<compile_context>
chip_gen: v7x
topology: tpu7x:2x2x1
jax: 0.10.0
libtpu: 0.0.40
codegen_flags: <defaults>
</compile_context>

<pallas_src>
import functools
import math

import jax
import jax.numpy as jnp
from jax import lax
from jax.experimental import pallas as pl
from jax.experimental.pallas import tpu as pltpu


def _transformer_block_kernel(x_ref, mconv_ref, bconv_ref, mlin_ref, blin_ref,
                              mqkv_ref, bqkv_ref, mo_ref, bo_ref, mff_ref,
                              out_ref, x_scr, o_scr, *, C, num_heads, B_blk, S):
    f32 = jnp.float32
    bf16 = jnp.bfloat16
    hd = C // num_heads
    M = B_blk * S
    layer = pl.program_id(1)

    # ---- grid step l == 0: Conv1x1 (BN folded) + SiLU, then p + Linear(p) -----
    @pl.when(layer == 0)
    def _():
        xin = x_ref[...].reshape(M, x_ref.shape[-1])              # bf16, lane-dense
        z = jnp.dot(xin, mconv_ref[...], preferred_element_type=f32) + bconv_ref[...]
        a = z * pl.reciprocal(1.0 + jnp.exp(-z), approx=True)     # SiLU, EUP recip
        x0 = a + jnp.dot(a.astype(bf16), mlin_ref[...],
                         preferred_element_type=f32) + blin_ref[...]
        x_scr[...] = x0

    # ---- one TransformerLayer per grid step along the "arbitrary" axis --------
    x = x_scr[...]                                                # (M, C) f32 carry

    # Fused q/k/v projection: layer q/k/v Linears folded with MHA in_proj and the
    # 1/sqrt(hd) scale folded into the q columns (wrapper-side).
    qkv = (jnp.dot(x.astype(bf16), mqkv_ref[0], preferred_element_type=f32)
           + bqkv_ref[0]).astype(bf16)                            # (M, 3C)

    # Per-(batch, head) attention; each head's output lands in its lane range of
    # o_scr so the out-projection is a single (M,C)@(C,C) MXU matmul (K=C).
    for b in range(B_blk):
        r0 = b * S
        for h in range(num_heads):
            lo = h * hd
            qh = qkv[r0:r0 + S, lo:lo + hd]
            kh = qkv[r0:r0 + S, C + lo:C + lo + hd]
            vh = qkv[r0:r0 + S, 2 * C + lo:2 * C + lo + hd]
            s = lax.dot_general(qh, kh, (((1,), (1,)), ((), ())),
                                preferred_element_type=f32)       # (S, S) = q @ k^T
            e = jnp.exp(s - jnp.max(s, axis=-1, keepdims=True))
            inv = pl.reciprocal(jnp.sum(e, axis=-1, keepdims=True), approx=True)
            oh = jnp.dot(e.astype(bf16), vh, preferred_element_type=f32) * inv
            o_scr[r0:r0 + S, lo:lo + hd] = oh.astype(bf16)

    x = x + jnp.dot(o_scr[...], mo_ref[0], preferred_element_type=f32) + bo_ref[0]
    # fc2(fc1(x)) has no nonlinearity in between -> folded to one (C,C) matmul.
    x = x + jnp.dot(x.astype(bf16), mff_ref[0], preferred_element_type=f32)
    x_scr[...] = x

    @pl.when(layer == pl.num_programs(1) - 1)
    def _():
        out_ref[...] = x.reshape(B_blk, S, C).astype(out_ref.dtype)


def _pick_batch_block(B, S):
    # Smallest divisor of B that gives >= 256 matmul rows per grid step
    # (fills v6e/v7x MXU; v5e only needs 128); cap the row block at 1024.
    best = 1
    for d in range(1, B + 1):
        if B % d != 0 or d * S > 1024:
            continue
        best = d
        if d * S >= 256:
            break
    return best


def transformer_block_pallas(x_nchw, params):
    """x_nchw: (B, c1, W, H) float32 -> (B, c2, W, H) float32 (eval-mode BN)."""
    B, C1, Wd, Hd = x_nchw.shape
    C = params["conv_w"].shape[0]
    S = Wd * Hd
    L = params["num_layers"]
    H = params["num_heads"]
    assert C % 128 == 0 and S % 8 == 0 and C % H == 0, (C, S, H)
    hd = C // H
    f32, bf16 = jnp.float32, jnp.bfloat16
    mm = functools.partial(jnp.matmul, precision=lax.Precision.HIGHEST)

    # NCHW -> (B, S, c1); S enumerates spatial positions exactly like x.flatten(2).
    # Zero-pad channels up to a multiple of 128 (zero rows in mconv keep it exact)
    # so the kernel input is lane-dense and the conv contraction has K >= 128.
    C1p = ((C1 + 127) // 128) * 128
    x_seq = jnp.transpose(x_nchw, (0, 2, 3, 1)).reshape(B, S, C1).astype(f32)
    x_seq = jnp.pad(x_seq, ((0, 0), (0, 0), (0, C1p - C1))).astype(bf16)

    # Fold BatchNorm (running stats / eval semantics) into the bias-free 1x1 conv.
    bn_scale = params["bn_gamma"] / jnp.sqrt(params["bn_var"] + 1e-5)
    mconv = (params["conv_w"] * bn_scale[:, None]).T                          # (C1, C)
    mconv = jnp.pad(mconv, ((0, C1p - C1), (0, 0))).astype(bf16)              # (C1p, C)
    bconv = (params["bn_beta"] - params["bn_mean"] * bn_scale).reshape(1, C).astype(f32)

    mlin = params["lin_w"].T.astype(bf16)                                     # (C, C)
    blin = params["lin_b"].reshape(1, C).astype(f32)

    scale = 1.0 / math.sqrt(hd)
    mqkv, bqkv, mo, bo, mff = [], [], [], [], []
    for lw in params["layers"]:
        in_w, in_b = lw["in_w"], lw["in_b"]
        mq = mm(in_w[0 * C:1 * C], lw["wq"]).T * scale        # scale folded into q
        mk = mm(in_w[1 * C:2 * C], lw["wk"]).T
        mv = mm(in_w[2 * C:3 * C], lw["wv"]).T
        mqkv.append(jnp.concatenate([mq, mk, mv], axis=1))    # (C, 3C)
        bqkv.append(jnp.concatenate([in_b[:C] * scale, in_b[C:]]).reshape(1, 3 * C))
        mo.append(lw["out_w"].T)
        bo.append(lw["out_b"].reshape(1, C))
        mff.append(mm(lw["w2"], lw["w1"]).T)                  # fc2 o fc1 folded

    mqkv = jnp.stack(mqkv).astype(bf16)       # (L, C, 3C)
    bqkv = jnp.stack(bqkv).astype(f32)        # (L, 1, 3C)
    mo = jnp.stack(mo).astype(bf16)           # (L, C, C)
    bo = jnp.stack(bo).astype(f32)            # (L, 1, C)
    mff = jnp.stack(mff).astype(bf16)         # (L, C, C)

    B_blk = _pick_batch_block(B, S)
    nb = B // B_blk
    M = B_blk * S

    def const_spec(shape):                    # resident across the whole grid
        nd = len(shape)

        def imap(n, l):
            return (0,) * nd
        return pl.BlockSpec(shape, imap)

    def layer_spec(shape):                    # one layer's weights per l step
        nd = len(shape)

        def imap(n, l):
            return (l,) + (0,) * (nd - 1)
        return pl.BlockSpec((1,) + tuple(shape[1:]), imap)

    in_specs = [
        pl.BlockSpec((B_blk, S, C1p), lambda n, l: (n, 0, 0)),
        const_spec(mconv.shape), const_spec(bconv.shape),
        const_spec(mlin.shape), const_spec(blin.shape),
        layer_spec(mqkv.shape), layer_spec(bqkv.shape),
        layer_spec(mo.shape), layer_spec(bo.shape), layer_spec(mff.shape),
    ]

    flops = (2 * B * S * (C1p * C + C * C)
             + L * (2 * B * S * C * 3 * C + 4 * B * H * S * S * hd
                    + 4 * B * S * C * C))
    transcendentals = B * S * C + L * B * H * S * S
    bytes_accessed = (x_seq.size * 2 + B * S * C * 4
                      + (mconv.size + mlin.size + mqkv.size + mo.size + mff.size) * 2
                      + (bconv.size + blin.size + bqkv.size + bo.size) * 4)

    out = pl.pallas_call(
        functools.partial(_transformer_block_kernel,
                          C=C, num_heads=H, B_blk=B_blk, S=S),
        out_shape=jax.ShapeDtypeStruct((B, S, C), f32),
        grid=(nb, L),
        in_specs=in_specs,
        out_specs=pl.BlockSpec((B_blk, S, C), lambda n, l: (n, 0, 0)),
        scratch_shapes=[pltpu.VMEM((M, C), f32),      # activation carried over l
                        pltpu.VMEM((M, C), bf16)],    # per-head attention outputs
        compiler_params=pltpu.CompilerParams(
            dimension_semantics=("parallel", "arbitrary")),
        cost_estimate=pl.CostEstimate(flops=int(flops),
                                      transcendentals=int(transcendentals),
                                      bytes_accessed=int(bytes_accessed)),
    )(x_seq, mconv, bconv, mlin, blin, mqkv, bqkv, mo, bo, mff)

    # (B, S, C) -> (B, C, W, H), matching .permute(1, 2, 0).reshape(b, c2, w, h).
    return jnp.transpose(out.reshape(B, Wd, Hd, C), (0, 3, 1, 2))


# ------------------------- pure-JAX reference (for sanity) -----------------------
def transformer_block_reference(x_nchw, params):
    """Op-for-op PyTorch semantics (eval-mode BN, unfused projections)."""
    B, C1, Wd, Hd = x_nchw.shape
    C = params["conv_w"].shape[0]
    S = Wd * Hd
    H = params["num_heads"]
    hd = C // H
    hp = lax.Precision.HIGHEST
    f32 = jnp.float32

    # Conv(1x1) + BatchNorm2d(eval) + SiLU
    x = jnp.einsum("bcwh,oc->bowh", x_nchw.astype(f32), params["conv_w"], precision=hp)
    inv = params["bn_gamma"] / jnp.sqrt(params["bn_var"] + 1e-5)
    x = (x - params["bn_mean"][None, :, None, None]) * inv[None, :, None, None] \
        + params["bn_beta"][None, :, None, None]
    x = x * jax.nn.sigmoid(x)

    # p = x.flatten(2).permute(2, 0, 1); y = p + linear(p)
    p = x.reshape(B, C, S).transpose(2, 0, 1)                     # (S, B, C)
    y = p + (jnp.einsum("sbc,oc->sbo", p, params["lin_w"], precision=hp)
             + params["lin_b"])

    for lw in params["layers"]:
        q0 = jnp.einsum("sbc,oc->sbo", y, lw["wq"], precision=hp)
        k0 = jnp.einsum("sbc,oc->sbo", y, lw["wk"], precision=hp)
        v0 = jnp.einsum("sbc,oc->sbo", y, lw["wv"], precision=hp)
        in_w, in_b = lw["in_w"], lw["in_b"]
        qp = jnp.einsum("sbc,oc->sbo", q0, in_w[0 * C:1 * C], precision=hp) + in_b[0 * C:1 * C]
        kp = jnp.einsum("sbc,oc->sbo", k0, in_w[1 * C:2 * C], precision=hp) + in_b[1 * C:2 * C]
        vp = jnp.einsum("sbc,oc->sbo", v0, in_w[2 * C:3 * C], precision=hp) + in_b[2 * C:3 * C]

        qh = qp.reshape(S, B, H, hd)
        kh = kp.reshape(S, B, H, hd)
        vh = vp.reshape(S, B, H, hd)
        scores = jnp.einsum("qbhd,kbhd->bhqk", qh, kh, precision=hp) / math.sqrt(hd)
        attn = jax.nn.softmax(scores, axis=-1)
        o = jnp.einsum("bhqk,kbhd->qbhd", attn, vh, precision=hp).reshape(S, B, C)
        o = jnp.einsum("sbc,oc->sbo", o, lw["out_w"], precision=hp) + lw["out_b"]
        y = o + y

        ff = jnp.einsum("sbc,oc->sbo", y, lw["w1"], precision=hp)
        ff = jnp.einsum("sbc,oc->sbo", ff, lw["w2"], precision=hp)
        y = ff + y

    return y.transpose(1, 2, 0).reshape(B, C, Wd, Hd)


def init_params(key, c1, c2, num_heads, num_layers):
    keys = jax.random.split(key, 8 + num_layers)

    def lin_w(k, out_d, in_d):
        return jax.random.normal(k, (out_d, in_d), jnp.float32) / math.sqrt(in_d)

    layers = []
    for l in range(num_layers):
        lk = jax.random.split(keys[8 + l], 9)
        layers.append({
            "wq": lin_w(lk[0], c2, c2),
            "wk": lin_w(lk[1], c2, c2),
            "wv": lin_w(lk[2], c2, c2),
            "in_w": lin_w(lk[3], 3 * c2, c2),
            "in_b": 0.01 * jax.random.normal(lk[4], (3 * c2,), jnp.float32),
            "out_w": lin_w(lk[5], c2, c2),
            "out_b": 0.01 * jax.random.normal(lk[6], (c2,), jnp.float32),
            "w1": lin_w(lk[7], c2, c2),
            "w2": lin_w(lk[8], c2, c2),
        })

    return {
        "conv_w": lin_w(keys[0], c2, c1),
        "bn_gamma": 1.0 + 0.1 * jax.random.normal(keys[1], (c2,), jnp.float32),
        "bn_beta": 0.05 * jax.random.normal(keys[2], (c2,), jnp.float32),
        "bn_mean": 0.1 * jax.random.normal(keys[3], (c2,), jnp.float32),
        "bn_var": jnp.abs(1.0 + 0.1 * jax.random.normal(keys[4], (c2,), jnp.float32)),
        "lin_w": lin_w(keys[5], c2, c2),
        "lin_b": 0.01 * jax.random.normal(keys[6], (c2,), jnp.float32),
        "layers": layers,
        "num_heads": num_heads,
        "num_layers": num_layers,
    }


if __name__ == "__main__":
    key = jax.random.PRNGKey(0)
    kx, kp = jax.random.split(key)

    # c1 != c2 so the Conv path is exercised; c2 = 128 keeps activations lane-dense;
    # 16x16 spatial -> S = 256 rows per batch element (full MXU row fill).
    B, C1, Wd, Hd = 2, 4, 16, 16
    C2, NUM_HEADS, NUM_LAYERS = 128, 4, 2

    x = jax.random.normal(kx, (B, C1, Wd, Hd), jnp.float32)
    params = init_params(kp, C1, C2, NUM_HEADS, NUM_LAYERS)

    out = jax.block_until_ready(transformer_block_pallas(x, params))
    ref = jax.block_until_ready(transformer_block_reference(x, params))

    assert out.shape == ref.shape == (B, C2, Wd, Hd), (out.shape, ref.shape)
    max_abs = float(jnp.max(jnp.abs(out - ref)))
    rel_fro = float(jnp.linalg.norm(out - ref) / jnp.linalg.norm(ref))
    # Tolerances sized for bf16 matmul operands (f32 accumulation) vs the
    # HIGHEST-precision f32 reference.
    if not (rel_fro < 2e-2 and max_abs < 0.5):
        raise AssertionError(
            f"Pallas TransformerBlock mismatch vs reference: "
            f"rel_fro={rel_fro:.3e}, max_abs={max_abs:.3e}")

    print("KERNEL_OK")
</pallas_src>

<mosaic_0001>
module attributes {stable_mosaic.version = 11 : i64} {
  func.func @_transformer_block_kernel(%arg0: i32, %arg1: i32, %arg2: memref<1x256x128xbf16, #tpu.memory_space<vmem>>, %arg3: memref<128x128xbf16, #tpu.memory_space<vmem>>, %arg4: memref<1x128xf32, #tpu.memory_space<vmem>>, %arg5: memref<128x128xbf16, #tpu.memory_space<vmem>>, %arg6: memref<1x128xf32, #tpu.memory_space<vmem>>, %arg7: memref<1x128x384xbf16, #tpu.memory_space<vmem>>, %arg8: memref<1x1x384xf32, #tpu.memory_space<vmem>>, %arg9: memref<1x128x128xbf16, #tpu.memory_space<vmem>>, %arg10: memref<1x1x128xf32, #tpu.memory_space<vmem>>, %arg11: memref<1x128x128xbf16, #tpu.memory_space<vmem>>, %arg12: memref<1x256x128xf32, #tpu.memory_space<vmem>>, %arg13: memref<256x128xf32, #tpu.memory_space<vmem>>, %arg14: memref<256x128xbf16, #tpu.memory_space<vmem>>) attributes {dimension_semantics = [#tpu.dimension_semantics<parallel>, #tpu.dimension_semantics<arbitrary>], iteration_bounds = array<i64: 2, 2>, scalar_prefetch = 0 : i64, scratch_operands = 2 : i64, tpu.core_type = #tpu.core_type<tc>, window_params = [{transform_indices = @transform_0, window_bounds = array<i64: 1, 256, 128>}, {pipeline_mode = #tpu.pipeline_mode<synchronous>, transform_indices = @transform_1, window_bounds = array<i64: 128, 128>}, {pipeline_mode = #tpu.pipeline_mode<synchronous>, transform_indices = @transform_2, window_bounds = array<i64: 1, 128>}, {pipeline_mode = #tpu.pipeline_mode<synchronous>, transform_indices = @transform_3, window_bounds = array<i64: 128, 128>}, {pipeline_mode = #tpu.pipeline_mode<synchronous>, transform_indices = @transform_4, window_bounds = array<i64: 1, 128>}, {transform_indices = @transform_5, window_bounds = array<i64: 1, 128, 384>}, {transform_indices = @transform_6, window_bounds = array<i64: 1, 1, 384>}, {transform_indices = @transform_7, window_bounds = array<i64: 1, 128, 128>}, {transform_indices = @transform_8, window_bounds = array<i64: 1, 1, 128>}, {transform_indices = @transform_9, window_bounds = array<i64: 1, 128, 128>}, {transform_indices = @transform_10, window_bounds = array<i64: 1, 256, 128>}]} {
    %c0_i32 = arith.constant 0 : i32
    %0 = arith.cmpi eq, %arg1, %c0_i32 : i32
    %1 = arith.extui %0 : i1 to i32
    %c0_i32_0 = arith.constant 0 : i32
    %2 = arith.cmpi ne, %1, %c0_i32_0 : i32
    scf.if %2 {
      %c0_45 = arith.constant 0 : index
      %c0_46 = arith.constant 0 : index
      %c0_47 = arith.constant 0 : index
      %103 = vector.load %arg2[%c0_45, %c0_46, %c0_47] : memref<1x256x128xbf16, #tpu.memory_space<vmem>>, vector<1x256x128xbf16>
      %104 = vector.shape_cast %103 : vector<1x256x128xbf16> to vector<256x128xbf16>
      %c0_48 = arith.constant 0 : index
      %c0_49 = arith.constant 0 : index
      %105 = vector.load %arg3[%c0_48, %c0_49] : memref<128x128xbf16, #tpu.memory_space<vmem>>, vector<128x128xbf16>
      %cst_50 = arith.constant dense<0.000000e+00> : vector<256x128xf32>
      %106 = tpu.matmul %104, %105, %cst_50 {dimension_numbers = #tpu.dot_dimension_numbers<[1], [0], [0], [1], [0, 0, 1, 1], [], []>} : vector<256x128xbf16>, vector<128x128xbf16>, vector<256x128xf32> -> vector<256x128xf32>
      %c0_51 = arith.constant 0 : index
      %c0_52 = arith.constant 0 : index
      %107 = vector.load %arg4[%c0_51, %c0_52] : memref<1x128xf32, #tpu.memory_space<vmem>>, vector<1x128xf32>
      %108 = vector.broadcast %107 : vector<1x128xf32> to vector<256x128xf32>
      %109 = arith.addf %106, %108 : vector<256x128xf32>
      %cst_53 = arith.constant 0.000000e+00 : f32
      %110 = vector.broadcast %cst_53 : f32 to vector<256x128xf32>
      %111 = arith.subf %110, %109 : vector<256x128xf32>
      %112 = math.exp %111 : vector<256x128xf32>
      %cst_54 = arith.constant 1.000000e+00 : f32
      %113 = vector.broadcast %cst_54 : f32 to vector<256x128xf32>
      %114 = arith.addf %113, %112 : vector<256x128xf32>
      %115 = tpu.reciprocal %114 {approx = true} : vector<256x128xf32> -> vector<256x128xf32>
      %116 = arith.mulf %109, %115 : vector<256x128xf32>
      %117 = arith.truncf %116 : vector<256x128xf32> to vector<256x128xbf16>
      %c0_55 = arith.constant 0 : index
      %c0_56 = arith.constant 0 : index
      %118 = vector.load %arg5[%c0_55, %c0_56] : memref<128x128xbf16, #tpu.memory_space<vmem>>, vector<128x128xbf16>
      %cst_57 = arith.constant dense<0.000000e+00> : vector<256x128xf32>
      %119 = tpu.matmul %117, %118, %cst_57 {dimension_numbers = #tpu.dot_dimension_numbers<[1], [0], [0], [1], [0, 0, 1, 1], [], []>} : vector<256x128xbf16>, vector<128x128xbf16>, vector<256x128xf32> -> vector<256x128xf32>
      %120 = arith.addf %116, %119 : vector<256x128xf32>
      %c0_58 = arith.constant 0 : index
      %c0_59 = arith.constant 0 : index
      %121 = vector.load %arg6[%c0_58, %c0_59] : memref<1x128xf32, #tpu.memory_space<vmem>>, vector<1x128xf32>
      %122 = vector.broadcast %121 : vector<1x128xf32> to vector<256x128xf32>
      %123 = arith.addf %120, %122 : vector<256x128xf32>
      %c0_60 = arith.constant 0 : index
      %c0_61 = arith.constant 0 : index
      %124 = vector.load %arg13[%c0_60, %c0_61] : memref<256x128xf32, #tpu.memory_space<vmem>>, vector<256x128xf32>
      tpu.vector_store %arg13[%c0_60, %c0_61], %123 {strides = array<i32>} : memref<256x128xf32, #tpu.memory_space<vmem>>, vector<256x128xf32>,
    } else {
    }
    %c0 = arith.constant 0 : index
    %c0_1 = arith.constant 0 : index
    %3 = vector.load %arg13[%c0, %c0_1] : memref<256x128xf32, #tpu.memory_space<vmem>>, vector<256x128xf32>
    %4 = arith.truncf %3 : vector<256x128xf32> to vector<256x128xbf16>
    %c0_2 = arith.constant 0 : index
    %c0_3 = arith.constant 0 : index
    %c0_4 = arith.constant 0 : index
    %5 = vector.load %arg7[%c0_2, %c0_3, %c0_4] : memref<1x128x384xbf16, #tpu.memory_space<vmem>>, vector<1x128x384xbf16>
    %6 = vector.shape_cast %5 : vector<1x128x384xbf16> to vector<128x384xbf16>
    %cst = arith.constant dense<0.000000e+00> : vector<256x384xf32>
    %7 = tpu.matmul %4, %6, %cst {dimension_numbers = #tpu.dot_dimension_numbers<[1], [0], [0], [1], [0, 0, 1, 1], [], []>} : vector<256x128xbf16>, vector<128x384xbf16>, vector<256x384xf32> -> vector<256x384xf32>
    %c0_5 = arith.constant 0 : index
    %c0_6 = arith.constant 0 : index
    %c0_7 = arith.constant 0 : index
    %8 = vector.load %arg8[%c0_5, %c0_6, %c0_7] : memref<1x1x384xf32, #tpu.memory_space<vmem>>, vector<1x1x384xf32>
    %9 = vector.shape_cast %8 : vector<1x1x384xf32> to vector<1x384xf32>
    %10 = vector.broadcast %9 : vector<1x384xf32> to vector<256x384xf32>
    %11 = arith.addf %7, %10 : vector<256x384xf32>
    %12 = arith.truncf %11 : vector<256x384xf32> to vector<256x384xbf16>
    %13 = vector.extract_strided_slice %12 {offsets = [0, 0], sizes = [256, 32], strides = [1, 1]} : vector<256x384xbf16> to vector<256x32xbf16>
    %14 = vector.extract_strided_slice %12 {offsets = [0, 128], sizes = [256, 32], strides = [1, 1]} : vector<256x384xbf16> to vector<256x32xbf16>
    %15 = vector.extract_strided_slice %12 {offsets = [0, 256], sizes = [256, 32], strides = [1, 1]} : vector<256x384xbf16> to vector<256x32xbf16>
    %cst_8 = arith.constant dense<0.000000e+00> : vector<256x256xf32>
    %16 = tpu.matmul %13, %14, %cst_8 {dimension_numbers = #tpu.dot_dimension_numbers<[1], [1], [0], [0], [0, 0, 1, 0], [], []>} : vector<256x32xbf16>, vector<256x32xbf16>, vector<256x256xf32> -> vector<256x256xf32>
    %cst_9 = arith.constant dense<0xFF800000> : vector<256xf32>
    %17 = vector.multi_reduction <maximumf>, %16, %cst_9 [1] : vector<256x256xf32> to vector<256xf32>
    %18 = vector.shape_cast %17 : vector<256xf32> to vector<256x1xf32>
    %19 = vector.broadcast %18 : vector<256x1xf32> to vector<256x256xf32>
    %20 = arith.subf %16, %19 : vector<256x256xf32>
    %21 = math.exp %20 : vector<256x256xf32>
    %cst_10 = arith.constant dense<0.000000e+00> : vector<256xf32>
    %22 = vector.multi_reduction <add>, %21, %cst_10 [1] : vector<256x256xf32> to vector<256xf32>
    %23 = vector.shape_cast %22 : vector<256xf32> to vector<256x1xf32>
    %24 = tpu.reciprocal %23 {approx = true} : vector<256x1xf32> -> vector<256x1xf32>
    %25 = arith.truncf %21 : vector<256x256xf32> to vector<256x256xbf16>
    %cst_11 = arith.constant dense<0.000000e+00> : vector<256x32xf32>
    %26 = tpu.matmul %25, %15, %cst_11 {dimension_numbers = #tpu.dot_dimension_numbers<[1], [0], [0], [1], [0, 0, 1, 1], [], []>} : vector<256x256xbf16>, vector<256x32xbf16>, vector<256x32xf32> -> vector<256x32xf32>
    %27 = vector.broadcast %24 : vector<256x1xf32> to vector<256x32xf32>
    %28 = arith.mulf %26, %27 : vector<256x32xf32>
    %29 = arith.truncf %28 : vector<256x32xf32> to vector<256x32xbf16>
    %c0_12 = arith.constant 0 : index
    %c0_13 = arith.constant 0 : index
    %30 = vector.load %arg14[%c0_12, %c0_13] : memref<256x128xbf16, #tpu.memory_space<vmem>>, vector<256x32xbf16>
    tpu.vector_store %arg14[%c0_12, %c0_13], %29 {strides = array<i32>} : memref<256x128xbf16, #tpu.memory_space<vmem>>, vector<256x32xbf16>,
    %31 = vector.extract_strided_slice %12 {offsets = [0, 32], sizes = [256, 32], strides = [1, 1]} : vector<256x384xbf16> to vector<256x32xbf16>
    %32 = vector.extract_strided_slice %12 {offsets = [0, 160], sizes = [256, 32], strides = [1, 1]} : vector<256x384xbf16> to vector<256x32xbf16>
    %33 = vector.extract_strided_slice %12 {offsets = [0, 288], sizes = [256, 32], strides = [1, 1]} : vector<256x384xbf16> to vector<256x32xbf16>
    %cst_14 = arith.constant dense<0.000000e+00> : vector<256x256xf32>
    %34 = tpu.matmul %31, %32, %cst_14 {dimension_numbers = #tpu.dot_dimension_numbers<[1], [1], [0], [0], [0, 0, 1, 0], [], []>} : vector<256x32xbf16>, vector<256x32xbf16>, vector<256x256xf32> -> vector<256x256xf32>
    %cst_15 = arith.constant dense<0xFF800000> : vector<256xf32>
    %35 = vector.multi_reduction <maximumf>, %34, %cst_15 [1] : vector<256x256xf32> to vector<256xf32>
    %36 = vector.shape_cast %35 : vector<256xf32> to vector<256x1xf32>
    %37 = vector.broadcast %36 : vector<256x1xf32> to vector<256x256xf32>
    %38 = arith.subf %34, %37 : vector<256x256xf32>
    %39 = math.exp %38 : vector<256x256xf32>
    %cst_16 = arith.constant dense<0.000000e+00> : vector<256xf32>
    %40 = vector.multi_reduction <add>, %39, %cst_16 [1] : vector<256x256xf32> to vector<256xf32>
    %41 = vector.shape_cast %40 : vector<256xf32> to vector<256x1xf32>
    %42 = tpu.reciprocal %41 {approx = true} : vector<256x1xf32> -> vector<256x1xf32>
    %43 = arith.truncf %39 : vector<256x256xf32> to vector<256x256xbf16>
    %cst_17 = arith.constant dense<0.000000e+00> : vector<256x32xf32>
    %44 = tpu.matmul %43, %33, %cst_17 {dimension_numbers = #tpu.dot_dimension_numbers<[1], [0], [0], [1], [0, 0, 1, 1], [], []>} : vector<256x256xbf16>, vector<256x32xbf16>, vector<256x32xf32> -> vector<256x32xf32>
    %45 = vector.broadcast %42 : vector<256x1xf32> to vector<256x32xf32>
    %46 = arith.mulf %44, %45 : vector<256x32xf32>
    %47 = arith.truncf %46 : vector<256x32xf32> to vector<256x32xbf16>
    %c0_18 = arith.constant 0 : index
    %c32 = arith.constant 32 : index
    %48 = vector.load %arg14[%c0_18, %c32] : memref<256x128xbf16, #tpu.memory_space<vmem>>, vector<256x32xbf16>
    tpu.vector_store %arg14[%c0_18, %c32], %47 {strides = array<i32>} : memref<256x128xbf16, #tpu.memory_space<vmem>>, vector<256x32xbf16>,
    %49 = vector.extract_strided_slice %12 {offsets = [0, 64], sizes = [256, 32], strides = [1, 1]} : vector<256x384xbf16> to vector<256x32xbf16>
    %50 = vector.extract_strided_slice %12 {offsets = [0, 192], sizes = [256, 32], strides = [1, 1]} : vector<256x384xbf16> to vector<256x32xbf16>
    %51 = vector.extract_strided_slice %12 {offsets = [0, 320], sizes = [256, 32], strides = [1, 1]} : vector<256x384xbf16> to vector<256x32xbf16>
    %cst_19 = arith.constant dense<0.000000e+00> : vector<256x256xf32>
    %52 = tpu.matmul %49, %50, %cst_19 {dimension_numbers = #tpu.dot_dimension_numbers<[1], [1], [0], [0], [0, 0, 1, 0], [], []>} : vector<256x32xbf16>, vector<256x32xbf16>, vector<256x256xf32> -> vector<256x256xf32>
    %cst_20 = arith.constant dense<0xFF800000> : vector<256xf32>
    %53 = vector.multi_reduction <maximumf>, %52, %cst_20 [1] : vector<256x256xf32> to vector<256xf32>
    %54 = vector.shape_cast %53 : vector<256xf32> to vector<256x1xf32>
    %55 = vector.broadcast %54 : vector<256x1xf32> to vector<256x256xf32>
    %56 = arith.subf %52, %55 : vector<256x256xf32>
    %57 = math.exp %56 : vector<256x256xf32>
    %cst_21 = arith.constant dense<0.000000e+00> : vector<256xf32>
    %58 = vector.multi_reduction <add>, %57, %cst_21 [1] : vector<256x256xf32> to vector<256xf32>
    %59 = vector.shape_cast %58 : vector<256xf32> to vector<256x1xf32>
    %60 = tpu.reciprocal %59 {approx = true} : vector<256x1xf32> -> vector<256x1xf32>
    %61 = arith.truncf %57 : vector<256x256xf32> to vector<256x256xbf16>
    %cst_22 = arith.constant dense<0.000000e+00> : vector<256x32xf32>
    %62 = tpu.matmul %61, %51, %cst_22 {dimension_numbers = #tpu.dot_dimension_numbers<[1], [0], [0], [1], [0, 0, 1, 1], [], []>} : vector<256x256xbf16>, vector<256x32xbf16>, vector<256x32xf32> -> vector<256x32xf32>
    %63 = vector.broadcast %60 : vector<256x1xf32> to vector<256x32xf32>
    %64 = arith.mulf %62, %63 : vector<256x32xf32>
    %65 = arith.truncf %64 : vector<256x32xf32> to vector<256x32xbf16>
    %c0_23 = arith.constant 0 : index
    %c64 = arith.constant 64 : index
    %66 = vector.load %arg14[%c0_23, %c64] : memref<256x128xbf16, #tpu.memory_space<vmem>>, vector<256x32xbf16>
    tpu.vector_store %arg14[%c0_23, %c64], %65 {strides = array<i32>} : memref<256x128xbf16, #tpu.memory_space<vmem>>, vector<256x32xbf16>,
    %67 = vector.extract_strided_slice %12 {offsets = [0, 96], sizes = [256, 32], strides = [1, 1]} : vector<256x384xbf16> to vector<256x32xbf16>
    %68 = vector.extract_strided_slice %12 {offsets = [0, 224], sizes = [256, 32], strides = [1, 1]} : vector<256x384xbf16> to vector<256x32xbf16>
    %69 = vector.extract_strided_slice %12 {offsets = [0, 352], sizes = [256, 32], strides = [1, 1]} : vector<256x384xbf16> to vector<256x32xbf16>
    %cst_24 = arith.constant dense<0.000000e+00> : vector<256x256xf32>
    %70 = tpu.matmul %67, %68, %cst_24 {dimension_numbers = #tpu.dot_dimension_numbers<[1], [1], [0], [0], [0, 0, 1, 0], [], []>} : vector<256x32xbf16>, vector<256x32xbf16>, vector<256x256xf32> -> vector<256x256xf32>
    %cst_25 = arith.constant dense<0xFF800000> : vector<256xf32>
    %71 = vector.multi_reduction <maximumf>, %70, %cst_25 [1] : vector<256x256xf32> to vector<256xf32>
    %72 = vector.shape_cast %71 : vector<256xf32> to vector<256x1xf32>
    %73 = vector.broadcast %72 : vector<256x1xf32> to vector<256x256xf32>
    %74 = arith.subf %70, %73 : vector<256x256xf32>
    %75 = math.exp %74 : vector<256x256xf32>
    %cst_26 = arith.constant dense<0.000000e+00> : vector<256xf32>
    %76 = vector.multi_reduction <add>, %75, %cst_26 [1] : vector<256x256xf32> to vector<256xf32>
    %77 = vector.shape_cast %76 : vector<256xf32> to vector<256x1xf32>
    %78 = tpu.reciprocal %77 {approx = true} : vector<256x1xf32> -> vector<256x1xf32>
    %79 = arith.truncf %75 : vector<256x256xf32> to vector<256x256xbf16>
    %cst_27 = arith.constant dense<0.000000e+00> : vector<256x32xf32>
    %80 = tpu.matmul %79, %69, %cst_27 {dimension_numbers = #tpu.dot_dimension_numbers<[1], [0], [0], [1], [0, 0, 1, 1], [], []>} : vector<256x256xbf16>, vector<256x32xbf16>, vector<256x32xf32> -> vector<256x32xf32>
    %81 = vector.broadcast %78 : vector<256x1xf32> to vector<256x32xf32>
    %82 = arith.mulf %80, %81 : vector<256x32xf32>
    %83 = arith.truncf %82 : vector<256x32xf32> to vector<256x32xbf16>
    %c0_28 = arith.constant 0 : index
    %c96 = arith.constant 96 : index
    %84 = vector.load %arg14[%c0_28, %c96] : memref<256x128xbf16, #tpu.memory_space<vmem>>, vector<256x32xbf16>
    tpu.vector_store %arg14[%c0_28, %c96], %83 {strides = array<i32>} : memref<256x128xbf16, #tpu.memory_space<vmem>>, vector<256x32xbf16>,
    %c0_29 = arith.constant 0 : index
    %c0_30 = arith.constant 0 : index
    %85 = vector.load %arg14[%c0_29, %c0_30] : memref<256x128xbf16, #tpu.memory_space<vmem>>, vector<256x128xbf16>
    %c0_31 = arith.constant 0 : index
    %c0_32 = arith.constant 0 : index
    %c0_33 = arith.constant 0 : index
    %86 = vector.load %arg9[%c0_31, %c0_32, %c0_33] : memref<1x128x128xbf16, #tpu.memory_space<vmem>>, vector<1x128x128xbf16>
    %87 = vector.shape_cast %86 : vector<1x128x128xbf16> to vector<128x128xbf16>
    %cst_34 = arith.constant dense<0.000000e+00> : vector<256x128xf32>
    %88 = tpu.matmul %85, %87, %cst_34 {dimension_numbers = #tpu.dot_dimension_numbers<[1], [0], [0], [1], [0, 0, 1, 1], [], []>} : vector<256x128xbf16>, vector<128x128xbf16>, vector<256x128xf32> -> vector<256x128xf32>
    %89 = arith.addf %3, %88 : vector<256x128xf32>
    %c0_35 = arith.constant 0 : index
    %c0_36 = arith.constant 0 : index
    %c0_37 = arith.constant 0 : index
    %90 = vector.load %arg10[%c0_35, %c0_36, %c0_37] : memref<1x1x128xf32, #tpu.memory_space<vmem>>, vector<1x1x128xf32>
    %91 = vector.shape_cast %90 : vector<1x1x128xf32> to vector<1x128xf32>
    %92 = vector.broadcast %91 : vector<1x128xf32> to vector<256x128xf32>
    %93 = arith.addf %89, %92 : vector<256x128xf32>
    %94 = arith.truncf %93 : vector<256x128xf32> to vector<256x128xbf16>
    %c0_38 = arith.constant 0 : index
    %c0_39 = arith.constant 0 : index
    %c0_40 = arith.constant 0 : index
    %95 = vector.load %arg11[%c0_38, %c0_39, %c0_40] : memref<1x128x128xbf16, #tpu.memory_space<vmem>>, vector<1x128x128xbf16>
    %96 = vector.shape_cast %95 : vector<1x128x128xbf16> to vector<128x128xbf16>
    %cst_41 = arith.constant dense<0.000000e+00> : vector<256x128xf32>
    %97 = tpu.matmul %94, %96, %cst_41 {dimension_numbers = #tpu.dot_dimension_numbers<[1], [0], [0], [1], [0, 0, 1, 1], [], []>} : vector<256x128xbf16>, vector<128x128xbf16>, vector<256x128xf32> -> vector<256x128xf32>
    %98 = arith.addf %93, %97 : vector<256x128xf32>
    %c0_42 = arith.constant 0 : index
    %c0_43 = arith.constant 0 : index
    %99 = vector.load %arg13[%c0_42, %c0_43] : memref<256x128xf32, #tpu.memory_space<vmem>>, vector<256x128xf32>
    tpu.vector_store %arg13[%c0_42, %c0_43], %98 {strides = array<i32>} : memref<256x128xf32, #tpu.memory_space<vmem>>, vector<256x128xf32>,
    %c1_i32 = arith.constant 1 : i32
    %100 = arith.cmpi eq, %arg1, %c1_i32 : i32
    %101 = arith.extui %100 : i1 to i32
    %c0_i32_44 = arith.constant 0 : i32
    %102 = arith.cmpi ne, %101, %c0_i32_44 : i32
    scf.if %102 {
      %103 = vector.shape_cast %98 : vector<256x128xf32> to vector<1x256x128xf32>
      %c0_45 = arith.constant 0 : index
      %c0_46 = arith.constant 0 : index
      %c0_47 = arith.constant 0 : index
      %104 = vector.load %arg12[%c0_45, %c0_46, %c0_47] : memref<1x256x128xf32, #tpu.memory_space<vmem>>, vector<1x256x128xf32>
      tpu.vector_store %arg12[%c0_45, %c0_46, %c0_47], %103 {strides = array<i32>} : memref<1x256x128xf32, #tpu.memory_space<vmem>>, vector<1x256x128xf32>,
    } else {
    }
    return
  }
  func.func @transform_0(%arg0: i32, %arg1: i32) -> (i32, i32, i32) {
    %c0_i32 = arith.constant 0 : i32
    %c0_i32_0 = arith.constant 0 : i32
    %c0_i32_1 = arith.constant 0 : i32
    return %arg0, %c0_i32, %c0_i32_0 : i32, i32, i32
  }
  func.func @transform_1(%arg0: i32, %arg1: i32) -> (i32, i32) {
    %c0_i32 = arith.constant 0 : i32
    %c0_i32_0 = arith.constant 0 : i32
    %c0_i32_1 = arith.constant 0 : i32
    return %c0_i32, %c0_i32_0 : i32, i32
  }
  func.func @transform_2(%arg0: i32, %arg1: i32) -> (i32, i32) {
    %c0_i32 = arith.constant 0 : i32
    %c0_i32_0 = arith.constant 0 : i32
    %c0_i32_1 = arith.constant 0 : i32
    return %c0_i32, %c0_i32_0 : i32, i32
  }
  func.func @transform_3(%arg0: i32, %arg1: i32) -> (i32, i32) {
    %c0_i32 = arith.constant 0 : i32
    %c0_i32_0 = arith.constant 0 : i32
    %c0_i32_1 = arith.constant 0 : i32
    return %c0_i32, %c0_i32_0 : i32, i32
  }
  func.func @transform_4(%arg0: i32, %arg1: i32) -> (i32, i32) {
    %c0_i32 = arith.constant 0 : i32
    %c0_i32_0 = arith.constant 0 : i32
    %c0_i32_1 = arith.constant 0 : i32
    return %c0_i32, %c0_i32_0 : i32, i32
  }
  func.func @transform_5(%arg0: i32, %arg1: i32) -> (i32, i32, i32) {
    %c0_i32 = arith.constant 0 : i32
    %c0_i32_0 = arith.constant 0 : i32
    %c0_i32_1 = arith.constant 0 : i32
    return %arg1, %c0_i32, %c0_i32_0 : i32, i32, i32
  }
  func.func @transform_6(%arg0: i32, %arg1: i32) -> (i32, i32, i32) {
    %c0_i32 = arith.constant 0 : i32
    %c0_i32_0 = arith.constant 0 : i32
    %c0_i32_1 = arith.constant 0 : i32
    return %arg1, %c0_i32, %c0_i32_0 : i32, i32, i32
  }
  func.func @transform_7(%arg0: i32, %arg1: i32) -> (i32, i32, i32) {
    %c0_i32 = arith.constant 0 : i32
    %c0_i32_0 = arith.constant 0 : i32
    %c0_i32_1 = arith.constant 0 : i32
    return %arg1, %c0_i32, %c0_i32_0 : i32, i32, i32
  }
  func.func @transform_8(%arg0: i32, %arg1: i32) -> (i32, i32, i32) {
    %c0_i32 = arith.constant 0 : i32
    %c0_i32_0 = arith.constant 0 : i32
    %c0_i32_1 = arith.constant 0 : i32
    return %arg1, %c0_i32, %c0_i32_0 : i32, i32, i32
  }
  func.func @transform_9(%arg0: i32, %arg1: i32) -> (i32, i32, i32) {
    %c0_i32 = arith.constant 0 : i32
    %c0_i32_0 = arith.constant 0 : i32
    %c0_i32_1 = arith.constant 0 : i32
    return %arg1, %c0_i32, %c0_i32_0 : i32, i32, i32
  }
  func.func @transform_10(%arg0: i32, %arg1: i32) -> (i32, i32, i32) {
    %c0_i32 = arith.constant 0 : i32
    %c0_i32_0 = arith.constant 0 : i32
    %c0_i32_1 = arith.constant 0 : i32
    return %arg0, %c0_i32, %c0_i32_0 : i32, i32, i32
  }
}

</mosaic_0001>

<llo_original>
// kernel: tpu_custom_call.1
$region0: #{tpu_custom_call.1}
  #allocation0 [shape = 'u32[]', space=smem, size = 0x4, offset = 0x4, fixed_abs, tag = 'smem constant byte address 0x4 - core index']
  #allocation1 [shape = 'u32[144,128]{1,0:T(1,128)}', space=vmem, size = 0x12000, scoped, tag = 'internal scratch']
  #allocation2 [shape = 'f32[256,128]{1,0:T(8,128)}', space=vmem, size = 0x20000, scoped, tag = 'scratch operand']
  #allocation3 [shape = 'bf16[256,128]{1,0:T(16,128)(2,1)}', space=vmem, size = 0x10000, scoped, tag = 'scratch operand']
  %s0 = inlined_call_operand.hbm [shape: bf16[2,256,128], index: 0, kind: input, shape index: {}]
  %s1 = inlined_call_operand.hbm [shape: bf16[128,128], index: 1, kind: input, shape index: {}]
  %s2 = inlined_call_operand.vmem [shape: f32[1,128], index: 2, kind: input, shape index: {}]
  %s3 = inlined_call_operand.hbm [shape: bf16[128,128], index: 3, kind: input, shape index: {}]
  %s4 = inlined_call_operand.vmem [shape: f32[1,128], index: 4, kind: input, shape index: {}]
  %s5 = inlined_call_operand.hbm [shape: bf16[2,128,384], index: 5, kind: input, shape index: {}]
  %s6 = inlined_call_operand.vmem [shape: f32[2,1,384], index: 6, kind: input, shape index: {}]
  %s7 = inlined_call_operand.hbm [shape: bf16[2,128,128], index: 7, kind: input, shape index: {}]
  %s8 = inlined_call_operand.vmem [shape: f32[2,1,128], index: 8, kind: input, shape index: {}]
  %s9 = inlined_call_operand.hbm [shape: bf16[2,128,128], index: 9, kind: input, shape index: {}]
  %s10 = inlined_call_operand.hbm [shape: f32[2,256,128], index: 10, kind: output, shape index: {}]
  %s11 = sld [smem:[#allocation0]]
  $region105: #{tpu_custom_call.1} parent=0
    _
  %s13 = ssub.s32 1, %s11
  %s14 = scalar_select 0, %s13, %s11
  $region1: #{tpu_custom_call.1} parent=0
    #allocation4 [shape = 'u8[131072]{0}', space=vmem, size = 0x20000, scoped, tag = 'input window, operand 0']
    #allocation5 [shape = 's32[2]{0}', space=sflag, size = 0x8, scoped, tag = 'scoped memory for tpu_custom_call.1']
    #allocation6 [shape = 's32[2]{0}', space=sflag, size = 0x8, scoped, tag = 'scoped memory for tpu_custom_call.1']
    #allocation7 [shape = 'u8[32768]{0}', space=vmem, size = 0x8000, scoped, tag = 'input window, operand 1, single buffered']
    #allocation8 [shape = 's32[1]{0}', space=sflag, size = 0x4, scoped, tag = 'scoped memory for tpu_custom_call.1']
    #allocation9 [shape = 'u8[32768]{0}', space=vmem, size = 0x8000, scoped, tag = 'input window, operand 3, single buffered']
    #allocation10 [shape = 'u8[196608]{0}', space=vmem, size = 0x30000, scoped, tag = 'input window, operand 5']
    #allocation11 [shape = 's32[2]{0}', space=sflag, size = 0x8, scoped, tag = 'scoped memory for tpu_custom_call.1']
    #allocation12 [shape = 'u8[65536]{0}', space=vmem, size = 0x10000, scoped, tag = 'input window, operand 7']
    #allocation13 [shape = 'u8[65536]{0}', space=vmem, size = 0x10000, scoped, tag = 'input window, operand 9']
    #allocation14 [shape = 's32[2]{0}', space=sflag, size = 0x8, scoped, tag = 'scoped memory for tpu_custom_call.1']
    #allocation15 [shape = 'u8[262144]{0}', space=vmem, size = 0x40000, scoped, tag = 'output window, operand 0']
    %15 = vsyncpa [#allocation5], 0
    %s16 = scalar_lea.sflag [#allocation5], 1
    %17 = vsyncpa %s16, 0
    %18 = vsyncpa [#allocation8], 0
    %19 = vsyncpa [#allocation11], 0
    %s20 = scalar_lea.sflag [#allocation11], 1
    %21 = vsyncpa %s20, 0
    %22 = vsyncpa [#allocation14], 0
    %s23 = scalar_lea.sflag [#allocation14], 1
    %24 = vsyncpa %s23, 0
    %25 = vsyncpa [#allocation6], 0
    %s26 = scalar_lea.sflag [#allocation6], 1
    %27 = vsyncpa %s26, 0
    loop: start=0, step=1, limit=6
    $region2: #{tpu_custom_call.1} parent=1 // loop_pre_header
      _
    $region3: #{tpu_custom_call.1} parent=1 // loop_header
      %s29 = sphi 0, %s33
      %p30 = scmp.ge.s32.totalorder %s29, 6
      %s36 = sphi 0, %s48
      %s37 = sphi 0, %s44
      %s38 = sphi 0, %s36
      %s39 = sphi 0, %s37
      %s40 = sphi 0, %s38
      %s41 = sphi 0, %s39
      %s51 = sphi 0, %s53
      %s54 = sphi 0, %s51
      %s55 = sphi 0, %s54
      %s71 = sphi 0, %s55
      %s75 = sphi 0, %s75
      %s77 = sphi 0, %s75
      %s78 = sphi 0, %s77
      %s92 = sphi 0, %s78
      %s96 = sphi 0, %s96
      %s98 = sphi 0, %s96
      %s99 = sphi 0, %s98
      %s113 = sphi 0, %s99
      %s117 = sphi 0, %s117
      %s119 = sphi 0, %s117
      %s120 = sphi 0, %s119
      %s134 = sphi 0, %s120
      %s138 = sphi 0, %s138
      %s140 = sphi 0, %s138
      %s141 = sphi 0, %s140
      %s155 = sphi 0, %s141
      %s161 = sphi 0, %s163
      %s164 = sphi 0, %s161
      %s165 = sphi 0, %s164
      %s181 = sphi 0, %s165
      %s187 = sphi 0, %s189
      %s190 = sphi 0, %s187
      %s191 = sphi 0, %s190
      %s207 = sphi 0, %s191
      %s213 = sphi 0, %s215
      %s216 = sphi 0, %s213
      %s217 = sphi 0, %s216
      %s233 = sphi 0, %s217
      %s239 = sphi 0, %s241
      %s242 = sphi 0, %s239
      %s243 = sphi 0, %s242
      %s259 = sphi 0, %s243
      %s265 = sphi 0, %s267
      %s268 = sphi 0, %s265
      %s269 = sphi 0, %s268
      %s285 = sphi 0, %s269
      %s291 = sphi 0, %s293
      %s294 = sphi 0, %s291
      %s295 = sphi 0, %s294
      %s311 = sphi 0, %s295
    $region4: #{tpu_custom_call.1} parent=1 // loop_header_branch
      %32 = sbr.rel (%p30) target = $region8
    $region5: #{tpu_custom_call.1} parent=1 // loop_body
      %s34 = ssub.s32 %s29, 1
      %s35 = ssub.s32 %s29, 2
      %s42 = sadd.s32 1, %s37
      %p43 = scmp.ge.s32.totalorder %s42, 2
      %s44 = scalar_select %p43, 0, %s42
      %s45 = sadd.s32 1, %s36
      %s46 = scalar_select %p43, %s45, %s36
      %p47 = scmp.ge.s32.totalorder %s46, 2
      %s48 = scalar_select %p47, 0, %s46
      %s49 = ssub.s32 %s36, %s48
      %p50 = scmp.eq.s32.totalorder %s49, 0
      %s52 = sadd.s32 %s51, 1
      %s53 = scalar_select %p50, %s51, %s52
      %p56 = pneg %p50
      %p57 = scmp.eq.s32.totalorder %s29, 3
      %p58 = por %p56, %p57
      %p59 = scmp.ne.s32.totalorder %s51, %s54
      %p60 = scmp.eq.s32.totalorder %s29, 0
      %p61 = por %p59, %p60
      %p62 = scmp.ne.s32.totalorder %s51, %s54
      %p63 = scmp.eq.s32.totalorder %s34, 3
      %p64 = por %p62, %p63
      %p65 = scmp.ne.s32.totalorder %s54, %s55
      %p66 = scmp.eq.s32.totalorder %s34, 0
      %p67 = por %p65, %p66
      %p68 = scmp.ne.s32.totalorder %s54, %s55
      %p69 = scmp.eq.s32.totalorder %s35, 3
      %p70 = por %p68, %p69
      %p72 = scmp.ne.s32.totalorder %s55, %s71
      %p73 = scmp.eq.s32.totalorder %s35, 0
      %p74 = por %p72, %p73
      %s76 = sadd.s32 %s75, 1
      %p79 = scmp.eq.s32.totalorder %s29, 3
      %p80 = scmp.ne.s32.totalorder %s75, %s77
      %p81 = scmp.eq.s32.totalorder %s29, 0
      %p82 = por %p80, %p81
      %p83 = scmp.ne.s32.totalorder %s75, %s77
      %p84 = scmp.eq.s32.totalorder %s34, 3
      %p85 = por %p83, %p84
      %p86 = scmp.ne.s32.totalorder %s77, %s78
      %p87 = scmp.eq.s32.totalorder %s34, 0
      %p88 = por %p86, %p87
      %p89 = scmp.ne.s32.totalorder %s77, %s78
      %p90 = scmp.eq.s32.totalorder %s35, 3
      %p91 = por %p89, %p90
      %p93 = scmp.ne.s32.totalorder %s78, %s92
      %p94 = scmp.eq.s32.totalorder %s35, 0
      %p95 = por %p93, %p94
      %s97 = sadd.s32 %s96, 1
      %p100 = scmp.eq.s32.totalorder %s29, 3
      %p101 = scmp.ne.s32.totalorder %s96, %s98
      %p102 = scmp.eq.s32.totalorder %s29, 0
      %p103 = por %p101, %p102
      %p104 = scmp.ne.s32.totalorder %s96, %s98
      %p105 = scmp.eq.s32.totalorder %s34, 3
      %p106 = por %p104, %p105
      %p107 = scmp.ne.s32.totalorder %s98, %s99
      %p108 = scmp.eq.s32.totalorder %s34, 0
      %p109 = por %p107, %p108
      %p110 = scmp.ne.s32.totalorder %s98, %s99
      %p111 = scmp.eq.s32.totalorder %s35, 3
      %p112 = por %p110, %p111
      %p114 = scmp.ne.s32.totalorder %s99, %s113
      %p115 = scmp.eq.s32.totalorder %s35, 0
      %p116 = por %p114, %p115
      %s118 = sadd.s32 %s117, 1
      %p121 = scmp.eq.s32.totalorder %s29, 3
      %p122 = scmp.ne.s32.totalorder %s117, %s119
      %p123 = scmp.eq.s32.totalorder %s29, 0
      %p124 = por %p122, %p123
      %p125 = scmp.ne.s32.totalorder %s117, %s119
      %p126 = scmp.eq.s32.totalorder %s34, 3
      %p127 = por %p125, %p126
      %p128 = scmp.ne.s32.totalorder %s119, %s120
      %p129 = scmp.eq.s32.totalorder %s34, 0
      %p130 = por %p128, %p129
      %p131 = scmp.ne.s32.totalorder %s119, %s120
      %p132 = scmp.eq.s32.totalorder %s35, 3
      %p133 = por %p131, %p132
      %p135 = scmp.ne.s32.totalorder %s120, %s134
      %p136 = scmp.eq.s32.totalorder %s35, 0
      %p137 = por %p135, %p136
      %s139 = sadd.s32 %s138, 1
      %p142 = scmp.eq.s32.totalorder %s29, 3
      %p143 = scmp.ne.s32.totalorder %s138, %s140
      %p144 = scmp.eq.s32.totalorder %s29, 0
      %p145 = por %p143, %p144
      %p146 = scmp.ne.s32.totalorder %s138, %s140
      %p147 = scmp.eq.s32.totalorder %s34, 3
      %p148 = por %p146, %p147
      %p149 = scmp.ne.s32.totalorder %s140, %s141
      %p150 = scmp.eq.s32.totalorder %s34, 0
      %p151 = por %p149, %p150
      %p152 = scmp.ne.s32.totalorder %s140, %s141
      %p153 = scmp.eq.s32.totalorder %s35, 3
      %p154 = por %p152, %p153
      %p156 = scmp.ne.s32.totalorder %s141, %s155
      %p157 = scmp.eq.s32.totalorder %s35, 0
      %p158 = por %p156, %p157
      %s159 = ssub.s32 %s37, %s44
      %p160 = scmp.eq.s32.totalorder %s159, 0
      %s162 = sadd.s32 %s161, 1
      %s163 = scalar_select %p160, %s161, %s162
      %p166 = pneg %p160
      %p167 = scmp.eq.s32.totalorder %s29, 3
      %p168 = por %p166, %p167
      %p169 = scmp.ne.s32.totalorder %s161, %s164
      %p170 = scmp.eq.s32.totalorder %s29, 0
      %p171 = por %p169, %p170
      %p172 = scmp.ne.s32.totalorder %s161, %s164
      %p173 = scmp.eq.s32.totalorder %s34, 3
      %p174 = por %p172, %p173
      %p175 = scmp.ne.s32.totalorder %s164, %s165
      %p176 = scmp.eq.s32.totalorder %s34, 0
      %p177 = por %p175, %p176
      %p178 = scmp.ne.s32.totalorder %s164, %s165
      %p179 = scmp.eq.s32.totalorder %s35, 3
      %p180 = por %p178, %p179
      %p182 = scmp.ne.s32.totalorder %s165, %s181
      %p183 = scmp.eq.s32.totalorder %s35, 0
      %p184 = por %p182, %p183
      %s185 = ssub.s32 %s37, %s44
      %p186 = scmp.eq.s32.totalorder %s185, 0
      %s188 = sadd.s32 %s187, 1
      %s189 = scalar_select %p186, %s187, %s188
      %p192 = pneg %p186
      %p193 = scmp.eq.s32.totalorder %s29, 3
      %p194 = por %p192, %p193
      %p195 = scmp.ne.s32.totalorder %s187, %s190
      %p196 = scmp.eq.s32.totalorder %s29, 0
      %p197 = por %p195, %p196
      %p198 = scmp.ne.s32.totalorder %s187, %s190
      %p199 = scmp.eq.s32.totalorder %s34, 3
      %p200 = por %p198, %p199
      %p201 = scmp.ne.s32.totalorder %s190, %s191
      %p202 = scmp.eq.s32.totalorder %s34, 0
      %p203 = por %p201, %p202
      %p204 = scmp.ne.s32.totalorder %s190, %s191
      %p205 = scmp.eq.s32.totalorder %s35, 3
      %p206 = por %p204, %p205
      %p208 = scmp.ne.s32.totalorder %s191, %s207
      %p209 = scmp.eq.s32.totalorder %s35, 0
      %p210 = por %p208, %p209
      %s211 = ssub.s32 %s37, %s44
      %p212 = scmp.eq.s32.totalorder %s211, 0
      %s214 = sadd.s32 %s213, 1
      %s215 = scalar_select %p212, %s213, %s214
      %p218 = pneg %p212
      %p219 = scmp.eq.s32.totalorder %s29, 3
      %p220 = por %p218, %p219
      %p221 = scmp.ne.s32.totalorder %s213, %s216
      %p222 = scmp.eq.s32.totalorder %s29, 0
      %p223 = por %p221, %p222
      %p224 = scmp.ne.s32.totalorder %s213, %s216
      %p225 = scmp.eq.s32.totalorder %s34, 3
      %p226 = por %p224, %p225
      %p227 = scmp.ne.s32.totalorder %s216, %s217
      %p228 = scmp.eq.s32.totalorder %s34, 0
      %p229 = por %p227, %p228
      %p230 = scmp.ne.s32.totalorder %s216, %s217
      %p231 = scmp.eq.s32.totalorder %s35, 3
      %p232 = por %p230, %p231
      %p234 = scmp.ne.s32.totalorder %s217, %s233
      %p235 = scmp.eq.s32.totalorder %s35, 0
      %p236 = por %p234, %p235
      %s237 = ssub.s32 %s37, %s44
      %p238 = scmp.eq.s32.totalorder %s237, 0
      %s240 = sadd.s32 %s239, 1
      %s241 = scalar_select %p238, %s239, %s240
      %p244 = pneg %p238
      %p245 = scmp.eq.s32.totalorder %s29, 3
      %p246 = por %p244, %p245
      %p247 = scmp.ne.s32.totalorder %s239, %s242
      %p248 = scmp.eq.s32.totalorder %s29, 0
      %p249 = por %p247, %p248
      %p250 = scmp.ne.s32.totalorder %s239, %s242
      %p251 = scmp.eq.s32.totalorder %s34, 3
      %p252 = por %p250, %p251
      %p253 = scmp.ne.s32.totalorder %s242, %s243
      %p254 = scmp.eq.s32.totalorder %s34, 0
      %p255 = por %p253, %p254
      %p256 = scmp.ne.s32.totalorder %s242, %s243
      %p257 = scmp.eq.s32.totalorder %s35, 3
      %p258 = por %p256, %p257
      %p260 = scmp.ne.s32.totalorder %s243, %s259
      %p261 = scmp.eq.s32.totalorder %s35, 0
      %p262 = por %p260, %p261
      %s263 = ssub.s32 %s37, %s44
      %p264 = scmp.eq.s32.totalorder %s263, 0
      %s266 = sadd.s32 %s265, 1
      %s267 = scalar_select %p264, %s265, %s266
      %p270 = pneg %p264
      %p271 = scmp.eq.s32.totalorder %s29, 3
      %p272 = por %p270, %p271
      %p273 = scmp.ne.s32.totalorder %s265, %s268
      %p274 = scmp.eq.s32.totalorder %s29, 0
      %p275 = por %p273, %p274
      %p276 = scmp.ne.s32.totalorder %s265, %s268
      %p277 = scmp.eq.s32.totalorder %s34, 3
      %p278 = por %p276, %p277
      %p279 = scmp.ne.s32.totalorder %s268, %s269
      %p280 = scmp.eq.s32.totalorder %s34, 0
      %p281 = por %p279, %p280
      %p282 = scmp.ne.s32.totalorder %s268, %s269
      %p283 = scmp.eq.s32.totalorder %s35, 3
      %p284 = por %p282, %p283
      %p286 = scmp.ne.s32.totalorder %s269, %s285
      %p287 = scmp.eq.s32.totalorder %s35, 0
      %p288 = por %p286, %p287
      %s289 = ssub.s32 %s36, %s48
      %p290 = scmp.eq.s32.totalorder %s289, 0
      %s292 = sadd.s32 %s291, 1
      %s293 = scalar_select %p290, %s291, %s292
      %p296 = pneg %p290
      %p297 = scmp.eq.s32.totalorder %s29, 3
      %p298 = por %p296, %p297
      %p299 = scmp.ne.s32.totalorder %s291, %s294
      %p300 = scmp.eq.s32.totalorder %s29, 0
      %p301 = por %p299, %p300
      %p302 = scmp.ne.s32.totalorder %s291, %s294
      %p303 = scmp.eq.s32.totalorder %s34, 3
      %p304 = por %p302, %p303
      %p305 = scmp.ne.s32.totalorder %s294, %s295
      %p306 = scmp.eq.s32.totalorder %s34, 0
      %p307 = por %p305, %p306
      %p308 = scmp.ne.s32.totalorder %s294, %s295
      %p309 = scmp.eq.s32.totalorder %s35, 3
      %p310 = por %p308, %p309
      %p312 = scmp.ne.s32.totalorder %s295, %s311
      %p313 = scmp.eq.s32.totalorder %s35, 0
      %p314 = por %p312, %p313
      %p315 = scmp.le.s32.totalorder 1, %s29
      %p316 = scmp.lt.s32.totalorder %s29, 5
      %p317 = pnand %p315, %p316
      %p318 = pneg %p317
      // Predicated region
      $region9: #{tpu_custom_call.1} parent=5 // pred_check
        _
      $region10: #{tpu_custom_call.1} parent=5 // pred_check_branch
        %320 = sbr.rel (%p317) target = $region12
      $region11: #{tpu_custom_call.1} parent=5 // pred_region
        %s321 = ssub.s32 %s29, 1
        // Predicated region
        $region13: #{tpu_custom_call.1} parent=11 // pred_check
          %p322 = pneg %p88
        $region14: #{tpu_custom_call.1} parent=11 // pred_check_branch
          %324 = sbr.rel (%p322) target = $region16
        $region15: #{tpu_custom_call.1} parent=11 // pred_region
          %s326 = ssub.s32 1024, 1024
          %327 = vsyncadd [#allocation8], %s326
          %s328 = sshll.u32 [#allocation7], 4
          %s329 = int_to_ptr.vmem [resolvable:$true] %s328
          %334 = dma.hbm_to_vmem [thread:$0]  %s1, 1024, %s329, [#allocation8], 64, 64, 4
        $region16: #{tpu_custom_call.1} parent=11 // pred_fallthru
          _
        // Predicated region
        $region17: #{tpu_custom_call.1} parent=11 // pred_check
          %p335 = pneg %p109
        $region18: #{tpu_custom_call.1} parent=11 // pred_check_branch
          %337 = sbr.rel (%p335) target = $region20
        $region19: #{tpu_custom_call.1} parent=11 // pred_region
          _
        $region20: #{tpu_custom_call.1} parent=11 // pred_fallthru
          _
        // Predicated region
        $region21: #{tpu_custom_call.1} parent=11 // pred_check
          %p338 = pneg %p130
        $region22: #{tpu_custom_call.1} parent=11 // pred_check_branch
          %340 = sbr.rel (%p338) target = $region24
        $region23: #{tpu_custom_call.1} parent=11 // pred_region
          %s342 = ssub.s32 1024, 1024
          %343 = vsyncadd [#allocation8], %s342
          %s344 = sshll.u32 [#allocation9], 4
          %s345 = int_to_ptr.vmem [resolvable:$true] %s344
          %350 = dma.hbm_to_vmem [thread:$0]  %s3, 1024, %s345, [#allocation8], 64, 64, 4
        $region24: #{tpu_custom_call.1} parent=11 // pred_fallthru
          _
        // Predicated region
        $region25: #{tpu_custom_call.1} parent=11 // pred_check
          %p351 = pneg %p151
        $region26: #{tpu_custom_call.1} parent=11 // pred_check_branch
          %353 = sbr.rel (%p351) target = $region28
        $region27: #{tpu_custom_call.1} parent=11 // pred_region
          _
        $region28: #{tpu_custom_call.1} parent=11 // pred_fallthru
          _
      $region12: #{tpu_custom_call.1} parent=5 // pred_fallthru
        _
      %p354 = scmp.lt.s32.totalorder %s29, 4
      // Predicated region
      $region29: #{tpu_custom_call.1} parent=5 // pred_check
        %p355 = pneg %p354
      $region30: #{tpu_custom_call.1} parent=5 // pred_check_branch
        %357 = sbr.rel (%p355) target = $region32
      $region31: #{tpu_custom_call.1} parent=5 // pred_region
        // Predicated region
        $region33: #{tpu_custom_call.1} parent=31 // pred_check
          %p358 = pneg %p61
        $region34: #{tpu_custom_call.1} parent=31 // pred_check_branch
          %360 = sbr.rel (%p358) target = $region36
        $region35: #{tpu_custom_call.1} parent=31 // pred_region
          %s361 = sand.u32 %s51, 1
          %s362 = scalar_lea.sflag [#allocation5], %s361
          %s363 = sand.u32 %s51, 1
          %s364 = smul.addr %s363, 128
          %s365 = scalar_lea.vmem [#allocation4], %s364
          %s367 = ssub.s32 2048, 2048
          %368 = vsyncadd %s362, %s367
          %s369 = smul.addr %s36, 32
          %s370 = smul.addr %s369, 64
          %s371 = scalar_lea.hbm %s0, %s370
          %s372 = sshll.u32 %s365, 4
          %s373 = int_to_ptr.vmem [resolvable:$true] %s372
          %378 = dma.hbm_to_vmem [thread:$0]  %s371, 2048, %s373, %s362, 64, 64, 4
        $region36: #{tpu_custom_call.1} parent=31 // pred_fallthru
          _
        // Predicated region
        $region37: #{tpu_custom_call.1} parent=31 // pred_check
          %p379 = pneg %p171
        $region38: #{tpu_custom_call.1} parent=31 // pred_check_branch
          %381 = sbr.rel (%p379) target = $region40
        $region39: #{tpu_custom_call.1} parent=31 // pred_region
          %s382 = sand.u32 %s29, 1
          %s383 = scalar_lea.sflag [#allocation11], %s382
          %s384 = sand.u32 %s161, 1
          %s385 = smul.addr %s384, 192
          %s386 = scalar_lea.vmem [#allocation10], %s385
          %s388 = ssub.s32 3072, 3072
          %389 = vsyncadd %s383, %s388
          %s390 = smul.addr %s37, 48
          %s391 = smul.addr %s390, 64
          %s392 = scalar_lea.hbm %s5, %s391
          %s393 = sshll.u32 %s386, 4
          %s394 = int_to_ptr.vmem [resolvable:$true] %s393
          %399 = dma.hbm_to_vmem [thread:$0]  %s392, 3072, %s394, %s383, 192, 192, 12
        $region40: #{tpu_custom_call.1} parent=31 // pred_fallthru
          _
        // Predicated region
        $region41: #{tpu_custom_call.1} parent=31 // pred_check
          %p400 = pneg %p197
        $region42: #{tpu_custom_call.1} parent=31 // pred_check_branch
          %402 = sbr.rel (%p400) target = $region44
        $region43: #{tpu_custom_call.1} parent=31 // pred_region
          %p403 = scmp.lt.s32.totalorder %s37, 1
          %s404 = scalar_select %p403, %s37, 1
          %s405 = smul.addr %s404, 3
          %s406 = scalar_lea.vmem %s6, %s405
        $region44: #{tpu_custom_call.1} parent=31 // pred_fallthru
          _
        // Predicated region
        $region45: #{tpu_custom_call.1} parent=31 // pred_check
          %p407 = pneg %p223
        $region46: #{tpu_custom_call.1} parent=31 // pred_check_branch
          %409 = sbr.rel (%p407) target = $region48
        $region47: #{tpu_custom_call.1} parent=31 // pred_region
          %s410 = sand.u32 %s29, 1
          %s411 = scalar_lea.sflag [#allocation11], %s410
          %s412 = sand.u32 %s213, 1
          %s413 = smul.addr %s412, 64
          %s414 = scalar_lea.vmem [#allocation12], %s413
          %s416 = ssub.s32 1024, 1024
          %417 = vsyncadd %s411, %s416
          %s418 = smul.addr %s37, 16
          %s419 = smul.addr %s418, 64
          %s420 = scalar_lea.hbm %s7, %s419
          %s421 = sshll.u32 %s414, 4
          %s422 = int_to_ptr.vmem [resolvable:$true] %s421
          %427 = dma.hbm_to_vmem [thread:$0]  %s420, 1024, %s422, %s411, 64, 64, 4
        $region48: #{tpu_custom_call.1} parent=31 // pred_fallthru
          _
        // Predicated region
        $region49: #{tpu_custom_call.1} parent=31 // pred_check
          %p428 = pneg %p249
        $region50: #{tpu_custom_call.1} parent=31 // pred_check_branch
          %430 = sbr.rel (%p428) target = $region52
        $region51: #{tpu_custom_call.1} parent=31 // pred_region
          %p431 = scmp.lt.s32.totalorder %s37, 1
          %s432 = scalar_select %p431, %s37, 1
          %s433 = scalar_lea.vmem %s8, %s432
        $region52: #{tpu_custom_call.1} parent=31 // pred_fallthru
          _
        // Predicated region
        $region53: #{tpu_custom_call.1} parent=31 // pred_check
          %p434 = pneg %p275
        $region54: #{tpu_custom_call.1} parent=31 // pred_check_branch
          %436 = sbr.rel (%p434) target = $region56
        $region55: #{tpu_custom_call.1} parent=31 // pred_region
          %s437 = sand.u32 %s265, 1
          %s438 = scalar_lea.sflag [#allocation14], %s437
          %s439 = sand.u32 %s265, 1
          %s440 = smul.addr %s439, 64
          %s441 = scalar_lea.vmem [#allocation13], %s440
          %s443 = ssub.s32 1024, 1024
          %444 = vsyncadd %s438, %s443
          %s445 = smul.addr %s37, 16
          %s446 = smul.addr %s445, 64
          %s447 = scalar_lea.hbm %s9, %s446
          %s448 = sshll.u32 %s441, 4
          %s449 = int_to_ptr.vmem [resolvable:$true] %s448
          %454 = dma.hbm_to_vmem [thread:$0]  %s447, 1024, %s449, %s438, 64, 64, 4
        $region56: #{tpu_custom_call.1} parent=31 // pred_fallthru
          _
      $region32: #{tpu_custom_call.1} parent=5 // pred_fallthru
        _
      %p455 = scmp.le.s32.totalorder 1, %s29
      %p456 = scmp.lt.s32.totalorder %s29, 5
      %p457 = pnand %p455, %p456
      %p458 = pneg %p457
      // Predicated region
      $region57: #{tpu_custom_call.1} parent=5 // pred_check
        _
      $region58: #{tpu_custom_call.1} parent=5 // pred_check_branch
        %460 = sbr.rel (%p457) target = $region60
      $region59: #{tpu_custom_call.1} parent=5 // pred_region
        %s461 = ssub.s32 %s29, 1
        %s462 = sand.u32 %s54, 1
        %s463 = scalar_lea.sflag [#allocation5], %s462
        %s464 = sand.u32 %s54, 1
        %s465 = smul.addr %s464, 128
        %s466 = scalar_lea.vmem [#allocation4], %s465
        // Predicated region
        $region61: #{tpu_custom_call.1} parent=59 // pred_check
          %p467 = pneg %p67
        $region62: #{tpu_custom_call.1} parent=59 // pred_check_branch
          %469 = sbr.rel (%p467) target = $region64
        $region63: #{tpu_custom_call.1} parent=59 // pred_region
          %470 = dma.done %s463, 2048
        $region64: #{tpu_custom_call.1} parent=59 // pred_fallthru
          _
        // Predicated region
        $region65: #{tpu_custom_call.1} parent=59 // pred_check
          %p471 = pneg %p88
        $region66: #{tpu_custom_call.1} parent=59 // pred_check_branch
          %473 = sbr.rel (%p471) target = $region68
        $region67: #{tpu_custom_call.1} parent=59 // pred_region
          %474 = dma.done [#allocation8], 1024
        $region68: #{tpu_custom_call.1} parent=59 // pred_fallthru
          _
        // Predicated region
        $region69: #{tpu_custom_call.1} parent=59 // pred_check
          %p475 = pneg %p130
        $region70: #{tpu_custom_call.1} parent=59 // pred_check_branch
          %477 = sbr.rel (%p475) target = $region72
        $region71: #{tpu_custom_call.1} parent=59 // pred_region
          %478 = dma.done [#allocation8], 1024
        $region72: #{tpu_custom_call.1} parent=59 // pred_fallthru
          _
        %s479 = sand.u32 %s34, 1
        %s480 = scalar_lea.sflag [#allocation11], %s479
        %s481 = sand.u32 %s164, 1
        %s482 = smul.addr %s481, 192
        %s483 = scalar_lea.vmem [#allocation10], %s482
        // Predicated region
        $region73: #{tpu_custom_call.1} parent=59 // pred_check
          %p484 = pneg %p177
        $region74: #{tpu_custom_call.1} parent=59 // pred_check_branch
          %486 = sbr.rel (%p484) target = $region76
        $region75: #{tpu_custom_call.1} parent=59 // pred_region
          %487 = dma.done %s480, 3072
        $region76: #{tpu_custom_call.1} parent=59 // pred_fallthru
          _
        %s488 = sand.u32 %s34, 1
        %s489 = scalar_lea.sflag [#allocation11], %s488
        %s490 = sand.u32 %s216, 1
        %s491 = smul.addr %s490, 64
        %s492 = scalar_lea.vmem [#allocation12], %s491
        // Predicated region
        $region77: #{tpu_custom_call.1} parent=59 // pred_check
          %p493 = pneg %p229
        $region78: #{tpu_custom_call.1} parent=59 // pred_check_branch
          %495 = sbr.rel (%p493) target = $region80
        $region79: #{tpu_custom_call.1} parent=59 // pred_region
          %496 = dma.done %s489, 1024
        $region80: #{tpu_custom_call.1} parent=59 // pred_fallthru
          _
        %s497 = sand.u32 %s268, 1
        %s498 = scalar_lea.sflag [#allocation14], %s497
        %s499 = sand.u32 %s268, 1
        %s500 = smul.addr %s499, 64
        %s501 = scalar_lea.vmem [#allocation13], %s500
        // Predicated region
        $region81: #{tpu_custom_call.1} parent=59 // pred_check
          %p502 = pneg %p281
        $region82: #{tpu_custom_call.1} parent=59 // pred_check_branch
          %504 = sbr.rel (%p502) target = $region84
        $region83: #{tpu_custom_call.1} parent=59 // pred_region
          %505 = dma.done %s498, 1024
        $region84: #{tpu_custom_call.1} parent=59 // pred_fallthru
          _
        %s506 = sand.u32 %s54, 1
        %s507 = scalar_lea.sflag [#allocation5], %s506
        %s508 = sand.u32 %s54, 1
        %s509 = smul.addr %s508, 128
        %s510 = scalar_lea.vmem [#allocation4], %s509
        %p511 = pneg %p67
        %p512 = pneg %p64
        %p513 = pneg %p88
        %p514 = pneg %p85
        %p515 = pneg %p109
        %p516 = pneg %p106
        %p517 = pneg %p130
        %p518 = pneg %p127
        %p519 = pneg %p151
        %p520 = pneg %p148
        %s521 = sand.u32 %s34, 1
        %s522 = scalar_lea.sflag [#allocation11], %s521
        %s523 = sand.u32 %s164, 1
        %s524 = smul.addr %s523, 192
        %s525 = scalar_lea.vmem [#allocation10], %s524
        %p526 = pneg %p177
        %p527 = pneg %p174
        %p528 = scmp.lt.s32.totalorder %s39, 1
        %s529 = scalar_select %p528, %s39, 1
        %s530 = smul.addr %s529, 3
        %s531 = scalar_lea.vmem %s6, %s530
        %p532 = pneg %p203
        %p533 = pneg %p200
        %s534 = sand.u32 %s34, 1
        %s535 = scalar_lea.sflag [#allocation11], %s534
        %s536 = sand.u32 %s216, 1
        %s537 = smul.addr %s536, 64
        %s538 = scalar_lea.vmem [#allocation12], %s537
        %p539 = pneg %p229
        %p540 = pneg %p226
        %p541 = scmp.lt.s32.totalorder %s39, 1
        %s542 = scalar_select %p541, %s39, 1
        %s543 = scalar_lea.vmem %s8, %s542
        %p544 = pneg %p255
        %p545 = pneg %p252
        %s546 = sand.u32 %s268, 1
        %s547 = scalar_lea.sflag [#allocation14], %s546
        %s548 = sand.u32 %s268, 1
        %s549 = smul.addr %s548, 64
        %s550 = scalar_lea.vmem [#allocation13], %s549
        %p551 = pneg %p281
        %p552 = pneg %p278
        %p553 = pneg %p307
        %p554 = pneg %p304
        %s555 = sand.u32 %s294, 1
        %s556 = scalar_lea.sflag [#allocation6], %s555
        %s557 = sand.u32 %s294, 1
        %s558 = smul.addr %s557, 256
        %s559 = scalar_lea.vmem [#allocation15], %s558
        %p560 = scmp.lt.s32.totalorder %s39, 1
        %s561 = scalar_select %p560, %s39, 1
        %s562 = smul.addr %s561, 3
        %s563 = scalar_lea.vmem %s6, %s562
        %p564 = scmp.lt.s32.totalorder %s39, 1
        %s565 = scalar_select %p564, %s39, 1
        %s566 = scalar_lea.vmem %s8, %s565
        %p568 = scmp.eq.s32.totalorder %s39, 0
        // Predicated region
        $region85: #{tpu_custom_call.1} parent=59 // pred_check
          %p569 = pneg %p568
        $region86: #{tpu_custom_call.1} parent=59 // pred_check_branch
          %571 = sbr.rel (%p569) target = $region88
        $region87: #{tpu_custom_call.1} parent=59 // pred_region
          %v572 = vld [vmem:[%s466] sm:$0xf]
          %v573 = vld [vmem:[%s466 + $0x4] sm:$0xf]
          %v574 = vld [vmem:[%s466 + $0x8] sm:$0xf]
          %v575 = vld [vmem:[%s466 + $0xc] sm:$0xf]
          %v576 = vld [vmem:[%s466 + $0x10] sm:$0xf]
          %v577 = vld [vmem:[%s466 + $0x14] sm:$0xf]
          %v578 = vld [vmem:[%s466 + $0x18] sm:$0xf]
          %v579 = vld [vmem:[%s466 + $0x1c] sm:$0xf]
          %v580 = vld [vmem:[%s466 + $0x20] sm:$0xf]
          %v581 = vld [vmem:[%s466 + $0x24] sm:$0xf]
          %v582 = vld [vmem:[%s466 + $0x28] sm:$0xf]
          %v583 = vld [vmem:[%s466 + $0x2c] sm:$0xf]
          %v584 = vld [vmem:[%s466 + $0x30] sm:$0xf]
          %v585 = vld [vmem:[%s466 + $0x34] sm:$0xf]
          %v586 = vld [vmem:[%s466 + $0x38] sm:$0xf]
          %v587 = vld [vmem:[%s466 + $0x3c] sm:$0xf]
          %v588 = vld [vmem:[%s466 + $0x40] sm:$0xf]
          %v589 = vld [vmem:[%s466 + $0x44] sm:$0xf]
          %v590 = vld [vmem:[%s466 + $0x48] sm:$0xf]
          %v591 = vld [vmem:[%s466 + $0x4c] sm:$0xf]
          %v592 = vld [vmem:[%s466 + $0x50] sm:$0xf]
          %v593 = vld [vmem:[%s466 + $0x54] sm:$0xf]
          %v594 = vld [vmem:[%s466 + $0x58] sm:$0xf]
          %v595 = vld [vmem:[%s466 + $0x5c] sm:$0xf]
          %v596 = vld [vmem:[%s466 + $0x60] sm:$0xf]
          %v597 = vld [vmem:[%s466 + $0x64] sm:$0xf]
          %v598 = vld [vmem:[%s466 + $0x68] sm:$0xf]
          %v599 = vld [vmem:[%s466 + $0x6c] sm:$0xf]
          %v600 = vld [vmem:[%s466 + $0x70] sm:$0xf]
          %v601 = vld [vmem:[%s466 + $0x74] sm:$0xf]
          %v602 = vld [vmem:[%s466 + $0x78] sm:$0xf]
          %v603 = vld [vmem:[%s466 + $0x7c] sm:$0xf]
          %v604 = vld [vmem:[#allocation7] sm:$0xf]
          %v605 = vld [vmem:[#allocation7 + $0x4] sm:$0xf]
          %v606 = vld [vmem:[#allocation7 + $0x8] sm:$0xf]
          %v607 = vld [vmem:[#allocation7 + $0xc] sm:$0xf]
          %v608 = vld [vmem:[#allocation7 + $0x10] sm:$0xf]
          %v609 = vld [vmem:[#allocation7 + $0x14] sm:$0xf]
          %v610 = vld [vmem:[#allocation7 + $0x18] sm:$0xf]
          %v611 = vld [vmem:[#allocation7 + $0x1c] sm:$0xf]
          %v612 = vld [vmem:[#allocation7 + $0x20] sm:$0xf]
          %v613 = vld [vmem:[#allocation7 + $0x24] sm:$0xf]
          %v614 = vld [vmem:[#allocation7 + $0x28] sm:$0xf]
          %v615 = vld [vmem:[#allocation7 + $0x2c] sm:$0xf]
          %v616 = vld [vmem:[#allocation7 + $0x30] sm:$0xf]
          %v617 = vld [vmem:[#allocation7 + $0x34] sm:$0xf]
          %v618 = vld [vmem:[#allocation7 + $0x38] sm:$0xf]
          %v619 = vld [vmem:[#allocation7 + $0x3c] sm:$0xf]
          %v620 = vld [vmem:[%s2] sm:$0x1]
          %v622 = vlaneseq
          %v623 = vshrl.u32 %v622, 7
          %v624 = vsub.s32 0, %v623
          %v625 = vrot.slane %v620, %v624
          %v659 = vunpack.c.l.b16 %v572
          %v660 = vunpack.c.l.b16 %v573
          %v661 = vunpack.c.l.b16 %v574
          %v662 = vunpack.c.l.b16 %v575
          %v663 = vunpack.c.l.b16 %v576
          %v664 = vunpack.c.l.b16 %v577
          %v665 = vunpack.c.l.b16 %v578
          %v666 = vunpack.c.l.b16 %v579
          %v667 = vunpack.c.l.b16 %v580
          %v668 = vunpack.c.l.b16 %v581
          %v669 = vunpack.c.l.b16 %v582
          %v670 = vunpack.c.l.b16 %v583
          %v671 = vunpack.c.l.b16 %v584
          %v672 = vunpack.c.l.b16 %v585
          %v673 = vunpack.c.l.b16 %v586
          %v674 = vunpack.c.l.b16 %v587
          %v675 = vunpack.c.l.b16 %v588
          %v676 = vunpack.c.l.b16 %v589
          %v677 = vunpack.c.l.b16 %v590
          %v678 = vunpack.c.l.b16 %v591
          %v679 = vunpack.c.l.b16 %v592
          %v680 = vunpack.c.l.b16 %v593
          %v681 = vunpack.c.l.b16 %v594
          %v682 = vunpack.c.l.b16 %v595
          %v683 = vunpack.c.l.b16 %v596
          %v684 = vunpack.c.l.b16 %v597
          %v685 = vunpack.c.l.b16 %v598
          %v686 = vunpack.c.l.b16 %v599
          %v687 = vunpack.c.l.b16 %v600
          %v688 = vunpack.c.l.b16 %v601
          %v689 = vunpack.c.l.b16 %v602
          %v690 = vunpack.c.l.b16 %v603
          %v691 = vpack.c.b16 %v660, %v659
          %v692 = vpack.c.b16 %v662, %v661
          %v693 = vpack.c.b16 %v664, %v663
          %v694 = vpack.c.b16 %v666, %v665
          %v695 = vpack.c.b16 %v668, %v667
          %v696 = vpack.c.b16 %v670, %v669
          %v697 = vpack.c.b16 %v672, %v671
          %v698 = vpack.c.b16 %v674, %v673
          %v699 = vpack.c.b16 %v676, %v675
          %v700 = vpack.c.b16 %v678, %v677
          %v701 = vpack.c.b16 %v680, %v679
          %v702 = vpack.c.b16 %v682, %v681
          %v703 = vpack.c.b16 %v684, %v683
          %v704 = vpack.c.b16 %v686, %v685
          %v705 = vpack.c.b16 %v688, %v687
          %v706 = vpack.c.b16 %v690, %v689
          %v739 = vunpack.c.l.b16 %v604
          %v740 = vunpack.c.l.b16 %v605
          %v741 = vunpack.c.l.b16 %v606
          %v742 = vunpack.c.l.b16 %v607
          %v743 = vunpack.c.l.b16 %v608
          %v744 = vunpack.c.l.b16 %v609
          %v745 = vunpack.c.l.b16 %v610
          %v746 = vunpack.c.l.b16 %v611
          %v747 = vunpack.c.l.b16 %v612
          %v748 = vunpack.c.l.b16 %v613
          %v749 = vunpack.c.l.b16 %v614
          %v750 = vunpack.c.l.b16 %v615
          %v751 = vunpack.c.l.b16 %v616
          %v752 = vunpack.c.l.b16 %v617
          %v753 = vunpack.c.l.b16 %v618
          %v754 = vunpack.c.l.b16 %v619
          %v755 = vpack.c.b16 %v740, %v739
          %v756 = vpack.c.b16 %v742, %v741
          %v757 = vpack.c.b16 %v744, %v743
          %v758 = vpack.c.b16 %v746, %v745
          %v759 = vpack.c.b16 %v748, %v747
          %v760 = vpack.c.b16 %v750, %v749
          %v761 = vpack.c.b16 %v752, %v751
          %v762 = vpack.c.b16 %v754, %v753
          %771 = vmatprep.subr.bf16.mxu0 0
          %772 = vmatpush1.bf16.msra.mxu0 %v755
          %773 = vmatprep.subr.bf16.mxu0 0
          %774 = vmatpush1.bf16.msra.mxu0 %v756
          %775 = vmatprep.subr.bf16.mxu0 0
          %776 = vmatpush1.bf16.msra.mxu0 %v757
          %777 = vmatprep.subr.bf16.mxu0 0
          %778 = vmatpush1.bf16.msra.mxu0 %v758
          %779 = vmatprep.subr.bf16.mxu0 0
          %780 = vmatpush1.bf16.msra.mxu0 %v759
          %781 = vmatprep.subr.bf16.mxu0 0
          %782 = vmatpush1.bf16.msra.mxu0 %v760
          %783 = vmatprep.subr.bf16.mxu0 0
          %784 = vmatpush1.bf16.msra.mxu0 %v761
          %785 = vmatprep.subr.bf16.mxu0 0
          %786 = vmatpush1.bf16.msra.mxu0 %v762
          %787 = vmatprep.subr.bf16.mxu0 0
          %788 = vmatpush1.bf16.msra.mxu0 0
          %789 = vmatprep.subr.bf16.mxu0 0
          %790 = vmatpush1.bf16.msra.mxu0 0
          %791 = vmatprep.subr.bf16.mxu0 0
          %792 = vmatpush1.bf16.msra.mxu0 0
          %793 = vmatprep.subr.bf16.mxu0 0
          %794 = vmatpush1.bf16.msra.mxu0 0
          %795 = vmatprep.subr.bf16.mxu0 0
          %796 = vmatpush1.bf16.msra.mxu0 0
          %797 = vmatprep.subr.bf16.mxu0 0
          %798 = vmatpush1.bf16.msra.mxu0 0
          %799 = vmatprep.subr.bf16.mxu0 0
          %800 = vmatpush1.bf16.msra.mxu0 0
          %801 = vmatprep.subr.bf16.mxu0 0
          %802 = vmatpush1.bf16.msra.mxu0 0
          %803 = vmatprep.mubr.bf16.mxu0 0
          %804 = vmatmul.mubr.bf16.gmra.mrb[0].mxu0 %v691
          %v805 = vpop.f32.mrb[0].mxu0
          %v806 = vadd.f32 %v625, %v805
          %v807 = vpop.f32.mrb[0].mxu0
          %v808 = vpop.f32.mrb[0].mxu0
          %v809 = vadd.f32 %v625, %v808
          %v810 = vpop.f32.mrb[0].mxu0
          %811 = vmatprep.mubr.bf16.mxu0 0
          %812 = vmatmul.mubr.bf16.gmra.mrb[0].mxu0 %v692
          %v813 = vpop.f32.mrb[0].mxu0
          %v814 = vadd.f32 %v625, %v813
          %v815 = vpop.f32.mrb[0].mxu0
          %v816 = vpop.f32.mrb[0].mxu0
          %v817 = vadd.f32 %v625, %v816
          %v818 = vpop.f32.mrb[0].mxu0
          %819 = vmatprep.mubr.bf16.mxu0 0
          %820 = vmatmul.mubr.bf16.gmra.mrb[0].mxu0 %v693
          %v821 = vpop.f32.mrb[0].mxu0
          %v822 = vadd.f32 %v625, %v821
          %v823 = vpop.f32.mrb[0].mxu0
          %v824 = vpop.f32.mrb[0].mxu0
          %v825 = vadd.f32 %v625, %v824
          %v826 = vpop.f32.mrb[0].mxu0
          %827 = vmatprep.mubr.bf16.mxu0 0
          %828 = vmatmul.mubr.bf16.gmra.mrb[0].mxu0 %v694
          %v829 = vpop.f32.mrb[0].mxu0
          %v830 = vadd.f32 %v625, %v829
          %v831 = vpop.f32.mrb[0].mxu0
          %v832 = vpop.f32.mrb[0].mxu0
          %v833 = vadd.f32 %v625, %v832
          %v834 = vpop.f32.mrb[0].mxu0
          %835 = vmatprep.mubr.bf16.mxu0 0
          %836 = vmatmul.mubr.bf16.gmra.mrb[0].mxu0 %v695
          %v837 = vpop.f32.mrb[0].mxu0
          %v838 = vadd.f32 %v625, %v837
          %v839 = vpop.f32.mrb[0].mxu0
          %v840 = vpop.f32.mrb[0].mxu0
          %v841 = vadd.f32 %v625, %v840
          %v842 = vpop.f32.mrb[0].mxu0
          %843 = vmatprep.mubr.bf16.mxu0 0
          %844 = vmatmul.mubr.bf16.gmra.mrb[0].mxu0 %v696
          %v845 = vpop.f32.mrb[0].mxu0
          %v846 = vadd.f32 %v625, %v845
          %v847 = vpop.f32.mrb[0].mxu0
          %v848 = vpop.f32.mrb[0].mxu0
          %v849 = vadd.f32 %v625, %v848
          %v850 = vpop.f32.mrb[0].mxu0
          %851 = vmatprep.mubr.bf16.mxu0 0
          %852 = vmatmul.mubr.bf16.gmra.mrb[0].mxu0 %v697
          %v853 = vpop.f32.mrb[0].mxu0
          %v854 = vadd.f32 %v625, %v853
          %v855 = vpop.f32.mrb[0].mxu0
          %v856 = vpop.f32.mrb[0].mxu0
          %v857 = vadd.f32 %v625, %v856
          %v858 = vpop.f32.mrb[0].mxu0
          %859 = vmatprep.mubr.bf16.mxu0 0
          %860 = vmatmul.mubr.bf16.gmra.mrb[0].mxu0 %v698
          %v861 = vpop.f32.mrb[0].mxu0
          %v862 = vadd.f32 %v625, %v861
          %v863 = vpop.f32.mrb[0].mxu0
          %v864 = vpop.f32.mrb[0].mxu0
          %v865 = vadd.f32 %v625, %v864
          %v866 = vpop.f32.mrb[0].mxu0
          %867 = vmatprep.mubr.bf16.mxu0 0
          %868 = vmatmul.mubr.bf16.gmra.mrb[0].mxu0 %v699
          %v869 = vpop.f32.mrb[0].mxu0
          %v870 = vadd.f32 %v625, %v869
          %v871 = vpop.f32.mrb[0].mxu0
          %v872 = vpop.f32.mrb[0].mxu0
          %v873 = vadd.f32 %v625, %v872
          %v874 = vpop.f32.mrb[0].mxu0
          %875 = vmatprep.mubr.bf16.mxu0 0
          %876 = vmatmul.mubr.bf16.gmra.mrb[0].mxu0 %v700
          %v877 = vpop.f32.mrb[0].mxu0
          %v878 = vadd.f32 %v625, %v877
          %v879 = vpop.f32.mrb[0].mxu0
          %v880 = vpop.f32.mrb[0].mxu0
          %v881 = vadd.f32 %v625, %v880
          %v882 = vpop.f32.mrb[0].mxu0
          %883 = vmatprep.mubr.bf16.mxu0 0
          %884 = vmatmul.mubr.bf16.gmra.mrb[0].mxu0 %v701
          %v885 = vpop.f32.mrb[0].mxu0
          %v886 = vadd.f32 %v625, %v885
          %v887 = vpop.f32.mrb[0].mxu0
          %v888 = vpop.f32.mrb[0].mxu0
          %v889 = vadd.f32 %v625, %v888
          %v890 = vpop.f32.mrb[0].mxu0
          %891 = vmatprep.mubr.bf16.mxu0 0
          %892 = vmatmul.mubr.bf16.gmra.mrb[0].mxu0 %v702
          %v893 = vpop.f32.mrb[0].mxu0
          %v894 = vadd.f32 %v625, %v893
          %v895 = vpop.f32.mrb[0].mxu0
          %v896 = vpop.f32.mrb[0].mxu0
          %v897 = vadd.f32 %v625, %v896
          %v898 = vpop.f32.mrb[0].mxu0
          %899 = vmatprep.mubr.bf16.mxu0 0
          %900 = vmatmul.mubr.bf16.gmra.mrb[0].mxu0 %v703
          %v901 = vpop.f32.mrb[0].mxu0
          %v902 = vadd.f32 %v625, %v901
          %v903 = vpop.f32.mrb[0].mxu0
          %v904 = vpop.f32.mrb[0].mxu0
          %v905 = vadd.f32 %v625, %v904
          %v906 = vpop.f32.mrb[0].mxu0
          %907 = vmatprep.mubr.bf16.mxu0 0
          %908 = vmatmul.mubr.bf16.gmra.mrb[0].mxu0 %v704
          %v909 = vpop.f32.mrb[0].mxu0
          %v910 = vadd.f32 %v625, %v909
          %v911 = vpop.f32.mrb[0].mxu0
          %v912 = vpop.f32.mrb[0].mxu0
          %v913 = vadd.f32 %v625, %v912
          %v914 = vpop.f32.mrb[0].mxu0
          %915 = vmatprep.mubr.bf16.mxu0 0
          %916 = vmatmul.mubr.bf16.gmra.mrb[0].mxu0 %v705
          %v917 = vpop.f32.mrb[0].mxu0
          %v918 = vadd.f32 %v625, %v917
          %v919 = vpop.f32.mrb[0].mxu0
          %v920 = vpop.f32.mrb[0].mxu0
          %v921 = vadd.f32 %v625, %v920
          %v922 = vpop.f32.mrb[0].mxu0
          %923 = vmatprep.mubr.bf16.mxu0 0
          %924 = vmatmul.mubr.bf16.gmra.mrb[0].mxu0 %v706
          %v925 = vpop.f32.mrb[0].mxu0
          %v926 = vadd.f32 %v625, %v925
          %v927 = vpop.f32.mrb[0].mxu0
          %v928 = vpop.f32.mrb[0].mxu0
          %v929 = vadd.f32 %v625, %v928
          %v930 = vpop.f32.mrb[0].mxu0
          %931 = vdwg.mxu0
          %v932 = vsub.f32 0.0, %v806
          %v933 = vsub.f32 0.0, %v809
          %v934 = vsub.f32 0.0, %v814
          %v935 = vsub.f32 0.0, %v817
          %v936 = vsub.f32 0.0, %v822
          %v937 = vsub.f32 0.0, %v825
          %v938 = vsub.f32 0.0, %v830
          %v939 = vsub.f32 0.0, %v833
          %v940 = vsub.f32 0.0, %v838
          %v941 = vsub.f32 0.0, %v841
          %v942 = vsub.f32 0.0, %v846
          %v943 = vsub.f32 0.0, %v849
          %v944 = vsub.f32 0.0, %v854
          %v945 = vsub.f32 0.0, %v857
          %v946 = vsub.f32 0.0, %v862
          %v947 = vsub.f32 0.0, %v865
          %v948 = vsub.f32 0.0, %v870
          %v949 = vsub.f32 0.0, %v873
          %v950 = vsub.f32 0.0, %v878
          %v951 = vsub.f32 0.0, %v881
          %v952 = vsub.f32 0.0, %v886
          %v953 = vsub.f32 0.0, %v889
          %v954 = vsub.f32 0.0, %v894
          %v955 = vsub.f32 0.0, %v897
          %v956 = vsub.f32 0.0, %v902
          %v957 = vsub.f32 0.0, %v905
          %v958 = vsub.f32 0.0, %v910
          %v959 = vsub.f32 0.0, %v913
          %v960 = vsub.f32 0.0, %v918
          %v961 = vsub.f32 0.0, %v921
          %v962 = vsub.f32 0.0, %v926
          %v963 = vsub.f32 0.0, %v929
          %v964 = vmul.f32 %v932, 1.442695
          %v965 = vpow.pop %v964
          %v966 = vmul.f32 %v933, 1.442695
          %v967 = vpow.pop %v966
          %v968 = vmul.f32 %v934, 1.442695
          %v969 = vpow.pop %v968
          %v970 = vmul.f32 %v935, 1.442695
          %v971 = vpow.pop %v970
          %v972 = vmul.f32 %v936, 1.442695
          %v973 = vpow.pop %v972
          %v974 = vmul.f32 %v937, 1.442695
          %v975 = vpow.pop %v974
          %v976 = vmul.f32 %v938, 1.442695
          %v977 = vpow.pop %v976
          %v978 = vmul.f32 %v939, 1.442695
          %v979 = vpow.pop %v978
          %v980 = vmul.f32 %v940, 1.442695
          %v981 = vpow.pop %v980
          %v982 = vmul.f32 %v941, 1.442695
          %v983 = vpow.pop %v982
          %v984 = vmul.f32 %v942, 1.442695
          %v985 = vpow.pop %v984
          %v986 = vmul.f32 %v943, 1.442695
          %v987 = vpow.pop %v986
          %v988 = vmul.f32 %v944, 1.442695
          %v989 = vpow.pop %v988
          %v990 = vmul.f32 %v945, 1.442695
          %v991 = vpow.pop %v990
          %v992 = vmul.f32 %v946, 1.442695
          %v993 = vpow.pop %v992
          %v994 = vmul.f32 %v947, 1.442695
          %v995 = vpow.pop %v994
          %v996 = vmul.f32 %v948, 1.442695
          %v997 = vpow.pop %v996
          %v998 = vmul.f32 %v949, 1.442695
          %v999 = vpow.pop %v998
          %v1000 = vmul.f32 %v950, 1.442695
          %v1001 = vpow.pop %v1000
          %v1002 = vmul.f32 %v951, 1.442695
          %v1003 = vpow.pop %v1002
          %v1004 = vmul.f32 %v952, 1.442695
          %v1005 = vpow.pop %v1004
          %v1006 = vmul.f32 %v953, 1.442695
          %v1007 = vpow.pop %v1006
          %v1008 = vmul.f32 %v954, 1.442695
          %v1009 = vpow.pop %v1008
          %v1010 = vmul.f32 %v955, 1.442695
          %v1011 = vpow.pop %v1010
          %v1012 = vmul.f32 %v956, 1.442695
          %v1013 = vpow.pop %v1012
          %v1014 = vmul.f32 %v957, 1.442695
          %v1015 = vpow.pop %v1014
          %v1016 = vmul.f32 %v958, 1.442695
          %v1017 = vpow.pop %v1016
          %v1018 = vmul.f32 %v959, 1.442695
          %v1019 = vpow.pop %v1018
          %v1020 = vmul.f32 %v960, 1.442695
          %v1021 = vpow.pop %v1020
          %v1022 = vmul.f32 %v961, 1.442695
          %v1023 = vpow.pop %v1022
          %v1024 = vmul.f32 %v962, 1.442695
          %v1025 = vpow.pop %v1024
          %v1026 = vmul.f32 %v963, 1.442695
          %v1027 = vpow.pop %v1026
          %v1028 = vadd.f32 %v965, 1.0
          %v1029 = vadd.f32 %v967, 1.0
          %v1030 = vadd.f32 %v969, 1.0
          %v1031 = vadd.f32 %v971, 1.0
          %v1032 = vadd.f32 %v973, 1.0
          %v1033 = vadd.f32 %v975, 1.0
          %v1034 = vadd.f32 %v977, 1.0
          %v1035 = vadd.f32 %v979, 1.0
          %v1036 = vadd.f32 %v981, 1.0
          %v1037 = vadd.f32 %v983, 1.0
          %v1038 = vadd.f32 %v985, 1.0
          %v1039 = vadd.f32 %v987, 1.0
          %v1040 = vadd.f32 %v989, 1.0
          %v1041 = vadd.f32 %v991, 1.0
          %v1042 = vadd.f32 %v993, 1.0
          %v1043 = vadd.f32 %v995, 1.0
          %v1044 = vadd.f32 %v997, 1.0
          %v1045 = vadd.f32 %v999, 1.0
          %v1046 = vadd.f32 %v1001, 1.0
          %v1047 = vadd.f32 %v1003, 1.0
          %v1048 = vadd.f32 %v1005, 1.0
          %v1049 = vadd.f32 %v1007, 1.0
          %v1050 = vadd.f32 %v1009, 1.0
          %v1051 = vadd.f32 %v1011, 1.0
          %v1052 = vadd.f32 %v1013, 1.0
          %v1053 = vadd.f32 %v1015, 1.0
          %v1054 = vadd.f32 %v1017, 1.0
          %v1055 = vadd.f32 %v1019, 1.0
          %v1056 = vadd.f32 %v1021, 1.0
          %v1057 = vadd.f32 %v1023, 1.0
          %v1058 = vadd.f32 %v1025, 1.0
          %v1059 = vadd.f32 %v1027, 1.0
          %v1060 = vrcp.pop %v1028
          %v1061 = vrcp.pop %v1029
          %v1062 = vrcp.pop %v1030
          %v1063 = vrcp.pop %v1031
          %v1064 = vrcp.pop %v1032
          %v1065 = vrcp.pop %v1033
          %v1066 = vrcp.pop %v1034
          %v1067 = vrcp.pop %v1035
          %v1068 = vrcp.pop %v1036
          %v1069 = vrcp.pop %v1037
          %v1070 = vrcp.pop %v1038
          %v1071 = vrcp.pop %v1039
          %v1072 = vrcp.pop %v1040
          %v1073 = vrcp.pop %v1041
          %v1074 = vrcp.pop %v1042
          %v1075 = vrcp.pop %v1043
          %v1076 = vrcp.pop %v1044
          %v1077 = vrcp.pop %v1045
          %v1078 = vrcp.pop %v1046
          %v1079 = vrcp.pop %v1047
          %v1080 = vrcp.pop %v1048
          %v1081 = vrcp.pop %v1049
          %v1082 = vrcp.pop %v1050
          %v1083 = vrcp.pop %v1051
          %v1084 = vrcp.pop %v1052
          %v1085 = vrcp.pop %v1053
          %v1086 = vrcp.pop %v1054
          %v1087 = vrcp.pop %v1055
          %v1088 = vrcp.pop %v1056
          %v1089 = vrcp.pop %v1057
          %v1090 = vrcp.pop %v1058
          %v1091 = vrcp.pop %v1059
          %v1092 = vmul.f32 %v806, %v1060
          %v1093 = vmul.f32 %v809, %v1061
          %v1094 = vmul.f32 %v814, %v1062
          %v1095 = vmul.f32 %v817, %v1063
          %v1096 = vmul.f32 %v822, %v1064
          %v1097 = vmul.f32 %v825, %v1065
          %v1098 = vmul.f32 %v830, %v1066
          %v1099 = vmul.f32 %v833, %v1067
          %v1100 = vmul.f32 %v838, %v1068
          %v1101 = vmul.f32 %v841, %v1069
          %v1102 = vmul.f32 %v846, %v1070
          %v1103 = vmul.f32 %v849, %v1071
          %v1104 = vmul.f32 %v854, %v1072
          %v1105 = vmul.f32 %v857, %v1073
          %v1106 = vmul.f32 %v862, %v1074
          %v1107 = vmul.f32 %v865, %v1075
          %v1108 = vmul.f32 %v870, %v1076
          %v1109 = vmul.f32 %v873, %v1077
          %v1110 = vmul.f32 %v878, %v1078
          %v1111 = vmul.f32 %v881, %v1079
          %v1112 = vmul.f32 %v886, %v1080
          %v1113 = vmul.f32 %v889, %v1081
          %v1114 = vmul.f32 %v894, %v1082
          %v1115 = vmul.f32 %v897, %v1083
          %v1116 = vmul.f32 %v902, %v1084
          %v1117 = vmul.f32 %v905, %v1085
          %v1118 = vmul.f32 %v910, %v1086
          %v1119 = vmul.f32 %v913, %v1087
          %v1120 = vmul.f32 %v918, %v1088
          %v1121 = vmul.f32 %v921, %v1089
          %v1122 = vmul.f32 %v926, %v1090
          %v1123 = vmul.f32 %v929, %v1091
          %v1124 = vpack.c.bf16 %v1093, %v1092
          %v1125 = vpack.c.bf16 %v1095, %v1094
          %v1126 = vpack.c.bf16 %v1097, %v1096
          %v1127 = vpack.c.bf16 %v1099, %v1098
          %v1128 = vpack.c.bf16 %v1101, %v1100
          %v1129 = vpack.c.bf16 %v1103, %v1102
          %v1130 = vpack.c.bf16 %v1105, %v1104
          %v1131 = vpack.c.bf16 %v1107, %v1106
          %v1132 = vpack.c.bf16 %v1109, %v1108
          %v1133 = vpack.c.bf16 %v1111, %v1110
          %v1134 = vpack.c.bf16 %v1113, %v1112
          %v1135 = vpack.c.bf16 %v1115, %v1114
          %v1136 = vpack.c.bf16 %v1117, %v1116
          %v1137 = vpack.c.bf16 %v1119, %v1118
          %v1138 = vpack.c.bf16 %v1121, %v1120
          %v1139 = vpack.c.bf16 %v1123, %v1122
          %v1140 = vld [vmem:[#allocation9] sm:$0xf]
          %v1141 = vld [vmem:[#allocation9 + $0x4] sm:$0xf]
          %v1142 = vld [vmem:[#allocation9 + $0x8] sm:$0xf]
          %v1143 = vld [vmem:[#allocation9 + $0xc] sm:$0xf]
          %v1144 = vld [vmem:[#allocation9 + $0x10] sm:$0xf]
          %v1145 = vld [vmem:[#allocation9 + $0x14] sm:$0xf]
          %v1146 = vld [vmem:[#allocation9 + $0x18] sm:$0xf]
          %v1147 = vld [vmem:[#allocation9 + $0x1c] sm:$0xf]
          %v1148 = vld [vmem:[#allocation9 + $0x20] sm:$0xf]
          %v1149 = vld [vmem:[#allocation9 + $0x24] sm:$0xf]
          %v1150 = vld [vmem:[#allocation9 + $0x28] sm:$0xf]
          %v1151 = vld [vmem:[#allocation9 + $0x2c] sm:$0xf]
          %v1152 = vld [vmem:[#allocation9 + $0x30] sm:$0xf]
          %v1153 = vld [vmem:[#allocation9 + $0x34] sm:$0xf]
          %v1154 = vld [vmem:[#allocation9 + $0x38] sm:$0xf]
          %v1155 = vld [vmem:[#allocation9 + $0x3c] sm:$0xf]
          %v1172 = vunpack.c.l.b16 %v1140
          %v1173 = vunpack.c.l.b16 %v1141
          %v1174 = vunpack.c.l.b16 %v1142
          %v1175 = vunpack.c.l.b16 %v1143
          %v1176 = vunpack.c.l.b16 %v1144
          %v1177 = vunpack.c.l.b16 %v1145
          %v1178 = vunpack.c.l.b16 %v1146
          %v1179 = vunpack.c.l.b16 %v1147
          %v1180 = vunpack.c.l.b16 %v1148
          %v1181 = vunpack.c.l.b16 %v1149
          %v1182 = vunpack.c.l.b16 %v1150
          %v1183 = vunpack.c.l.b16 %v1151
          %v1184 = vunpack.c.l.b16 %v1152
          %v1185 = vunpack.c.l.b16 %v1153
          %v1186 = vunpack.c.l.b16 %v1154
          %v1187 = vunpack.c.l.b16 %v1155
          %v1188 = vpack.c.b16 %v1173, %v1172
          %v1189 = vpack.c.b16 %v1175, %v1174
          %v1190 = vpack.c.b16 %v1177, %v1176
          %v1191 = vpack.c.b16 %v1179, %v1178
          %v1192 = vpack.c.b16 %v1181, %v1180
          %v1193 = vpack.c.b16 %v1183, %v1182
          %v1194 = vpack.c.b16 %v1185, %v1184
          %v1195 = vpack.c.b16 %v1187, %v1186
          %1204 = vmatprep.subr.bf16.mxu0 0
          %1205 = vmatpush1.bf16.msra.mxu0 %v1188
          %1206 = vmatprep.subr.bf16.mxu0 0
          %1207 = vmatpush1.bf16.msra.mxu0 %v1189
          %1208 = vmatprep.subr.bf16.mxu0 0
          %1209 = vmatpush1.bf16.msra.mxu0 %v1190
          %1210 = vmatprep.subr.bf16.mxu0 0
          %1211 = vmatpush1.bf16.msra.mxu0 %v1191
          %1212 = vmatprep.subr.bf16.mxu0 0
          %1213 = vmatpush1.bf16.msra.mxu0 %v1192
          %1214 = vmatprep.subr.bf16.mxu0 0
          %1215 = vmatpush1.bf16.msra.mxu0 %v1193
          %1216 = vmatprep.subr.bf16.mxu0 0
          %1217 = vmatpush1.bf16.msra.mxu0 %v1194
          %1218 = vmatprep.subr.bf16.mxu0 0
          %1219 = vmatpush1.bf16.msra.mxu0 %v1195
          %1220 = vmatprep.subr.bf16.mxu0 0
          %1221 = vmatpush1.bf16.msra.mxu0 0
          %1222 = vmatprep.subr.bf16.mxu0 0
          %1223 = vmatpush1.bf16.msra.mxu0 0
          %1224 = vmatprep.subr.bf16.mxu0 0
          %1225 = vmatpush1.bf16.msra.mxu0 0
          %1226 = vmatprep.subr.bf16.mxu0 0
          %1227 = vmatpush1.bf16.msra.mxu0 0
          %1228 = vmatprep.subr.bf16.mxu0 0
          %1229 = vmatpush1.bf16.msra.mxu0 0
          %1230 = vmatprep.subr.bf16.mxu0 0
          %1231 = vmatpush1.bf16.msra.mxu0 0
          %1232 = vmatprep.subr.bf16.mxu0 0
          %1233 = vmatpush1.bf16.msra.mxu0 0
          %1234 = vmatprep.subr.bf16.mxu0 0
          %1235 = vmatpush1.bf16.msra.mxu0 0
          %1236 = vmatprep.mubr.bf16.mxu0 0
          %1237 = vmatmul.mubr.bf16.gmra.mrb[0].mxu0 %v1124
          %v1238 = vpop.f32.mrb[0].mxu0
          %v1239 = vadd.f32 0.0, %v1238
          %v1240 = vpop.f32.mrb[0].mxu0
          %v1241 = vpop.f32.mrb[0].mxu0
          %v1242 = vadd.f32 0.0, %v1241
          %v1243 = vpop.f32.mrb[0].mxu0
          %1244 = vmatprep.mubr.bf16.mxu0 0
          %1245 = vmatmul.mubr.bf16.gmra.mrb[0].mxu0 %v1125
          %v1246 = vpop.f32.mrb[0].mxu0
          %v1247 = vadd.f32 0.0, %v1246
          %v1248 = vpop.f32.mrb[0].mxu0
          %v1249 = vpop.f32.mrb[0].mxu0
          %v1250 = vadd.f32 0.0, %v1249
          %v1251 = vpop.f32.mrb[0].mxu0
          %1252 = vmatprep.mubr.bf16.mxu0 0
          %1253 = vmatmul.mubr.bf16.gmra.mrb[0].mxu0 %v1126
          %v1254 = vpop.f32.mrb[0].mxu0
          %v1255 = vadd.f32 0.0, %v1254
          %v1256 = vpop.f32.mrb[0].mxu0
          %v1257 = vpop.f32.mrb[0].mxu0
          %v1258 = vadd.f32 0.0, %v1257
          %v1259 = vpop.f32.mrb[0].mxu0
          %1260 = vmatprep.mubr.bf16.mxu0 0
          %1261 = vmatmul.mubr.bf16.gmra.mrb[0].mxu0 %v1127
          %v1262 = vpop.f32.mrb[0].mxu0
          %v1263 = vadd.f32 0.0, %v1262
          %v1264 = vpop.f32.mrb[0].mxu0
          %v1265 = vpop.f32.mrb[0].mxu0
          %v1266 = vadd.f32 0.0, %v1265
          %v1267 = vpop.f32.mrb[0].mxu0
          %1268 = vmatprep.mubr.bf16.mxu0 0
          %1269 = vmatmul.mubr.bf16.gmra.mrb[0].mxu0 %v1128
          %v1270 = vpop.f32.mrb[0].mxu0
          %v1271 = vadd.f32 0.0, %v1270
          %v1272 = vpop.f32.mrb[0].mxu0
          %v1273 = vpop.f32.mrb[0].mxu0
          %v1274 = vadd.f32 0.0, %v1273
          %v1275 = vpop.f32.mrb[0].mxu0
          %1276 = vmatprep.mubr.bf16.mxu0 0
          %1277 = vmatmul.mubr.bf16.gmra.mrb[0].mxu0 %v1129
          %v1278 = vpop.f32.mrb[0].mxu0
          %v1279 = vadd.f32 0.0, %v1278
          %v1280 = vpop.f32.mrb[0].mxu0
          %v1281 = vpop.f32.mrb[0].mxu0
          %v1282 = vadd.f32 0.0, %v1281
          %v1283 = vpop.f32.mrb[0].mxu0
          %1284 = vmatprep.mubr.bf16.mxu0 0
          %1285 = vmatmul.mubr.bf16.gmra.mrb[0].mxu0 %v1130
          %v1286 = vpop.f32.mrb[0].mxu0
          %v1287 = vadd.f32 0.0, %v1286
          %v1288 = vpop.f32.mrb[0].mxu0
          %v1289 = vpop.f32.mrb[0].mxu0
          %v1290 = vadd.f32 0.0, %v1289
          %v1291 = vpop.f32.mrb[0].mxu0
          %1292 = vmatprep.mubr.bf16.mxu0 0
          %1293 = vmatmul.mubr.bf16.gmra.mrb[0].mxu0 %v1131
          %v1294 = vpop.f32.mrb[0].mxu0
          %v1295 = vadd.f32 0.0, %v1294
          %v1296 = vpop.f32.mrb[0].mxu0
          %v1297 = vpop.f32.mrb[0].mxu0
          %v1298 = vadd.f32 0.0, %v1297
          %v1299 = vpop.f32.mrb[0].mxu0
          %1300 = vmatprep.mubr.bf16.mxu0 0
          %1301 = vmatmul.mubr.bf16.gmra.mrb[0].mxu0 %v1132
          %v1302 = vpop.f32.mrb[0].mxu0
          %v1303 = vadd.f32 0.0, %v1302
          %v1304 = vpop.f32.mrb[0].mxu0
          %v1305 = vpop.f32.mrb[0].mxu0
          %v1306 = vadd.f32 0.0, %v1305
          %v1307 = vpop.f32.mrb[0].mxu0
          %1308 = vmatprep.mubr.bf16.mxu0 0
          %1309 = vmatmul.mubr.bf16.gmra.mrb[0].mxu0 %v1133
          %v1310 = vpop.f32.mrb[0].mxu0
          %v1311 = vadd.f32 0.0, %v1310
          %v1312 = vpop.f32.mrb[0].mxu0
          %v1313 = vpop.f32.mrb[0].mxu0
          %v1314 = vadd.f32 0.0, %v1313
          %v1315 = vpop.f32.mrb[0].mxu0
          %1316 = vmatprep.mubr.bf16.mxu0 0
          %1317 = vmatmul.mubr.bf16.gmra.mrb[0].mxu0 %v1134
          %v1318 = vpop.f32.mrb[0].mxu0
          %v1319 = vadd.f32 0.0, %v1318
          %v1320 = vpop.f32.mrb[0].mxu0
          %v1321 = vpop.f32.mrb[0].mxu0
          %v1322 = vadd.f32 0.0, %v1321
          %v1323 = vpop.f32.mrb[0].mxu0
          %1324 = vmatprep.mubr.bf16.mxu0 0
          %1325 = vmatmul.mubr.bf16.gmra.mrb[0].mxu0 %v1135
          %v1326 = vpop.f32.mrb[0].mxu0
          %v1327 = vadd.f32 0.0, %v1326
          %v1328 = vpop.f32.mrb[0].mxu0
          %v1329 = vpop.f32.mrb[0].mxu0
          %v1330 = vadd.f32 0.0, %v1329
          %v1331 = vpop.f32.mrb[0].mxu0
          %1332 = vmatprep.mubr.bf16.mxu0 0
          %1333 = vmatmul.mubr.bf16.gmra.mrb[0].mxu0 %v1136
          %v1334 = vpop.f32.mrb[0].mxu0
          %v1335 = vadd.f32 0.0, %v1334
          %v1336 = vpop.f32.mrb[0].mxu0
          %v1337 = vpop.f32.mrb[0].mxu0
          %v1338 = vadd.f32 0.0, %v1337
          %v1339 = vpop.f32.mrb[0].mxu0
          %1340 = vmatprep.mubr.bf16.mxu0 0
          %1341 = vmatmul.mubr.bf16.gmra.mrb[0].mxu0 %v1137
          %v1342 = vpop.f32.mrb[0].mxu0
          %v1343 = vadd.f32 0.0, %v1342
          %v1344 = vpop.f32.mrb[0].mxu0
          %v1345 = vpop.f32.mrb[0].mxu0
          %v1346 = vadd.f32 0.0, %v1345
          %v1347 = vpop.f32.mrb[0].mxu0
          %1348 = vmatprep.mubr.bf16.mxu0 0
          %1349 = vmatmul.mubr.bf16.gmra.mrb[0].mxu0 %v1138
          %v1350 = vpop.f32.mrb[0].mxu0
          %v1351 = vadd.f32 0.0, %v1350
          %v1352 = vpop.f32.mrb[0].mxu0
          %v1353 = vpop.f32.mrb[0].mxu0
          %v1354 = vadd.f32 0.0, %v1353
          %v1355 = vpop.f32.mrb[0].mxu0
          %1356 = vmatprep.mubr.bf16.mxu0 0
          %1357 = vmatmul.mubr.bf16.gmra.mrb[0].mxu0 %v1139
          %v1358 = vpop.f32.mrb[0].mxu0
          %v1359 = vadd.f32 0.0, %v1358
          %v1360 = vpop.f32.mrb[0].mxu0
          %v1361 = vpop.f32.mrb[0].mxu0
          %v1362 = vadd.f32 0.0, %v1361
          %v1363 = vpop.f32.mrb[0].mxu0
          %1364 = vdwg.mxu0
          %v1365 = vadd.f32 %v1092, %v1239
          %v1366 = vadd.f32 %v1093, %v1242
          %v1367 = vadd.f32 %v1094, %v1247
          %v1368 = vadd.f32 %v1095, %v1250
          %v1369 = vadd.f32 %v1096, %v1255
          %v1370 = vadd.f32 %v1097, %v1258
          %v1371 = vadd.f32 %v1098, %v1263
          %v1372 = vadd.f32 %v1099, %v1266
          %v1373 = vadd.f32 %v1100, %v1271
          %v1374 = vadd.f32 %v1101, %v1274
          %v1375 = vadd.f32 %v1102, %v1279
          %v1376 = vadd.f32 %v1103, %v1282
          %v1377 = vadd.f32 %v1104, %v1287
          %v1378 = vadd.f32 %v1105, %v1290
          %v1379 = vadd.f32 %v1106, %v1295
          %v1380 = vadd.f32 %v1107, %v1298
          %v1381 = vadd.f32 %v1108, %v1303
          %v1382 = vadd.f32 %v1109, %v1306
          %v1383 = vadd.f32 %v1110, %v1311
          %v1384 = vadd.f32 %v1111, %v1314
          %v1385 = vadd.f32 %v1112, %v1319
          %v1386 = vadd.f32 %v1113, %v1322
          %v1387 = vadd.f32 %v1114, %v1327
          %v1388 = vadd.f32 %v1115, %v1330
          %v1389 = vadd.f32 %v1116, %v1335
          %v1390 = vadd.f32 %v1117, %v1338
          %v1391 = vadd.f32 %v1118, %v1343
          %v1392 = vadd.f32 %v1119, %v1346
          %v1393 = vadd.f32 %v1120, %v1351
          %v1394 = vadd.f32 %v1121, %v1354
          %v1395 = vadd.f32 %v1122, %v1359
          %v1396 = vadd.f32 %v1123, %v1362
          %v1397 = vld [vmem:[%s4] sm:$0x1]
          %v1399 = vlaneseq
          %v1400 = vshrl.u32 %v1399, 7
          %v1401 = vsub.s32 0, %v1400
          %v1402 = vrot.slane %v1397, %v1401
          %v1404 = vadd.f32 %v1365, %v1402
          %v1405 = vadd.f32 %v1366, %v1402
          %v1406 = vadd.f32 %v1367, %v1402
          %v1407 = vadd.f32 %v1368, %v1402
          %v1408 = vadd.f32 %v1369, %v1402
          %v1409 = vadd.f32 %v1370, %v1402
          %v1410 = vadd.f32 %v1371, %v1402
          %v1411 = vadd.f32 %v1372, %v1402
          %v1412 = vadd.f32 %v1373, %v1402
          %v1413 = vadd.f32 %v1374, %v1402
          %v1414 = vadd.f32 %v1375, %v1402
          %v1415 = vadd.f32 %v1376, %v1402
          %v1416 = vadd.f32 %v1377, %v1402
          %v1417 = vadd.f32 %v1378, %v1402
          %v1418 = vadd.f32 %v1379, %v1402
          %v1419 = vadd.f32 %v1380, %v1402
          %v1420 = vadd.f32 %v1381, %v1402
          %v1421 = vadd.f32 %v1382, %v1402
          %v1422 = vadd.f32 %v1383, %v1402
          %v1423 = vadd.f32 %v1384, %v1402
          %v1424 = vadd.f32 %v1385, %v1402
          %v1425 = vadd.f32 %v1386, %v1402
          %v1426 = vadd.f32 %v1387, %v1402
          %v1427 = vadd.f32 %v1388, %v1402
          %v1428 = vadd.f32 %v1389, %v1402
          %v1429 = vadd.f32 %v1390, %v1402
          %v1430 = vadd.f32 %v1391, %v1402
          %v1431 = vadd.f32 %v1392, %v1402
          %v1432 = vadd.f32 %v1393, %v1402
          %v1433 = vadd.f32 %v1394, %v1402
          %v1434 = vadd.f32 %v1395, %v1402
          %v1435 = vadd.f32 %v1396, %v1402
          %1436 = vst [vmem:[#allocation2] sm:$0xff] %v1404
          %1437 = vst [vmem:[#allocation2 + $0x8] sm:$0xff] %v1405
          %1438 = vst [vmem:[#allocation2 + $0x10] sm:$0xff] %v1406
          %1439 = vst [vmem:[#allocation2 + $0x18] sm:$0xff] %v1407
          %1440 = vst [vmem:[#allocation2 + $0x20] sm:$0xff] %v1408
          %1441 = vst [vmem:[#allocation2 + $0x28] sm:$0xff] %v1409
          %1442 = vst [vmem:[#allocation2 + $0x30] sm:$0xff] %v1410
          %1443 = vst [vmem:[#allocation2 + $0x38] sm:$0xff] %v1411
          %1444 = vst [vmem:[#allocation2 + $0x40] sm:$0xff] %v1412
          %1445 = vst [vmem:[#allocation2 + $0x48] sm:$0xff] %v1413
          %1446 = vst [vmem:[#allocation2 + $0x50] sm:$0xff] %v1414
          %1447 = vst [vmem:[#allocation2 + $0x58] sm:$0xff] %v1415
          %1448 = vst [vmem:[#allocation2 + $0x60] sm:$0xff] %v1416
          %1449 = vst [vmem:[#allocation2 + $0x68] sm:$0xff] %v1417
          %1450 = vst [vmem:[#allocation2 + $0x70] sm:$0xff] %v1418
          %1451 = vst [vmem:[#allocation2 + $0x78] sm:$0xff] %v1419
          %1452 = vst [vmem:[#allocation2 + $0x80] sm:$0xff] %v1420
          %1453 = vst [vmem:[#allocation2 + $0x88] sm:$0xff] %v1421
          %1454 = vst [vmem:[#allocation2 + $0x90] sm:$0xff] %v1422
          %1455 = vst [vmem:[#allocation2 + $0x98] sm:$0xff] %v1423
          %1456 = vst [vmem:[#allocation2 + $0xa0] sm:$0xff] %v1424
          %1457 = vst [vmem:[#allocation2 + $0xa8] sm:$0xff] %v1425
          %1458 = vst [vmem:[#allocation2 + $0xb0] sm:$0xff] %v1426
          %1459 = vst [vmem:[#allocation2 + $0xb8] sm:$0xff] %v1427
          %1460 = vst [vmem:[#allocation2 + $0xc0] sm:$0xff] %v1428
          %1461 = vst [vmem:[#allocation2 + $0xc8] sm:$0xff] %v1429
          %1462 = vst [vmem:[#allocation2 + $0xd0] sm:$0xff] %v1430
          %1463 = vst [vmem:[#allocation2 + $0xd8] sm:$0xff] %v1431
          %1464 = vst [vmem:[#allocation2 + $0xe0] sm:$0xff] %v1432
          %1465 = vst [vmem:[#allocation2 + $0xe8] sm:$0xff] %v1433
          %1466 = vst [vmem:[#allocation2 + $0xf0] sm:$0xff] %v1434
          %1467 = vst [vmem:[#allocation2 + $0xf8] sm:$0xff] %v1435
        $region88: #{tpu_custom_call.1} parent=59 // pred_fallthru
          _
        %v1468 = vld [vmem:[#allocation2] sm:$0xff]
        %v1469 = vld [vmem:[#allocation2 + $0x8] sm:$0xff]
        %v1470 = vld [vmem:[#allocation2 + $0x10] sm:$0xff]
        %v1471 = vld [vmem:[#allocation2 + $0x18] sm:$0xff]
        %v1472 = vld [vmem:[#allocation2 + $0x20] sm:$0xff]
        %v1473 = vld [vmem:[#allocation2 + $0x28] sm:$0xff]
        %v1474 = vld [vmem:[#allocation2 + $0x30] sm:$0xff]
        %v1475 = vld [vmem:[#allocation2 + $0x38] sm:$0xff]
        %v1476 = vld [vmem:[#allocation2 + $0x40] sm:$0xff]
        %v1477 = vld [vmem:[#allocation2 + $0x48] sm:$0xff]
        %v1478 = vld [vmem:[#allocation2 + $0x50] sm:$0xff]
        %v1479 = vld [vmem:[#allocation2 + $0x58] sm:$0xff]
        %v1480 = vld [vmem:[#allocation2 + $0x60] sm:$0xff]
        %v1481 = vld [vmem:[#allocation2 + $0x68] sm:$0xff]
        %v1482 = vld [vmem:[#allocation2 + $0x70] sm:$0xff]
        %v1483 = vld [vmem:[#allocation2 + $0x78] sm:$0xff]
        %v1484 = vld [vmem:[#allocation2 + $0x80] sm:$0xff]
        %v1485 = vld [vmem:[#allocation2 + $0x88] sm:$0xff]
        %v1486 = vld [vmem:[#allocation2 + $0x90] sm:$0xff]
        %v1487 = vld [vmem:[#allocation2 + $0x98] sm:$0xff]
        %v1488 = vld [vmem:[#allocation2 + $0xa0] sm:$0xff]
        %v1489 = vld [vmem:[#allocation2 + $0xa8] sm:$0xff]
        %v1490 = vld [vmem:[#allocation2 + $0xb0] sm:$0xff]
        %v1491 = vld [vmem:[#allocation2 + $0xb8] sm:$0xff]
        %v1492 = vld [vmem:[#allocation2 + $0xc0] sm:$0xff]
        %v1493 = vld [vmem:[#allocation2 + $0xc8] sm:$0xff]
        %v1494 = vld [vmem:[#allocation2 + $0xd0] sm:$0xff]
        %v1495 = vld [vmem:[#allocation2 + $0xd8] sm:$0xff]
        %v1496 = vld [vmem:[#allocation2 + $0xe0] sm:$0xff]
        %v1497 = vld [vmem:[#allocation2 + $0xe8] sm:$0xff]
        %v1498 = vld [vmem:[#allocation2 + $0xf0] sm:$0xff]
        %v1499 = vld [vmem:[#allocation2 + $0xf8] sm:$0xff]
        %v1500 = vpack.c.bf16 %v1469, %v1468
        %v1501 = vpack.c.bf16 %v1471, %v1470
        %v1502 = vpack.c.bf16 %v1473, %v1472
        %v1503 = vpack.c.bf16 %v1475, %v1474
        %v1504 = vpack.c.bf16 %v1477, %v1476
        %v1505 = vpack.c.bf16 %v1479, %v1478
        %v1506 = vpack.c.bf16 %v1481, %v1480
        %v1507 = vpack.c.bf16 %v1483, %v1482
        %v1508 = vpack.c.bf16 %v1485, %v1484
        %v1509 = vpack.c.bf16 %v1487, %v1486
        %v1510 = vpack.c.bf16 %v1489, %v1488
        %v1511 = vpack.c.bf16 %v1491, %v1490
        %v1512 = vpack.c.bf16 %v1493, %v1492
        %v1513 = vpack.c.bf16 %v1495, %v1494
        %v1514 = vpack.c.bf16 %v1497, %v1496
        %v1515 = vpack.c.bf16 %v1499, %v1498
        %v1516 = vld [vmem:[%s483] sm:$0xff]
        %v1517 = vld [vmem:[%s483 + $0x8] sm:$0xf]
        %v1518 = vld [vmem:[%s483 + $0xc] sm:$0xff]
        %v1519 = vld [vmem:[%s483 + $0x14] sm:$0xf]
        %v1520 = vld [vmem:[%s483 + $0x18] sm:$0xff]
        %v1521 = vld [vmem:[%s483 + $0x20] sm:$0xf]
        %v1522 = vld [vmem:[%s483 + $0x24] sm:$0xff]
        %v1523 = vld [vmem:[%s483 + $0x2c] sm:$0xf]
        %v1524 = vld [vmem:[%s483 + $0x30] sm:$0xff]
        %v1525 = vld [vmem:[%s483 + $0x38] sm:$0xf]
        %v1526 = vld [vmem:[%s483 + $0x3c] sm:$0xff]
        %v1527 = vld [vmem:[%s483 + $0x44] sm:$0xf]
        %v1528 = vld [vmem:[%s483 + $0x48] sm:$0xff]
        %v1529 = vld [vmem:[%s483 + $0x50] sm:$0xf]
        %v1530 = vld [vmem:[%s483 + $0x54] sm:$0xff]
        %v1531 = vld [vmem:[%s483 + $0x5c] sm:$0xf]
        %v1532 = vld [vmem:[%s483 + $0x60] sm:$0xff]
        %v1533 = vld [vmem:[%s483 + $0x68] sm:$0xf]
        %v1534 = vld [vmem:[%s483 + $0x6c] sm:$0xff]
        %v1535 = vld [vmem:[%s483 + $0x74] sm:$0xf]
        %v1536 = vld [vmem:[%s483 + $0x78] sm:$0xff]
        %v1537 = vld [vmem:[%s483 + $0x80] sm:$0xf]
        %v1538 = vld [vmem:[%s483 + $0x84] sm:$0xff]
        %v1539 = vld [vmem:[%s483 + $0x8c] sm:$0xf]
        %v1540 = vld [vmem:[%s483 + $0x90] sm:$0xff]
        %v1541 = vld [vmem:[%s483 + $0x98] sm:$0xf]
        %v1542 = vld [vmem:[%s483 + $0x9c] sm:$0xff]
        %v1543 = vld [vmem:[%s483 + $0xa4] sm:$0xf]
        %v1544 = vld [vmem:[%s483 + $0xa8] sm:$0xff]
        %v1545 = vld [vmem:[%s483 + $0xb0] sm:$0xf]
        %v1546 = vld [vmem:[%s483 + $0xb4] sm:$0xff]
        %v1547 = vld [vmem:[%s483 + $0xbc] sm:$0xf]
        %v1548 = vld [vmem:[%s563] sm:$0x7]
        %v1550 = vlaneseq
        %v1551 = vshrl.u32 %v1550, 7
        %v1552 = vsub.s32 0, %v1551
        %v1553 = vrot.slane %v1548, %v1552
        %v1554 = vlaneseq
        %v1555 = vshrl.u32 %v1554, 7
        %v1556 = vsub.s32 1, %v1555
        %v1557 = vrot.slane %v1548, %v1556
        %v1558 = vlaneseq
        %v1559 = vshrl.u32 %v1558, 7
        %v1560 = vsub.s32 2, %v1559
        %v1561 = vrot.slane %v1548, %v1560
        %v1597 = vunpack.c.l.b16 %v1516
        %v1598 = vunpack.c.h.b16 %v1516
        %v1599 = vunpack.c.l.b16 %v1517
        %v1600 = vunpack.c.l.b16 %v1518
        %v1601 = vunpack.c.h.b16 %v1518
        %v1602 = vunpack.c.l.b16 %v1519
        %v1603 = vunpack.c.l.b16 %v1520
        %v1604 = vunpack.c.h.b16 %v1520
        %v1605 = vunpack.c.l.b16 %v1521
        %v1606 = vunpack.c.l.b16 %v1522
        %v1607 = vunpack.c.h.b16 %v1522
        %v1608 = vunpack.c.l.b16 %v1523
        %v1609 = vunpack.c.l.b16 %v1524
        %v1610 = vunpack.c.h.b16 %v1524
        %v1611 = vunpack.c.l.b16 %v1525
        %v1612 = vunpack.c.l.b16 %v1526
        %v1613 = vunpack.c.h.b16 %v1526
        %v1614 = vunpack.c.l.b16 %v1527
        %v1615 = vunpack.c.l.b16 %v1528
        %v1616 = vunpack.c.h.b16 %v1528
        %v1617 = vunpack.c.l.b16 %v1529
        %v1618 = vunpack.c.l.b16 %v1530
        %v1619 = vunpack.c.h.b16 %v1530
        %v1620 = vunpack.c.l.b16 %v1531
        %v1621 = vunpack.c.l.b16 %v1532
        %v1622 = vunpack.c.h.b16 %v1532
        %v1623 = vunpack.c.l.b16 %v1533
        %v1624 = vunpack.c.l.b16 %v1534
        %v1625 = vunpack.c.h.b16 %v1534
        %v1626 = vunpack.c.l.b16 %v1535
        %v1627 = vunpack.c.l.b16 %v1536
        %v1628 = vunpack.c.h.b16 %v1536
        %v1629 = vunpack.c.l.b16 %v1537
        %v1630 = vunpack.c.l.b16 %v1538
        %v1631 = vunpack.c.h.b16 %v1538
        %v1632 = vunpack.c.l.b16 %v1539
        %v1633 = vunpack.c.l.b16 %v1540
        %v1634 = vunpack.c.h.b16 %v1540
        %v1635 = vunpack.c.l.b16 %v1541
        %v1636 = vunpack.c.l.b16 %v1542
        %v1637 = vunpack.c.h.b16 %v1542
        %v1638 = vunpack.c.l.b16 %v1543
        %v1639 = vunpack.c.l.b16 %v1544
        %v1640 = vunpack.c.h.b16 %v1544
        %v1641 = vunpack.c.l.b16 %v1545
        %v1642 = vunpack.c.l.b16 %v1546
        %v1643 = vunpack.c.h.b16 %v1546
        %v1644 = vunpack.c.l.b16 %v1547
        %v1645 = vpack.c.b16 %v1600, %v1597
        %v1646 = vpack.c.b16 %v1601, %v1598
        %v1647 = vpack.c.b16 %v1602, %v1599
        %v1648 = vpack.c.b16 %v1606, %v1603
        %v1649 = vpack.c.b16 %v1607, %v1604
        %v1650 = vpack.c.b16 %v1608, %v1605
        %v1651 = vpack.c.b16 %v1612, %v1609
        %v1652 = vpack.c.b16 %v1613, %v1610
        %v1653 = vpack.c.b16 %v1614, %v1611
        %v1654 = vpack.c.b16 %v1618, %v1615
        %v1655 = vpack.c.b16 %v1619, %v1616
        %v1656 = vpack.c.b16 %v1620, %v1617
        %v1657 = vpack.c.b16 %v1624, %v1621
        %v1658 = vpack.c.b16 %v1625, %v1622
        %v1659 = vpack.c.b16 %v1626, %v1623
        %v1660 = vpack.c.b16 %v1630, %v1627
        %v1661 = vpack.c.b16 %v1631, %v1628
        %v1662 = vpack.c.b16 %v1632, %v1629
        %v1663 = vpack.c.b16 %v1636, %v1633
        %v1664 = vpack.c.b16 %v1637, %v1634
        %v1665 = vpack.c.b16 %v1638, %v1635
        %v1666 = vpack.c.b16 %v1642, %v1639
        %v1667 = vpack.c.b16 %v1643, %v1640
        %v1668 = vpack.c.b16 %v1644, %v1641
        %1693 = vmatprep.subr.bf16.mxu0 %v1646
        %1694 = vmatpush1.bf16.msra.mxu0 %v1645
        %1695 = vmatprep.subr.bf16.mxu0 %v1649
        %1696 = vmatpush1.bf16.msra.mxu0 %v1648
        %1697 = vmatprep.subr.bf16.mxu0 %v1652
        %1698 = vmatpush1.bf16.msra.mxu0 %v1651
        %1699 = vmatprep.subr.bf16.mxu0 %v1655
        %1700 = vmatpush1.bf16.msra.mxu0 %v1654
        %1701 = vmatprep.subr.bf16.mxu0 %v1658
        %1702 = vmatpush1.bf16.msra.mxu0 %v1657
        %1703 = vmatprep.subr.bf16.mxu0 %v1661
        %1704 = vmatpush1.bf16.msra.mxu0 %v1660
        %1705 = vmatprep.subr.bf16.mxu0 %v1664
        %1706 = vmatpush1.bf16.msra.mxu0 %v1663
        %1707 = vmatprep.subr.bf16.mxu0 %v1667
        %1708 = vmatpush1.bf16.msra.mxu0 %v1666
        %1709 = vmatprep.subr.bf16.mxu0 0
        %1710 = vmatpush1.bf16.msra.mxu0 0
        %1711 = vmatprep.subr.bf16.mxu0 0
        %1712 = vmatpush1.bf16.msra.mxu0 0
        %1713 = vmatprep.subr.bf16.mxu0 0
        %1714 = vmatpush1.bf16.msra.mxu0 0
        %1715 = vmatprep.subr.bf16.mxu0 0
        %1716 = vmatpush1.bf16.msra.mxu0 0
        %1717 = vmatprep.subr.bf16.mxu0 0
        %1718 = vmatpush1.bf16.msra.mxu0 0
        %1719 = vmatprep.subr.bf16.mxu0 0
        %1720 = vmatpush1.bf16.msra.mxu0 0
        %1721 = vmatprep.subr.bf16.mxu0 0
        %1722 = vmatpush1.bf16.msra.mxu0 0
        %1723 = vmatprep.subr.bf16.mxu0 0
        %1724 = vmatpush1.bf16.msra.mxu0 0
        %1725 = vmatprep.mubr.bf16.mxu0 0
        %1726 = vmatmul.mubr.bf16.gmra.mrb[0].mxu0 %v1500
        %v1727 = vpop.f32.mrb[0].mxu0
        %v1728 = vadd.f32 %v1553, %v1727
        %v1729 = vpop.f32.mrb[0].mxu0
        %v1730 = vadd.f32 %v1557, %v1729
        %v1731 = vpop.f32.mrb[0].mxu0
        %v1732 = vadd.f32 %v1553, %v1731
        %v1733 = vpop.f32.mrb[0].mxu0
        %v1734 = vadd.f32 %v1557, %v1733
        %1735 = vmatprep.mubr.bf16.mxu0 0
        %1736 = vmatmul.mubr.bf16.gmra.mrb[0].mxu0 %v1501
        %v1737 = vpop.f32.mrb[0].mxu0
        %v1738 = vadd.f32 %v1553, %v1737
        %v1739 = vpop.f32.mrb[0].mxu0
        %v1740 = vadd.f32 %v1557, %v1739
        %v1741 = vpop.f32.mrb[0].mxu0
        %v1742 = vadd.f32 %v1553, %v1741
        %v1743 = vpop.f32.mrb[0].mxu0
        %v1744 = vadd.f32 %v1557, %v1743
        %1745 = vmatprep.mubr.bf16.mxu0 0
        %1746 = vmatmul.mubr.bf16.gmra.mrb[0].mxu0 %v1502
        %v1747 = vpop.f32.mrb[0].mxu0
        %v1748 = vadd.f32 %v1553, %v1747
        %v1749 = vpop.f32.mrb[0].mxu0
        %v1750 = vadd.f32 %v1557, %v1749
        %v1751 = vpop.f32.mrb[0].mxu0
        %v1752 = vadd.f32 %v1553, %v1751
        %v1753 = vpop.f32.mrb[0].mxu0
        %v1754 = vadd.f32 %v1557, %v1753
        %1755 = vmatprep.mubr.bf16.mxu0 0
        %1756 = vmatmul.mubr.bf16.gmra.mrb[0].mxu0 %v1503
        %v1757 = vpop.f32.mrb[0].mxu0
        %v1758 = vadd.f32 %v1553, %v1757
        %v1759 = vpop.f32.mrb[0].mxu0
        %v1760 = vadd.f32 %v1557, %v1759
        %v1761 = vpop.f32.mrb[0].mxu0
        %v1762 = vadd.f32 %v1553, %v1761
        %v1763 = vpop.f32.mrb[0].mxu0
        %v1764 = vadd.f32 %v1557, %v1763
        %1765 = vmatprep.mubr.bf16.mxu0 0
        %1766 = vmatmul.mubr.bf16.gmra.mrb[0].mxu0 %v1504
        %v1767 = vpop.f32.mrb[0].mxu0
        %v1768 = vadd.f32 %v1553, %v1767
        %v1769 = vpop.f32.mrb[0].mxu0
        %v1770 = vadd.f32 %v1557, %v1769
        %v1771 = vpop.f32.mrb[0].mxu0
        %v1772 = vadd.f32 %v1553, %v1771
        %v1773 = vpop.f32.mrb[0].mxu0
        %v1774 = vadd.f32 %v1557, %v1773
        %1775 = vmatprep.mubr.bf16.mxu0 0
        %1776 = vmatmul.mubr.bf16.gmra.mrb[0].mxu0 %v1505
        %v1777 = vpop.f32.mrb[0].mxu0
        %v1778 = vadd.f32 %v1553, %v1777
        %v1779 = vpop.f32.mrb[0].mxu0
        %v1780 = vadd.f32 %v1557, %v1779
        %v1781 = vpop.f32.mrb[0].mxu0
        %v1782 = vadd.f32 %v1553, %v1781
        %v1783 = vpop.f32.mrb[0].mxu0
        %v1784 = vadd.f32 %v1557, %v1783
        %1785 = vmatprep.mubr.bf16.mxu0 0
        %1786 = vmatmul.mubr.bf16.gmra.mrb[0].mxu0 %v1506
        %v1787 = vpop.f32.mrb[0].mxu0
        %v1788 = vadd.f32 %v1553, %v1787
        %v1789 = vpop.f32.mrb[0].mxu0
        %v1790 = vadd.f32 %v1557, %v1789
        %v1791 = vpop.f32.mrb[0].mxu0
        %v1792 = vadd.f32 %v1553, %v1791
        %v1793 = vpop.f32.mrb[0].mxu0
        %v1794 = vadd.f32 %v1557, %v1793
        %1795 = vmatprep.mubr.bf16.mxu0 0
        %1796 = vmatmul.mubr.bf16.gmra.mrb[0].mxu0 %v1507
        %v1797 = vpop.f32.mrb[0].mxu0
        %v1798 = vadd.f32 %v1553, %v1797
        %v1799 = vpop.f32.mrb[0].mxu0
        %v1800 = vadd.f32 %v1557, %v1799
        %v1801 = vpop.f32.mrb[0].mxu0
        %v1802 = vadd.f32 %v1553, %v1801
        %v1803 = vpop.f32.mrb[0].mxu0
        %v1804 = vadd.f32 %v1557, %v1803
        %1805 = vmatprep.mubr.bf16.mxu0 0
        %1806 = vmatmul.mubr.bf16.gmra.mrb[0].mxu0 %v1508
        %v1807 = vpop.f32.mrb[0].mxu0
        %v1808 = vadd.f32 %v1553, %v1807
        %v1809 = vpop.f32.mrb[0].mxu0
        %v1810 = vadd.f32 %v1557, %v1809
        %v1811 = vpop.f32.mrb[0].mxu0
        %v1812 = vadd.f32 %v1553, %v1811
        %v1813 = vpop.f32.mrb[0].mxu0
        %v1814 = vadd.f32 %v1557, %v1813
        %1815 = vmatprep.mubr.bf16.mxu0 0
        %1816 = vmatmul.mubr.bf16.gmra.mrb[0].mxu0 %v1509
        %v1817 = vpop.f32.mrb[0].mxu0
        %v1818 = vadd.f32 %v1553, %v1817
        %v1819 = vpop.f32.mrb[0].mxu0
        %v1820 = vadd.f32 %v1557, %v1819
        %v1821 = vpop.f32.mrb[0].mxu0
        %v1822 = vadd.f32 %v1553, %v1821
        %v1823 = vpop.f32.mrb[0].mxu0
        %v1824 = vadd.f32 %v1557, %v1823
        %1825 = vmatprep.mubr.bf16.mxu0 0
        %1826 = vmatmul.mubr.bf16.gmra.mrb[0].mxu0 %v1510
        %v1827 = vpop.f32.mrb[0].mxu0
        %v1828 = vadd.f32 %v1553, %v1827
        %v1829 = vpop.f32.mrb[0].mxu0
        %v1830 = vadd.f32 %v1557, %v1829
        %v1831 = vpop.f32.mrb[0].mxu0
        %v1832 = vadd.f32 %v1553, %v1831
        %v1833 = vpop.f32.mrb[0].mxu0
        %v1834 = vadd.f32 %v1557, %v1833
        %1835 = vmatprep.mubr.bf16.mxu0 0
        %1836 = vmatmul.mubr.bf16.gmra.mrb[0].mxu0 %v1511
        %v1837 = vpop.f32.mrb[0].mxu0
        %v1838 = vadd.f32 %v1553, %v1837
        %v1839 = vpop.f32.mrb[0].mxu0
        %v1840 = vadd.f32 %v1557, %v1839
        %v1841 = vpop.f32.mrb[0].mxu0
        %v1842 = vadd.f32 %v1553, %v1841
        %v1843 = vpop.f32.mrb[0].mxu0
        %v1844 = vadd.f32 %v1557, %v1843
        %1845 = vmatprep.mubr.bf16.mxu0 0
        %1846 = vmatmul.mubr.bf16.gmra.mrb[0].mxu0 %v1512
        %v1847 = vpop.f32.mrb[0].mxu0
        %v1848 = vadd.f32 %v1553, %v1847
        %v1849 = vpop.f32.mrb[0].mxu0
        %v1850 = vadd.f32 %v1557, %v1849
        %v1851 = vpop.f32.mrb[0].mxu0
        %v1852 = vadd.f32 %v1553, %v1851
        %v1853 = vpop.f32.mrb[0].mxu0
        %v1854 = vadd.f32 %v1557, %v1853
        %1855 = vmatprep.mubr.bf16.mxu0 0
        %1856 = vmatmul.mubr.bf16.gmra.mrb[0].mxu0 %v1513
        %v1857 = vpop.f32.mrb[0].mxu0
        %v1858 = vadd.f32 %v1553, %v1857
        %v1859 = vpop.f32.mrb[0].mxu0
        %v1860 = vadd.f32 %v1557, %v1859
        %v1861 = vpop.f32.mrb[0].mxu0
        %v1862 = vadd.f32 %v1553, %v1861
        %v1863 = vpop.f32.mrb[0].mxu0
        %v1864 = vadd.f32 %v1557, %v1863
        %1865 = vmatprep.mubr.bf16.mxu0 0
        %1866 = vmatmul.mubr.bf16.gmra.mrb[0].mxu0 %v1514
        %v1867 = vpop.f32.mrb[0].mxu0
        %v1868 = vadd.f32 %v1553, %v1867
        %v1869 = vpop.f32.mrb[0].mxu0
        %v1870 = vadd.f32 %v1557, %v1869
        %v1871 = vpop.f32.mrb[0].mxu0
        %v1872 = vadd.f32 %v1553, %v1871
        %v1873 = vpop.f32.mrb[0].mxu0
        %v1874 = vadd.f32 %v1557, %v1873
        %1875 = vmatprep.mubr.bf16.mxu0 0
        %1876 = vmatmul.mubr.bf16.gmra.mrb[0].mxu0 %v1515
        %v1877 = vpop.f32.mrb[0].mxu0
        %v1878 = vadd.f32 %v1553, %v1877
        %v1879 = vpop.f32.mrb[0].mxu0
        %v1880 = vadd.f32 %v1557, %v1879
        %v1881 = vpop.f32.mrb[0].mxu0
        %v1882 = vadd.f32 %v1553, %v1881
        %v1883 = vpop.f32.mrb[0].mxu0
        %v1884 = vadd.f32 %v1557, %v1883
        %1885 = vdwg.mxu0
        %1886 = vmatprep.subr.bf16.mxu0 0
        %1887 = vmatpush1.bf16.msra.mxu0 %v1647
        %1888 = vmatprep.subr.bf16.mxu0 0
        %1889 = vmatpush1.bf16.msra.mxu0 %v1650
        %1890 = vmatprep.subr.bf16.mxu0 0
        %1891 = vmatpush1.bf16.msra.mxu0 %v1653
        %1892 = vmatprep.subr.bf16.mxu0 0
        %1893 = vmatpush1.bf16.msra.mxu0 %v1656
        %1894 = vmatprep.subr.bf16.mxu0 0
        %1895 = vmatpush1.bf16.msra.mxu0 %v1659
        %1896 = vmatprep.subr.bf16.mxu0 0
        %1897 = vmatpush1.bf16.msra.mxu0 %v1662
        %1898 = vmatprep.subr.bf16.mxu0 0
        %1899 = vmatpush1.bf16.msra.mxu0 %v1665
        %1900 = vmatprep.subr.bf16.mxu0 0
        %1901 = vmatpush1.bf16.msra.mxu0 %v1668
        %1902 = vmatprep.subr.bf16.mxu0 0
        %1903 = vmatpush1.bf16.msra.mxu0 0
        %1904 = vmatprep.subr.bf16.mxu0 0
        %1905 = vmatpush1.bf16.msra.mxu0 0
        %1906 = vmatprep.subr.bf16.mxu0 0
        %1907 = vmatpush1.bf16.msra.mxu0 0
        %1908 = vmatprep.subr.bf16.mxu0 0
        %1909 = vmatpush1.bf16.msra.mxu0 0
        %1910 = vmatprep.subr.bf16.mxu0 0
        %1911 = vmatpush1.bf16.msra.mxu0 0
        %1912 = vmatprep.subr.bf16.mxu0 0
        %1913 = vmatpush1.bf16.msra.mxu0 0
        %1914 = vmatprep.subr.bf16.mxu0 0
        %1915 = vmatpush1.bf16.msra.mxu0 0
        %1916 = vmatprep.subr.bf16.mxu0 0
        %1917 = vmatpush1.bf16.msra.mxu0 0
        %1918 = vmatprep.mubr.bf16.mxu0 0
        %1919 = vmatmul.mubr.bf16.gmra.mrb[0].mxu0 %v1500
        %v1920 = vpop.f32.mrb[0].mxu0
        %v1921 = vadd.f32 %v1561, %v1920
        %v1922 = vpop.f32.mrb[0].mxu0
        %v1923 = vpop.f32.mrb[0].mxu0
        %v1924 = vadd.f32 %v1561, %v1923
        %v1925 = vpop.f32.mrb[0].mxu0
        %1926 = vmatprep.mubr.bf16.mxu0 0
        %1927 = vmatmul.mubr.bf16.gmra.mrb[0].mxu0 %v1501
        %v1928 = vpop.f32.mrb[0].mxu0
        %v1929 = vadd.f32 %v1561, %v1928
        %v1930 = vpop.f32.mrb[0].mxu0
        %v1931 = vpop.f32.mrb[0].mxu0
        %v1932 = vadd.f32 %v1561, %v1931
        %v1933 = vpop.f32.mrb[0].mxu0
        %1934 = vmatprep.mubr.bf16.mxu0 0
        %1935 = vmatmul.mubr.bf16.gmra.mrb[0].mxu0 %v1502
        %v1936 = vpop.f32.mrb[0].mxu0
        %v1937 = vadd.f32 %v1561, %v1936
        %v1938 = vpop.f32.mrb[0].mxu0
        %v1939 = vpop.f32.mrb[0].mxu0
        %v1940 = vadd.f32 %v1561, %v1939
        %v1941 = vpop.f32.mrb[0].mxu0
        %1942 = vmatprep.mubr.bf16.mxu0 0
        %1943 = vmatmul.mubr.bf16.gmra.mrb[0].mxu0 %v1503
        %v1944 = vpop.f32.mrb[0].mxu0
        %v1945 = vadd.f32 %v1561, %v1944
        %v1946 = vpop.f32.mrb[0].mxu0
        %v1947 = vpop.f32.mrb[0].mxu0
        %v1948 = vadd.f32 %v1561, %v1947
        %v1949 = vpop.f32.mrb[0].mxu0
        %1950 = vmatprep.mubr.bf16.mxu0 0
        %1951 = vmatmul.mubr.bf16.gmra.mrb[0].mxu0 %v1504
        %v1952 = vpop.f32.mrb[0].mxu0
        %v1953 = vadd.f32 %v1561, %v1952
        %v1954 = vpop.f32.mrb[0].mxu0
        %v1955 = vpop.f32.mrb[0].mxu0
        %v1956 = vadd.f32 %v1561, %v1955
        %v1957 = vpop.f32.mrb[0].mxu0
        %1958 = vmatprep.mubr.bf16.mxu0 0
        %1959 = vmatmul.mubr.bf16.gmra.mrb[0].mxu0 %v1505
        %v1960 = vpop.f32.mrb[0].mxu0
        %v1961 = vadd.f32 %v1561, %v1960
        %v1962 = vpop.f32.mrb[0].mxu0
        %v1963 = vpop.f32.mrb[0].mxu0
        %v1964 = vadd.f32 %v1561, %v1963
        %v1965 = vpop.f32.mrb[0].mxu0
        %1966 = vmatprep.mubr.bf16.mxu0 0
        %1967 = vmatmul.mubr.bf16.gmra.mrb[0].mxu0 %v1506
        %v1968 = vpop.f32.mrb[0].mxu0
        %v1969 = vadd.f32 %v1561, %v1968
        %v1970 = vpop.f32.mrb[0].mxu0
        %v1971 = vpop.f32.mrb[0].mxu0
        %v1972 = vadd.f32 %v1561, %v1971
        %v1973 = vpop.f32.mrb[0].mxu0
        %1974 = vmatprep.mubr.bf16.mxu0 0
        %1975 = vmatmul.mubr.bf16.gmra.mrb[0].mxu0 %v1507
        %v1976 = vpop.f32.mrb[0].mxu0
        %v1977 = vadd.f32 %v1561, %v1976
        %v1978 = vpop.f32.mrb[0].mxu0
        %v1979 = vpop.f32.mrb[0].mxu0
        %v1980 = vadd.f32 %v1561, %v1979
        %v1981 = vpop.f32.mrb[0].mxu0
        %1982 = vmatprep.mubr.bf16.mxu0 0
        %1983 = vmatmul.mubr.bf16.gmra.mrb[0].mxu0 %v1508
        %v1984 = vpop.f32.mrb[0].mxu0
        %v1985 = vadd.f32 %v1561, %v1984
        %v1986 = vpop.f32.mrb[0].mxu0
        %v1987 = vpop.f32.mrb[0].mxu0
        %v1988 = vadd.f32 %v1561, %v1987
        %v1989 = vpop.f32.mrb[0].mxu0
        %1990 = vmatprep.mubr.bf16.mxu0 0
        %1991 = vmatmul.mubr.bf16.gmra.mrb[0].mxu0 %v1509
        %v1992 = vpop.f32.mrb[0].mxu0
        %v1993 = vadd.f32 %v1561, %v1992
        %v1994 = vpop.f32.mrb[0].mxu0
        %v1995 = vpop.f32.mrb[0].mxu0
        %v1996 = vadd.f32 %v1561, %v1995
        %v1997 = vpop.f32.mrb[0].mxu0
        %1998 = vmatprep.mubr.bf16.mxu0 0
        %1999 = vmatmul.mubr.bf16.gmra.mrb[0].mxu0 %v1510
        %v2000 = vpop.f32.mrb[0].mxu0
        %v2001 = vadd.f32 %v1561, %v2000
        %v2002 = vpop.f32.mrb[0].mxu0
        %v2003 = vpop.f32.mrb[0].mxu0
        %v2004 = vadd.f32 %v1561, %v2003
        %v2005 = vpop.f32.mrb[0].mxu0
        %2006 = vmatprep.mubr.bf16.mxu0 0
        %2007 = vmatmul.mubr.bf16.gmra.mrb[0].mxu0 %v1511
        %v2008 = vpop.f32.mrb[0].mxu0
        %v2009 = vadd.f32 %v1561, %v2008
        %v2010 = vpop.f32.mrb[0].mxu0
        %v2011 = vpop.f32.mrb[0].mxu0
        %v2012 = vadd.f32 %v1561, %v2011
        %v2013 = vpop.f32.mrb[0].mxu0
        %2014 = vmatprep.mubr.bf16.mxu0 0
        %2015 = vmatmul.mubr.bf16.gmra.mrb[0].mxu0 %v1512
        %v2016 = vpop.f32.mrb[0].mxu0
        %v2017 = vadd.f32 %v1561, %v2016
        %v2018 = vpop.f32.mrb[0].mxu0
        %v2019 = vpop.f32.mrb[0].mxu0
        %v2020 = vadd.f32 %v1561, %v2019
        %v2021 = vpop.f32.mrb[0].mxu0
        %2022 = vmatprep.mubr.bf16.mxu0 0
        %2023 = vmatmul.mubr.bf16.gmra.mrb[0].mxu0 %v1513
        %v2024 = vpop.f32.mrb[0].mxu0
        %v2025 = vadd.f32 %v1561, %v2024
        %v2026 = vpop.f32.mrb[0].mxu0
        %v2027 = vpop.f32.mrb[0].mxu0
        %v2028 = vadd.f32 %v1561, %v2027
        %v2029 = vpop.f32.mrb[0].mxu0
        %2030 = vmatprep.mubr.bf16.mxu0 0
        %2031 = vmatmul.mubr.bf16.gmra.mrb[0].mxu0 %v1514
        %v2032 = vpop.f32.mrb[0].mxu0
        %v2033 = vadd.f32 %v1561, %v2032
        %v2034 = vpop.f32.mrb[0].mxu0
        %v2035 = vpop.f32.mrb[0].mxu0
        %v2036 = vadd.f32 %v1561, %v2035
        %v2037 = vpop.f32.mrb[0].mxu0
        %2038 = vmatprep.mubr.bf16.mxu0 0
        %2039 = vmatmul.mubr.bf16.gmra.mrb[0].mxu0 %v1515
        %v2040 = vpop.f32.mrb[0].mxu0
        %v2041 = vadd.f32 %v1561, %v2040
        %v2042 = vpop.f32.mrb[0].mxu0
        %v2043 = vpop.f32.mrb[0].mxu0
        %v2044 = vadd.f32 %v1561, %v2043
        %v2045 = vpop.f32.mrb[0].mxu0
        %2046 = vdwg.mxu0
        %v2047 = vpack.c.bf16 %v1732, %v1728
        %v2048 = vpack.c.bf16 %v1734, %v1730
        %v2049 = vpack.c.bf16 %v1924, %v1921
        %v2050 = vpack.c.bf16 %v1742, %v1738
        %v2051 = vpack.c.bf16 %v1744, %v1740
        %v2052 = vpack.c.bf16 %v1932, %v1929
        %v2053 = vpack.c.bf16 %v1752, %v1748
        %v2054 = vpack.c.bf16 %v1754, %v1750
        %v2055 = vpack.c.bf16 %v1940, %v1937
        %v2056 = vpack.c.bf16 %v1762, %v1758
        %v2057 = vpack.c.bf16 %v1764, %v1760
        %v2058 = vpack.c.bf16 %v1948, %v1945
        %v2059 = vpack.c.bf16 %v1772, %v1768
        %v2060 = vpack.c.bf16 %v1774, %v1770
        %v2061 = vpack.c.bf16 %v1956, %v1953
        %v2062 = vpack.c.bf16 %v1782, %v1778
        %v2063 = vpack.c.bf16 %v1784, %v1780
        %v2064 = vpack.c.bf16 %v1964, %v1961
        %v2065 = vpack.c.bf16 %v1792, %v1788
        %v2066 = vpack.c.bf16 %v1794, %v1790
        %v2067 = vpack.c.bf16 %v1972, %v1969
        %v2068 = vpack.c.bf16 %v1802, %v1798
        %v2069 = vpack.c.bf16 %v1804, %v1800
        %v2070 = vpack.c.bf16 %v1980, %v1977
        %v2071 = vpack.c.bf16 %v1812, %v1808
        %v2072 = vpack.c.bf16 %v1814, %v1810
        %v2073 = vpack.c.bf16 %v1988, %v1985
        %v2074 = vpack.c.bf16 %v1822, %v1818
        %v2075 = vpack.c.bf16 %v1824, %v1820
        %v2076 = vpack.c.bf16 %v1996, %v1993
        %v2077 = vpack.c.bf16 %v1832, %v1828
        %v2078 = vpack.c.bf16 %v1834, %v1830
        %v2079 = vpack.c.bf16 %v2004, %v2001
        %v2080 = vpack.c.bf16 %v1842, %v1838
        %v2081 = vpack.c.bf16 %v1844, %v1840
        %v2082 = vpack.c.bf16 %v2012, %v2009
        %v2083 = vpack.c.bf16 %v1852, %v1848
        %v2084 = vpack.c.bf16 %v1854, %v1850
        %v2085 = vpack.c.bf16 %v2020, %v2017
        %v2086 = vpack.c.bf16 %v1862, %v1858
        %v2087 = vpack.c.bf16 %v1864, %v1860
        %v2088 = vpack.c.bf16 %v2028, %v2025
        %v2089 = vpack.c.bf16 %v1872, %v1868
        %v2090 = vpack.c.bf16 %v1874, %v1870
        %v2091 = vpack.c.bf16 %v2036, %v2033
        %v2092 = vpack.c.bf16 %v1882, %v1878
        %v2093 = vpack.c.bf16 %v1884, %v1880
        %v2094 = vpack.c.bf16 %v2044, %v2041
        %vm2095 = vcmask 261120
        %v2097 = vsel %vm2095, %v2047, 0
        %v2100 = vsel %vm2095, %v2050, 0
        %v2103 = vsel %vm2095, %v2053, 0
        %v2106 = vsel %vm2095, %v2056, 0
        %v2109 = vsel %vm2095, %v2059, 0
        %v2112 = vsel %vm2095, %v2062, 0
        %v2115 = vsel %vm2095, %v2065, 0
        %v2118 = vsel %vm2095, %v2068, 0
        %v2121 = vsel %vm2095, %v2071, 0
        %v2124 = vsel %vm2095, %v2074, 0
        %v2127 = vsel %vm2095, %v2077, 0
        %v2130 = vsel %vm2095, %v2080, 0
        %v2133 = vsel %vm2095, %v2083, 0
        %v2136 = vsel %vm2095, %v2086, 0
        %v2139 = vsel %vm2095, %v2089, 0
        %v2142 = vsel %vm2095, %v2092, 0
        %v2145 = vsel %vm2095, %v2048, 0
        %v2148 = vsel %vm2095, %v2051, 0
        %v2151 = vsel %vm2095, %v2054, 0
        %v2154 = vsel %vm2095, %v2057, 0
        %v2157 = vsel %vm2095, %v2060, 0
        %v2160 = vsel %vm2095, %v2063, 0
        %v2163 = vsel %vm2095, %v2066, 0
        %v2166 = vsel %vm2095, %v2069, 0
        %v2169 = vsel %vm2095, %v2072, 0
        %v2172 = vsel %vm2095, %v2075, 0
        %v2175 = vsel %vm2095, %v2078, 0
        %v2178 = vsel %vm2095, %v2081, 0
        %v2181 = vsel %vm2095, %v2084, 0
        %v2184 = vsel %vm2095, %v2087, 0
        %v2187 = vsel %vm2095, %v2090, 0
        %v2190 = vsel %vm2095, %v2093, 0
        %2192 = vmatprep.subr.bf16.mxu0 0
        %2193 = vmatpush1.bf16.xpose.msra.mxu0 %v2145
        %2194 = vmatprep.subr.bf16.mxu0 0
        %2195 = vmatpush1.bf16.xpose.msra.mxu0 %v2148
        %2196 = vmatprep.subr.bf16.mxu0 0
        %2197 = vmatpush1.bf16.xpose.msra.mxu0 %v2151
        %2198 = vmatprep.subr.bf16.mxu0 0
        %2199 = vmatpush1.bf16.xpose.msra.mxu0 %v2154
        %2200 = vmatprep.subr.bf16.mxu0 0
        %2201 = vmatpush1.bf16.xpose.msra.mxu0 %v2157
        %2202 = vmatprep.subr.bf16.mxu0 0
        %2203 = vmatpush1.bf16.xpose.msra.mxu0 %v2160
        %2204 = vmatprep.subr.bf16.mxu0 0
        %2205 = vmatpush1.bf16.xpose.msra.mxu0 %v2163
        %2206 = vmatprep.subr.bf16.mxu0 0
        %2207 = vmatpush1.bf16.xpose.msra.mxu0 %v2166
        %2208 = vmatprep.subr.bf16.mxu0 0
        %2209 = vmatpush1.bf16.xpose.msra.mxu0 %v2169
        %2210 = vmatprep.subr.bf16.mxu0 0
        %2211 = vmatpush1.bf16.xpose.msra.mxu0 %v2172
        %2212 = vmatprep.subr.bf16.mxu0 0
        %2213 = vmatpush1.bf16.xpose.msra.mxu0 %v2175
        %2214 = vmatprep.subr.bf16.mxu0 0
        %2215 = vmatpush1.bf16.xpose.msra.mxu0 %v2178
        %2216 = vmatprep.subr.bf16.mxu0 0
        %2217 = vmatpush1.bf16.xpose.msra.mxu0 %v2181
        %2218 = vmatprep.subr.bf16.mxu0 0
        %2219 = vmatpush1.bf16.xpose.msra.mxu0 %v2184
        %2220 = vmatprep.subr.bf16.mxu0 0
        %2221 = vmatpush1.bf16.xpose.msra.mxu0 %v2187
        %2222 = vmatprep.subr.bf16.mxu0 0
        %2223 = vmatpush1.bf16.xpose.msra.mxu0 %v2190
        %2224 = vmatprep.mubr.bf16.mxu0 0
        %2225 = vmatmul.mubr.bf16.gmra.mrb[0].mxu0 %v2097
        %v2226 = vpop.f32.mrb[0].mxu0
        %v2227 = vadd.f32 0.0, %v2226
        %v2228 = vpop.f32.mrb[0].mxu0
        %v2229 = vadd.f32 0.0, %v2228
        %v2230 = vpop.f32.mrb[0].mxu0
        %v2231 = vadd.f32 0.0, %v2230
        %v2232 = vpop.f32.mrb[0].mxu0
        %v2233 = vadd.f32 0.0, %v2232
        %2234 = vmatprep.mubr.bf16.mxu0 0
        %2235 = vmatmul.mubr.bf16.gmra.mrb[0].mxu0 %v2100
        %v2236 = vpop.f32.mrb[0].mxu0
        %v2237 = vadd.f32 0.0, %v2236
        %v2238 = vpop.f32.mrb[0].mxu0
        %v2239 = vadd.f32 0.0, %v2238
        %v2240 = vpop.f32.mrb[0].mxu0
        %v2241 = vadd.f32 0.0, %v2240
        %v2242 = vpop.f32.mrb[0].mxu0
        %v2243 = vadd.f32 0.0, %v2242
        %2244 = vmatprep.mubr.bf16.mxu0 0
        %2245 = vmatmul.mubr.bf16.gmra.mrb[0].mxu0 %v2103
        %v2246 = vpop.f32.mrb[0].mxu0
        %v2247 = vadd.f32 0.0, %v2246
        %v2248 = vpop.f32.mrb[0].mxu0
        %v2249 = vadd.f32 0.0, %v2248
        %v2250 = vpop.f32.mrb[0].mxu0
        %v2251 = vadd.f32 0.0, %v2250
        %v2252 = vpop.f32.mrb[0].mxu0
        %v2253 = vadd.f32 0.0, %v2252
        %2254 = vmatprep.mubr.bf16.mxu0 0
        %2255 = vmatmul.mubr.bf16.gmra.mrb[0].mxu0 %v2106
        %v2256 = vpop.f32.mrb[0].mxu0
        %v2257 = vadd.f32 0.0, %v2256
        %v2258 = vpop.f32.mrb[0].mxu0
        %v2259 = vadd.f32 0.0, %v2258
        %v2260 = vpop.f32.mrb[0].mxu0
        %v2261 = vadd.f32 0.0, %v2260
        %v2262 = vpop.f32.mrb[0].mxu0
        %v2263 = vadd.f32 0.0, %v2262
        %2264 = vmatprep.mubr.bf16.mxu0 0
        %2265 = vmatmul.mubr.bf16.gmra.mrb[0].mxu0 %v2109
        %v2266 = vpop.f32.mrb[0].mxu0
        %v2267 = vadd.f32 0.0, %v2266
        %v2268 = vpop.f32.mrb[0].mxu0
        %v2269 = vadd.f32 0.0, %v2268
        %v2270 = vpop.f32.mrb[0].mxu0
        %v2271 = vadd.f32 0.0, %v2270
        %v2272 = vpop.f32.mrb[0].mxu0
        %v2273 = vadd.f32 0.0, %v2272
        %2274 = vmatprep.mubr.bf16.mxu0 0
        %2275 = vmatmul.mubr.bf16.gmra.mrb[0].mxu0 %v2112
        %v2276 = vpop.f32.mrb[0].mxu0
        %v2277 = vadd.f32 0.0, %v2276
        %v2278 = vpop.f32.mrb[0].mxu0
        %v2279 = vadd.f32 0.0, %v2278
        %v2280 = vpop.f32.mrb[0].mxu0
        %v2281 = vadd.f32 0.0, %v2280
        %v2282 = vpop.f32.mrb[0].mxu0
        %v2283 = vadd.f32 0.0, %v2282
        %2284 = vmatprep.mubr.bf16.mxu0 0
        %2285 = vmatmul.mubr.bf16.gmra.mrb[0].mxu0 %v2115
        %v2286 = vpop.f32.mrb[0].mxu0
        %v2287 = vadd.f32 0.0, %v2286
        %v2288 = vpop.f32.mrb[0].mxu0
        %v2289 = vadd.f32 0.0, %v2288
        %v2290 = vpop.f32.mrb[0].mxu0
        %v2291 = vadd.f32 0.0, %v2290
        %v2292 = vpop.f32.mrb[0].mxu0
        %v2293 = vadd.f32 0.0, %v2292
        %2294 = vmatprep.mubr.bf16.mxu0 0
        %2295 = vmatmul.mubr.bf16.gmra.mrb[0].mxu0 %v2118
        %v2296 = vpop.f32.mrb[0].mxu0
        %v2297 = vadd.f32 0.0, %v2296
        %v2298 = vpop.f32.mrb[0].mxu0
        %v2299 = vadd.f32 0.0, %v2298
        %v2300 = vpop.f32.mrb[0].mxu0
        %v2301 = vadd.f32 0.0, %v2300
        %v2302 = vpop.f32.mrb[0].mxu0
        %v2303 = vadd.f32 0.0, %v2302
        %2304 = vmatprep.mubr.bf16.mxu0 0
        %2305 = vmatmul.mubr.bf16.gmra.mrb[0].mxu0 %v2121
        %v2306 = vpop.f32.mrb[0].mxu0
        %v2307 = vadd.f32 0.0, %v2306
        %v2308 = vpop.f32.mrb[0].mxu0
        %v2309 = vadd.f32 0.0, %v2308
        %v2310 = vpop.f32.mrb[0].mxu0
        %v2311 = vadd.f32 0.0, %v2310
        %v2312 = vpop.f32.mrb[0].mxu0
        %v2313 = vadd.f32 0.0, %v2312
        %2314 = vmatprep.mubr.bf16.mxu0 0
        %2315 = vmatmul.mubr.bf16.gmra.mrb[0].mxu0 %v2124
        %v2316 = vpop.f32.mrb[0].mxu0
        %v2317 = vadd.f32 0.0, %v2316
        %v2318 = vpop.f32.mrb[0].mxu0
        %v2319 = vadd.f32 0.0, %v2318
        %v2320 = vpop.f32.mrb[0].mxu0
        %v2321 = vadd.f32 0.0, %v2320
        %v2322 = vpop.f32.mrb[0].mxu0
        %v2323 = vadd.f32 0.0, %v2322
        %2324 = vmatprep.mubr.bf16.mxu0 0
        %2325 = vmatmul.mubr.bf16.gmra.mrb[0].mxu0 %v2127
        %v2326 = vpop.f32.mrb[0].mxu0
        %v2327 = vadd.f32 0.0, %v2326
        %v2328 = vpop.f32.mrb[0].mxu0
        %v2329 = vadd.f32 0.0, %v2328
        %v2330 = vpop.f32.mrb[0].mxu0
        %v2331 = vadd.f32 0.0, %v2330
        %v2332 = vpop.f32.mrb[0].mxu0
        %v2333 = vadd.f32 0.0, %v2332
        %2334 = vmatprep.mubr.bf16.mxu0 0
        %2335 = vmatmul.mubr.bf16.gmra.mrb[0].mxu0 %v2130
        %v2336 = vpop.f32.mrb[0].mxu0
        %v2337 = vadd.f32 0.0, %v2336
        %v2338 = vpop.f32.mrb[0].mxu0
        %v2339 = vadd.f32 0.0, %v2338
        %v2340 = vpop.f32.mrb[0].mxu0
        %v2341 = vadd.f32 0.0, %v2340
        %v2342 = vpop.f32.mrb[0].mxu0
        %v2343 = vadd.f32 0.0, %v2342
        %2344 = vmatprep.mubr.bf16.mxu0 0
        %2345 = vmatmul.mubr.bf16.gmra.mrb[0].mxu0 %v2133
        %v2346 = vpop.f32.mrb[0].mxu0
        %v2347 = vadd.f32 0.0, %v2346
        %v2348 = vpop.f32.mrb[0].mxu0
        %v2349 = vadd.f32 0.0, %v2348
        %v2350 = vpop.f32.mrb[0].mxu0
        %v2351 = vadd.f32 0.0, %v2350
        %v2352 = vpop.f32.mrb[0].mxu0
        %v2353 = vadd.f32 0.0, %v2352
        %2354 = vmatprep.mubr.bf16.mxu0 0
        %2355 = vmatmul.mubr.bf16.gmra.mrb[0].mxu0 %v2136
        %v2356 = vpop.f32.mrb[0].mxu0
        %v2357 = vadd.f32 0.0, %v2356
        %v2358 = vpop.f32.mrb[0].mxu0
        %v2359 = vadd.f32 0.0, %v2358
        %v2360 = vpop.f32.mrb[0].mxu0
        %v2361 = vadd.f32 0.0, %v2360
        %v2362 = vpop.f32.mrb[0].mxu0
        %v2363 = vadd.f32 0.0, %v2362
        %2364 = vmatprep.mubr.bf16.mxu0 0
        %2365 = vmatmul.mubr.bf16.gmra.mrb[0].mxu0 %v2139
        %v2366 = vpop.f32.mrb[0].mxu0
        %v2367 = vadd.f32 0.0, %v2366
        %v2368 = vpop.f32.mrb[0].mxu0
        %v2369 = vadd.f32 0.0, %v2368
        %v2370 = vpop.f32.mrb[0].mxu0
        %v2371 = vadd.f32 0.0, %v2370
        %v2372 = vpop.f32.mrb[0].mxu0
        %v2373 = vadd.f32 0.0, %v2372
        %2374 = vmatprep.mubr.bf16.mxu0 0
        %2375 = vmatmul.mubr.bf16.gmra.mrb[0].mxu0 %v2142
        %v2376 = vpop.f32.mrb[0].mxu0
        %v2377 = vadd.f32 0.0, %v2376
        %v2378 = vpop.f32.mrb[0].mxu0
        %v2379 = vadd.f32 0.0, %v2378
        %v2380 = vpop.f32.mrb[0].mxu0
        %v2381 = vadd.f32 0.0, %v2380
        %v2382 = vpop.f32.mrb[0].mxu0
        %v2383 = vadd.f32 0.0, %v2382
        %2384 = vdwg.mxu0
        %v2385 = vmax.f32 %v2227, %v2229
        %2386 = vmax.xlane.f32.xlu0 %v2385
        %v2387 = vpop.xlane.xlu0 %2386
        %v2388 = vmax.f32 %v2231, %v2233
        %2389 = vmax.xlane.f32.xlu0 %v2388
        %v2390 = vpop.xlane.xlu0 %2389
        %v2391 = vmax.f32 %v2237, %v2239
        %2392 = vmax.xlane.f32.xlu0 %v2391
        %v2393 = vpop.xlane.xlu0 %2392
        %v2394 = vmax.f32 %v2241, %v2243
        %2395 = vmax.xlane.f32.xlu0 %v2394
        %v2396 = vpop.xlane.xlu0 %2395
        %v2397 = vmax.f32 %v2247, %v2249
        %2398 = vmax.xlane.f32.xlu0 %v2397
        %v2399 = vpop.xlane.xlu0 %2398
        %v2400 = vmax.f32 %v2251, %v2253
        %2401 = vmax.xlane.f32.xlu0 %v2400
        %v2402 = vpop.xlane.xlu0 %2401
        %v2403 = vmax.f32 %v2257, %v2259
        %2404 = vmax.xlane.f32.xlu0 %v2403
        %v2405 = vpop.xlane.xlu0 %2404
        %v2406 = vmax.f32 %v2261, %v2263
        %2407 = vmax.xlane.f32.xlu0 %v2406
        %v2408 = vpop.xlane.xlu0 %2407
        %v2409 = vmax.f32 %v2267, %v2269
        %2410 = vmax.xlane.f32.xlu0 %v2409
        %v2411 = vpop.xlane.xlu0 %2410
        %v2412 = vmax.f32 %v2271, %v2273
        %2413 = vmax.xlane.f32.xlu0 %v2412
        %v2414 = vpop.xlane.xlu0 %2413
        %v2415 = vmax.f32 %v2277, %v2279
        %2416 = vmax.xlane.f32.xlu0 %v2415
        %v2417 = vpop.xlane.xlu0 %2416
        %v2418 = vmax.f32 %v2281, %v2283
        %2419 = vmax.xlane.f32.xlu0 %v2418
        %v2420 = vpop.xlane.xlu0 %2419
        %v2421 = vmax.f32 %v2287, %v2289
        %2422 = vmax.xlane.f32.xlu0 %v2421
        %v2423 = vpop.xlane.xlu0 %2422
        %v2424 = vmax.f32 %v2291, %v2293
        %2425 = vmax.xlane.f32.xlu0 %v2424
        %v2426 = vpop.xlane.xlu0 %2425
        %v2427 = vmax.f32 %v2297, %v2299
        %2428 = vmax.xlane.f32.xlu0 %v2427
        %v2429 = vpop.xlane.xlu0 %2428
        %v2430 = vmax.f32 %v2301, %v2303
        %2431 = vmax.xlane.f32.xlu0 %v2430
        %v2432 = vpop.xlane.xlu0 %2431
        %v2433 = vmax.f32 %v2307, %v2309
        %2434 = vmax.xlane.f32.xlu0 %v2433
        %v2435 = vpop.xlane.xlu0 %2434
        %v2436 = vmax.f32 %v2311, %v2313
        %2437 = vmax.xlane.f32.xlu0 %v2436
        %v2438 = vpop.xlane.xlu0 %2437
        %v2439 = vmax.f32 %v2317, %v2319
        %2440 = vmax.xlane.f32.xlu0 %v2439
        %v2441 = vpop.xlane.xlu0 %2440
        %v2442 = vmax.f32 %v2321, %v2323
        %2443 = vmax.xlane.f32.xlu0 %v2442
        %v2444 = vpop.xlane.xlu0 %2443
        %v2445 = vmax.f32 %v2327, %v2329
        %2446 = vmax.xlane.f32.xlu0 %v2445
        %v2447 = vpop.xlane.xlu0 %2446
        %v2448 = vmax.f32 %v2331, %v2333
        %2449 = vmax.xlane.f32.xlu0 %v2448
        %v2450 = vpop.xlane.xlu0 %2449
        %v2451 = vmax.f32 %v2337, %v2339
        %2452 = vmax.xlane.f32.xlu0 %v2451
        %v2453 = vpop.xlane.xlu0 %2452
        %v2454 = vmax.f32 %v2341, %v2343
        %2455 = vmax.xlane.f32.xlu0 %v2454
        %v2456 = vpop.xlane.xlu0 %2455
        %v2457 = vmax.f32 %v2347, %v2349
        %2458 = vmax.xlane.f32.xlu0 %v2457
        %v2459 = vpop.xlane.xlu0 %2458
        %v2460 = vmax.f32 %v2351, %v2353
        %2461 = vmax.xlane.f32.xlu0 %v2460
        %v2462 = vpop.xlane.xlu0 %2461
        %v2463 = vmax.f32 %v2357, %v2359
        %2464 = vmax.xlane.f32.xlu0 %v2463
        %v2465 = vpop.xlane.xlu0 %2464
        %v2466 = vmax.f32 %v2361, %v2363
        %2467 = vmax.xlane.f32.xlu0 %v2466
        %v2468 = vpop.xlane.xlu0 %2467
        %v2469 = vmax.f32 %v2367, %v2369
        %2470 = vmax.xlane.f32.xlu0 %v2469
        %v2471 = vpop.xlane.xlu0 %2470
        %v2472 = vmax.f32 %v2371, %v2373
        %2473 = vmax.xlane.f32.xlu0 %v2472
        %v2474 = vpop.xlane.xlu0 %2473
        %v2475 = vmax.f32 %v2377, %v2379
        %2476 = vmax.xlane.f32.xlu0 %v2475
        %v2477 = vpop.xlane.xlu0 %2476
        %v2478 = vmax.f32 %v2381, %v2383
        %2479 = vmax.xlane.f32.xlu0 %v2478
        %v2480 = vpop.xlane.xlu0 %2479
        %v2481 = vsub.f32 %v2227, %v2387
        %v2482 = vsub.f32 %v2229, %v2387
        %v2483 = vsub.f32 %v2231, %v2390
        %v2484 = vsub.f32 %v2233, %v2390
        %v2485 = vsub.f32 %v2237, %v2393
        %v2486 = vsub.f32 %v2239, %v2393
        %v2487 = vsub.f32 %v2241, %v2396
        %v2488 = vsub.f32 %v2243, %v2396
        %v2489 = vsub.f32 %v2247, %v2399
        %v2490 = vsub.f32 %v2249, %v2399
        %v2491 = vsub.f32 %v2251, %v2402
        %v2492 = vsub.f32 %v2253, %v2402
        %v2493 = vsub.f32 %v2257, %v2405
        %v2494 = vsub.f32 %v2259, %v2405
        %v2495 = vsub.f32 %v2261, %v2408
        %v2496 = vsub.f32 %v2263, %v2408
        %v2497 = vsub.f32 %v2267, %v2411
        %v2498 = vsub.f32 %v2269, %v2411
        %v2499 = vsub.f32 %v2271, %v2414
        %v2500 = vsub.f32 %v2273, %v2414
        %v2501 = vsub.f32 %v2277, %v2417
        %v2502 = vsub.f32 %v2279, %v2417
        %v2503 = vsub.f32 %v2281, %v2420
        %v2504 = vsub.f32 %v2283, %v2420
        %v2505 = vsub.f32 %v2287, %v2423
        %v2506 = vsub.f32 %v2289, %v2423
        %v2507 = vsub.f32 %v2291, %v2426
        %v2508 = vsub.f32 %v2293, %v2426
        %v2509 = vsub.f32 %v2297, %v2429
        %v2510 = vsub.f32 %v2299, %v2429
        %v2511 = vsub.f32 %v2301, %v2432
        %v2512 = vsub.f32 %v2303, %v2432
        %v2513 = vsub.f32 %v2307, %v2435
        %v2514 = vsub.f32 %v2309, %v2435
        %v2515 = vsub.f32 %v2311, %v2438
        %v2516 = vsub.f32 %v2313, %v2438
        %v2517 = vsub.f32 %v2317, %v2441
        %v2518 = vsub.f32 %v2319, %v2441
        %v2519 = vsub.f32 %v2321, %v2444
        %v2520 = vsub.f32 %v2323, %v2444
        %v2521 = vsub.f32 %v2327, %v2447
        %v2522 = vsub.f32 %v2329, %v2447
        %v2523 = vsub.f32 %v2331, %v2450
        %v2524 = vsub.f32 %v2333, %v2450
        %v2525 = vsub.f32 %v2337, %v2453
        %v2526 = vsub.f32 %v2339, %v2453
        %v2527 = vsub.f32 %v2341, %v2456
        %v2528 = vsub.f32 %v2343, %v2456
        %v2529 = vsub.f32 %v2347, %v2459
        %v2530 = vsub.f32 %v2349, %v2459
        %v2531 = vsub.f32 %v2351, %v2462
        %v2532 = vsub.f32 %v2353, %v2462
        %v2533 = vsub.f32 %v2357, %v2465
        %v2534 = vsub.f32 %v2359, %v2465
        %v2535 = vsub.f32 %v2361, %v2468
        %v2536 = vsub.f32 %v2363, %v2468
        %v2537 = vsub.f32 %v2367, %v2471
        %v2538 = vsub.f32 %v2369, %v2471
        %v2539 = vsub.f32 %v2371, %v2474
        %v2540 = vsub.f32 %v2373, %v2474
        %v2541 = vsub.f32 %v2377, %v2477
        %v2542 = vsub.f32 %v2379, %v2477
        %v2543 = vsub.f32 %v2381, %v2480
        %v2544 = vsub.f32 %v2383, %v2480
        %v2545 = vmul.f32 %v2481, 1.442695
        %v2546 = vpow.pop %v2545
        %v2547 = vmul.f32 %v2482, 1.442695
        %v2548 = vpow.pop %v2547
        %v2549 = vmul.f32 %v2483, 1.442695
        %v2550 = vpow.pop %v2549
        %v2551 = vmul.f32 %v2484, 1.442695
        %v2552 = vpow.pop %v2551
        %v2553 = vmul.f32 %v2485, 1.442695
        %v2554 = vpow.pop %v2553
        %v2555 = vmul.f32 %v2486, 1.442695
        %v2556 = vpow.pop %v2555
        %v2557 = vmul.f32 %v2487, 1.442695
        %v2558 = vpow.pop %v2557
        %v2559 = vmul.f32 %v2488, 1.442695
        %v2560 = vpow.pop %v2559
        %v2561 = vmul.f32 %v2489, 1.442695
        %v2562 = vpow.pop %v2561
        %v2563 = vmul.f32 %v2490, 1.442695
        %v2564 = vpow.pop %v2563
        %v2565 = vmul.f32 %v2491, 1.442695
        %v2566 = vpow.pop %v2565
        %v2567 = vmul.f32 %v2492, 1.442695
        %v2568 = vpow.pop %v2567
        %v2569 = vmul.f32 %v2493, 1.442695
        %v2570 = vpow.pop %v2569
        %v2571 = vmul.f32 %v2494, 1.442695
        %v2572 = vpow.pop %v2571
        %v2573 = vmul.f32 %v2495, 1.442695
        %v2574 = vpow.pop %v2573
        %v2575 = vmul.f32 %v2496, 1.442695
        %v2576 = vpow.pop %v2575
        %v2577 = vmul.f32 %v2497, 1.442695
        %v2578 = vpow.pop %v2577
        %v2579 = vmul.f32 %v2498, 1.442695
        %v2580 = vpow.pop %v2579
        %v2581 = vmul.f32 %v2499, 1.442695
        %v2582 = vpow.pop %v2581
        %v2583 = vmul.f32 %v2500, 1.442695
        %v2584 = vpow.pop %v2583
        %v2585 = vmul.f32 %v2501, 1.442695
        %v2586 = vpow.pop %v2585
        %v2587 = vmul.f32 %v2502, 1.442695
        %v2588 = vpow.pop %v2587
        %v2589 = vmul.f32 %v2503, 1.442695
        %v2590 = vpow.pop %v2589
        %v2591 = vmul.f32 %v2504, 1.442695
        %v2592 = vpow.pop %v2591
        %v2593 = vmul.f32 %v2505, 1.442695
        %v2594 = vpow.pop %v2593
        %v2595 = vmul.f32 %v2506, 1.442695
        %v2596 = vpow.pop %v2595
        %v2597 = vmul.f32 %v2507, 1.442695
        %v2598 = vpow.pop %v2597
        %v2599 = vmul.f32 %v2508, 1.442695
        %v2600 = vpow.pop %v2599
        %v2601 = vmul.f32 %v2509, 1.442695
        %v2602 = vpow.pop %v2601
        %v2603 = vmul.f32 %v2510, 1.442695
        %v2604 = vpow.pop %v2603
        %v2605 = vmul.f32 %v2511, 1.442695
        %v2606 = vpow.pop %v2605
        %v2607 = vmul.f32 %v2512, 1.442695
        %v2608 = vpow.pop %v2607
        %v2609 = vmul.f32 %v2513, 1.442695
        %v2610 = vpow.pop %v2609
        %v2611 = vmul.f32 %v2514, 1.442695
        %v2612 = vpow.pop %v2611
        %v2613 = vmul.f32 %v2515, 1.442695
        %v2614 = vpow.pop %v2613
        %v2615 = vmul.f32 %v2516, 1.442695
        %v2616 = vpow.pop %v2615
        %v2617 = vmul.f32 %v2517, 1.442695
        %v2618 = vpow.pop %v2617
        %v2619 = vmul.f32 %v2518, 1.442695
        %v2620 = vpow.pop %v2619
        %v2621 = vmul.f32 %v2519, 1.442695
        %v2622 = vpow.pop %v2621
        %v2623 = vmul.f32 %v2520, 1.442695
        %v2624 = vpow.pop %v2623
        %v2625 = vmul.f32 %v2521, 1.442695
        %v2626 = vpow.pop %v2625
        %v2627 = vmul.f32 %v2522, 1.442695
        %v2628 = vpow.pop %v2627
        %v2629 = vmul.f32 %v2523, 1.442695
        %v2630 = vpow.pop %v2629
        %v2631 = vmul.f32 %v2524, 1.442695
        %v2632 = vpow.pop %v2631
        %v2633 = vmul.f32 %v2525, 1.442695
        %v2634 = vpow.pop %v2633
        %v2635 = vmul.f32 %v2526, 1.442695
        %v2636 = vpow.pop %v2635
        %v2637 = vmul.f32 %v2527, 1.442695
        %v2638 = vpow.pop %v2637
        %v2639 = vmul.f32 %v2528, 1.442695
        %v2640 = vpow.pop %v2639
        %v2641 = vmul.f32 %v2529, 1.442695
        %v2642 = vpow.pop %v2641
        %v2643 = vmul.f32 %v2530, 1.442695
        %v2644 = vpow.pop %v2643
        %v2645 = vmul.f32 %v2531, 1.442695
        %v2646 = vpow.pop %v2645
        %v2647 = vmul.f32 %v2532, 1.442695
        %v2648 = vpow.pop %v2647
        %v2649 = vmul.f32 %v2533, 1.442695
        %v2650 = vpow.pop %v2649
        %v2651 = vmul.f32 %v2534, 1.442695
        %v2652 = vpow.pop %v2651
        %v2653 = vmul.f32 %v2535, 1.442695
        %v2654 = vpow.pop %v2653
        %v2655 = vmul.f32 %v2536, 1.442695
        %v2656 = vpow.pop %v2655
        %v2657 = vmul.f32 %v2537, 1.442695
        %v2658 = vpow.pop %v2657
        %v2659 = vmul.f32 %v2538, 1.442695
        %v2660 = vpow.pop %v2659
        %v2661 = vmul.f32 %v2539, 1.442695
        %v2662 = vpow.pop %v2661
        %v2663 = vmul.f32 %v2540, 1.442695
        %v2664 = vpow.pop %v2663
        %v2665 = vmul.f32 %v2541, 1.442695
        %v2666 = vpow.pop %v2665
        %v2667 = vmul.f32 %v2542, 1.442695
        %v2668 = vpow.pop %v2667
        %v2669 = vmul.f32 %v2543, 1.442695
        %v2670 = vpow.pop %v2669
        %v2671 = vmul.f32 %v2544, 1.442695
        %v2672 = vpow.pop %v2671
        %v2673 = vadd.f32 %v2546, %v2548
        %2674 = vadd.xlane.f32.xlu0 %v2673
        %v2675 = vpop.xlane.xlu0 %2674
        %v2676 = vadd.f32 %v2550, %v2552
        %2677 = vadd.xlane.f32.xlu0 %v2676
        %v2678 = vpop.xlane.xlu0 %2677
        %v2679 = vadd.f32 %v2554, %v2556
        %2680 = vadd.xlane.f32.xlu0 %v2679
        %v2681 = vpop.xlane.xlu0 %2680
        %v2682 = vadd.f32 %v2558, %v2560
        %2683 = vadd.xlane.f32.xlu0 %v2682
        %v2684 = vpop.xlane.xlu0 %2683
        %v2685 = vadd.f32 %v2562, %v2564
        %2686 = vadd.xlane.f32.xlu0 %v2685
        %v2687 = vpop.xlane.xlu0 %2686
        %v2688 = vadd.f32 %v2566, %v2568
        %2689 = vadd.xlane.f32.xlu0 %v2688
        %v2690 = vpop.xlane.xlu0 %2689
        %v2691 = vadd.f32 %v2570, %v2572
        %2692 = vadd.xlane.f32.xlu0 %v2691
        %v2693 = vpop.xlane.xlu0 %2692
        %v2694 = vadd.f32 %v2574, %v2576
        %2695 = vadd.xlane.f32.xlu0 %v2694
        %v2696 = vpop.xlane.xlu0 %2695
        %v2697 = vadd.f32 %v2578, %v2580
        %2698 = vadd.xlane.f32.xlu0 %v2697
        %v2699 = vpop.xlane.xlu0 %2698
        %v2700 = vadd.f32 %v2582, %v2584
        %2701 = vadd.xlane.f32.xlu0 %v2700
        %v2702 = vpop.xlane.xlu0 %2701
        %v2703 = vadd.f32 %v2586, %v2588
        %2704 = vadd.xlane.f32.xlu0 %v2703
        %v2705 = vpop.xlane.xlu0 %2704
        %v2706 = vadd.f32 %v2590, %v2592
        %2707 = vadd.xlane.f32.xlu0 %v2706
        %v2708 = vpop.xlane.xlu0 %2707
        %v2709 = vadd.f32 %v2594, %v2596
        %2710 = vadd.xlane.f32.xlu0 %v2709
        %v2711 = vpop.xlane.xlu0 %2710
        %v2712 = vadd.f32 %v2598, %v2600
        %2713 = vadd.xlane.f32.xlu0 %v2712
        %v2714 = vpop.xlane.xlu0 %2713
        %v2715 = vadd.f32 %v2602, %v2604
        %2716 = vadd.xlane.f32.xlu0 %v2715
        %v2717 = vpop.xlane.xlu0 %2716
        %v2718 = vadd.f32 %v2606, %v2608
        %2719 = vadd.xlane.f32.xlu0 %v2718
        %v2720 = vpop.xlane.xlu0 %2719
        %v2721 = vadd.f32 %v2610, %v2612
        %2722 = vadd.xlane.f32.xlu0 %v2721
        %v2723 = vpop.xlane.xlu0 %2722
        %v2724 = vadd.f32 %v2614, %v2616
        %2725 = vadd.xlane.f32.xlu0 %v2724
        %v2726 = vpop.xlane.xlu0 %2725
        %v2727 = vadd.f32 %v2618, %v2620
        %2728 = vadd.xlane.f32.xlu0 %v2727
        %v2729 = vpop.xlane.xlu0 %2728
        %v2730 = vadd.f32 %v2622, %v2624
        %2731 = vadd.xlane.f32.xlu0 %v2730
        %v2732 = vpop.xlane.xlu0 %2731
        %v2733 = vadd.f32 %v2626, %v2628
        %2734 = vadd.xlane.f32.xlu0 %v2733
        %v2735 = vpop.xlane.xlu0 %2734
        %v2736 = vadd.f32 %v2630, %v2632
        %2737 = vadd.xlane.f32.xlu0 %v2736
        %v2738 = vpop.xlane.xlu0 %2737
        %v2739 = vadd.f32 %v2634, %v2636
        %2740 = vadd.xlane.f32.xlu0 %v2739
        %v2741 = vpop.xlane.xlu0 %2740
        %v2742 = vadd.f32 %v2638, %v2640
        %2743 = vadd.xlane.f32.xlu0 %v2742
        %v2744 = vpop.xlane.xlu0 %2743
        %v2745 = vadd.f32 %v2642, %v2644
        %2746 = vadd.xlane.f32.xlu0 %v2745
        %v2747 = vpop.xlane.xlu0 %2746
        %v2748 = vadd.f32 %v2646, %v2648
        %2749 = vadd.xlane.f32.xlu0 %v2748
        %v2750 = vpop.xlane.xlu0 %2749
        %v2751 = vadd.f32 %v2650, %v2652
        %2752 = vadd.xlane.f32.xlu0 %v2751
        %v2753 = vpop.xlane.xlu0 %2752
        %v2754 = vadd.f32 %v2654, %v2656
        %2755 = vadd.xlane.f32.xlu0 %v2754
        %v2756 = vpop.xlane.xlu0 %2755
        %v2757 = vadd.f32 %v2658, %v2660
        %2758 = vadd.xlane.f32.xlu0 %v2757
        %v2759 = vpop.xlane.xlu0 %2758
        %v2760 = vadd.f32 %v2662, %v2664
        %2761 = vadd.xlane.f32.xlu0 %v2760
        %v2762 = vpop.xlane.xlu0 %2761
        %v2763 = vadd.f32 %v2666, %v2668
        %2764 = vadd.xlane.f32.xlu0 %v2763
        %v2765 = vpop.xlane.xlu0 %2764
        %v2766 = vadd.f32 %v2670, %v2672
        %2767 = vadd.xlane.f32.xlu0 %v2766
        %v2768 = vpop.xlane.xlu0 %2767
        %v2769 = vrcp.pop %v2675
        %v2770 = vrcp.pop %v2678
        %v2771 = vrcp.pop %v2681
        %v2772 = vrcp.pop %v2684
        %v2773 = vrcp.pop %v2687
        %v2774 = vrcp.pop %v2690
        %v2775 = vrcp.pop %v2693
        %v2776 = vrcp.pop %v2696
        %v2777 = vrcp.pop %v2699
        %v2778 = vrcp.pop %v2702
        %v2779 = vrcp.pop %v2705
        %v2780 = vrcp.pop %v2708
        %v2781 = vrcp.pop %v2711
        %v2782 = vrcp.pop %v2714
        %v2783 = vrcp.pop %v2717
        %v2784 = vrcp.pop %v2720
        %v2785 = vrcp.pop %v2723
        %v2786 = vrcp.pop %v2726
        %v2787 = vrcp.pop %v2729
        %v2788 = vrcp.pop %v2732
        %v2789 = vrcp.pop %v2735
        %v2790 = vrcp.pop %v2738
        %v2791 = vrcp.pop %v2741
        %v2792 = vrcp.pop %v2744
        %v2793 = vrcp.pop %v2747
        %v2794 = vrcp.pop %v2750
        %v2795 = vrcp.pop %v2753
        %v2796 = vrcp.pop %v2756
        %v2797 = vrcp.pop %v2759
        %v2798 = vrcp.pop %v2762
        %v2799 = vrcp.pop %v2765
        %v2800 = vrcp.pop %v2768
        %v2801 = vpack.c.bf16 %v2550, %v2546
        %v2802 = vpack.c.bf16 %v2552, %v2548
        %v2803 = vpack.c.bf16 %v2558, %v2554
        %v2804 = vpack.c.bf16 %v2560, %v2556
        %v2805 = vpack.c.bf16 %v2566, %v2562
        %v2806 = vpack.c.bf16 %v2568, %v2564
        %v2807 = vpack.c.bf16 %v2574, %v2570
        %v2808 = vpack.c.bf16 %v2576, %v2572
        %v2809 = vpack.c.bf16 %v2582, %v2578
        %v2810 = vpack.c.bf16 %v2584, %v2580
        %v2811 = vpack.c.bf16 %v2590, %v2586
        %v2812 = vpack.c.bf16 %v2592, %v2588
        %v2813 = vpack.c.bf16 %v2598, %v2594
        %v2814 = vpack.c.bf16 %v2600, %v2596
        %v2815 = vpack.c.bf16 %v2606, %v2602
        %v2816 = vpack.c.bf16 %v2608, %v2604
        %v2817 = vpack.c.bf16 %v2614, %v2610
        %v2818 = vpack.c.bf16 %v2616, %v2612
        %v2819 = vpack.c.bf16 %v2622, %v2618
        %v2820 = vpack.c.bf16 %v2624, %v2620
        %v2821 = vpack.c.bf16 %v2630, %v2626
        %v2822 = vpack.c.bf16 %v2632, %v2628
        %v2823 = vpack.c.bf16 %v2638, %v2634
        %v2824 = vpack.c.bf16 %v2640, %v2636
        %v2825 = vpack.c.bf16 %v2646, %v2642
        %v2826 = vpack.c.bf16 %v2648, %v2644
        %v2827 = vpack.c.bf16 %v2654, %v2650
        %v2828 = vpack.c.bf16 %v2656, %v2652
        %v2829 = vpack.c.bf16 %v2662, %v2658
        %v2830 = vpack.c.bf16 %v2664, %v2660
        %v2831 = vpack.c.bf16 %v2670, %v2666
        %v2832 = vpack.c.bf16 %v2672, %v2668
        %2833 = vmatprep.subr.bf16.mxu0 0
        %2834 = vmatpush1.bf16.msra.mxu0 %v2049
        %2835 = vmatprep.subr.bf16.mxu0 0
        %2836 = vmatpush1.bf16.msra.mxu0 %v2052
        %2837 = vmatprep.subr.bf16.mxu0 0
        %2838 = vmatpush1.bf16.msra.mxu0 %v2055
        %2839 = vmatprep.subr.bf16.mxu0 0
        %2840 = vmatpush1.bf16.msra.mxu0 %v2058
        %2841 = vmatprep.subr.bf16.mxu0 0
        %2842 = vmatpush1.bf16.msra.mxu0 %v2061
        %2843 = vmatprep.subr.bf16.mxu0 0
        %2844 = vmatpush1.bf16.msra.mxu0 %v2064
        %2845 = vmatprep.subr.bf16.mxu0 0
        %2846 = vmatpush1.bf16.msra.mxu0 %v2067
        %2847 = vmatprep.subr.bf16.mxu0 0
        %2848 = vmatpush1.bf16.msra.mxu0 %v2070
        %2849 = vmatprep.subr.bf16.mxu0 0
        %2850 = vmatpush1.bf16.msra.mxu0 %v2073
        %2851 = vmatprep.subr.bf16.mxu0 0
        %2852 = vmatpush1.bf16.msra.mxu0 %v2076
        %2853 = vmatprep.subr.bf16.mxu0 0
        %2854 = vmatpush1.bf16.msra.mxu0 %v2079
        %2855 = vmatprep.subr.bf16.mxu0 0
        %2856 = vmatpush1.bf16.msra.mxu0 %v2082
        %2857 = vmatprep.subr.bf16.mxu0 0
        %2858 = vmatpush1.bf16.msra.mxu0 %v2085
        %2859 = vmatprep.subr.bf16.mxu0 0
        %2860 = vmatpush1.bf16.msra.mxu0 %v2088
        %2861 = vmatprep.subr.bf16.mxu0 0
        %2862 = vmatpush1.bf16.msra.mxu0 %v2091
        %2863 = vmatprep.subr.bf16.mxu0 0
        %2864 = vmatpush1.bf16.msra.mxu0 %v2094
        %2865 = vmatprep.mubr.bf16.mxu0 %v2802
        %2866 = vmatmul.mubr.bf16.gmra.mrb[0].mxu0 %v2801
        %v2867 = vpop.f32.mrb[0].mxu0
        %v2868 = vadd.f32 0.0, %v2867
        %v2869 = vpop.f32.mrb[0].mxu0
        %v2870 = vpop.f32.mrb[0].mxu0
        %v2871 = vadd.f32 0.0, %v2870
        %v2872 = vpop.f32.mrb[0].mxu0
        %2873 = vmatprep.mubr.bf16.mxu0 %v2804
        %2874 = vmatmul.mubr.bf16.gmra.mrb[0].mxu0 %v2803
        %v2875 = vpop.f32.mrb[0].mxu0
        %v2876 = vadd.f32 0.0, %v2875
        %v2877 = vpop.f32.mrb[0].mxu0
        %v2878 = vpop.f32.mrb[0].mxu0
        %v2879 = vadd.f32 0.0, %v2878
        %v2880 = vpop.f32.mrb[0].mxu0
        %2881 = vmatprep.mubr.bf16.mxu0 %v2806
        %2882 = vmatmul.mubr.bf16.gmra.mrb[0].mxu0 %v2805
        %v2883 = vpop.f32.mrb[0].mxu0
        %v2884 = vadd.f32 0.0, %v2883
        %v2885 = vpop.f32.mrb[0].mxu0
        %v2886 = vpop.f32.mrb[0].mxu0
        %v2887 = vadd.f32 0.0, %v2886
        %v2888 = vpop.f32.mrb[0].mxu0
        %2889 = vmatprep.mubr.bf16.mxu0 %v2808
        %2890 = vmatmul.mubr.bf16.gmra.mrb[0].mxu0 %v2807
        %v2891 = vpop.f32.mrb[0].mxu0
        %v2892 = vadd.f32 0.0, %v2891
        %v2893 = vpop.f32.mrb[0].mxu0
        %v2894 = vpop.f32.mrb[0].mxu0
        %v2895 = vadd.f32 0.0, %v2894
        %v2896 = vpop.f32.mrb[0].mxu0
        %2897 = vmatprep.mubr.bf16.mxu0 %v2810
        %2898 = vmatmul.mubr.bf16.gmra.mrb[0].mxu0 %v2809
        %v2899 = vpop.f32.mrb[0].mxu0
        %v2900 = vadd.f32 0.0, %v2899
        %v2901 = vpop.f32.mrb[0].mxu0
        %v2902 = vpop.f32.mrb[0].mxu0
        %v2903 = vadd.f32 0.0, %v2902
        %v2904 = vpop.f32.mrb[0].mxu0
        %2905 = vmatprep.mubr.bf16.mxu0 %v2812
        %2906 = vmatmul.mubr.bf16.gmra.mrb[0].mxu0 %v2811
        %v2907 = vpop.f32.mrb[0].mxu0
        %v2908 = vadd.f32 0.0, %v2907
        %v2909 = vpop.f32.mrb[0].mxu0
        %v2910 = vpop.f32.mrb[0].mxu0
        %v2911 = vadd.f32 0.0, %v2910
        %v2912 = vpop.f32.mrb[0].mxu0
        %2913 = vmatprep.mubr.bf16.mxu0 %v2814
        %2914 = vmatmul.mubr.bf16.gmra.mrb[0].mxu0 %v2813
        %v2915 = vpop.f32.mrb[0].mxu0
        %v2916 = vadd.f32 0.0, %v2915
        %v2917 = vpop.f32.mrb[0].mxu0
        %v2918 = vpop.f32.mrb[0].mxu0
        %v2919 = vadd.f32 0.0, %v2918
        %v2920 = vpop.f32.mrb[0].mxu0
        %2921 = vmatprep.mubr.bf16.mxu0 %v2816
        %2922 = vmatmul.mubr.bf16.gmra.mrb[0].mxu0 %v2815
        %v2923 = vpop.f32.mrb[0].mxu0
        %v2924 = vadd.f32 0.0, %v2923
        %v2925 = vpop.f32.mrb[0].mxu0
        %v2926 = vpop.f32.mrb[0].mxu0
        %v2927 = vadd.f32 0.0, %v2926
        %v2928 = vpop.f32.mrb[0].mxu0
        %2929 = vmatprep.mubr.bf16.mxu0 %v2818
        %2930 = vmatmul.mubr.bf16.gmra.mrb[0].mxu0 %v2817
        %v2931 = vpop.f32.mrb[0].mxu0
        %v2932 = vadd.f32 0.0, %v2931
        %v2933 = vpop.f32.mrb[0].mxu0
        %v2934 = vpop.f32.mrb[0].mxu0
        %v2935 = vadd.f32 0.0, %v2934
        %v2936 = vpop.f32.mrb[0].mxu0
        %2937 = vmatprep.mubr.bf16.mxu0 %v2820
        %2938 = vmatmul.mubr.bf16.gmra.mrb[0].mxu0 %v2819
        %v2939 = vpop.f32.mrb[0].mxu0
        %v2940 = vadd.f32 0.0, %v2939
        %v2941 = vpop.f32.mrb[0].mxu0
        %v2942 = vpop.f32.mrb[0].mxu0
        %v2943 = vadd.f32 0.0, %v2942
        %v2944 = vpop.f32.mrb[0].mxu0
        %2945 = vmatprep.mubr.bf16.mxu0 %v2822
        %2946 = vmatmul.mubr.bf16.gmra.mrb[0].mxu0 %v2821
        %v2947 = vpop.f32.mrb[0].mxu0
        %v2948 = vadd.f32 0.0, %v2947
        %v2949 = vpop.f32.mrb[0].mxu0
        %v2950 = vpop.f32.mrb[0].mxu0
        %v2951 = vadd.f32 0.0, %v2950
        %v2952 = vpop.f32.mrb[0].mxu0
        %2953 = vmatprep.mubr.bf16.mxu0 %v2824
        %2954 = vmatmul.mubr.bf16.gmra.mrb[0].mxu0 %v2823
        %v2955 = vpop.f32.mrb[0].mxu0
        %v2956 = vadd.f32 0.0, %v2955
        %v2957 = vpop.f32.mrb[0].mxu0
        %v2958 = vpop.f32.mrb[0].mxu0
        %v2959 = vadd.f32 0.0, %v2958
        %v2960 = vpop.f32.mrb[0].mxu0
        %2961 = vmatprep.mubr.bf16.mxu0 %v2826
        %2962 = vmatmul.mubr.bf16.gmra.mrb[0].mxu0 %v2825
        %v2963 = vpop.f32.mrb[0].mxu0
        %v2964 = vadd.f32 0.0, %v2963
        %v2965 = vpop.f32.mrb[0].mxu0
        %v2966 = vpop.f32.mrb[0].mxu0
        %v2967 = vadd.f32 0.0, %v2966
        %v2968 = vpop.f32.mrb[0].mxu0
        %2969 = vmatprep.mubr.bf16.mxu0 %v2828
        %2970 = vmatmul.mubr.bf16.gmra.mrb[0].mxu0 %v2827
        %v2971 = vpop.f32.mrb[0].mxu0
        %v2972 = vadd.f32 0.0, %v2971
        %v2973 = vpop.f32.mrb[0].mxu0
        %v2974 = vpop.f32.mrb[0].mxu0
        %v2975 = vadd.f32 0.0, %v2974
        %v2976 = vpop.f32.mrb[0].mxu0
        %2977 = vmatprep.mubr.bf16.mxu0 %v2830
        %2978 = vmatmul.mubr.bf16.gmra.mrb[0].mxu0 %v2829
        %v2979 = vpop.f32.mrb[0].mxu0
        %v2980 = vadd.f32 0.0, %v2979
        %v2981 = vpop.f32.mrb[0].mxu0
        %v2982 = vpop.f32.mrb[0].mxu0
        %v2983 = vadd.f32 0.0, %v2982
        %v2984 = vpop.f32.mrb[0].mxu0
        %2985 = vmatprep.mubr.bf16.mxu0 %v2832
        %2986 = vmatmul.mubr.bf16.gmra.mrb[0].mxu0 %v2831
        %v2987 = vpop.f32.mrb[0].mxu0
        %v2988 = vadd.f32 0.0, %v2987
        %v2989 = vpop.f32.mrb[0].mxu0
        %v2990 = vpop.f32.mrb[0].mxu0
        %v2991 = vadd.f32 0.0, %v2990
        %v2992 = vpop.f32.mrb[0].mxu0
        %2993 = vdwg.mxu0
        %v2994 = vmul.f32 %v2868, %v2769
        %v2995 = vmul.f32 %v2871, %v2770
        %v2996 = vmul.f32 %v2876, %v2771
        %v2997 = vmul.f32 %v2879, %v2772
        %v2998 = vmul.f32 %v2884, %v2773
        %v2999 = vmul.f32 %v2887, %v2774
        %v3000 = vmul.f32 %v2892, %v2775
        %v3001 = vmul.f32 %v2895, %v2776
        %v3002 = vmul.f32 %v2900, %v2777
        %v3003 = vmul.f32 %v2903, %v2778
        %v3004 = vmul.f32 %v2908, %v2779
        %v3005 = vmul.f32 %v2911, %v2780
        %v3006 = vmul.f32 %v2916, %v2781
        %v3007 = vmul.f32 %v2919, %v2782
        %v3008 = vmul.f32 %v2924, %v2783
        %v3009 = vmul.f32 %v2927, %v2784
        %v3010 = vmul.f32 %v2932, %v2785
        %v3011 = vmul.f32 %v2935, %v2786
        %v3012 = vmul.f32 %v2940, %v2787
        %v3013 = vmul.f32 %v2943, %v2788
        %v3014 = vmul.f32 %v2948, %v2789
        %v3015 = vmul.f32 %v2951, %v2790
        %v3016 = vmul.f32 %v2956, %v2791
        %v3017 = vmul.f32 %v2959, %v2792
        %v3018 = vmul.f32 %v2964, %v2793
        %v3019 = vmul.f32 %v2967, %v2794
        %v3020 = vmul.f32 %v2972, %v2795
        %v3021 = vmul.f32 %v2975, %v2796
        %v3022 = vmul.f32 %v2980, %v2797
        %v3023 = vmul.f32 %v2983, %v2798
        %v3024 = vmul.f32 %v2988, %v2799
        %v3025 = vmul.f32 %v2991, %v2800
        %v3026 = vpack.c.bf16 %v2995, %v2994
        %v3027 = vpack.c.bf16 %v2997, %v2996
        %v3028 = vpack.c.bf16 %v2999, %v2998
        %v3029 = vpack.c.bf16 %v3001, %v3000
        %v3030 = vpack.c.bf16 %v3003, %v3002
        %v3031 = vpack.c.bf16 %v3005, %v3004
        %v3032 = vpack.c.bf16 %v3007, %v3006
        %v3033 = vpack.c.bf16 %v3009, %v3008
        %v3034 = vpack.c.bf16 %v3011, %v3010
        %v3035 = vpack.c.bf16 %v3013, %v3012
        %v3036 = vpack.c.bf16 %v3015, %v3014
        %v3037 = vpack.c.bf16 %v3017, %v3016
        %v3038 = vpack.c.bf16 %v3019, %v3018
        %v3039 = vpack.c.bf16 %v3021, %v3020
        %v3040 = vpack.c.bf16 %v3023, %v3022
        %v3041 = vpack.c.bf16 %v3025, %v3024
        %3042 = vst.msk [vmem:[#allocation3] sm:$0xff] %vm2095, %v3026
        %3043 = vst.msk [vmem:[#allocation3 + $0x8] sm:$0xff] %vm2095, %v3027
        %3044 = vst.msk [vmem:[#allocation3 + $0x10] sm:$0xff] %vm2095, %v3028
        %3045 = vst.msk [vmem:[#allocation3 + $0x18] sm:$0xff] %vm2095, %v3029
        %3046 = vst.msk [vmem:[#allocation3 + $0x20] sm:$0xff] %vm2095, %v3030
        %3047 = vst.msk [vmem:[#allocation3 + $0x28] sm:$0xff] %vm2095, %v3031
        %3048 = vst.msk [vmem:[#allocation3 + $0x30] sm:$0xff] %vm2095, %v3032
        %3049 = vst.msk [vmem:[#allocation3 + $0x38] sm:$0xff] %vm2095, %v3033
        %3050 = vst.msk [vmem:[#allocation3 + $0x40] sm:$0xff] %vm2095, %v3034
        %3051 = vst.msk [vmem:[#allocation3 + $0x48] sm:$0xff] %vm2095, %v3035
        %3052 = vst.msk [vmem:[#allocation3 + $0x50] sm:$0xff] %vm2095, %v3036
        %3053 = vst.msk [vmem:[#allocation3 + $0x58] sm:$0xff] %vm2095, %v3037
        %3054 = vst.msk [vmem:[#allocation3 + $0x60] sm:$0xff] %vm2095, %v3038
        %3055 = vst.msk [vmem:[#allocation3 + $0x68] sm:$0xff] %vm2095, %v3039
        %3056 = vst.msk [vmem:[#allocation3 + $0x70] sm:$0xff] %vm2095, %v3040
        %3057 = vst.msk [vmem:[#allocation3 + $0x78] sm:$0xff] %vm2095, %v3041
        %3074 = vrot.lane.b32.xlu0 %v2047, 96
        %v3075 = vpop.permute.xlu0 %3074
        %3076 = vrot.lane.b32.xlu0 %v2050, 96
        %v3077 = vpop.permute.xlu0 %3076
        %3078 = vrot.lane.b32.xlu0 %v2053, 96
        %v3079 = vpop.permute.xlu0 %3078
        %3080 = vrot.lane.b32.xlu0 %v2056, 96
        %v3081 = vpop.permute.xlu0 %3080
        %3082 = vrot.lane.b32.xlu0 %v2059, 96
        %v3083 = vpop.permute.xlu0 %3082
        %3084 = vrot.lane.b32.xlu0 %v2062, 96
        %v3085 = vpop.permute.xlu0 %3084
        %3086 = vrot.lane.b32.xlu0 %v2065, 96
        %v3087 = vpop.permute.xlu0 %3086
        %3088 = vrot.lane.b32.xlu0 %v2068, 96
        %v3089 = vpop.permute.xlu0 %3088
        %3090 = vrot.lane.b32.xlu0 %v2071, 96
        %v3091 = vpop.permute.xlu0 %3090
        %3092 = vrot.lane.b32.xlu0 %v2074, 96
        %v3093 = vpop.permute.xlu0 %3092
        %3094 = vrot.lane.b32.xlu0 %v2077, 96
        %v3095 = vpop.permute.xlu0 %3094
        %3096 = vrot.lane.b32.xlu0 %v2080, 96
        %v3097 = vpop.permute.xlu0 %3096
        %3098 = vrot.lane.b32.xlu0 %v2083, 96
        %v3099 = vpop.permute.xlu0 %3098
        %3100 = vrot.lane.b32.xlu0 %v2086, 96
        %v3101 = vpop.permute.xlu0 %3100
        %3102 = vrot.lane.b32.xlu0 %v2089, 96
        %v3103 = vpop.permute.xlu0 %3102
        %3104 = vrot.lane.b32.xlu0 %v2092, 96
        %v3105 = vpop.permute.xlu0 %3104
        %3122 = vrot.lane.b32.xlu0 %v2048, 96
        %v3123 = vpop.permute.xlu0 %3122
        %3124 = vrot.lane.b32.xlu0 %v2051, 96
        %v3125 = vpop.permute.xlu0 %3124
        %3126 = vrot.lane.b32.xlu0 %v2054, 96
        %v3127 = vpop.permute.xlu0 %3126
        %3128 = vrot.lane.b32.xlu0 %v2057, 96
        %v3129 = vpop.permute.xlu0 %3128
        %3130 = vrot.lane.b32.xlu0 %v2060, 96
        %v3131 = vpop.permute.xlu0 %3130
        %3132 = vrot.lane.b32.xlu0 %v2063, 96
        %v3133 = vpop.permute.xlu0 %3132
        %3134 = vrot.lane.b32.xlu0 %v2066, 96
        %v3135 = vpop.permute.xlu0 %3134
        %3136 = vrot.lane.b32.xlu0 %v2069, 96
        %v3137 = vpop.permute.xlu0 %3136
        %3138 = vrot.lane.b32.xlu0 %v2072, 96
        %v3139 = vpop.permute.xlu0 %3138
        %3140 = vrot.lane.b32.xlu0 %v2075, 96
        %v3141 = vpop.permute.xlu0 %3140
        %3142 = vrot.lane.b32.xlu0 %v2078, 96
        %v3143 = vpop.permute.xlu0 %3142
        %3144 = vrot.lane.b32.xlu0 %v2081, 96
        %v3145 = vpop.permute.xlu0 %3144
        %3146 = vrot.lane.b32.xlu0 %v2084, 96
        %v3147 = vpop.permute.xlu0 %3146
        %3148 = vrot.lane.b32.xlu0 %v2087, 96
        %v3149 = vpop.permute.xlu0 %3148
        %3150 = vrot.lane.b32.xlu0 %v2090, 96
        %v3151 = vpop.permute.xlu0 %3150
        %3152 = vrot.lane.b32.xlu0 %v2093, 96
        %v3153 = vpop.permute.xlu0 %3152
        %v3155 = vsel %vm2095, %v3075, 0
        %v3158 = vsel %vm2095, %v3077, 0
        %v3161 = vsel %vm2095, %v3079, 0
        %v3164 = vsel %vm2095, %v3081, 0
        %v3167 = vsel %vm2095, %v3083, 0
        %v3170 = vsel %vm2095, %v3085, 0
        %v3173 = vsel %vm2095, %v3087, 0
        %v3176 = vsel %vm2095, %v3089, 0
        %v3179 = vsel %vm2095, %v3091, 0
        %v3182 = vsel %vm2095, %v3093, 0
        %v3185 = vsel %vm2095, %v3095, 0
        %v3188 = vsel %vm2095, %v3097, 0
        %v3191 = vsel %vm2095, %v3099, 0
        %v3194 = vsel %vm2095, %v3101, 0
        %v3197 = vsel %vm2095, %v3103, 0
        %v3200 = vsel %vm2095, %v3105, 0
        %v3203 = vsel %vm2095, %v3123, 0
        %v3206 = vsel %vm2095, %v3125, 0
        %v3209 = vsel %vm2095, %v3127, 0
        %v3212 = vsel %vm2095, %v3129, 0
        %v3215 = vsel %vm2095, %v3131, 0
        %v3218 = vsel %vm2095, %v3133, 0
        %v3221 = vsel %vm2095, %v3135, 0
        %v3224 = vsel %vm2095, %v3137, 0
        %v3227 = vsel %vm2095, %v3139, 0
        %v3230 = vsel %vm2095, %v3141, 0
        %v3233 = vsel %vm2095, %v3143, 0
        %v3236 = vsel %vm2095, %v3145, 0
        %v3239 = vsel %vm2095, %v3147, 0
        %v3242 = vsel %vm2095, %v3149, 0
        %v3245 = vsel %vm2095, %v3151, 0
        %v3248 = vsel %vm2095, %v3153, 0
        %3250 = vmatprep.subr.bf16.mxu0 0
        %3251 = vmatpush1.bf16.xpose.msra.mxu0 %v3203
        %3252 = vmatprep.subr.bf16.mxu0 0
        %3253 = vmatpush1.bf16.xpose.msra.mxu0 %v3206
        %3254 = vmatprep.subr.bf16.mxu0 0
        %3255 = vmatpush1.bf16.xpose.msra.mxu0 %v3209
        %3256 = vmatprep.subr.bf16.mxu0 0
        %3257 = vmatpush1.bf16.xpose.msra.mxu0 %v3212
        %3258 = vmatprep.subr.bf16.mxu0 0
        %3259 = vmatpush1.bf16.xpose.msra.mxu0 %v3215
        %3260 = vmatprep.subr.bf16.mxu0 0
        %3261 = vmatpush1.bf16.xpose.msra.mxu0 %v3218
        %3262 = vmatprep.subr.bf16.mxu0 0
        %3263 = vmatpush1.bf16.xpose.msra.mxu0 %v3221
        %3264 = vmatprep.subr.bf16.mxu0 0
        %3265 = vmatpush1.bf16.xpose.msra.mxu0 %v3224
        %3266 = vmatprep.subr.bf16.mxu0 0
        %3267 = vmatpush1.bf16.xpose.msra.mxu0 %v3227
        %3268 = vmatprep.subr.bf16.mxu0 0
        %3269 = vmatpush1.bf16.xpose.msra.mxu0 %v3230
        %3270 = vmatprep.subr.bf16.mxu0 0
        %3271 = vmatpush1.bf16.xpose.msra.mxu0 %v3233
        %3272 = vmatprep.subr.bf16.mxu0 0
        %3273 = vmatpush1.bf16.xpose.msra.mxu0 %v3236
        %3274 = vmatprep.subr.bf16.mxu0 0
        %3275 = vmatpush1.bf16.xpose.msra.mxu0 %v3239
        %3276 = vmatprep.subr.bf16.mxu0 0
        %3277 = vmatpush1.bf16.xpose.msra.mxu0 %v3242
        %3278 = vmatprep.subr.bf16.mxu0 0
        %3279 = vmatpush1.bf16.xpose.msra.mxu0 %v3245
        %3280 = vmatprep.subr.bf16.mxu0 0
        %3281 = vmatpush1.bf16.xpose.msra.mxu0 %v3248
        %3282 = vmatprep.mubr.bf16.mxu0 0
        %3283 = vmatmul.mubr.bf16.gmra.mrb[0].mxu0 %v3155
        %v3284 = vpop.f32.mrb[0].mxu0
        %v3285 = vadd.f32 0.0, %v3284
        %v3286 = vpop.f32.mrb[0].mxu0
        %v3287 = vadd.f32 0.0, %v3286
        %v3288 = vpop.f32.mrb[0].mxu0
        %v3289 = vadd.f32 0.0, %v3288
        %v3290 = vpop.f32.mrb[0].mxu0
        %v3291 = vadd.f32 0.0, %v3290
        %3292 = vmatprep.mubr.bf16.mxu0 0
        %3293 = vmatmul.mubr.bf16.gmra.mrb[0].mxu0 %v3158
        %v3294 = vpop.f32.mrb[0].mxu0
        %v3295 = vadd.f32 0.0, %v3294
        %v3296 = vpop.f32.mrb[0].mxu0
        %v3297 = vadd.f32 0.0, %v3296
        %v3298 = vpop.f32.mrb[0].mxu0
        %v3299 = vadd.f32 0.0, %v3298
        %v3300 = vpop.f32.mrb[0].mxu0
        %v3301 = vadd.f32 0.0, %v3300
        %3302 = vmatprep.mubr.bf16.mxu0 0
        %3303 = vmatmul.mubr.bf16.gmra.mrb[0].mxu0 %v3161
        %v3304 = vpop.f32.mrb[0].mxu0
        %v3305 = vadd.f32 0.0, %v3304
        %v3306 = vpop.f32.mrb[0].mxu0
        %v3307 = vadd.f32 0.0, %v3306
        %v3308 = vpop.f32.mrb[0].mxu0
        %v3309 = vadd.f32 0.0, %v3308
        %v3310 = vpop.f32.mrb[0].mxu0
        %v3311 = vadd.f32 0.0, %v3310
        %3312 = vmatprep.mubr.bf16.mxu0 0
        %3313 = vmatmul.mubr.bf16.gmra.mrb[0].mxu0 %v3164
        %v3314 = vpop.f32.mrb[0].mxu0
        %v3315 = vadd.f32 0.0, %v3314
        %v3316 = vpop.f32.mrb[0].mxu0
        %v3317 = vadd.f32 0.0, %v3316
        %v3318 = vpop.f32.mrb[0].mxu0
        %v3319 = vadd.f32 0.0, %v3318
        %v3320 = vpop.f32.mrb[0].mxu0
        %v3321 = vadd.f32 0.0, %v3320
        %3322 = vmatprep.mubr.bf16.mxu0 0
        %3323 = vmatmul.mubr.bf16.gmra.mrb[0].mxu0 %v3167
        %v3324 = vpop.f32.mrb[0].mxu0
        %v3325 = vadd.f32 0.0, %v3324
        %v3326 = vpop.f32.mrb[0].mxu0
        %v3327 = vadd.f32 0.0, %v3326
        %v3328 = vpop.f32.mrb[0].mxu0
        %v3329 = vadd.f32 0.0, %v3328
        %v3330 = vpop.f32.mrb[0].mxu0
        %v3331 = vadd.f32 0.0, %v3330
        %3332 = vmatprep.mubr.bf16.mxu0 0
        %3333 = vmatmul.mubr.bf16.gmra.mrb[0].mxu0 %v3170
        %v3334 = vpop.f32.mrb[0].mxu0
        %v3335 = vadd.f32 0.0, %v3334
        %v3336 = vpop.f32.mrb[0].mxu0
        %v3337 = vadd.f32 0.0, %v3336
        %v3338 = vpop.f32.mrb[0].mxu0
        %v3339 = vadd.f32 0.0, %v3338
        %v3340 = vpop.f32.mrb[0].mxu0
        %v3341 = vadd.f32 0.0, %v3340
        %3342 = vmatprep.mubr.bf16.mxu0 0
        %3343 = vmatmul.mubr.bf16.gmra.mrb[0].mxu0 %v3173
        %v3344 = vpop.f32.mrb[0].mxu0
        %v3345 = vadd.f32 0.0, %v3344
        %v3346 = vpop.f32.mrb[0].mxu0
        %v3347 = vadd.f32 0.0, %v3346
        %v3348 = vpop.f32.mrb[0].mxu0
        %v3349 = vadd.f32 0.0, %v3348
        %v3350 = vpop.f32.mrb[0].mxu0
        %v3351 = vadd.f32 0.0, %v3350
        %3352 = vmatprep.mubr.bf16.mxu0 0
        %3353 = vmatmul.mubr.bf16.gmra.mrb[0].mxu0 %v3176
        %v3354 = vpop.f32.mrb[0].mxu0
        %v3355 = vadd.f32 0.0, %v3354
        %v3356 = vpop.f32.mrb[0].mxu0
        %v3357 = vadd.f32 0.0, %v3356
        %v3358 = vpop.f32.mrb[0].mxu0
        %v3359 = vadd.f32 0.0, %v3358
        %v3360 = vpop.f32.mrb[0].mxu0
        %v3361 = vadd.f32 0.0, %v3360
        %3362 = vmatprep.mubr.bf16.mxu0 0
        %3363 = vmatmul.mubr.bf16.gmra.mrb[0].mxu0 %v3179
        %v3364 = vpop.f32.mrb[0].mxu0
        %v3365 = vadd.f32 0.0, %v3364
        %v3366 = vpop.f32.mrb[0].mxu0
        %v3367 = vadd.f32 0.0, %v3366
        %v3368 = vpop.f32.mrb[0].mxu0
        %v3369 = vadd.f32 0.0, %v3368
        %v3370 = vpop.f32.mrb[0].mxu0
        %v3371 = vadd.f32 0.0, %v3370
        %3372 = vmatprep.mubr.bf16.mxu0 0
        %3373 = vmatmul.mubr.bf16.gmra.mrb[0].mxu0 %v3182
        %v3374 = vpop.f32.mrb[0].mxu0
        %v3375 = vadd.f32 0.0, %v3374
        %v3376 = vpop.f32.mrb[0].mxu0
        %v3377 = vadd.f32 0.0, %v3376
        %v3378 = vpop.f32.mrb[0].mxu0
        %v3379 = vadd.f32 0.0, %v3378
        %v3380 = vpop.f32.mrb[0].mxu0
        %v3381 = vadd.f32 0.0, %v3380
        %3382 = vmatprep.mubr.bf16.mxu0 0
        %3383 = vmatmul.mubr.bf16.gmra.mrb[0].mxu0 %v3185
        %v3384 = vpop.f32.mrb[0].mxu0
        %v3385 = vadd.f32 0.0, %v3384
        %v3386 = vpop.f32.mrb[0].mxu0
        %v3387 = vadd.f32 0.0, %v3386
        %v3388 = vpop.f32.mrb[0].mxu0
        %v3389 = vadd.f32 0.0, %v3388
        %v3390 = vpop.f32.mrb[0].mxu0
        %v3391 = vadd.f32 0.0, %v3390
        %3392 = vmatprep.mubr.bf16.mxu0 0
        %3393 = vmatmul.mubr.bf16.gmra.mrb[0].mxu0 %v3188
        %v3394 = vpop.f32.mrb[0].mxu0
        %v3395 = vadd.f32 0.0, %v3394
        %v3396 = vpop.f32.mrb[0].mxu0
        %v3397 = vadd.f32 0.0, %v3396
        %v3398 = vpop.f32.mrb[0].mxu0
        %v3399 = vadd.f32 0.0, %v3398
        %v3400 = vpop.f32.mrb[0].mxu0
        %v3401 = vadd.f32 0.0, %v3400
        %3402 = vmatprep.mubr.bf16.mxu0 0
        %3403 = vmatmul.mubr.bf16.gmra.mrb[0].mxu0 %v3191
        %v3404 = vpop.f32.mrb[0].mxu0
        %v3405 = vadd.f32 0.0, %v3404
        %v3406 = vpop.f32.mrb[0].mxu0
        %v3407 = vadd.f32 0.0, %v3406
        %v3408 = vpop.f32.mrb[0].mxu0
        %v3409 = vadd.f32 0.0, %v3408
        %v3410 = vpop.f32.mrb[0].mxu0
        %v3411 = vadd.f32 0.0, %v3410
        %3412 = vmatprep.mubr.bf16.mxu0 0
        %3413 = vmatmul.mubr.bf16.gmra.mrb[0].mxu0 %v3194
        %v3414 = vpop.f32.mrb[0].mxu0
        %v3415 = vadd.f32 0.0, %v3414
        %v3416 = vpop.f32.mrb[0].mxu0
        %v3417 = vadd.f32 0.0, %v3416
        %v3418 = vpop.f32.mrb[0].mxu0
        %v3419 = vadd.f32 0.0, %v3418
        %v3420 = vpop.f32.mrb[0].mxu0
        %v3421 = vadd.f32 0.0, %v3420
        %3422 = vmatprep.mubr.bf16.mxu0 0
        %3423 = vmatmul.mubr.bf16.gmra.mrb[0].mxu0 %v3197
        %v3424 = vpop.f32.mrb[0].mxu0
        %v3425 = vadd.f32 0.0, %v3424
        %v3426 = vpop.f32.mrb[0].mxu0
        %v3427 = vadd.f32 0.0, %v3426
        %v3428 = vpop.f32.mrb[0].mxu0
        %v3429 = vadd.f32 0.0, %v3428
        %v3430 = vpop.f32.mrb[0].mxu0
        %v3431 = vadd.f32 0.0, %v3430
        %3432 = vmatprep.mubr.bf16.mxu0 0
        %3433 = vmatmul.mubr.bf16.gmra.mrb[0].mxu0 %v3200
        %v3434 = vpop.f32.mrb[0].mxu0
        %v3435 = vadd.f32 0.0, %v3434
        %v3436 = vpop.f32.mrb[0].mxu0
        %v3437 = vadd.f32 0.0, %v3436
        %v3438 = vpop.f32.mrb[0].mxu0
        %v3439 = vadd.f32 0.0, %v3438
        %v3440 = vpop.f32.mrb[0].mxu0
        %v3441 = vadd.f32 0.0, %v3440
        %3442 = vdwg.mxu0
        %v3443 = vmax.f32 %v3285, %v3287
        %3444 = vmax.xlane.f32.xlu0 %v3443
        %v3445 = vpop.xlane.xlu0 %3444
        %v3446 = vmax.f32 %v3289, %v3291
        %3447 = vmax.xlane.f32.xlu0 %v3446
        %v3448 = vpop.xlane.xlu0 %3447
        %v3449 = vmax.f32 %v3295, %v3297
        %3450 = vmax.xlane.f32.xlu0 %v3449
        %v3451 = vpop.xlane.xlu0 %3450
        %v3452 = vmax.f32 %v3299, %v3301
        %3453 = vmax.xlane.f32.xlu0 %v3452
        %v3454 = vpop.xlane.xlu0 %3453
        %v3455 = vmax.f32 %v3305, %v3307
        %3456 = vmax.xlane.f32.xlu0 %v3455
        %v3457 = vpop.xlane.xlu0 %3456
        %v3458 = vmax.f32 %v3309, %v3311
        %3459 = vmax.xlane.f32.xlu0 %v3458
        %v3460 = vpop.xlane.xlu0 %3459
        %v3461 = vmax.f32 %v3315, %v3317
        %3462 = vmax.xlane.f32.xlu0 %v3461
        %v3463 = vpop.xlane.xlu0 %3462
        %v3464 = vmax.f32 %v3319, %v3321
        %3465 = vmax.xlane.f32.xlu0 %v3464
        %v3466 = vpop.xlane.xlu0 %3465
        %v3467 = vmax.f32 %v3325, %v3327
        %3468 = vmax.xlane.f32.xlu0 %v3467
        %v3469 = vpop.xlane.xlu0 %3468
        %v3470 = vmax.f32 %v3329, %v3331
        %3471 = vmax.xlane.f32.xlu0 %v3470
        %v3472 = vpop.xlane.xlu0 %3471
        %v3473 = vmax.f32 %v3335, %v3337
        %3474 = vmax.xlane.f32.xlu0 %v3473
        %v3475 = vpop.xlane.xlu0 %3474
        %v3476 = vmax.f32 %v3339, %v3341
        %3477 = vmax.xlane.f32.xlu0 %v3476
        %v3478 = vpop.xlane.xlu0 %3477
        %v3479 = vmax.f32 %v3345, %v3347
        %3480 = vmax.xlane.f32.xlu0 %v3479
        %v3481 = vpop.xlane.xlu0 %3480
        %v3482 = vmax.f32 %v3349, %v3351
        %3483 = vmax.xlane.f32.xlu0 %v3482
        %v3484 = vpop.xlane.xlu0 %3483
        %v3485 = vmax.f32 %v3355, %v3357
        %3486 = vmax.xlane.f32.xlu0 %v3485
        %v3487 = vpop.xlane.xlu0 %3486
        %v3488 = vmax.f32 %v3359, %v3361
        %3489 = vmax.xlane.f32.xlu0 %v3488
        %v3490 = vpop.xlane.xlu0 %3489
        %v3491 = vmax.f32 %v3365, %v3367
        %3492 = vmax.xlane.f32.xlu0 %v3491
        %v3493 = vpop.xlane.xlu0 %3492
        %v3494 = vmax.f32 %v3369, %v3371
        %3495 = vmax.xlane.f32.xlu0 %v3494
        %v3496 = vpop.xlane.xlu0 %3495
        %v3497 = vmax.f32 %v3375, %v3377
        %3498 = vmax.xlane.f32.xlu0 %v3497
        %v3499 = vpop.xlane.xlu0 %3498
        %v3500 = vmax.f32 %v3379, %v3381
        %3501 = vmax.xlane.f32.xlu0 %v3500
        %v3502 = vpop.xlane.xlu0 %3501
        %v3503 = vmax.f32 %v3385, %v3387
        %3504 = vmax.xlane.f32.xlu0 %v3503
        %v3505 = vpop.xlane.xlu0 %3504
        %v3506 = vmax.f32 %v3389, %v3391
        %3507 = vmax.xlane.f32.xlu0 %v3506
        %v3508 = vpop.xlane.xlu0 %3507
        %v3509 = vmax.f32 %v3395, %v3397
        %3510 = vmax.xlane.f32.xlu0 %v3509
        %v3511 = vpop.xlane.xlu0 %3510
        %v3512 = vmax.f32 %v3399, %v3401
        %3513 = vmax.xlane.f32.xlu0 %v3512
        %v3514 = vpop.xlane.xlu0 %3513
        %v3515 = vmax.f32 %v3405, %v3407
        %3516 = vmax.xlane.f32.xlu0 %v3515
        %v3517 = vpop.xlane.xlu0 %3516
        %v3518 = vmax.f32 %v3409, %v3411
        %3519 = vmax.xlane.f32.xlu0 %v3518
        %v3520 = vpop.xlane.xlu0 %3519
        %v3521 = vmax.f32 %v3415, %v3417
        %3522 = vmax.xlane.f32.xlu0 %v3521
        %v3523 = vpop.xlane.xlu0 %3522
        %v3524 = vmax.f32 %v3419, %v3421
        %3525 = vmax.xlane.f32.xlu0 %v3524
        %v3526 = vpop.xlane.xlu0 %3525
        %v3527 = vmax.f32 %v3425, %v3427
        %3528 = vmax.xlane.f32.xlu0 %v3527
        %v3529 = vpop.xlane.xlu0 %3528
        %v3530 = vmax.f32 %v3429, %v3431
        %3531 = vmax.xlane.f32.xlu0 %v3530
        %v3532 = vpop.xlane.xlu0 %3531
        %v3533 = vmax.f32 %v3435, %v3437
        %3534 = vmax.xlane.f32.xlu0 %v3533
        %v3535 = vpop.xlane.xlu0 %3534
        %v3536 = vmax.f32 %v3439, %v3441
        %3537 = vmax.xlane.f32.xlu0 %v3536
        %v3538 = vpop.xlane.xlu0 %3537
        %v3539 = vsub.f32 %v3285, %v3445
        %v3540 = vsub.f32 %v3287, %v3445
        %v3541 = vsub.f32 %v3289, %v3448
        %v3542 = vsub.f32 %v3291, %v3448
        %v3543 = vsub.f32 %v3295, %v3451
        %v3544 = vsub.f32 %v3297, %v3451
        %v3545 = vsub.f32 %v3299, %v3454
        %v3546 = vsub.f32 %v3301, %v3454
        %v3547 = vsub.f32 %v3305, %v3457
        %v3548 = vsub.f32 %v3307, %v3457
        %v3549 = vsub.f32 %v3309, %v3460
        %v3550 = vsub.f32 %v3311, %v3460
        %v3551 = vsub.f32 %v3315, %v3463
        %v3552 = vsub.f32 %v3317, %v3463
        %v3553 = vsub.f32 %v3319, %v3466
        %v3554 = vsub.f32 %v3321, %v3466
        %v3555 = vsub.f32 %v3325, %v3469
        %v3556 = vsub.f32 %v3327, %v3469
        %v3557 = vsub.f32 %v3329, %v3472
        %v3558 = vsub.f32 %v3331, %v3472
        %v3559 = vsub.f32 %v3335, %v3475
        %v3560 = vsub.f32 %v3337, %v3475
        %v3561 = vsub.f32 %v3339, %v3478
        %v3562 = vsub.f32 %v3341, %v3478
        %v3563 = vsub.f32 %v3345, %v3481
        %v3564 = vsub.f32 %v3347, %v3481
        %v3565 = vsub.f32 %v3349, %v3484
        %v3566 = vsub.f32 %v3351, %v3484
        %v3567 = vsub.f32 %v3355, %v3487
        %v3568 = vsub.f32 %v3357, %v3487
        %v3569 = vsub.f32 %v3359, %v3490
        %v3570 = vsub.f32 %v3361, %v3490
        %v3571 = vsub.f32 %v3365, %v3493
        %v3572 = vsub.f32 %v3367, %v3493
        %v3573 = vsub.f32 %v3369, %v3496
        %v3574 = vsub.f32 %v3371, %v3496
        %v3575 = vsub.f32 %v3375, %v3499
        %v3576 = vsub.f32 %v3377, %v3499
        %v3577 = vsub.f32 %v3379, %v3502
        %v3578 = vsub.f32 %v3381, %v3502
        %v3579 = vsub.f32 %v3385, %v3505
        %v3580 = vsub.f32 %v3387, %v3505
        %v3581 = vsub.f32 %v3389, %v3508
        %v3582 = vsub.f32 %v3391, %v3508
        %v3583 = vsub.f32 %v3395, %v3511
        %v3584 = vsub.f32 %v3397, %v3511
        %v3585 = vsub.f32 %v3399, %v3514
        %v3586 = vsub.f32 %v3401, %v3514
        %v3587 = vsub.f32 %v3405, %v3517
        %v3588 = vsub.f32 %v3407, %v3517
        %v3589 = vsub.f32 %v3409, %v3520
        %v3590 = vsub.f32 %v3411, %v3520
        %v3591 = vsub.f32 %v3415, %v3523
        %v3592 = vsub.f32 %v3417, %v3523
        %v3593 = vsub.f32 %v3419, %v3526
        %v3594 = vsub.f32 %v3421, %v3526
        %v3595 = vsub.f32 %v3425, %v3529
        %v3596 = vsub.f32 %v3427, %v3529
        %v3597 = vsub.f32 %v3429, %v3532
        %v3598 = vsub.f32 %v3431, %v3532
        %v3599 = vsub.f32 %v3435, %v3535
        %v3600 = vsub.f32 %v3437, %v3535
        %v3601 = vsub.f32 %v3439, %v3538
        %v3602 = vsub.f32 %v3441, %v3538
        %v3603 = vmul.f32 %v3539, 1.442695
        %v3604 = vpow.pop %v3603
        %v3605 = vmul.f32 %v3540, 1.442695
        %v3606 = vpow.pop %v3605
        %v3607 = vmul.f32 %v3541, 1.442695
        %v3608 = vpow.pop %v3607
        %v3609 = vmul.f32 %v3542, 1.442695
        %v3610 = vpow.pop %v3609
        %v3611 = vmul.f32 %v3543, 1.442695
        %v3612 = vpow.pop %v3611
        %v3613 = vmul.f32 %v3544, 1.442695
        %v3614 = vpow.pop %v3613
        %v3615 = vmul.f32 %v3545, 1.442695
        %v3616 = vpow.pop %v3615
        %v3617 = vmul.f32 %v3546, 1.442695
        %v3618 = vpow.pop %v3617
        %v3619 = vmul.f32 %v3547, 1.442695
        %v3620 = vpow.pop %v3619
        %v3621 = vmul.f32 %v3548, 1.442695
        %v3622 = vpow.pop %v3621
        %v3623 = vmul.f32 %v3549, 1.442695
        %v3624 = vpow.pop %v3623
        %v3625 = vmul.f32 %v3550, 1.442695
        %v3626 = vpow.pop %v3625
        %v3627 = vmul.f32 %v3551, 1.442695
        %v3628 = vpow.pop %v3627
        %v3629 = vmul.f32 %v3552, 1.442695
        %v3630 = vpow.pop %v3629
        %v3631 = vmul.f32 %v3553, 1.442695
        %v3632 = vpow.pop %v3631
        %v3633 = vmul.f32 %v3554, 1.442695
        %v3634 = vpow.pop %v3633
        %v3635 = vmul.f32 %v3555, 1.442695
        %v3636 = vpow.pop %v3635
        %v3637 = vmul.f32 %v3556, 1.442695
        %v3638 = vpow.pop %v3637
        %v3639 = vmul.f32 %v3557, 1.442695
        %v3640 = vpow.pop %v3639
        %v3641 = vmul.f32 %v3558, 1.442695
        %v3642 = vpow.pop %v3641
        %v3643 = vmul.f32 %v3559, 1.442695
        %v3644 = vpow.pop %v3643
        %v3645 = vmul.f32 %v3560, 1.442695
        %v3646 = vpow.pop %v3645
        %v3647 = vmul.f32 %v3561, 1.442695
        %v3648 = vpow.pop %v3647
        %v3649 = vmul.f32 %v3562, 1.442695
        %v3650 = vpow.pop %v3649
        %v3651 = vmul.f32 %v3563, 1.442695
        %v3652 = vpow.pop %v3651
        %v3653 = vmul.f32 %v3564, 1.442695
        %v3654 = vpow.pop %v3653
        %v3655 = vmul.f32 %v3565, 1.442695
        %v3656 = vpow.pop %v3655
        %v3657 = vmul.f32 %v3566, 1.442695
        %v3658 = vpow.pop %v3657
        %v3659 = vmul.f32 %v3567, 1.442695
        %v3660 = vpow.pop %v3659
        %v3661 = vmul.f32 %v3568, 1.442695
        %v3662 = vpow.pop %v3661
        %v3663 = vmul.f32 %v3569, 1.442695
        %v3664 = vpow.pop %v3663
        %v3665 = vmul.f32 %v3570, 1.442695
        %v3666 = vpow.pop %v3665
        %v3667 = vmul.f32 %v3571, 1.442695
        %v3668 = vpow.pop %v3667
        %v3669 = vmul.f32 %v3572, 1.442695
        %v3670 = vpow.pop %v3669
        %v3671 = vmul.f32 %v3573, 1.442695
        %v3672 = vpow.pop %v3671
        %v3673 = vmul.f32 %v3574, 1.442695
        %v3674 = vpow.pop %v3673
        %v3675 = vmul.f32 %v3575, 1.442695
        %v3676 = vpow.pop %v3675
        %v3677 = vmul.f32 %v3576, 1.442695
        %v3678 = vpow.pop %v3677
        %v3679 = vmul.f32 %v3577, 1.442695
        %v3680 = vpow.pop %v3679
        %v3681 = vmul.f32 %v3578, 1.442695
        %v3682 = vpow.pop %v3681
        %v3683 = vmul.f32 %v3579, 1.442695
        %v3684 = vpow.pop %v3683
        %v3685 = vmul.f32 %v3580, 1.442695
        %v3686 = vpow.pop %v3685
        %v3687 = vmul.f32 %v3581, 1.442695
        %v3688 = vpow.pop %v3687
        %v3689 = vmul.f32 %v3582, 1.442695
        %v3690 = vpow.pop %v3689
        %v3691 = vmul.f32 %v3583, 1.442695
        %v3692 = vpow.pop %v3691
        %v3693 = vmul.f32 %v3584, 1.442695
        %v3694 = vpow.pop %v3693
        %v3695 = vmul.f32 %v3585, 1.442695
        %v3696 = vpow.pop %v3695
        %v3697 = vmul.f32 %v3586, 1.442695
        %v3698 = vpow.pop %v3697
        %v3699 = vmul.f32 %v3587, 1.442695
        %v3700 = vpow.pop %v3699
        %v3701 = vmul.f32 %v3588, 1.442695
        %v3702 = vpow.pop %v3701
        %v3703 = vmul.f32 %v3589, 1.442695
        %v3704 = vpow.pop %v3703
        %v3705 = vmul.f32 %v3590, 1.442695
        %v3706 = vpow.pop %v3705
        %v3707 = vmul.f32 %v3591, 1.442695
        %v3708 = vpow.pop %v3707
        %v3709 = vmul.f32 %v3592, 1.442695
        %v3710 = vpow.pop %v3709
        %v3711 = vmul.f32 %v3593, 1.442695
        %v3712 = vpow.pop %v3711
        %v3713 = vmul.f32 %v3594, 1.442695
        %v3714 = vpow.pop %v3713
        %v3715 = vmul.f32 %v3595, 1.442695
        %v3716 = vpow.pop %v3715
        %v3717 = vmul.f32 %v3596, 1.442695
        %v3718 = vpow.pop %v3717
        %v3719 = vmul.f32 %v3597, 1.442695
        %v3720 = vpow.pop %v3719
        %v3721 = vmul.f32 %v3598, 1.442695
        %v3722 = vpow.pop %v3721
        %v3723 = vmul.f32 %v3599, 1.442695
        %v3724 = vpow.pop %v3723
        %v3725 = vmul.f32 %v3600, 1.442695
        %v3726 = vpow.pop %v3725
        %v3727 = vmul.f32 %v3601, 1.442695
        %v3728 = vpow.pop %v3727
        %v3729 = vmul.f32 %v3602, 1.442695
        %v3730 = vpow.pop %v3729
        %v3731 = vadd.f32 %v3604, %v3606
        %3732 = vadd.xlane.f32.xlu0 %v3731
        %v3733 = vpop.xlane.xlu0 %3732
        %v3734 = vadd.f32 %v3608, %v3610
        %3735 = vadd.xlane.f32.xlu0 %v3734
        %v3736 = vpop.xlane.xlu0 %3735
        %v3737 = vadd.f32 %v3612, %v3614
        %3738 = vadd.xlane.f32.xlu0 %v3737
        %v3739 = vpop.xlane.xlu0 %3738
        %v3740 = vadd.f32 %v3616, %v3618
        %3741 = vadd.xlane.f32.xlu0 %v3740
        %v3742 = vpop.xlane.xlu0 %3741
        %v3743 = vadd.f32 %v3620, %v3622
        %3744 = vadd.xlane.f32.xlu0 %v3743
        %v3745 = vpop.xlane.xlu0 %3744
        %v3746 = vadd.f32 %v3624, %v3626
        %3747 = vadd.xlane.f32.xlu0 %v3746
        %v3748 = vpop.xlane.xlu0 %3747
        %v3749 = vadd.f32 %v3628, %v3630
        %3750 = vadd.xlane.f32.xlu0 %v3749
        %v3751 = vpop.xlane.xlu0 %3750
        %v3752 = vadd.f32 %v3632, %v3634
        %3753 = vadd.xlane.f32.xlu0 %v3752
        %v3754 = vpop.xlane.xlu0 %3753
        %v3755 = vadd.f32 %v3636, %v3638
        %3756 = vadd.xlane.f32.xlu0 %v3755
        %v3757 = vpop.xlane.xlu0 %3756
        %v3758 = vadd.f32 %v3640, %v3642
        %3759 = vadd.xlane.f32.xlu0 %v3758
        %v3760 = vpop.xlane.xlu0 %3759
        %v3761 = vadd.f32 %v3644, %v3646
        %3762 = vadd.xlane.f32.xlu0 %v3761
        %v3763 = vpop.xlane.xlu0 %3762
        %v3764 = vadd.f32 %v3648, %v3650
        %3765 = vadd.xlane.f32.xlu0 %v3764
        %v3766 = vpop.xlane.xlu0 %3765
        %v3767 = vadd.f32 %v3652, %v3654
        %3768 = vadd.xlane.f32.xlu0 %v3767
        %v3769 = vpop.xlane.xlu0 %3768
        %v3770 = vadd.f32 %v3656, %v3658
        %3771 = vadd.xlane.f32.xlu0 %v3770
        %v3772 = vpop.xlane.xlu0 %3771
        %v3773 = vadd.f32 %v3660, %v3662
        %3774 = vadd.xlane.f32.xlu0 %v3773
        %v3775 = vpop.xlane.xlu0 %3774
        %v3776 = vadd.f32 %v3664, %v3666
        %3777 = vadd.xlane.f32.xlu0 %v3776
        %v3778 = vpop.xlane.xlu0 %3777
        %v3779 = vadd.f32 %v3668, %v3670
        %3780 = vadd.xlane.f32.xlu0 %v3779
        %v3781 = vpop.xlane.xlu0 %3780
        %v3782 = vadd.f32 %v3672, %v3674
        %3783 = vadd.xlane.f32.xlu0 %v3782
        %v3784 = vpop.xlane.xlu0 %3783
        %v3785 = vadd.f32 %v3676, %v3678
        %3786 = vadd.xlane.f32.xlu0 %v3785
        %v3787 = vpop.xlane.xlu0 %3786
        %v3788 = vadd.f32 %v3680, %v3682
        %3789 = vadd.xlane.f32.xlu0 %v3788
        %v3790 = vpop.xlane.xlu0 %3789
        %v3791 = vadd.f32 %v3684, %v3686
        %3792 = vadd.xlane.f32.xlu0 %v3791
        %v3793 = vpop.xlane.xlu0 %3792
        %v3794 = vadd.f32 %v3688, %v3690
        %3795 = vadd.xlane.f32.xlu0 %v3794
        %v3796 = vpop.xlane.xlu0 %3795
        %v3797 = vadd.f32 %v3692, %v3694
        %3798 = vadd.xlane.f32.xlu0 %v3797
        %v3799 = vpop.xlane.xlu0 %3798
        %v3800 = vadd.f32 %v3696, %v3698
        %3801 = vadd.xlane.f32.xlu0 %v3800
        %v3802 = vpop.xlane.xlu0 %3801
        %v3803 = vadd.f32 %v3700, %v3702
        %3804 = vadd.xlane.f32.xlu0 %v3803
        %v3805 = vpop.xlane.xlu0 %3804
        %v3806 = vadd.f32 %v3704, %v3706
        %3807 = vadd.xlane.f32.xlu0 %v3806
        %v3808 = vpop.xlane.xlu0 %3807
        %v3809 = vadd.f32 %v3708, %v3710
        %3810 = vadd.xlane.f32.xlu0 %v3809
        %v3811 = vpop.xlane.xlu0 %3810
        %v3812 = vadd.f32 %v3712, %v3714
        %3813 = vadd.xlane.f32.xlu0 %v3812
        %v3814 = vpop.xlane.xlu0 %3813
        %v3815 = vadd.f32 %v3716, %v3718
        %3816 = vadd.xlane.f32.xlu0 %v3815
        %v3817 = vpop.xlane.xlu0 %3816
        %v3818 = vadd.f32 %v3720, %v3722
        %3819 = vadd.xlane.f32.xlu0 %v3818
        %v3820 = vpop.xlane.xlu0 %3819
        %v3821 = vadd.f32 %v3724, %v3726
        %3822 = vadd.xlane.f32.xlu0 %v3821
        %v3823 = vpop.xlane.xlu0 %3822
        %v3824 = vadd.f32 %v3728, %v3730
        %3825 = vadd.xlane.f32.xlu0 %v3824
        %v3826 = vpop.xlane.xlu0 %3825
        %v3827 = vrcp.pop %v3733
        %v3828 = vrcp.pop %v3736
        %v3829 = vrcp.pop %v3739
        %v3830 = vrcp.pop %v3742
        %v3831 = vrcp.pop %v3745
        %v3832 = vrcp.pop %v3748
        %v3833 = vrcp.pop %v3751
        %v3834 = vrcp.pop %v3754
        %v3835 = vrcp.pop %v3757
        %v3836 = vrcp.pop %v3760
        %v3837 = vrcp.pop %v3763
        %v3838 = vrcp.pop %v3766
        %v3839 = vrcp.pop %v3769
        %v3840 = vrcp.pop %v3772
        %v3841 = vrcp.pop %v3775
        %v3842 = vrcp.pop %v3778
        %v3843 = vrcp.pop %v3781
        %v3844 = vrcp.pop %v3784
        %v3845 = vrcp.pop %v3787
        %v3846 = vrcp.pop %v3790
        %v3847 = vrcp.pop %v3793
        %v3848 = vrcp.pop %v3796
        %v3849 = vrcp.pop %v3799
        %v3850 = vrcp.pop %v3802
        %v3851 = vrcp.pop %v3805
        %v3852 = vrcp.pop %v3808
        %v3853 = vrcp.pop %v3811
        %v3854 = vrcp.pop %v3814
        %v3855 = vrcp.pop %v3817
        %v3856 = vrcp.pop %v3820
        %v3857 = vrcp.pop %v3823
        %v3858 = vrcp.pop %v3826
        %v3859 = vpack.c.bf16 %v3608, %v3604
        %v3860 = vpack.c.bf16 %v3610, %v3606
        %v3861 = vpack.c.bf16 %v3616, %v3612
        %v3862 = vpack.c.bf16 %v3618, %v3614
        %v3863 = vpack.c.bf16 %v3624, %v3620
        %v3864 = vpack.c.bf16 %v3626, %v3622
        %v3865 = vpack.c.bf16 %v3632, %v3628
        %v3866 = vpack.c.bf16 %v3634, %v3630
        %v3867 = vpack.c.bf16 %v3640, %v3636
        %v3868 = vpack.c.bf16 %v3642, %v3638
        %v3869 = vpack.c.bf16 %v3648, %v3644
        %v3870 = vpack.c.bf16 %v3650, %v3646
        %v3871 = vpack.c.bf16 %v3656, %v3652
        %v3872 = vpack.c.bf16 %v3658, %v3654
        %v3873 = vpack.c.bf16 %v3664, %v3660
        %v3874 = vpack.c.bf16 %v3666, %v3662
        %v3875 = vpack.c.bf16 %v3672, %v3668
        %v3876 = vpack.c.bf16 %v3674, %v3670
        %v3877 = vpack.c.bf16 %v3680, %v3676
        %v3878 = vpack.c.bf16 %v3682, %v3678
        %v3879 = vpack.c.bf16 %v3688, %v3684
        %v3880 = vpack.c.bf16 %v3690, %v3686
        %v3881 = vpack.c.bf16 %v3696, %v3692
        %v3882 = vpack.c.bf16 %v3698, %v3694
        %v3883 = vpack.c.bf16 %v3704, %v3700
        %v3884 = vpack.c.bf16 %v3706, %v3702
        %v3885 = vpack.c.bf16 %v3712, %v3708
        %v3886 = vpack.c.bf16 %v3714, %v3710
        %v3887 = vpack.c.bf16 %v3720, %v3716
        %v3888 = vpack.c.bf16 %v3722, %v3718
        %v3889 = vpack.c.bf16 %v3728, %v3724
        %v3890 = vpack.c.bf16 %v3730, %v3726
        %3907 = vrot.lane.b32.xlu0 %v2049, 96
        %v3908 = vpop.permute.xlu0 %3907
        %3909 = vrot.lane.b32.xlu0 %v2052, 96
        %v3910 = vpop.permute.xlu0 %3909
        %3911 = vrot.lane.b32.xlu0 %v2055, 96
        %v3912 = vpop.permute.xlu0 %3911
        %3913 = vrot.lane.b32.xlu0 %v2058, 96
        %v3914 = vpop.permute.xlu0 %3913
        %3915 = vrot.lane.b32.xlu0 %v2061, 96
        %v3916 = vpop.permute.xlu0 %3915
        %3917 = vrot.lane.b32.xlu0 %v2064, 96
        %v3918 = vpop.permute.xlu0 %3917
        %3919 = vrot.lane.b32.xlu0 %v2067, 96
        %v3920 = vpop.permute.xlu0 %3919
        %3921 = vrot.lane.b32.xlu0 %v2070, 96
        %v3922 = vpop.permute.xlu0 %3921
        %3923 = vrot.lane.b32.xlu0 %v2073, 96
        %v3924 = vpop.permute.xlu0 %3923
        %3925 = vrot.lane.b32.xlu0 %v2076, 96
        %v3926 = vpop.permute.xlu0 %3925
        %3927 = vrot.lane.b32.xlu0 %v2079, 96
        %v3928 = vpop.permute.xlu0 %3927
        %3929 = vrot.lane.b32.xlu0 %v2082, 96
        %v3930 = vpop.permute.xlu0 %3929
        %3931 = vrot.lane.b32.xlu0 %v2085, 96
        %v3932 = vpop.permute.xlu0 %3931
        %3933 = vrot.lane.b32.xlu0 %v2088, 96
        %v3934 = vpop.permute.xlu0 %3933
        %3935 = vrot.lane.b32.xlu0 %v2091, 96
        %v3936 = vpop.permute.xlu0 %3935
        %3937 = vrot.lane.b32.xlu0 %v2094, 96
        %v3938 = vpop.permute.xlu0 %3937
        %3955 = vmatprep.subr.bf16.mxu0 0
        %3956 = vmatpush1.bf16.msra.mxu0 %v3908
        %3957 = vmatprep.subr.bf16.mxu0 0
        %3958 = vmatpush1.bf16.msra.mxu0 %v3910
        %3959 = vmatprep.subr.bf16.mxu0 0
        %3960 = vmatpush1.bf16.msra.mxu0 %v3912
        %3961 = vmatprep.subr.bf16.mxu0 0
        %3962 = vmatpush1.bf16.msra.mxu0 %v3914
        %3963 = vmatprep.subr.bf16.mxu0 0
        %3964 = vmatpush1.bf16.msra.mxu0 %v3916
        %3965 = vmatprep.subr.bf16.mxu0 0
        %3966 = vmatpush1.bf16.msra.mxu0 %v3918
        %3967 = vmatprep.subr.bf16.mxu0 0
        %3968 = vmatpush1.bf16.msra.mxu0 %v3920
        %3969 = vmatprep.subr.bf16.mxu0 0
        %3970 = vmatpush1.bf16.msra.mxu0 %v3922
        %3971 = vmatprep.subr.bf16.mxu0 0
        %3972 = vmatpush1.bf16.msra.mxu0 %v3924
        %3973 = vmatprep.subr.bf16.mxu0 0
        %3974 = vmatpush1.bf16.msra.mxu0 %v3926
        %3975 = vmatprep.subr.bf16.mxu0 0
        %3976 = vmatpush1.bf16.msra.mxu0 %v3928
        %3977 = vmatprep.subr.bf16.mxu0 0
        %3978 = vmatpush1.bf16.msra.mxu0 %v3930
        %3979 = vmatprep.subr.bf16.mxu0 0
        %3980 = vmatpush1.bf16.msra.mxu0 %v3932
        %3981 = vmatprep.subr.bf16.mxu0 0
        %3982 = vmatpush1.bf16.msra.mxu0 %v3934
        %3983 = vmatprep.subr.bf16.mxu0 0
        %3984 = vmatpush1.bf16.msra.mxu0 %v3936
        %3985 = vmatprep.subr.bf16.mxu0 0
        %3986 = vmatpush1.bf16.msra.mxu0 %v3938
        %3987 = vmatprep.mubr.bf16.mxu0 %v3860
        %3988 = vmatmul.mubr.bf16.gmra.mrb[0].mxu0 %v3859
        %v3989 = vpop.f32.mrb[0].mxu0
        %v3990 = vadd.f32 0.0, %v3989
        %v3991 = vpop.f32.mrb[0].mxu0
        %v3992 = vpop.f32.mrb[0].mxu0
        %v3993 = vadd.f32 0.0, %v3992
        %v3994 = vpop.f32.mrb[0].mxu0
        %3995 = vmatprep.mubr.bf16.mxu0 %v3862
        %3996 = vmatmul.mubr.bf16.gmra.mrb[0].mxu0 %v3861
        %v3997 = vpop.f32.mrb[0].mxu0
        %v3998 = vadd.f32 0.0, %v3997
        %v3999 = vpop.f32.mrb[0].mxu0
        %v4000 = vpop.f32.mrb[0].mxu0
        %v4001 = vadd.f32 0.0, %v4000
        %v4002 = vpop.f32.mrb[0].mxu0
        %4003 = vmatprep.mubr.bf16.mxu0 %v3864
        %4004 = vmatmul.mubr.bf16.gmra.mrb[0].mxu0 %v3863
        %v4005 = vpop.f32.mrb[0].mxu0
        %v4006 = vadd.f32 0.0, %v4005
        %v4007 = vpop.f32.mrb[0].mxu0
        %v4008 = vpop.f32.mrb[0].mxu0
        %v4009 = vadd.f32 0.0, %v4008
        %v4010 = vpop.f32.mrb[0].mxu0
        %4011 = vmatprep.mubr.bf16.mxu0 %v3866
        %4012 = vmatmul.mubr.bf16.gmra.mrb[0].mxu0 %v3865
        %v4013 = vpop.f32.mrb[0].mxu0
        %v4014 = vadd.f32 0.0, %v4013
        %v4015 = vpop.f32.mrb[0].mxu0
        %v4016 = vpop.f32.mrb[0].mxu0
        %v4017 = vadd.f32 0.0, %v4016
        %v4018 = vpop.f32.mrb[0].mxu0
        %4019 = vmatprep.mubr.bf16.mxu0 %v3868
        %4020 = vmatmul.mubr.bf16.gmra.mrb[0].mxu0 %v3867
        %v4021 = vpop.f32.mrb[0].mxu0
        %v4022 = vadd.f32 0.0, %v4021
        %v4023 = vpop.f32.mrb[0].mxu0
        %v4024 = vpop.f32.mrb[0].mxu0
        %v4025 = vadd.f32 0.0, %v4024
        %v4026 = vpop.f32.mrb[0].mxu0
        %4027 = vmatprep.mubr.bf16.mxu0 %v3870
        %4028 = vmatmul.mubr.bf16.gmra.mrb[0].mxu0 %v3869
        %v4029 = vpop.f32.mrb[0].mxu0
        %v4030 = vadd.f32 0.0, %v4029
        %v4031 = vpop.f32.mrb[0].mxu0
        %v4032 = vpop.f32.mrb[0].mxu0
        %v4033 = vadd.f32 0.0, %v4032
        %v4034 = vpop.f32.mrb[0].mxu0
        %4035 = vmatprep.mubr.bf16.mxu0 %v3872
        %4036 = vmatmul.mubr.bf16.gmra.mrb[0].mxu0 %v3871
        %v4037 = vpop.f32.mrb[0].mxu0
        %v4038 = vadd.f32 0.0, %v4037
        %v4039 = vpop.f32.mrb[0].mxu0
        %v4040 = vpop.f32.mrb[0].mxu0
        %v4041 = vadd.f32 0.0, %v4040
        %v4042 = vpop.f32.mrb[0].mxu0
        %4043 = vmatprep.mubr.bf16.mxu0 %v3874
        %4044 = vmatmul.mubr.bf16.gmra.mrb[0].mxu0 %v3873
        %v4045 = vpop.f32.mrb[0].mxu0
        %v4046 = vadd.f32 0.0, %v4045
        %v4047 = vpop.f32.mrb[0].mxu0
        %v4048 = vpop.f32.mrb[0].mxu0
        %v4049 = vadd.f32 0.0, %v4048
        %v4050 = vpop.f32.mrb[0].mxu0
        %4051 = vmatprep.mubr.bf16.mxu0 %v3876
        %4052 = vmatmul.mubr.bf16.gmra.mrb[0].mxu0 %v3875
        %v4053 = vpop.f32.mrb[0].mxu0
        %v4054 = vadd.f32 0.0, %v4053
        %v4055 = vpop.f32.mrb[0].mxu0
        %v4056 = vpop.f32.mrb[0].mxu0
        %v4057 = vadd.f32 0.0, %v4056
        %v4058 = vpop.f32.mrb[0].mxu0
        %4059 = vmatprep.mubr.bf16.mxu0 %v3878
        %4060 = vmatmul.mubr.bf16.gmra.mrb[0].mxu0 %v3877
        %v4061 = vpop.f32.mrb[0].mxu0
        %v4062 = vadd.f32 0.0, %v4061
        %v4063 = vpop.f32.mrb[0].mxu0
        %v4064 = vpop.f32.mrb[0].mxu0
        %v4065 = vadd.f32 0.0, %v4064
        %v4066 = vpop.f32.mrb[0].mxu0
        %4067 = vmatprep.mubr.bf16.mxu0 %v3880
        %4068 = vmatmul.mubr.bf16.gmra.mrb[0].mxu0 %v3879
        %v4069 = vpop.f32.mrb[0].mxu0
        %v4070 = vadd.f32 0.0, %v4069
        %v4071 = vpop.f32.mrb[0].mxu0
        %v4072 = vpop.f32.mrb[0].mxu0
        %v4073 = vadd.f32 0.0, %v4072
        %v4074 = vpop.f32.mrb[0].mxu0
        %4075 = vmatprep.mubr.bf16.mxu0 %v3882
        %4076 = vmatmul.mubr.bf16.gmra.mrb[0].mxu0 %v3881
        %v4077 = vpop.f32.mrb[0].mxu0
        %v4078 = vadd.f32 0.0, %v4077
        %v4079 = vpop.f32.mrb[0].mxu0
        %v4080 = vpop.f32.mrb[0].mxu0
        %v4081 = vadd.f32 0.0, %v4080
        %v4082 = vpop.f32.mrb[0].mxu0
        %4083 = vmatprep.mubr.bf16.mxu0 %v3884
        %4084 = vmatmul.mubr.bf16.gmra.mrb[0].mxu0 %v3883
        %v4085 = vpop.f32.mrb[0].mxu0
        %v4086 = vadd.f32 0.0, %v4085
        %v4087 = vpop.f32.mrb[0].mxu0
        %v4088 = vpop.f32.mrb[0].mxu0
        %v4089 = vadd.f32 0.0, %v4088
        %v4090 = vpop.f32.mrb[0].mxu0
        %4091 = vmatprep.mubr.bf16.mxu0 %v3886
        %4092 = vmatmul.mubr.bf16.gmra.mrb[0].mxu0 %v3885
        %v4093 = vpop.f32.mrb[0].mxu0
        %v4094 = vadd.f32 0.0, %v4093
        %v4095 = vpop.f32.mrb[0].mxu0
        %v4096 = vpop.f32.mrb[0].mxu0
        %v4097 = vadd.f32 0.0, %v4096
        %v4098 = vpop.f32.mrb[0].mxu0
        %4099 = vmatprep.mubr.bf16.mxu0 %v3888
        %4100 = vmatmul.mubr.bf16.gmra.mrb[0].mxu0 %v3887
        %v4101 = vpop.f32.mrb[0].mxu0
        %v4102 = vadd.f32 0.0, %v4101
        %v4103 = vpop.f32.mrb[0].mxu0
        %v4104 = vpop.f32.mrb[0].mxu0
        %v4105 = vadd.f32 0.0, %v4104
        %v4106 = vpop.f32.mrb[0].mxu0
        %4107 = vmatprep.mubr.bf16.mxu0 %v3890
        %4108 = vmatmul.mubr.bf16.gmra.mrb[0].mxu0 %v3889
        %v4109 = vpop.f32.mrb[0].mxu0
        %v4110 = vadd.f32 0.0, %v4109
        %v4111 = vpop.f32.mrb[0].mxu0
        %v4112 = vpop.f32.mrb[0].mxu0
        %v4113 = vadd.f32 0.0, %v4112
        %v4114 = vpop.f32.mrb[0].mxu0
        %4115 = vdwg.mxu0
        %v4116 = vmul.f32 %v3990, %v3827
        %v4117 = vmul.f32 %v3993, %v3828
        %v4118 = vmul.f32 %v3998, %v3829
        %v4119 = vmul.f32 %v4001, %v3830
        %v4120 = vmul.f32 %v4006, %v3831
        %v4121 = vmul.f32 %v4009, %v3832
        %v4122 = vmul.f32 %v4014, %v3833
        %v4123 = vmul.f32 %v4017, %v3834
        %v4124 = vmul.f32 %v4022, %v3835
        %v4125 = vmul.f32 %v4025, %v3836
        %v4126 = vmul.f32 %v4030, %v3837
        %v4127 = vmul.f32 %v4033, %v3838
        %v4128 = vmul.f32 %v4038, %v3839
        %v4129 = vmul.f32 %v4041, %v3840
        %v4130 = vmul.f32 %v4046, %v3841
        %v4131 = vmul.f32 %v4049, %v3842
        %v4132 = vmul.f32 %v4054, %v3843
        %v4133 = vmul.f32 %v4057, %v3844
        %v4134 = vmul.f32 %v4062, %v3845
        %v4135 = vmul.f32 %v4065, %v3846
        %v4136 = vmul.f32 %v4070, %v3847
        %v4137 = vmul.f32 %v4073, %v3848
        %v4138 = vmul.f32 %v4078, %v3849
        %v4139 = vmul.f32 %v4081, %v3850
        %v4140 = vmul.f32 %v4086, %v3851
        %v4141 = vmul.f32 %v4089, %v3852
        %v4142 = vmul.f32 %v4094, %v3853
        %v4143 = vmul.f32 %v4097, %v3854
        %v4144 = vmul.f32 %v4102, %v3855
        %v4145 = vmul.f32 %v4105, %v3856
        %v4146 = vmul.f32 %v4110, %v3857
        %v4147 = vmul.f32 %v4113, %v3858
        %v4148 = vpack.c.bf16 %v4117, %v4116
        %v4149 = vpack.c.bf16 %v4119, %v4118
        %v4150 = vpack.c.bf16 %v4121, %v4120
        %v4151 = vpack.c.bf16 %v4123, %v4122
        %v4152 = vpack.c.bf16 %v4125, %v4124
        %v4153 = vpack.c.bf16 %v4127, %v4126
        %v4154 = vpack.c.bf16 %v4129, %v4128
        %v4155 = vpack.c.bf16 %v4131, %v4130
        %v4156 = vpack.c.bf16 %v4133, %v4132
        %v4157 = vpack.c.bf16 %v4135, %v4134
        %v4158 = vpack.c.bf16 %v4137, %v4136
        %v4159 = vpack.c.bf16 %v4139, %v4138
        %v4160 = vpack.c.bf16 %v4141, %v4140
        %v4161 = vpack.c.bf16 %v4143, %v4142
        %v4162 = vpack.c.bf16 %v4145, %v4144
        %v4163 = vpack.c.bf16 %v4147, %v4146
        %4180 = vrot.lane.b32.xlu0 %v4148, 32
        %v4181 = vpop.permute.xlu0 %4180
        %4182 = vrot.lane.b32.xlu0 %v4149, 32
        %v4183 = vpop.permute.xlu0 %4182
        %4184 = vrot.lane.b32.xlu0 %v4150, 32
        %v4185 = vpop.permute.xlu0 %4184
        %4186 = vrot.lane.b32.xlu0 %v4151, 32
        %v4187 = vpop.permute.xlu0 %4186
        %4188 = vrot.lane.b32.xlu0 %v4152, 32
        %v4189 = vpop.permute.xlu0 %4188
        %4190 = vrot.lane.b32.xlu0 %v4153, 32
        %v4191 = vpop.permute.xlu0 %4190
        %4192 = vrot.lane.b32.xlu0 %v4154, 32
        %v4193 = vpop.permute.xlu0 %4192
        %4194 = vrot.lane.b32.xlu0 %v4155, 32
        %v4195 = vpop.permute.xlu0 %4194
        %4196 = vrot.lane.b32.xlu0 %v4156, 32
        %v4197 = vpop.permute.xlu0 %4196
        %4198 = vrot.lane.b32.xlu0 %v4157, 32
        %v4199 = vpop.permute.xlu0 %4198
        %4200 = vrot.lane.b32.xlu0 %v4158, 32
        %v4201 = vpop.permute.xlu0 %4200
        %4202 = vrot.lane.b32.xlu0 %v4159, 32
        %v4203 = vpop.permute.xlu0 %4202
        %4204 = vrot.lane.b32.xlu0 %v4160, 32
        %v4205 = vpop.permute.xlu0 %4204
        %4206 = vrot.lane.b32.xlu0 %v4161, 32
        %v4207 = vpop.permute.xlu0 %4206
        %4208 = vrot.lane.b32.xlu0 %v4162, 32
        %v4209 = vpop.permute.xlu0 %4208
        %4210 = vrot.lane.b32.xlu0 %v4163, 32
        %v4211 = vpop.permute.xlu0 %4210
        %vm4228 = vcmask 523520
        %4229 = vst.msk [vmem:[#allocation3] sm:$0xff] %vm4228, %v4181
        %4230 = vst.msk [vmem:[#allocation3 + $0x8] sm:$0xff] %vm4228, %v4183
        %4231 = vst.msk [vmem:[#allocation3 + $0x10] sm:$0xff] %vm4228, %v4185
        %4232 = vst.msk [vmem:[#allocation3 + $0x18] sm:$0xff] %vm4228, %v4187
        %4233 = vst.msk [vmem:[#allocation3 + $0x20] sm:$0xff] %vm4228, %v4189
        %4234 = vst.msk [vmem:[#allocation3 + $0x28] sm:$0xff] %vm4228, %v4191
        %4235 = vst.msk [vmem:[#allocation3 + $0x30] sm:$0xff] %vm4228, %v4193
        %4236 = vst.msk [vmem:[#allocation3 + $0x38] sm:$0xff] %vm4228, %v4195
        %4237 = vst.msk [vmem:[#allocation3 + $0x40] sm:$0xff] %vm4228, %v4197
        %4238 = vst.msk [vmem:[#allocation3 + $0x48] sm:$0xff] %vm4228, %v4199
        %4239 = vst.msk [vmem:[#allocation3 + $0x50] sm:$0xff] %vm4228, %v4201
        %4240 = vst.msk [vmem:[#allocation3 + $0x58] sm:$0xff] %vm4228, %v4203
        %4241 = vst.msk [vmem:[#allocation3 + $0x60] sm:$0xff] %vm4228, %v4205
        %4242 = vst.msk [vmem:[#allocation3 + $0x68] sm:$0xff] %vm4228, %v4207
        %4243 = vst.msk [vmem:[#allocation3 + $0x70] sm:$0xff] %vm4228, %v4209
        %4244 = vst.msk [vmem:[#allocation3 + $0x78] sm:$0xff] %vm4228, %v4211
        %4245 = vrot.lane.b32.xlu0 %v2047, 64
        %v4246 = vpop.permute.xlu0 %4245
        %4247 = vrot.lane.b32.xlu0 %v2050, 64
        %v4248 = vpop.permute.xlu0 %4247
        %4249 = vrot.lane.b32.xlu0 %v2053, 64
        %v4250 = vpop.permute.xlu0 %4249
        %4251 = vrot.lane.b32.xlu0 %v2056, 64
        %v4252 = vpop.permute.xlu0 %4251
        %4253 = vrot.lane.b32.xlu0 %v2059, 64
        %v4254 = vpop.permute.xlu0 %4253
        %4255 = vrot.lane.b32.xlu0 %v2062, 64
        %v4256 = vpop.permute.xlu0 %4255
        %4257 = vrot.lane.b32.xlu0 %v2065, 64
        %v4258 = vpop.permute.xlu0 %4257
        %4259 = vrot.lane.b32.xlu0 %v2068, 64
        %v4260 = vpop.permute.xlu0 %4259
        %4261 = vrot.lane.b32.xlu0 %v2071, 64
        %v4262 = vpop.permute.xlu0 %4261
        %4263 = vrot.lane.b32.xlu0 %v2074, 64
        %v4264 = vpop.permute.xlu0 %4263
        %4265 = vrot.lane.b32.xlu0 %v2077, 64
        %v4266 = vpop.permute.xlu0 %4265
        %4267 = vrot.lane.b32.xlu0 %v2080, 64
        %v4268 = vpop.permute.xlu0 %4267
        %4269 = vrot.lane.b32.xlu0 %v2083, 64
        %v4270 = vpop.permute.xlu0 %4269
        %4271 = vrot.lane.b32.xlu0 %v2086, 64
        %v4272 = vpop.permute.xlu0 %4271
        %4273 = vrot.lane.b32.xlu0 %v2089, 64
        %v4274 = vpop.permute.xlu0 %4273
        %4275 = vrot.lane.b32.xlu0 %v2092, 64
        %v4276 = vpop.permute.xlu0 %4275
        %4277 = vrot.lane.b32.xlu0 %v2048, 64
        %v4278 = vpop.permute.xlu0 %4277
        %4279 = vrot.lane.b32.xlu0 %v2051, 64
        %v4280 = vpop.permute.xlu0 %4279
        %4281 = vrot.lane.b32.xlu0 %v2054, 64
        %v4282 = vpop.permute.xlu0 %4281
        %4283 = vrot.lane.b32.xlu0 %v2057, 64
        %v4284 = vpop.permute.xlu0 %4283
        %4285 = vrot.lane.b32.xlu0 %v2060, 64
        %v4286 = vpop.permute.xlu0 %4285
        %4287 = vrot.lane.b32.xlu0 %v2063, 64
        %v4288 = vpop.permute.xlu0 %4287
        %4289 = vrot.lane.b32.xlu0 %v2066, 64
        %v4290 = vpop.permute.xlu0 %4289
        %4291 = vrot.lane.b32.xlu0 %v2069, 64
        %v4292 = vpop.permute.xlu0 %4291
        %4293 = vrot.lane.b32.xlu0 %v2072, 64
        %v4294 = vpop.permute.xlu0 %4293
        %4295 = vrot.lane.b32.xlu0 %v2075, 64
        %v4296 = vpop.permute.xlu0 %4295
        %4297 = vrot.lane.b32.xlu0 %v2078, 64
        %v4298 = vpop.permute.xlu0 %4297
        %4299 = vrot.lane.b32.xlu0 %v2081, 64
        %v4300 = vpop.permute.xlu0 %4299
        %4301 = vrot.lane.b32.xlu0 %v2084, 64
        %v4302 = vpop.permute.xlu0 %4301
        %4303 = vrot.lane.b32.xlu0 %v2087, 64
        %v4304 = vpop.permute.xlu0 %4303
        %4305 = vrot.lane.b32.xlu0 %v2090, 64
        %v4306 = vpop.permute.xlu0 %4305
        %4307 = vrot.lane.b32.xlu0 %v2093, 64
        %v4308 = vpop.permute.xlu0 %4307
        %v4310 = vsel %vm2095, %v4246, 0
        %v4313 = vsel %vm2095, %v4248, 0
        %v4316 = vsel %vm2095, %v4250, 0
        %v4319 = vsel %vm2095, %v4252, 0
        %v4322 = vsel %vm2095, %v4254, 0
        %v4325 = vsel %vm2095, %v4256, 0
        %v4328 = vsel %vm2095, %v4258, 0
        %v4331 = vsel %vm2095, %v4260, 0
        %v4334 = vsel %vm2095, %v4262, 0
        %v4337 = vsel %vm2095, %v4264, 0
        %v4340 = vsel %vm2095, %v4266, 0
        %v4343 = vsel %vm2095, %v4268, 0
        %v4346 = vsel %vm2095, %v4270, 0
        %v4349 = vsel %vm2095, %v4272, 0
        %v4352 = vsel %vm2095, %v4274, 0
        %v4355 = vsel %vm2095, %v4276, 0
        %v4358 = vsel %vm2095, %v4278, 0
        %v4361 = vsel %vm2095, %v4280, 0
        %v4364 = vsel %vm2095, %v4282, 0
        %v4367 = vsel %vm2095, %v4284, 0
        %v4370 = vsel %vm2095, %v4286, 0
        %v4373 = vsel %vm2095, %v4288, 0
        %v4376 = vsel %vm2095, %v4290, 0
        %v4379 = vsel %vm2095, %v4292, 0
        %v4382 = vsel %vm2095, %v4294, 0
        %v4385 = vsel %vm2095, %v4296, 0
        %v4388 = vsel %vm2095, %v4298, 0
        %v4391 = vsel %vm2095, %v4300, 0
        %v4394 = vsel %vm2095, %v4302, 0
        %v4397 = vsel %vm2095, %v4304, 0
        %v4400 = vsel %vm2095, %v4306, 0
        %v4403 = vsel %vm2095, %v4308, 0
        %4405 = vmatprep.subr.bf16.mxu0 0
        %4406 = vmatpush1.bf16.xpose.msra.mxu0 %v4358
        %4407 = vmatprep.subr.bf16.mxu0 0
        %4408 = vmatpush1.bf16.xpose.msra.mxu0 %v4361
        %4409 = vmatprep.subr.bf16.mxu0 0
        %4410 = vmatpush1.bf16.xpose.msra.mxu0 %v4364
        %4411 = vmatprep.subr.bf16.mxu0 0
        %4412 = vmatpush1.bf16.xpose.msra.mxu0 %v4367
        %4413 = vmatprep.subr.bf16.mxu0 0
        %4414 = vmatpush1.bf16.xpose.msra.mxu0 %v4370
        %4415 = vmatprep.subr.bf16.mxu0 0
        %4416 = vmatpush1.bf16.xpose.msra.mxu0 %v4373
        %4417 = vmatprep.subr.bf16.mxu0 0
        %4418 = vmatpush1.bf16.xpose.msra.mxu0 %v4376
        %4419 = vmatprep.subr.bf16.mxu0 0
        %4420 = vmatpush1.bf16.xpose.msra.mxu0 %v4379
        %4421 = vmatprep.subr.bf16.mxu0 0
        %4422 = vmatpush1.bf16.xpose.msra.mxu0 %v4382
        %4423 = vmatprep.subr.bf16.mxu0 0
        %4424 = vmatpush1.bf16.xpose.msra.mxu0 %v4385
        %4425 = vmatprep.subr.bf16.mxu0 0
        %4426 = vmatpush1.bf16.xpose.msra.mxu0 %v4388
        %4427 = vmatprep.subr.bf16.mxu0 0
        %4428 = vmatpush1.bf16.xpose.msra.mxu0 %v4391
        %4429 = vmatprep.subr.bf16.mxu0 0
        %4430 = vmatpush1.bf16.xpose.msra.mxu0 %v4394
        %4431 = vmatprep.subr.bf16.mxu0 0
        %4432 = vmatpush1.bf16.xpose.msra.mxu0 %v4397
        %4433 = vmatprep.subr.bf16.mxu0 0
        %4434 = vmatpush1.bf16.xpose.msra.mxu0 %v4400
        %4435 = vmatprep.subr.bf16.mxu0 0
        %4436 = vmatpush1.bf16.xpose.msra.mxu0 %v4403
        %4437 = vmatprep.mubr.bf16.mxu0 0
        %4438 = vmatmul.mubr.bf16.gmra.mrb[0].mxu0 %v4310
        %v4439 = vpop.f32.mrb[0].mxu0
        %v4440 = vadd.f32 0.0, %v4439
        %v4441 = vpop.f32.mrb[0].mxu0
        %v4442 = vadd.f32 0.0, %v4441
        %v4443 = vpop.f32.mrb[0].mxu0
        %v4444 = vadd.f32 0.0, %v4443
        %v4445 = vpop.f32.mrb[0].mxu0
        %v4446 = vadd.f32 0.0, %v4445
        %4447 = vmatprep.mubr.bf16.mxu0 0
        %4448 = vmatmul.mubr.bf16.gmra.mrb[0].mxu0 %v4313
        %v4449 = vpop.f32.mrb[0].mxu0
        %v4450 = vadd.f32 0.0, %v4449
        %v4451 = vpop.f32.mrb[0].mxu0
        %v4452 = vadd.f32 0.0, %v4451
        %v4453 = vpop.f32.mrb[0].mxu0
        %v4454 = vadd.f32 0.0, %v4453
        %v4455 = vpop.f32.mrb[0].mxu0
        %v4456 = vadd.f32 0.0, %v4455
        %4457 = vmatprep.mubr.bf16.mxu0 0
        %4458 = vmatmul.mubr.bf16.gmra.mrb[0].mxu0 %v4316
        %v4459 = vpop.f32.mrb[0].mxu0
        %v4460 = vadd.f32 0.0, %v4459
        %v4461 = vpop.f32.mrb[0].mxu0
        %v4462 = vadd.f32 0.0, %v4461
        %v4463 = vpop.f32.mrb[0].mxu0
        %v4464 = vadd.f32 0.0, %v4463
        %v4465 = vpop.f32.mrb[0].mxu0
        %v4466 = vadd.f32 0.0, %v4465
        %4467 = vmatprep.mubr.bf16.mxu0 0
        %4468 = vmatmul.mubr.bf16.gmra.mrb[0].mxu0 %v4319
        %v4469 = vpop.f32.mrb[0].mxu0
        %v4470 = vadd.f32 0.0, %v4469
        %v4471 = vpop.f32.mrb[0].mxu0
        %v4472 = vadd.f32 0.0, %v4471
        %v4473 = vpop.f32.mrb[0].mxu0
        %v4474 = vadd.f32 0.0, %v4473
        %v4475 = vpop.f32.mrb[0].mxu0
        %v4476 = vadd.f32 0.0, %v4475
        %4477 = vmatprep.mubr.bf16.mxu0 0
        %4478 = vmatmul.mubr.bf16.gmra.mrb[0].mxu0 %v4322
        %v4479 = vpop.f32.mrb[0].mxu0
        %v4480 = vadd.f32 0.0, %v4479
        %v4481 = vpop.f32.mrb[0].mxu0
        %v4482 = vadd.f32 0.0, %v4481
        %v4483 = vpop.f32.mrb[0].mxu0
        %v4484 = vadd.f32 0.0, %v4483
        %v4485 = vpop.f32.mrb[0].mxu0
        %v4486 = vadd.f32 0.0, %v4485
        %4487 = vmatprep.mubr.bf16.mxu0 0
        %4488 = vmatmul.mubr.bf16.gmra.mrb[0].mxu0 %v4325
        %v4489 = vpop.f32.mrb[0].mxu0
        %v4490 = vadd.f32 0.0, %v4489
        %v4491 = vpop.f32.mrb[0].mxu0
        %v4492 = vadd.f32 0.0, %v4491
        %v4493 = vpop.f32.mrb[0].mxu0
        %v4494 = vadd.f32 0.0, %v4493
        %v4495 = vpop.f32.mrb[0].mxu0
        %v4496 = vadd.f32 0.0, %v4495
        %4497 = vmatprep.mubr.bf16.mxu0 0
        %4498 = vmatmul.mubr.bf16.gmra.mrb[0].mxu0 %v4328
        %v4499 = vpop.f32.mrb[0].mxu0
        %v4500 = vadd.f32 0.0, %v4499
        %v4501 = vpop.f32.mrb[0].mxu0
        %v4502 = vadd.f32 0.0, %v4501
        %v4503 = vpop.f32.mrb[0].mxu0
        %v4504 = vadd.f32 0.0, %v4503
        %v4505 = vpop.f32.mrb[0].mxu0
        %v4506 = vadd.f32 0.0, %v4505
        %4507 = vmatprep.mubr.bf16.mxu0 0
        %4508 = vmatmul.mubr.bf16.gmra.mrb[0].mxu0 %v4331
        %v4509 = vpop.f32.mrb[0].mxu0
        %v4510 = vadd.f32 0.0, %v4509
        %v4511 = vpop.f32.mrb[0].mxu0
        %v4512 = vadd.f32 0.0, %v4511
        %v4513 = vpop.f32.mrb[0].mxu0
        %v4514 = vadd.f32 0.0, %v4513
        %v4515 = vpop.f32.mrb[0].mxu0
        %v4516 = vadd.f32 0.0, %v4515
        %4517 = vmatprep.mubr.bf16.mxu0 0
        %4518 = vmatmul.mubr.bf16.gmra.mrb[0].mxu0 %v4334
        %v4519 = vpop.f32.mrb[0].mxu0
        %v4520 = vadd.f32 0.0, %v4519
        %v4521 = vpop.f32.mrb[0].mxu0
        %v4522 = vadd.f32 0.0, %v4521
        %v4523 = vpop.f32.mrb[0].mxu0
        %v4524 = vadd.f32 0.0, %v4523
        %v4525 = vpop.f32.mrb[0].mxu0
        %v4526 = vadd.f32 0.0, %v4525
        %4527 = vmatprep.mubr.bf16.mxu0 0
        %4528 = vmatmul.mubr.bf16.gmra.mrb[0].mxu0 %v4337
        %v4529 = vpop.f32.mrb[0].mxu0
        %v4530 = vadd.f32 0.0, %v4529
        %v4531 = vpop.f32.mrb[0].mxu0
        %v4532 = vadd.f32 0.0, %v4531
        %v4533 = vpop.f32.mrb[0].mxu0
        %v4534 = vadd.f32 0.0, %v4533
        %v4535 = vpop.f32.mrb[0].mxu0
        %v4536 = vadd.f32 0.0, %v4535
        %4537 = vmatprep.mubr.bf16.mxu0 0
        %4538 = vmatmul.mubr.bf16.gmra.mrb[0].mxu0 %v4340
        %v4539 = vpop.f32.mrb[0].mxu0
        %v4540 = vadd.f32 0.0, %v4539
        %v4541 = vpop.f32.mrb[0].mxu0
        %v4542 = vadd.f32 0.0, %v4541
        %v4543 = vpop.f32.mrb[0].mxu0
        %v4544 = vadd.f32 0.0, %v4543
        %v4545 = vpop.f32.mrb[0].mxu0
        %v4546 = vadd.f32 0.0, %v4545
        %4547 = vmatprep.mubr.bf16.mxu0 0
        %4548 = vmatmul.mubr.bf16.gmra.mrb[0].mxu0 %v4343
        %v4549 = vpop.f32.mrb[0].mxu0
        %v4550 = vadd.f32 0.0, %v4549
        %v4551 = vpop.f32.mrb[0].mxu0
        %v4552 = vadd.f32 0.0, %v4551
        %v4553 = vpop.f32.mrb[0].mxu0
        %v4554 = vadd.f32 0.0, %v4553
        %v4555 = vpop.f32.mrb[0].mxu0
        %v4556 = vadd.f32 0.0, %v4555
        %4557 = vmatprep.mubr.bf16.mxu0 0
        %4558 = vmatmul.mubr.bf16.gmra.mrb[0].mxu0 %v4346
        %v4559 = vpop.f32.mrb[0].mxu0
        %v4560 = vadd.f32 0.0, %v4559
        %v4561 = vpop.f32.mrb[0].mxu0
        %v4562 = vadd.f32 0.0, %v4561
        %v4563 = vpop.f32.mrb[0].mxu0
        %v4564 = vadd.f32 0.0, %v4563
        %v4565 = vpop.f32.mrb[0].mxu0
        %v4566 = vadd.f32 0.0, %v4565
        %4567 = vmatprep.mubr.bf16.mxu0 0
        %4568 = vmatmul.mubr.bf16.gmra.mrb[0].mxu0 %v4349
        %v4569 = vpop.f32.mrb[0].mxu0
        %v4570 = vadd.f32 0.0, %v4569
        %v4571 = vpop.f32.mrb[0].mxu0
        %v4572 = vadd.f32 0.0, %v4571
        %v4573 = vpop.f32.mrb[0].mxu0
        %v4574 = vadd.f32 0.0, %v4573
        %v4575 = vpop.f32.mrb[0].mxu0
        %v4576 = vadd.f32 0.0, %v4575
        %4577 = vmatprep.mubr.bf16.mxu0 0
        %4578 = vmatmul.mubr.bf16.gmra.mrb[0].mxu0 %v4352
        %v4579 = vpop.f32.mrb[0].mxu0
        %v4580 = vadd.f32 0.0, %v4579
        %v4581 = vpop.f32.mrb[0].mxu0
        %v4582 = vadd.f32 0.0, %v4581
        %v4583 = vpop.f32.mrb[0].mxu0
        %v4584 = vadd.f32 0.0, %v4583
        %v4585 = vpop.f32.mrb[0].mxu0
        %v4586 = vadd.f32 0.0, %v4585
        %4587 = vmatprep.mubr.bf16.mxu0 0
        %4588 = vmatmul.mubr.bf16.gmra.mrb[0].mxu0 %v4355
        %v4589 = vpop.f32.mrb[0].mxu0
        %v4590 = vadd.f32 0.0, %v4589
        %v4591 = vpop.f32.mrb[0].mxu0
        %v4592 = vadd.f32 0.0, %v4591
        %v4593 = vpop.f32.mrb[0].mxu0
        %v4594 = vadd.f32 0.0, %v4593
        %v4595 = vpop.f32.mrb[0].mxu0
        %v4596 = vadd.f32 0.0, %v4595
        %4597 = vdwg.mxu0
        %v4598 = vmax.f32 %v4440, %v4442
        %4599 = vmax.xlane.f32.xlu0 %v4598
        %v4600 = vpop.xlane.xlu0 %4599
        %v4601 = vmax.f32 %v4444, %v4446
        %4602 = vmax.xlane.f32.xlu0 %v4601
        %v4603 = vpop.xlane.xlu0 %4602
        %v4604 = vmax.f32 %v4450, %v4452
        %4605 = vmax.xlane.f32.xlu0 %v4604
        %v4606 = vpop.xlane.xlu0 %4605
        %v4607 = vmax.f32 %v4454, %v4456
        %4608 = vmax.xlane.f32.xlu0 %v4607
        %v4609 = vpop.xlane.xlu0 %4608
        %v4610 = vmax.f32 %v4460, %v4462
        %4611 = vmax.xlane.f32.xlu0 %v4610
        %v4612 = vpop.xlane.xlu0 %4611
        %v4613 = vmax.f32 %v4464, %v4466
        %4614 = vmax.xlane.f32.xlu0 %v4613
        %v4615 = vpop.xlane.xlu0 %4614
        %v4616 = vmax.f32 %v4470, %v4472
        %4617 = vmax.xlane.f32.xlu0 %v4616
        %v4618 = vpop.xlane.xlu0 %4617
        %v4619 = vmax.f32 %v4474, %v4476
        %4620 = vmax.xlane.f32.xlu0 %v4619
        %v4621 = vpop.xlane.xlu0 %4620
        %v4622 = vmax.f32 %v4480, %v4482
        %4623 = vmax.xlane.f32.xlu0 %v4622
        %v4624 = vpop.xlane.xlu0 %4623
        %v4625 = vmax.f32 %v4484, %v4486
        %4626 = vmax.xlane.f32.xlu0 %v4625
        %v4627 = vpop.xlane.xlu0 %4626
        %v4628 = vmax.f32 %v4490, %v4492
        %4629 = vmax.xlane.f32.xlu0 %v4628
        %v4630 = vpop.xlane.xlu0 %4629
        %v4631 = vmax.f32 %v4494, %v4496
        %4632 = vmax.xlane.f32.xlu0 %v4631
        %v4633 = vpop.xlane.xlu0 %4632
        %v4634 = vmax.f32 %v4500, %v4502
        %4635 = vmax.xlane.f32.xlu0 %v4634
        %v4636 = vpop.xlane.xlu0 %4635
        %v4637 = vmax.f32 %v4504, %v4506
        %4638 = vmax.xlane.f32.xlu0 %v4637
        %v4639 = vpop.xlane.xlu0 %4638
        %v4640 = vmax.f32 %v4510, %v4512
        %4641 = vmax.xlane.f32.xlu0 %v4640
        %v4642 = vpop.xlane.xlu0 %4641
        %v4643 = vmax.f32 %v4514, %v4516
        %4644 = vmax.xlane.f32.xlu0 %v4643
        %v4645 = vpop.xlane.xlu0 %4644
        %v4646 = vmax.f32 %v4520, %v4522
        %4647 = vmax.xlane.f32.xlu0 %v4646
        %v4648 = vpop.xlane.xlu0 %4647
        %v4649 = vmax.f32 %v4524, %v4526
        %4650 = vmax.xlane.f32.xlu0 %v4649
        %v4651 = vpop.xlane.xlu0 %4650
        %v4652 = vmax.f32 %v4530, %v4532
        %4653 = vmax.xlane.f32.xlu0 %v4652
        %v4654 = vpop.xlane.xlu0 %4653
        %v4655 = vmax.f32 %v4534, %v4536
        %4656 = vmax.xlane.f32.xlu0 %v4655
        %v4657 = vpop.xlane.xlu0 %4656
        %v4658 = vmax.f32 %v4540, %v4542
        %4659 = vmax.xlane.f32.xlu0 %v4658
        %v4660 = vpop.xlane.xlu0 %4659
        %v4661 = vmax.f32 %v4544, %v4546
        %4662 = vmax.xlane.f32.xlu0 %v4661
        %v4663 = vpop.xlane.xlu0 %4662
        %v4664 = vmax.f32 %v4550, %v4552
        %4665 = vmax.xlane.f32.xlu0 %v4664
        %v4666 = vpop.xlane.xlu0 %4665
        %v4667 = vmax.f32 %v4554, %v4556
        %4668 = vmax.xlane.f32.xlu0 %v4667
        %v4669 = vpop.xlane.xlu0 %4668
        %v4670 = vmax.f32 %v4560, %v4562
        %4671 = vmax.xlane.f32.xlu0 %v4670
        %v4672 = vpop.xlane.xlu0 %4671
        %v4673 = vmax.f32 %v4564, %v4566
        %4674 = vmax.xlane.f32.xlu0 %v4673
        %v4675 = vpop.xlane.xlu0 %4674
        %v4676 = vmax.f32 %v4570, %v4572
        %4677 = vmax.xlane.f32.xlu0 %v4676
        %v4678 = vpop.xlane.xlu0 %4677
        %v4679 = vmax.f32 %v4574, %v4576
        %4680 = vmax.xlane.f32.xlu0 %v4679
        %v4681 = vpop.xlane.xlu0 %4680
        %v4682 = vmax.f32 %v4580, %v4582
        %4683 = vmax.xlane.f32.xlu0 %v4682
        %v4684 = vpop.xlane.xlu0 %4683
        %v4685 = vmax.f32 %v4584, %v4586
        %4686 = vmax.xlane.f32.xlu0 %v4685
        %v4687 = vpop.xlane.xlu0 %4686
        %v4688 = vmax.f32 %v4590, %v4592
        %4689 = vmax.xlane.f32.xlu0 %v4688
        %v4690 = vpop.xlane.xlu0 %4689
        %v4691 = vmax.f32 %v4594, %v4596
        %4692 = vmax.xlane.f32.xlu0 %v4691
        %v4693 = vpop.xlane.xlu0 %4692
        %v4694 = vsub.f32 %v4440, %v4600
        %v4695 = vsub.f32 %v4442, %v4600
        %v4696 = vsub.f32 %v4444, %v4603
        %v4697 = vsub.f32 %v4446, %v4603
        %v4698 = vsub.f32 %v4450, %v4606
        %v4699 = vsub.f32 %v4452, %v4606
        %v4700 = vsub.f32 %v4454, %v4609
        %v4701 = vsub.f32 %v4456, %v4609
        %v4702 = vsub.f32 %v4460, %v4612
        %v4703 = vsub.f32 %v4462, %v4612
        %v4704 = vsub.f32 %v4464, %v4615
        %v4705 = vsub.f32 %v4466, %v4615
        %v4706 = vsub.f32 %v4470, %v4618
        %v4707 = vsub.f32 %v4472, %v4618
        %v4708 = vsub.f32 %v4474, %v4621
        %v4709 = vsub.f32 %v4476, %v4621
        %v4710 = vsub.f32 %v4480, %v4624
        %v4711 = vsub.f32 %v4482, %v4624
        %v4712 = vsub.f32 %v4484, %v4627
        %v4713 = vsub.f32 %v4486, %v4627
        %v4714 = vsub.f32 %v4490, %v4630
        %v4715 = vsub.f32 %v4492, %v4630
        %v4716 = vsub.f32 %v4494, %v4633
        %v4717 = vsub.f32 %v4496, %v4633
        %v4718 = vsub.f32 %v4500, %v4636
        %v4719 = vsub.f32 %v4502, %v4636
        %v4720 = vsub.f32 %v4504, %v4639
        %v4721 = vsub.f32 %v4506, %v4639
        %v4722 = vsub.f32 %v4510, %v4642
        %v4723 = vsub.f32 %v4512, %v4642
        %v4724 = vsub.f32 %v4514, %v4645
        %v4725 = vsub.f32 %v4516, %v4645
        %v4726 = vsub.f32 %v4520, %v4648
        %v4727 = vsub.f32 %v4522, %v4648
        %v4728 = vsub.f32 %v4524, %v4651
        %v4729 = vsub.f32 %v4526, %v4651
        %v4730 = vsub.f32 %v4530, %v4654
        %v4731 = vsub.f32 %v4532, %v4654
        %v4732 = vsub.f32 %v4534, %v4657
        %v4733 = vsub.f32 %v4536, %v4657
        %v4734 = vsub.f32 %v4540, %v4660
        %v4735 = vsub.f32 %v4542, %v4660
        %v4736 = vsub.f32 %v4544, %v4663
        %v4737 = vsub.f32 %v4546, %v4663
        %v4738 = vsub.f32 %v4550, %v4666
        %v4739 = vsub.f32 %v4552, %v4666
        %v4740 = vsub.f32 %v4554, %v4669
        %v4741 = vsub.f32 %v4556, %v4669
        %v4742 = vsub.f32 %v4560, %v4672
        %v4743 = vsub.f32 %v4562, %v4672
        %v4744 = vsub.f32 %v4564, %v4675
        %v4745 = vsub.f32 %v4566, %v4675
        %v4746 = vsub.f32 %v4570, %v4678
        %v4747 = vsub.f32 %v4572, %v4678
        %v4748 = vsub.f32 %v4574, %v4681
        %v4749 = vsub.f32 %v4576, %v4681
        %v4750 = vsub.f32 %v4580, %v4684
        %v4751 = vsub.f32 %v4582, %v4684
        %v4752 = vsub.f32 %v4584, %v4687
        %v4753 = vsub.f32 %v4586, %v4687
        %v4754 = vsub.f32 %v4590, %v4690
        %v4755 = vsub.f32 %v4592, %v4690
        %v4756 = vsub.f32 %v4594, %v4693
        %v4757 = vsub.f32 %v4596, %v4693
        %v4758 = vmul.f32 %v4694, 1.442695
        %v4759 = vpow.pop %v4758
        %v4760 = vmul.f32 %v4695, 1.442695
        %v4761 = vpow.pop %v4760
        %v4762 = vmul.f32 %v4696, 1.442695
        %v4763 = vpow.pop %v4762
        %v4764 = vmul.f32 %v4697, 1.442695
        %v4765 = vpow.pop %v4764
        %v4766 = vmul.f32 %v4698, 1.442695
        %v4767 = vpow.pop %v4766
        %v4768 = vmul.f32 %v4699, 1.442695
        %v4769 = vpow.pop %v4768
        %v4770 = vmul.f32 %v4700, 1.442695
        %v4771 = vpow.pop %v4770
        %v4772 = vmul.f32 %v4701, 1.442695
        %v4773 = vpow.pop %v4772
        %v4774 = vmul.f32 %v4702, 1.442695
        %v4775 = vpow.pop %v4774
        %v4776 = vmul.f32 %v4703, 1.442695
        %v4777 = vpow.pop %v4776
        %v4778 = vmul.f32 %v4704, 1.442695
        %v4779 = vpow.pop %v4778
        %v4780 = vmul.f32 %v4705, 1.442695
        %v4781 = vpow.pop %v4780
        %v4782 = vmul.f32 %v4706, 1.442695
        %v4783 = vpow.pop %v4782
        %v4784 = vmul.f32 %v4707, 1.442695
        %v4785 = vpow.pop %v4784
        %v4786 = vmul.f32 %v4708, 1.442695
        %v4787 = vpow.pop %v4786
        %v4788 = vmul.f32 %v4709, 1.442695
        %v4789 = vpow.pop %v4788
        %v4790 = vmul.f32 %v4710, 1.442695
        %v4791 = vpow.pop %v4790
        %v4792 = vmul.f32 %v4711, 1.442695
        %v4793 = vpow.pop %v4792
        %v4794 = vmul.f32 %v4712, 1.442695
        %v4795 = vpow.pop %v4794
        %v4796 = vmul.f32 %v4713, 1.442695
        %v4797 = vpow.pop %v4796
        %v4798 = vmul.f32 %v4714, 1.442695
        %v4799 = vpow.pop %v4798
        %v4800 = vmul.f32 %v4715, 1.442695
        %v4801 = vpow.pop %v4800
        %v4802 = vmul.f32 %v4716, 1.442695
        %v4803 = vpow.pop %v4802
        %v4804 = vmul.f32 %v4717, 1.442695
        %v4805 = vpow.pop %v4804
        %v4806 = vmul.f32 %v4718, 1.442695
        %v4807 = vpow.pop %v4806
        %v4808 = vmul.f32 %v4719, 1.442695
        %v4809 = vpow.pop %v4808
        %v4810 = vmul.f32 %v4720, 1.442695
        %v4811 = vpow.pop %v4810
        %v4812 = vmul.f32 %v4721, 1.442695
        %v4813 = vpow.pop %v4812
        %v4814 = vmul.f32 %v4722, 1.442695
        %v4815 = vpow.pop %v4814
        %v4816 = vmul.f32 %v4723, 1.442695
        %v4817 = vpow.pop %v4816
        %v4818 = vmul.f32 %v4724, 1.442695
        %v4819 = vpow.pop %v4818
        %v4820 = vmul.f32 %v4725, 1.442695
        %v4821 = vpow.pop %v4820
        %v4822 = vmul.f32 %v4726, 1.442695
        %v4823 = vpow.pop %v4822
        %v4824 = vmul.f32 %v4727, 1.442695
        %v4825 = vpow.pop %v4824
        %v4826 = vmul.f32 %v4728, 1.442695
        %v4827 = vpow.pop %v4826
        %v4828 = vmul.f32 %v4729, 1.442695
        %v4829 = vpow.pop %v4828
        %v4830 = vmul.f32 %v4730, 1.442695
        %v4831 = vpow.pop %v4830
        %v4832 = vmul.f32 %v4731, 1.442695
        %v4833 = vpow.pop %v4832
        %v4834 = vmul.f32 %v4732, 1.442695
        %v4835 = vpow.pop %v4834
        %v4836 = vmul.f32 %v4733, 1.442695
        %v4837 = vpow.pop %v4836
        %v4838 = vmul.f32 %v4734, 1.442695
        %v4839 = vpow.pop %v4838
        %v4840 = vmul.f32 %v4735, 1.442695
        %v4841 = vpow.pop %v4840
        %v4842 = vmul.f32 %v4736, 1.442695
        %v4843 = vpow.pop %v4842
        %v4844 = vmul.f32 %v4737, 1.442695
        %v4845 = vpow.pop %v4844
        %v4846 = vmul.f32 %v4738, 1.442695
        %v4847 = vpow.pop %v4846
        %v4848 = vmul.f32 %v4739, 1.442695
        %v4849 = vpow.pop %v4848
        %v4850 = vmul.f32 %v4740, 1.442695
        %v4851 = vpow.pop %v4850
        %v4852 = vmul.f32 %v4741, 1.442695
        %v4853 = vpow.pop %v4852
        %v4854 = vmul.f32 %v4742, 1.442695
        %v4855 = vpow.pop %v4854
        %v4856 = vmul.f32 %v4743, 1.442695
        %v4857 = vpow.pop %v4856
        %v4858 = vmul.f32 %v4744, 1.442695
        %v4859 = vpow.pop %v4858
        %v4860 = vmul.f32 %v4745, 1.442695
        %v4861 = vpow.pop %v4860
        %v4862 = vmul.f32 %v4746, 1.442695
        %v4863 = vpow.pop %v4862
        %v4864 = vmul.f32 %v4747, 1.442695
        %v4865 = vpow.pop %v4864
        %v4866 = vmul.f32 %v4748, 1.442695
        %v4867 = vpow.pop %v4866
        %v4868 = vmul.f32 %v4749, 1.442695
        %v4869 = vpow.pop %v4868
        %v4870 = vmul.f32 %v4750, 1.442695
        %v4871 = vpow.pop %v4870
        %v4872 = vmul.f32 %v4751, 1.442695
        %v4873 = vpow.pop %v4872
        %v4874 = vmul.f32 %v4752, 1.442695
        %v4875 = vpow.pop %v4874
        %v4876 = vmul.f32 %v4753, 1.442695
        %v4877 = vpow.pop %v4876
        %v4878 = vmul.f32 %v4754, 1.442695
        %v4879 = vpow.pop %v4878
        %v4880 = vmul.f32 %v4755, 1.442695
        %v4881 = vpow.pop %v4880
        %v4882 = vmul.f32 %v4756, 1.442695
        %v4883 = vpow.pop %v4882
        %v4884 = vmul.f32 %v4757, 1.442695
        %v4885 = vpow.pop %v4884
        %v4886 = vadd.f32 %v4759, %v4761
        %4887 = vadd.xlane.f32.xlu0 %v4886
        %v4888 = vpop.xlane.xlu0 %4887
        %v4889 = vadd.f32 %v4763, %v4765
        %4890 = vadd.xlane.f32.xlu0 %v4889
        %v4891 = vpop.xlane.xlu0 %4890
        %v4892 = vadd.f32 %v4767, %v4769
        %4893 = vadd.xlane.f32.xlu0 %v4892
        %v4894 = vpop.xlane.xlu0 %4893
        %v4895 = vadd.f32 %v4771, %v4773
        %4896 = vadd.xlane.f32.xlu0 %v4895
        %v4897 = vpop.xlane.xlu0 %4896
        %v4898 = vadd.f32 %v4775, %v4777
        %4899 = vadd.xlane.f32.xlu0 %v4898
        %v4900 = vpop.xlane.xlu0 %4899
        %v4901 = vadd.f32 %v4779, %v4781
        %4902 = vadd.xlane.f32.xlu0 %v4901
        %v4903 = vpop.xlane.xlu0 %4902
        %v4904 = vadd.f32 %v4783, %v4785
        %4905 = vadd.xlane.f32.xlu0 %v4904
        %v4906 = vpop.xlane.xlu0 %4905
        %v4907 = vadd.f32 %v4787, %v4789
        %4908 = vadd.xlane.f32.xlu0 %v4907
        %v4909 = vpop.xlane.xlu0 %4908
        %v4910 = vadd.f32 %v4791, %v4793
        %4911 = vadd.xlane.f32.xlu0 %v4910
        %v4912 = vpop.xlane.xlu0 %4911
        %v4913 = vadd.f32 %v4795, %v4797
        %4914 = vadd.xlane.f32.xlu0 %v4913
        %v4915 = vpop.xlane.xlu0 %4914
        %v4916 = vadd.f32 %v4799, %v4801
        %4917 = vadd.xlane.f32.xlu0 %v4916
        %v4918 = vpop.xlane.xlu0 %4917
        %v4919 = vadd.f32 %v4803, %v4805
        %4920 = vadd.xlane.f32.xlu0 %v4919
        %v4921 = vpop.xlane.xlu0 %4920
        %v4922 = vadd.f32 %v4807, %v4809
        %4923 = vadd.xlane.f32.xlu0 %v4922
        %v4924 = vpop.xlane.xlu0 %4923
        %v4925 = vadd.f32 %v4811, %v4813
        %4926 = vadd.xlane.f32.xlu0 %v4925
        %v4927 = vpop.xlane.xlu0 %4926
        %v4928 = vadd.f32 %v4815, %v4817
        %4929 = vadd.xlane.f32.xlu0 %v4928
        %v4930 = vpop.xlane.xlu0 %4929
        %v4931 = vadd.f32 %v4819, %v4821
        %4932 = vadd.xlane.f32.xlu0 %v4931
        %v4933 = vpop.xlane.xlu0 %4932
        %v4934 = vadd.f32 %v4823, %v4825
        %4935 = vadd.xlane.f32.xlu0 %v4934
        %v4936 = vpop.xlane.xlu0 %4935
        %v4937 = vadd.f32 %v4827, %v4829
        %4938 = vadd.xlane.f32.xlu0 %v4937
        %v4939 = vpop.xlane.xlu0 %4938
        %v4940 = vadd.f32 %v4831, %v4833
        %4941 = vadd.xlane.f32.xlu0 %v4940
        %v4942 = vpop.xlane.xlu0 %4941
        %v4943 = vadd.f32 %v4835, %v4837
        %4944 = vadd.xlane.f32.xlu0 %v4943
        %v4945 = vpop.xlane.xlu0 %4944
        %v4946 = vadd.f32 %v4839, %v4841
        %4947 = vadd.xlane.f32.xlu0 %v4946
        %v4948 = vpop.xlane.xlu0 %4947
        %v4949 = vadd.f32 %v4843, %v4845
        %4950 = vadd.xlane.f32.xlu0 %v4949
        %v4951 = vpop.xlane.xlu0 %4950
        %v4952 = vadd.f32 %v4847, %v4849
        %4953 = vadd.xlane.f32.xlu0 %v4952
        %v4954 = vpop.xlane.xlu0 %4953
        %v4955 = vadd.f32 %v4851, %v4853
        %4956 = vadd.xlane.f32.xlu0 %v4955
        %v4957 = vpop.xlane.xlu0 %4956
        %v4958 = vadd.f32 %v4855, %v4857
        %4959 = vadd.xlane.f32.xlu0 %v4958
        %v4960 = vpop.xlane.xlu0 %4959
        %v4961 = vadd.f32 %v4859, %v4861
        %4962 = vadd.xlane.f32.xlu0 %v4961
        %v4963 = vpop.xlane.xlu0 %4962
        %v4964 = vadd.f32 %v4863, %v4865
        %4965 = vadd.xlane.f32.xlu0 %v4964
        %v4966 = vpop.xlane.xlu0 %4965
        %v4967 = vadd.f32 %v4867, %v4869
        %4968 = vadd.xlane.f32.xlu0 %v4967
        %v4969 = vpop.xlane.xlu0 %4968
        %v4970 = vadd.f32 %v4871, %v4873
        %4971 = vadd.xlane.f32.xlu0 %v4970
        %v4972 = vpop.xlane.xlu0 %4971
        %v4973 = vadd.f32 %v4875, %v4877
        %4974 = vadd.xlane.f32.xlu0 %v4973
        %v4975 = vpop.xlane.xlu0 %4974
        %v4976 = vadd.f32 %v4879, %v4881
        %4977 = vadd.xlane.f32.xlu0 %v4976
        %v4978 = vpop.xlane.xlu0 %4977
        %v4979 = vadd.f32 %v4883, %v4885
        %4980 = vadd.xlane.f32.xlu0 %v4979
        %v4981 = vpop.xlane.xlu0 %4980
        %v4982 = vrcp.pop %v4888
        %v4983 = vrcp.pop %v4891
        %v4984 = vrcp.pop %v4894
        %v4985 = vrcp.pop %v4897
        %v4986 = vrcp.pop %v4900
        %v4987 = vrcp.pop %v4903
        %v4988 = vrcp.pop %v4906
        %v4989 = vrcp.pop %v4909
        %v4990 = vrcp.pop %v4912
        %v4991 = vrcp.pop %v4915
        %v4992 = vrcp.pop %v4918
        %v4993 = vrcp.pop %v4921
        %v4994 = vrcp.pop %v4924
        %v4995 = vrcp.pop %v4927
        %v4996 = vrcp.pop %v4930
        %v4997 = vrcp.pop %v4933
        %v4998 = vrcp.pop %v4936
        %v4999 = vrcp.pop %v4939
        %v5000 = vrcp.pop %v4942
        %v5001 = vrcp.pop %v4945
        %v5002 = vrcp.pop %v4948
        %v5003 = vrcp.pop %v4951
        %v5004 = vrcp.pop %v4954
        %v5005 = vrcp.pop %v4957
        %v5006 = vrcp.pop %v4960
        %v5007 = vrcp.pop %v4963
        %v5008 = vrcp.pop %v4966
        %v5009 = vrcp.pop %v4969
        %v5010 = vrcp.pop %v4972
        %v5011 = vrcp.pop %v4975
        %v5012 = vrcp.pop %v4978
        %v5013 = vrcp.pop %v4981
        %v5014 = vpack.c.bf16 %v4763, %v4759
        %v5015 = vpack.c.bf16 %v4765, %v4761
        %v5016 = vpack.c.bf16 %v4771, %v4767
        %v5017 = vpack.c.bf16 %v4773, %v4769
        %v5018 = vpack.c.bf16 %v4779, %v4775
        %v5019 = vpack.c.bf16 %v4781, %v4777
        %v5020 = vpack.c.bf16 %v4787, %v4783
        %v5021 = vpack.c.bf16 %v4789, %v4785
        %v5022 = vpack.c.bf16 %v4795, %v4791
        %v5023 = vpack.c.bf16 %v4797, %v4793
        %v5024 = vpack.c.bf16 %v4803, %v4799
        %v5025 = vpack.c.bf16 %v4805, %v4801
        %v5026 = vpack.c.bf16 %v4811, %v4807
        %v5027 = vpack.c.bf16 %v4813, %v4809
        %v5028 = vpack.c.bf16 %v4819, %v4815
        %v5029 = vpack.c.bf16 %v4821, %v4817
        %v5030 = vpack.c.bf16 %v4827, %v4823
        %v5031 = vpack.c.bf16 %v4829, %v4825
        %v5032 = vpack.c.bf16 %v4835, %v4831
        %v5033 = vpack.c.bf16 %v4837, %v4833
        %v5034 = vpack.c.bf16 %v4843, %v4839
        %v5035 = vpack.c.bf16 %v4845, %v4841
        %v5036 = vpack.c.bf16 %v4851, %v4847
        %v5037 = vpack.c.bf16 %v4853, %v4849
        %v5038 = vpack.c.bf16 %v4859, %v4855
        %v5039 = vpack.c.bf16 %v4861, %v4857
        %v5040 = vpack.c.bf16 %v4867, %v4863
        %v5041 = vpack.c.bf16 %v4869, %v4865
        %v5042 = vpack.c.bf16 %v4875, %v4871
        %v5043 = vpack.c.bf16 %v4877, %v4873
        %v5044 = vpack.c.bf16 %v4883, %v4879
        %v5045 = vpack.c.bf16 %v4885, %v4881
        %5046 = vrot.lane.b32.xlu0 %v2049, 64
        %v5047 = vpop.permute.xlu0 %5046
        %5048 = vrot.lane.b32.xlu0 %v2052, 64
        %v5049 = vpop.permute.xlu0 %5048
        %5050 = vrot.lane.b32.xlu0 %v2055, 64
        %v5051 = vpop.permute.xlu0 %5050
        %5052 = vrot.lane.b32.xlu0 %v2058, 64
        %v5053 = vpop.permute.xlu0 %5052
        %5054 = vrot.lane.b32.xlu0 %v2061, 64
        %v5055 = vpop.permute.xlu0 %5054
        %5056 = vrot.lane.b32.xlu0 %v2064, 64
        %v5057 = vpop.permute.xlu0 %5056
        %5058 = vrot.lane.b32.xlu0 %v2067, 64
        %v5059 = vpop.permute.xlu0 %5058
        %5060 = vrot.lane.b32.xlu0 %v2070, 64
        %v5061 = vpop.permute.xlu0 %5060
        %5062 = vrot.lane.b32.xlu0 %v2073, 64
        %v5063 = vpop.permute.xlu0 %5062
        %5064 = vrot.lane.b32.xlu0 %v2076, 64
        %v5065 = vpop.permute.xlu0 %5064
        %5066 = vrot.lane.b32.xlu0 %v2079, 64
        %v5067 = vpop.permute.xlu0 %5066
        %5068 = vrot.lane.b32.xlu0 %v2082, 64
        %v5069 = vpop.permute.xlu0 %5068
        %5070 = vrot.lane.b32.xlu0 %v2085, 64
        %v5071 = vpop.permute.xlu0 %5070
        %5072 = vrot.lane.b32.xlu0 %v2088, 64
        %v5073 = vpop.permute.xlu0 %5072
        %5074 = vrot.lane.b32.xlu0 %v2091, 64
        %v5075 = vpop.permute.xlu0 %5074
        %5076 = vrot.lane.b32.xlu0 %v2094, 64
        %v5077 = vpop.permute.xlu0 %5076
        %5094 = vmatprep.subr.bf16.mxu0 0
        %5095 = vmatpush1.bf16.msra.mxu0 %v5047
        %5096 = vmatprep.subr.bf16.mxu0 0
        %5097 = vmatpush1.bf16.msra.mxu0 %v5049
        %5098 = vmatprep.subr.bf16.mxu0 0
        %5099 = vmatpush1.bf16.msra.mxu0 %v5051
        %5100 = vmatprep.subr.bf16.mxu0 0
        %5101 = vmatpush1.bf16.msra.mxu0 %v5053
        %5102 = vmatprep.subr.bf16.mxu0 0
        %5103 = vmatpush1.bf16.msra.mxu0 %v5055
        %5104 = vmatprep.subr.bf16.mxu0 0
        %5105 = vmatpush1.bf16.msra.mxu0 %v5057
        %5106 = vmatprep.subr.bf16.mxu0 0
        %5107 = vmatpush1.bf16.msra.mxu0 %v5059
        %5108 = vmatprep.subr.bf16.mxu0 0
        %5109 = vmatpush1.bf16.msra.mxu0 %v5061
        %5110 = vmatprep.subr.bf16.mxu0 0
        %5111 = vmatpush1.bf16.msra.mxu0 %v5063
        %5112 = vmatprep.subr.bf16.mxu0 0
        %5113 = vmatpush1.bf16.msra.mxu0 %v5065
        %5114 = vmatprep.subr.bf16.mxu0 0
        %5115 = vmatpush1.bf16.msra.mxu0 %v5067
        %5116 = vmatprep.subr.bf16.mxu0 0
        %5117 = vmatpush1.bf16.msra.mxu0 %v5069
        %5118 = vmatprep.subr.bf16.mxu0 0
        %5119 = vmatpush1.bf16.msra.mxu0 %v5071
        %5120 = vmatprep.subr.bf16.mxu0 0
        %5121 = vmatpush1.bf16.msra.mxu0 %v5073
        %5122 = vmatprep.subr.bf16.mxu0 0
        %5123 = vmatpush1.bf16.msra.mxu0 %v5075
        %5124 = vmatprep.subr.bf16.mxu0 0
        %5125 = vmatpush1.bf16.msra.mxu0 %v5077
        %5126 = vmatprep.mubr.bf16.mxu0 %v5015
        %5127 = vmatmul.mubr.bf16.gmra.mrb[0].mxu0 %v5014
        %v5128 = vpop.f32.mrb[0].mxu0
        %v5129 = vadd.f32 0.0, %v5128
        %v5130 = vpop.f32.mrb[0].mxu0
        %v5131 = vpop.f32.mrb[0].mxu0
        %v5132 = vadd.f32 0.0, %v5131
        %v5133 = vpop.f32.mrb[0].mxu0
        %5134 = vmatprep.mubr.bf16.mxu0 %v5017
        %5135 = vmatmul.mubr.bf16.gmra.mrb[0].mxu0 %v5016
        %v5136 = vpop.f32.mrb[0].mxu0
        %v5137 = vadd.f32 0.0, %v5136
        %v5138 = vpop.f32.mrb[0].mxu0
        %v5139 = vpop.f32.mrb[0].mxu0
        %v5140 = vadd.f32 0.0, %v5139
        %v5141 = vpop.f32.mrb[0].mxu0
        %5142 = vmatprep.mubr.bf16.mxu0 %v5019
        %5143 = vmatmul.mubr.bf16.gmra.mrb[0].mxu0 %v5018
        %v5144 = vpop.f32.mrb[0].mxu0
        %v5145 = vadd.f32 0.0, %v5144
        %v5146 = vpop.f32.mrb[0].mxu0
        %v5147 = vpop.f32.mrb[0].mxu0
        %v5148 = vadd.f32 0.0, %v5147
        %v5149 = vpop.f32.mrb[0].mxu0
        %5150 = vmatprep.mubr.bf16.mxu0 %v5021
        %5151 = vmatmul.mubr.bf16.gmra.mrb[0].mxu0 %v5020
        %v5152 = vpop.f32.mrb[0].mxu0
        %v5153 = vadd.f32 0.0, %v5152
        %v5154 = vpop.f32.mrb[0].mxu0
        %v5155 = vpop.f32.mrb[0].mxu0
        %v5156 = vadd.f32 0.0, %v5155
        %v5157 = vpop.f32.mrb[0].mxu0
        %5158 = vmatprep.mubr.bf16.mxu0 %v5023
        %5159 = vmatmul.mubr.bf16.gmra.mrb[0].mxu0 %v5022
        %v5160 = vpop.f32.mrb[0].mxu0
        %v5161 = vadd.f32 0.0, %v5160
        %v5162 = vpop.f32.mrb[0].mxu0
        %v5163 = vpop.f32.mrb[0].mxu0
        %v5164 = vadd.f32 0.0, %v5163
        %v5165 = vpop.f32.mrb[0].mxu0
        %5166 = vmatprep.mubr.bf16.mxu0 %v5025
        %5167 = vmatmul.mubr.bf16.gmra.mrb[0].mxu0 %v5024
        %v5168 = vpop.f32.mrb[0].mxu0
        %v5169 = vadd.f32 0.0, %v5168
        %v5170 = vpop.f32.mrb[0].mxu0
        %v5171 = vpop.f32.mrb[0].mxu0
        %v5172 = vadd.f32 0.0, %v5171
        %v5173 = vpop.f32.mrb[0].mxu0
        %5174 = vmatprep.mubr.bf16.mxu0 %v5027
        %5175 = vmatmul.mubr.bf16.gmra.mrb[0].mxu0 %v5026
        %v5176 = vpop.f32.mrb[0].mxu0
        %v5177 = vadd.f32 0.0, %v5176
        %v5178 = vpop.f32.mrb[0].mxu0
        %v5179 = vpop.f32.mrb[0].mxu0
        %v5180 = vadd.f32 0.0, %v5179
        %v5181 = vpop.f32.mrb[0].mxu0
        %5182 = vmatprep.mubr.bf16.mxu0 %v5029
        %5183 = vmatmul.mubr.bf16.gmra.mrb[0].mxu0 %v5028
        %v5184 = vpop.f32.mrb[0].mxu0
        %v5185 = vadd.f32 0.0, %v5184
        %v5186 = vpop.f32.mrb[0].mxu0
        %v5187 = vpop.f32.mrb[0].mxu0
        %v5188 = vadd.f32 0.0, %v5187
        %v5189 = vpop.f32.mrb[0].mxu0
        %5190 = vmatprep.mubr.bf16.mxu0 %v5031
        %5191 = vmatmul.mubr.bf16.gmra.mrb[0].mxu0 %v5030
        %v5192 = vpop.f32.mrb[0].mxu0
        %v5193 = vadd.f32 0.0, %v5192
        %v5194 = vpop.f32.mrb[0].mxu0
        %v5195 = vpop.f32.mrb[0].mxu0
        %v5196 = vadd.f32 0.0, %v5195
        %v5197 = vpop.f32.mrb[0].mxu0
        %5198 = vmatprep.mubr.bf16.mxu0 %v5033
        %5199 = vmatmul.mubr.bf16.gmra.mrb[0].mxu0 %v5032
        %v5200 = vpop.f32.mrb[0].mxu0
        %v5201 = vadd.f32 0.0, %v5200
        %v5202 = vpop.f32.mrb[0].mxu0
        %v5203 = vpop.f32.mrb[0].mxu0
        %v5204 = vadd.f32 0.0, %v5203
        %v5205 = vpop.f32.mrb[0].mxu0
        %5206 = vmatprep.mubr.bf16.mxu0 %v5035
        %5207 = vmatmul.mubr.bf16.gmra.mrb[0].mxu0 %v5034
        %v5208 = vpop.f32.mrb[0].mxu0
        %v5209 = vadd.f32 0.0, %v5208
        %v5210 = vpop.f32.mrb[0].mxu0
        %v5211 = vpop.f32.mrb[0].mxu0
        %v5212 = vadd.f32 0.0, %v5211
        %v5213 = vpop.f32.mrb[0].mxu0
        %5214 = vmatprep.mubr.bf16.mxu0 %v5037
        %5215 = vmatmul.mubr.bf16.gmra.mrb[0].mxu0 %v5036
        %v5216 = vpop.f32.mrb[0].mxu0
        %v5217 = vadd.f32 0.0, %v5216
        %v5218 = vpop.f32.mrb[0].mxu0
        %v5219 = vpop.f32.mrb[0].mxu0
        %v5220 = vadd.f32 0.0, %v5219
        %v5221 = vpop.f32.mrb[0].mxu0
        %5222 = vmatprep.mubr.bf16.mxu0 %v5039
        %5223 = vmatmul.mubr.bf16.gmra.mrb[0].mxu0 %v5038
        %v5224 = vpop.f32.mrb[0].mxu0
        %v5225 = vadd.f32 0.0, %v5224
        %v5226 = vpop.f32.mrb[0].mxu0
        %v5227 = vpop.f32.mrb[0].mxu0
        %v5228 = vadd.f32 0.0, %v5227
        %v5229 = vpop.f32.mrb[0].mxu0
        %5230 = vmatprep.mubr.bf16.mxu0 %v5041
        %5231 = vmatmul.mubr.bf16.gmra.mrb[0].mxu0 %v5040
        %v5232 = vpop.f32.mrb[0].mxu0
        %v5233 = vadd.f32 0.0, %v5232
        %v5234 = vpop.f32.mrb[0].mxu0
        %v5235 = vpop.f32.mrb[0].mxu0
        %v5236 = vadd.f32 0.0, %v5235
        %v5237 = vpop.f32.mrb[0].mxu0
        %5238 = vmatprep.mubr.bf16.mxu0 %v5043
        %5239 = vmatmul.mubr.bf16.gmra.mrb[0].mxu0 %v5042
        %v5240 = vpop.f32.mrb[0].mxu0
        %v5241 = vadd.f32 0.0, %v5240
        %v5242 = vpop.f32.mrb[0].mxu0
        %v5243 = vpop.f32.mrb[0].mxu0
        %v5244 = vadd.f32 0.0, %v5243
        %v5245 = vpop.f32.mrb[0].mxu0
        %5246 = vmatprep.mubr.bf16.mxu0 %v5045
        %5247 = vmatmul.mubr.bf16.gmra.mrb[0].mxu0 %v5044
        %v5248 = vpop.f32.mrb[0].mxu0
        %v5249 = vadd.f32 0.0, %v5248
        %v5250 = vpop.f32.mrb[0].mxu0
        %v5251 = vpop.f32.mrb[0].mxu0
        %v5252 = vadd.f32 0.0, %v5251
        %v5253 = vpop.f32.mrb[0].mxu0
        %5254 = vdwg.mxu0
        %v5255 = vmul.f32 %v5129, %v4982
        %v5256 = vmul.f32 %v5132, %v4983
        %v5257 = vmul.f32 %v5137, %v4984
        %v5258 = vmul.f32 %v5140, %v4985
        %v5259 = vmul.f32 %v5145, %v4986
        %v5260 = vmul.f32 %v5148, %v4987
        %v5261 = vmul.f32 %v5153, %v4988
        %v5262 = vmul.f32 %v5156, %v4989
        %v5263 = vmul.f32 %v5161, %v4990
        %v5264 = vmul.f32 %v5164, %v4991
        %v5265 = vmul.f32 %v5169, %v4992
        %v5266 = vmul.f32 %v5172, %v4993
        %v5267 = vmul.f32 %v5177, %v4994
        %v5268 = vmul.f32 %v5180, %v4995
        %v5269 = vmul.f32 %v5185, %v4996
        %v5270 = vmul.f32 %v5188, %v4997
        %v5271 = vmul.f32 %v5193, %v4998
        %v5272 = vmul.f32 %v5196, %v4999
        %v5273 = vmul.f32 %v5201, %v5000
        %v5274 = vmul.f32 %v5204, %v5001
        %v5275 = vmul.f32 %v5209, %v5002
        %v5276 = vmul.f32 %v5212, %v5003
        %v5277 = vmul.f32 %v5217, %v5004
        %v5278 = vmul.f32 %v5220, %v5005
        %v5279 = vmul.f32 %v5225, %v5006
        %v5280 = vmul.f32 %v5228, %v5007
        %v5281 = vmul.f32 %v5233, %v5008
        %v5282 = vmul.f32 %v5236, %v5009
        %v5283 = vmul.f32 %v5241, %v5010
        %v5284 = vmul.f32 %v5244, %v5011
        %v5285 = vmul.f32 %v5249, %v5012
        %v5286 = vmul.f32 %v5252, %v5013
        %v5287 = vpack.c.bf16 %v5256, %v5255
        %v5288 = vpack.c.bf16 %v5258, %v5257
        %v5289 = vpack.c.bf16 %v5260, %v5259
        %v5290 = vpack.c.bf16 %v5262, %v5261
        %v5291 = vpack.c.bf16 %v5264, %v5263
        %v5292 = vpack.c.bf16 %v5266, %v5265
        %v5293 = vpack.c.bf16 %v5268, %v5267
        %v5294 = vpack.c.bf16 %v5270, %v5269
        %v5295 = vpack.c.bf16 %v5272, %v5271
        %v5296 = vpack.c.bf16 %v5274, %v5273
        %v5297 = vpack.c.bf16 %v5276, %v5275
        %v5298 = vpack.c.bf16 %v5278, %v5277
        %v5299 = vpack.c.bf16 %v5280, %v5279
        %v5300 = vpack.c.bf16 %v5282, %v5281
        %v5301 = vpack.c.bf16 %v5284, %v5283
        %v5302 = vpack.c.bf16 %v5286, %v5285
        %5319 = vrot.lane.b32.xlu0 %v5287, 64
        %v5320 = vpop.permute.xlu0 %5319
        %5321 = vrot.lane.b32.xlu0 %v5288, 64
        %v5322 = vpop.permute.xlu0 %5321
        %5323 = vrot.lane.b32.xlu0 %v5289, 64
        %v5324 = vpop.permute.xlu0 %5323
        %5325 = vrot.lane.b32.xlu0 %v5290, 64
        %v5326 = vpop.permute.xlu0 %5325
        %5327 = vrot.lane.b32.xlu0 %v5291, 64
        %v5328 = vpop.permute.xlu0 %5327
        %5329 = vrot.lane.b32.xlu0 %v5292, 64
        %v5330 = vpop.permute.xlu0 %5329
        %5331 = vrot.lane.b32.xlu0 %v5293, 64
        %v5332 = vpop.permute.xlu0 %5331
        %5333 = vrot.lane.b32.xlu0 %v5294, 64
        %v5334 = vpop.permute.xlu0 %5333
        %5335 = vrot.lane.b32.xlu0 %v5295, 64
        %v5336 = vpop.permute.xlu0 %5335
        %5337 = vrot.lane.b32.xlu0 %v5296, 64
        %v5338 = vpop.permute.xlu0 %5337
        %5339 = vrot.lane.b32.xlu0 %v5297, 64
        %v5340 = vpop.permute.xlu0 %5339
        %5341 = vrot.lane.b32.xlu0 %v5298, 64
        %v5342 = vpop.permute.xlu0 %5341
        %5343 = vrot.lane.b32.xlu0 %v5299, 64
        %v5344 = vpop.permute.xlu0 %5343
        %5345 = vrot.lane.b32.xlu0 %v5300, 64
        %v5346 = vpop.permute.xlu0 %5345
        %5347 = vrot.lane.b32.xlu0 %v5301, 64
        %v5348 = vpop.permute.xlu0 %5347
        %5349 = vrot.lane.b32.xlu0 %v5302, 64
        %v5350 = vpop.permute.xlu0 %5349
        %vm5367 = vcmask 785920
        %5368 = vst.msk [vmem:[#allocation3] sm:$0xff] %vm5367, %v5320
        %5369 = vst.msk [vmem:[#allocation3 + $0x8] sm:$0xff] %vm5367, %v5322
        %5370 = vst.msk [vmem:[#allocation3 + $0x10] sm:$0xff] %vm5367, %v5324
        %5371 = vst.msk [vmem:[#allocation3 + $0x18] sm:$0xff] %vm5367, %v5326
        %5372 = vst.msk [vmem:[#allocation3 + $0x20] sm:$0xff] %vm5367, %v5328
        %5373 = vst.msk [vmem:[#allocation3 + $0x28] sm:$0xff] %vm5367, %v5330
        %5374 = vst.msk [vmem:[#allocation3 + $0x30] sm:$0xff] %vm5367, %v5332
        %5375 = vst.msk [vmem:[#allocation3 + $0x38] sm:$0xff] %vm5367, %v5334
        %5376 = vst.msk [vmem:[#allocation3 + $0x40] sm:$0xff] %vm5367, %v5336
        %5377 = vst.msk [vmem:[#allocation3 + $0x48] sm:$0xff] %vm5367, %v5338
        %5378 = vst.msk [vmem:[#allocation3 + $0x50] sm:$0xff] %vm5367, %v5340
        %5379 = vst.msk [vmem:[#allocation3 + $0x58] sm:$0xff] %vm5367, %v5342
        %5380 = vst.msk [vmem:[#allocation3 + $0x60] sm:$0xff] %vm5367, %v5344
        %5381 = vst.msk [vmem:[#allocation3 + $0x68] sm:$0xff] %vm5367, %v5346
        %5382 = vst.msk [vmem:[#allocation3 + $0x70] sm:$0xff] %vm5367, %v5348
        %5383 = vst.msk [vmem:[#allocation3 + $0x78] sm:$0xff] %vm5367, %v5350
        %5384 = vrot.lane.b32.xlu0 %v2047, 32
        %v5385 = vpop.permute.xlu0 %5384
        %5386 = vrot.lane.b32.xlu0 %v2050, 32
        %v5387 = vpop.permute.xlu0 %5386
        %5388 = vrot.lane.b32.xlu0 %v2053, 32
        %v5389 = vpop.permute.xlu0 %5388
        %5390 = vrot.lane.b32.xlu0 %v2056, 32
        %v5391 = vpop.permute.xlu0 %5390
        %5392 = vrot.lane.b32.xlu0 %v2059, 32
        %v5393 = vpop.permute.xlu0 %5392
        %5394 = vrot.lane.b32.xlu0 %v2062, 32
        %v5395 = vpop.permute.xlu0 %5394
        %5396 = vrot.lane.b32.xlu0 %v2065, 32
        %v5397 = vpop.permute.xlu0 %5396
        %5398 = vrot.lane.b32.xlu0 %v2068, 32
        %v5399 = vpop.permute.xlu0 %5398
        %5400 = vrot.lane.b32.xlu0 %v2071, 32
        %v5401 = vpop.permute.xlu0 %5400
        %5402 = vrot.lane.b32.xlu0 %v2074, 32
        %v5403 = vpop.permute.xlu0 %5402
        %5404 = vrot.lane.b32.xlu0 %v2077, 32
        %v5405 = vpop.permute.xlu0 %5404
        %5406 = vrot.lane.b32.xlu0 %v2080, 32
        %v5407 = vpop.permute.xlu0 %5406
        %5408 = vrot.lane.b32.xlu0 %v2083, 32
        %v5409 = vpop.permute.xlu0 %5408
        %5410 = vrot.lane.b32.xlu0 %v2086, 32
        %v5411 = vpop.permute.xlu0 %5410
        %5412 = vrot.lane.b32.xlu0 %v2089, 32
        %v5413 = vpop.permute.xlu0 %5412
        %5414 = vrot.lane.b32.xlu0 %v2092, 32
        %v5415 = vpop.permute.xlu0 %5414
        %5416 = vrot.lane.b32.xlu0 %v2048, 32
        %v5417 = vpop.permute.xlu0 %5416
        %5418 = vrot.lane.b32.xlu0 %v2051, 32
        %v5419 = vpop.permute.xlu0 %5418
        %5420 = vrot.lane.b32.xlu0 %v2054, 32
        %v5421 = vpop.permute.xlu0 %5420
        %5422 = vrot.lane.b32.xlu0 %v2057, 32
        %v5423 = vpop.permute.xlu0 %5422
        %5424 = vrot.lane.b32.xlu0 %v2060, 32
        %v5425 = vpop.permute.xlu0 %5424
        %5426 = vrot.lane.b32.xlu0 %v2063, 32
        %v5427 = vpop.permute.xlu0 %5426
        %5428 = vrot.lane.b32.xlu0 %v2066, 32
        %v5429 = vpop.permute.xlu0 %5428
        %5430 = vrot.lane.b32.xlu0 %v2069, 32
        %v5431 = vpop.permute.xlu0 %5430
        %5432 = vrot.lane.b32.xlu0 %v2072, 32
        %v5433 = vpop.permute.xlu0 %5432
        %5434 = vrot.lane.b32.xlu0 %v2075, 32
        %v5435 = vpop.permute.xlu0 %5434
        %5436 = vrot.lane.b32.xlu0 %v2078, 32
        %v5437 = vpop.permute.xlu0 %5436
        %5438 = vrot.lane.b32.xlu0 %v2081, 32
        %v5439 = vpop.permute.xlu0 %5438
        %5440 = vrot.lane.b32.xlu0 %v2084, 32
        %v5441 = vpop.permute.xlu0 %5440
        %5442 = vrot.lane.b32.xlu0 %v2087, 32
        %v5443 = vpop.permute.xlu0 %5442
        %5444 = vrot.lane.b32.xlu0 %v2090, 32
        %v5445 = vpop.permute.xlu0 %5444
        %5446 = vrot.lane.b32.xlu0 %v2093, 32
        %v5447 = vpop.permute.xlu0 %5446
        %v5449 = vsel %vm2095, %v5385, 0
        %v5452 = vsel %vm2095, %v5387, 0
        %v5455 = vsel %vm2095, %v5389, 0
        %v5458 = vsel %vm2095, %v5391, 0
        %v5461 = vsel %vm2095, %v5393, 0
        %v5464 = vsel %vm2095, %v5395, 0
        %v5467 = vsel %vm2095, %v5397, 0
        %v5470 = vsel %vm2095, %v5399, 0
        %v5473 = vsel %vm2095, %v5401, 0
        %v5476 = vsel %vm2095, %v5403, 0
        %v5479 = vsel %vm2095, %v5405, 0
        %v5482 = vsel %vm2095, %v5407, 0
        %v5485 = vsel %vm2095, %v5409, 0
        %v5488 = vsel %vm2095, %v5411, 0
        %v5491 = vsel %vm2095, %v5413, 0
        %v5494 = vsel %vm2095, %v5415, 0
        %v5497 = vsel %vm2095, %v5417, 0
        %v5500 = vsel %vm2095, %v5419, 0
        %v5503 = vsel %vm2095, %v5421, 0
        %v5506 = vsel %vm2095, %v5423, 0
        %v5509 = vsel %vm2095, %v5425, 0
        %v5512 = vsel %vm2095, %v5427, 0
        %v5515 = vsel %vm2095, %v5429, 0
        %v5518 = vsel %vm2095, %v5431, 0
        %v5521 = vsel %vm2095, %v5433, 0
        %v5524 = vsel %vm2095, %v5435, 0
        %v5527 = vsel %vm2095, %v5437, 0
        %v5530 = vsel %vm2095, %v5439, 0
        %v5533 = vsel %vm2095, %v5441, 0
        %v5536 = vsel %vm2095, %v5443, 0
        %v5539 = vsel %vm2095, %v5445, 0
        %v5542 = vsel %vm2095, %v5447, 0
        %5544 = vmatprep.subr.bf16.mxu0 0
        %5545 = vmatpush1.bf16.xpose.msra.mxu0 %v5497
        %5546 = vmatprep.subr.bf16.mxu0 0
        %5547 = vmatpush1.bf16.xpose.msra.mxu0 %v5500
        %5548 = vmatprep.subr.bf16.mxu0 0
        %5549 = vmatpush1.bf16.xpose.msra.mxu0 %v5503
        %5550 = vmatprep.subr.bf16.mxu0 0
        %5551 = vmatpush1.bf16.xpose.msra.mxu0 %v5506
        %5552 = vmatprep.subr.bf16.mxu0 0
        %5553 = vmatpush1.bf16.xpose.msra.mxu0 %v5509
        %5554 = vmatprep.subr.bf16.mxu0 0
        %5555 = vmatpush1.bf16.xpose.msra.mxu0 %v5512
        %5556 = vmatprep.subr.bf16.mxu0 0
        %5557 = vmatpush1.bf16.xpose.msra.mxu0 %v5515
        %5558 = vmatprep.subr.bf16.mxu0 0
        %5559 = vmatpush1.bf16.xpose.msra.mxu0 %v5518
        %5560 = vmatprep.subr.bf16.mxu0 0
        %5561 = vmatpush1.bf16.xpose.msra.mxu0 %v5521
        %5562 = vmatprep.subr.bf16.mxu0 0
        %5563 = vmatpush1.bf16.xpose.msra.mxu0 %v5524
        %5564 = vmatprep.subr.bf16.mxu0 0
        %5565 = vmatpush1.bf16.xpose.msra.mxu0 %v5527
        %5566 = vmatprep.subr.bf16.mxu0 0
        %5567 = vmatpush1.bf16.xpose.msra.mxu0 %v5530
        %5568 = vmatprep.subr.bf16.mxu0 0
        %5569 = vmatpush1.bf16.xpose.msra.mxu0 %v5533
        %5570 = vmatprep.subr.bf16.mxu0 0
        %5571 = vmatpush1.bf16.xpose.msra.mxu0 %v5536
        %5572 = vmatprep.subr.bf16.mxu0 0
        %5573 = vmatpush1.bf16.xpose.msra.mxu0 %v5539
        %5574 = vmatprep.subr.bf16.mxu0 0
        %5575 = vmatpush1.bf16.xpose.msra.mxu0 %v5542
        %5576 = vmatprep.mubr.bf16.mxu0 0
        %5577 = vmatmul.mubr.bf16.gmra.mrb[0].mxu0 %v5449
        %v5578 = vpop.f32.mrb[0].mxu0
        %v5579 = vadd.f32 0.0, %v5578
        %v5580 = vpop.f32.mrb[0].mxu0
        %v5581 = vadd.f32 0.0, %v5580
        %v5582 = vpop.f32.mrb[0].mxu0
        %v5583 = vadd.f32 0.0, %v5582
        %v5584 = vpop.f32.mrb[0].mxu0
        %v5585 = vadd.f32 0.0, %v5584
        %5586 = vmatprep.mubr.bf16.mxu0 0
        %5587 = vmatmul.mubr.bf16.gmra.mrb[0].mxu0 %v5452
        %v5588 = vpop.f32.mrb[0].mxu0
        %v5589 = vadd.f32 0.0, %v5588
        %v5590 = vpop.f32.mrb[0].mxu0
        %v5591 = vadd.f32 0.0, %v5590
        %v5592 = vpop.f32.mrb[0].mxu0
        %v5593 = vadd.f32 0.0, %v5592
        %v5594 = vpop.f32.mrb[0].mxu0
        %v5595 = vadd.f32 0.0, %v5594
        %5596 = vmatprep.mubr.bf16.mxu0 0
        %5597 = vmatmul.mubr.bf16.gmra.mrb[0].mxu0 %v5455
        %v5598 = vpop.f32.mrb[0].mxu0
        %v5599 = vadd.f32 0.0, %v5598
        %v5600 = vpop.f32.mrb[0].mxu0
        %v5601 = vadd.f32 0.0, %v5600
        %v5602 = vpop.f32.mrb[0].mxu0
        %v5603 = vadd.f32 0.0, %v5602
        %v5604 = vpop.f32.mrb[0].mxu0
        %v5605 = vadd.f32 0.0, %v5604
        %5606 = vmatprep.mubr.bf16.mxu0 0
        %5607 = vmatmul.mubr.bf16.gmra.mrb[0].mxu0 %v5458
        %v5608 = vpop.f32.mrb[0].mxu0
        %v5609 = vadd.f32 0.0, %v5608
        %v5610 = vpop.f32.mrb[0].mxu0
        %v5611 = vadd.f32 0.0, %v5610
        %v5612 = vpop.f32.mrb[0].mxu0
        %v5613 = vadd.f32 0.0, %v5612
        %v5614 = vpop.f32.mrb[0].mxu0
        %v5615 = vadd.f32 0.0, %v5614
        %5616 = vmatprep.mubr.bf16.mxu0 0
        %5617 = vmatmul.mubr.bf16.gmra.mrb[0].mxu0 %v5461
        %v5618 = vpop.f32.mrb[0].mxu0
        %v5619 = vadd.f32 0.0, %v5618
        %v5620 = vpop.f32.mrb[0].mxu0
        %v5621 = vadd.f32 0.0, %v5620
        %v5622 = vpop.f32.mrb[0].mxu0
        %v5623 = vadd.f32 0.0, %v5622
        %v5624 = vpop.f32.mrb[0].mxu0
        %v5625 = vadd.f32 0.0, %v5624
        %5626 = vmatprep.mubr.bf16.mxu0 0
        %5627 = vmatmul.mubr.bf16.gmra.mrb[0].mxu0 %v5464
        %v5628 = vpop.f32.mrb[0].mxu0
        %v5629 = vadd.f32 0.0, %v5628
        %v5630 = vpop.f32.mrb[0].mxu0
        %v5631 = vadd.f32 0.0, %v5630
        %v5632 = vpop.f32.mrb[0].mxu0
        %v5633 = vadd.f32 0.0, %v5632
        %v5634 = vpop.f32.mrb[0].mxu0
        %v5635 = vadd.f32 0.0, %v5634
        %5636 = vmatprep.mubr.bf16.mxu0 0
        %5637 = vmatmul.mubr.bf16.gmra.mrb[0].mxu0 %v5467
        %v5638 = vpop.f32.mrb[0].mxu0
        %v5639 = vadd.f32 0.0, %v5638
        %v5640 = vpop.f32.mrb[0].mxu0
        %v5641 = vadd.f32 0.0, %v5640
        %v5642 = vpop.f32.mrb[0].mxu0
        %v5643 = vadd.f32 0.0, %v5642
        %v5644 = vpop.f32.mrb[0].mxu0
        %v5645 = vadd.f32 0.0, %v5644
        %5646 = vmatprep.mubr.bf16.mxu0 0
        %5647 = vmatmul.mubr.bf16.gmra.mrb[0].mxu0 %v5470
        %v5648 = vpop.f32.mrb[0].mxu0
        %v5649 = vadd.f32 0.0, %v5648
        %v5650 = vpop.f32.mrb[0].mxu0
        %v5651 = vadd.f32 0.0, %v5650
        %v5652 = vpop.f32.mrb[0].mxu0
        %v5653 = vadd.f32 0.0, %v5652
        %v5654 = vpop.f32.mrb[0].mxu0
        %v5655 = vadd.f32 0.0, %v5654
        %5656 = vmatprep.mubr.bf16.mxu0 0
        %5657 = vmatmul.mubr.bf16.gmra.mrb[0].mxu0 %v5473
        %v5658 = vpop.f32.mrb[0].mxu0
        %v5659 = vadd.f32 0.0, %v5658
        %v5660 = vpop.f32.mrb[0].mxu0
        %v5661 = vadd.f32 0.0, %v5660
        %v5662 = vpop.f32.mrb[0].mxu0
        %v5663 = vadd.f32 0.0, %v5662
        %v5664 = vpop.f32.mrb[0].mxu0
        %v5665 = vadd.f32 0.0, %v5664
        %5666 = vmatprep.mubr.bf16.mxu0 0
        %5667 = vmatmul.mubr.bf16.gmra.mrb[0].mxu0 %v5476
        %v5668 = vpop.f32.mrb[0].mxu0
        %v5669 = vadd.f32 0.0, %v5668
        %v5670 = vpop.f32.mrb[0].mxu0
        %v5671 = vadd.f32 0.0, %v5670
        %v5672 = vpop.f32.mrb[0].mxu0
        %v5673 = vadd.f32 0.0, %v5672
        %v5674 = vpop.f32.mrb[0].mxu0
        %v5675 = vadd.f32 0.0, %v5674
        %5676 = vmatprep.mubr.bf16.mxu0 0
        %5677 = vmatmul.mubr.bf16.gmra.mrb[0].mxu0 %v5479
        %v5678 = vpop.f32.mrb[0].mxu0
        %v5679 = vadd.f32 0.0, %v5678
        %v5680 = vpop.f32.mrb[0].mxu0
        %v5681 = vadd.f32 0.0, %v5680
        %v5682 = vpop.f32.mrb[0].mxu0
        %v5683 = vadd.f32 0.0, %v5682
        %v5684 = vpop.f32.mrb[0].mxu0
        %v5685 = vadd.f32 0.0, %v5684
        %5686 = vmatprep.mubr.bf16.mxu0 0
        %5687 = vmatmul.mubr.bf16.gmra.mrb[0].mxu0 %v5482
        %v5688 = vpop.f32.mrb[0].mxu0
        %v5689 = vadd.f32 0.0, %v5688
        %v5690 = vpop.f32.mrb[0].mxu0
        %v5691 = vadd.f32 0.0, %v5690
        %v5692 = vpop.f32.mrb[0].mxu0
        %v5693 = vadd.f32 0.0, %v5692
        %v5694 = vpop.f32.mrb[0].mxu0
        %v5695 = vadd.f32 0.0, %v5694
        %5696 = vmatprep.mubr.bf16.mxu0 0
        %5697 = vmatmul.mubr.bf16.gmra.mrb[0].mxu0 %v5485
        %v5698 = vpop.f32.mrb[0].mxu0
        %v5699 = vadd.f32 0.0, %v5698
        %v5700 = vpop.f32.mrb[0].mxu0
        %v5701 = vadd.f32 0.0, %v5700
        %v5702 = vpop.f32.mrb[0].mxu0
        %v5703 = vadd.f32 0.0, %v5702
        %v5704 = vpop.f32.mrb[0].mxu0
        %v5705 = vadd.f32 0.0, %v5704
        %5706 = vmatprep.mubr.bf16.mxu0 0
        %5707 = vmatmul.mubr.bf16.gmra.mrb[0].mxu0 %v5488
        %v5708 = vpop.f32.mrb[0].mxu0
        %v5709 = vadd.f32 0.0, %v5708
        %v5710 = vpop.f32.mrb[0].mxu0
        %v5711 = vadd.f32 0.0, %v5710
        %v5712 = vpop.f32.mrb[0].mxu0
        %v5713 = vadd.f32 0.0, %v5712
        %v5714 = vpop.f32.mrb[0].mxu0
        %v5715 = vadd.f32 0.0, %v5714
        %5716 = vmatprep.mubr.bf16.mxu0 0
        %5717 = vmatmul.mubr.bf16.gmra.mrb[0].mxu0 %v5491
        %v5718 = vpop.f32.mrb[0].mxu0
        %v5719 = vadd.f32 0.0, %v5718
        %v5720 = vpop.f32.mrb[0].mxu0
        %v5721 = vadd.f32 0.0, %v5720
        %v5722 = vpop.f32.mrb[0].mxu0
        %v5723 = vadd.f32 0.0, %v5722
        %v5724 = vpop.f32.mrb[0].mxu0
        %v5725 = vadd.f32 0.0, %v5724
        %5726 = vmatprep.mubr.bf16.mxu0 0
        %5727 = vmatmul.mubr.bf16.gmra.mrb[0].mxu0 %v5494
        %v5728 = vpop.f32.mrb[0].mxu0
        %v5729 = vadd.f32 0.0, %v5728
        %v5730 = vpop.f32.mrb[0].mxu0
        %v5731 = vadd.f32 0.0, %v5730
        %v5732 = vpop.f32.mrb[0].mxu0
        %v5733 = vadd.f32 0.0, %v5732
        %v5734 = vpop.f32.mrb[0].mxu0
        %v5735 = vadd.f32 0.0, %v5734
        %5736 = vdwg.mxu0
        %v5737 = vmax.f32 %v5579, %v5581
        %5738 = vmax.xlane.f32.xlu0 %v5737
        %v5739 = vpop.xlane.xlu0 %5738
        %v5740 = vmax.f32 %v5583, %v5585
        %5741 = vmax.xlane.f32.xlu0 %v5740
        %v5742 = vpop.xlane.xlu0 %5741
        %v5743 = vmax.f32 %v5589, %v5591
        %5744 = vmax.xlane.f32.xlu0 %v5743
        %v5745 = vpop.xlane.xlu0 %5744
        %v5746 = vmax.f32 %v5593, %v5595
        %5747 = vmax.xlane.f32.xlu0 %v5746
        %v5748 = vpop.xlane.xlu0 %5747
        %v5749 = vmax.f32 %v5599, %v5601
        %5750 = vmax.xlane.f32.xlu0 %v5749
        %v5751 = vpop.xlane.xlu0 %5750
        %v5752 = vmax.f32 %v5603, %v5605
        %5753 = vmax.xlane.f32.xlu0 %v5752
        %v5754 = vpop.xlane.xlu0 %5753
        %v5755 = vmax.f32 %v5609, %v5611
        %5756 = vmax.xlane.f32.xlu0 %v5755
        %v5757 = vpop.xlane.xlu0 %5756
        %v5758 = vmax.f32 %v5613, %v5615
        %5759 = vmax.xlane.f32.xlu0 %v5758
        %v5760 = vpop.xlane.xlu0 %5759
        %v5761 = vmax.f32 %v5619, %v5621
        %5762 = vmax.xlane.f32.xlu0 %v5761
        %v5763 = vpop.xlane.xlu0 %5762
        %v5764 = vmax.f32 %v5623, %v5625
        %5765 = vmax.xlane.f32.xlu0 %v5764
        %v5766 = vpop.xlane.xlu0 %5765
        %v5767 = vmax.f32 %v5629, %v5631
        %5768 = vmax.xlane.f32.xlu0 %v5767
        %v5769 = vpop.xlane.xlu0 %5768
        %v5770 = vmax.f32 %v5633, %v5635
        %5771 = vmax.xlane.f32.xlu0 %v5770
        %v5772 = vpop.xlane.xlu0 %5771
        %v5773 = vmax.f32 %v5639, %v5641
        %5774 = vmax.xlane.f32.xlu0 %v5773
        %v5775 = vpop.xlane.xlu0 %5774
        %v5776 = vmax.f32 %v5643, %v5645
        %5777 = vmax.xlane.f32.xlu0 %v5776
        %v5778 = vpop.xlane.xlu0 %5777
        %v5779 = vmax.f32 %v5649, %v5651
        %5780 = vmax.xlane.f32.xlu0 %v5779
        %v5781 = vpop.xlane.xlu0 %5780
        %v5782 = vmax.f32 %v5653, %v5655
        %5783 = vmax.xlane.f32.xlu0 %v5782
        %v5784 = vpop.xlane.xlu0 %5783
        %v5785 = vmax.f32 %v5659, %v5661
        %5786 = vmax.xlane.f32.xlu0 %v5785
        %v5787 = vpop.xlane.xlu0 %5786
        %v5788 = vmax.f32 %v5663, %v5665
        %5789 = vmax.xlane.f32.xlu0 %v5788
        %v5790 = vpop.xlane.xlu0 %5789
        %v5791 = vmax.f32 %v5669, %v5671
        %5792 = vmax.xlane.f32.xlu0 %v5791
        %v5793 = vpop.xlane.xlu0 %5792
        %v5794 = vmax.f32 %v5673, %v5675
        %5795 = vmax.xlane.f32.xlu0 %v5794
        %v5796 = vpop.xlane.xlu0 %5795
        %v5797 = vmax.f32 %v5679, %v5681
        %5798 = vmax.xlane.f32.xlu0 %v5797
        %v5799 = vpop.xlane.xlu0 %5798
        %v5800 = vmax.f32 %v5683, %v5685
        %5801 = vmax.xlane.f32.xlu0 %v5800
        %v5802 = vpop.xlane.xlu0 %5801
        %v5803 = vmax.f32 %v5689, %v5691
        %5804 = vmax.xlane.f32.xlu0 %v5803
        %v5805 = vpop.xlane.xlu0 %5804
        %v5806 = vmax.f32 %v5693, %v5695
        %5807 = vmax.xlane.f32.xlu0 %v5806
        %v5808 = vpop.xlane.xlu0 %5807
        %v5809 = vmax.f32 %v5699, %v5701
        %5810 = vmax.xlane.f32.xlu0 %v5809
        %v5811 = vpop.xlane.xlu0 %5810
        %v5812 = vmax.f32 %v5703, %v5705
        %5813 = vmax.xlane.f32.xlu0 %v5812
        %v5814 = vpop.xlane.xlu0 %5813
        %v5815 = vmax.f32 %v5709, %v5711
        %5816 = vmax.xlane.f32.xlu0 %v5815
        %v5817 = vpop.xlane.xlu0 %5816
        %v5818 = vmax.f32 %v5713, %v5715
        %5819 = vmax.xlane.f32.xlu0 %v5818
        %v5820 = vpop.xlane.xlu0 %5819
        %v5821 = vmax.f32 %v5719, %v5721
        %5822 = vmax.xlane.f32.xlu0 %v5821
        %v5823 = vpop.xlane.xlu0 %5822
        %v5824 = vmax.f32 %v5723, %v5725
        %5825 = vmax.xlane.f32.xlu0 %v5824
        %v5826 = vpop.xlane.xlu0 %5825
        %v5827 = vmax.f32 %v5729, %v5731
        %5828 = vmax.xlane.f32.xlu0 %v5827
        %v5829 = vpop.xlane.xlu0 %5828
        %v5830 = vmax.f32 %v5733, %v5735
        %5831 = vmax.xlane.f32.xlu0 %v5830
        %v5832 = vpop.xlane.xlu0 %5831
        %v5833 = vsub.f32 %v5579, %v5739
        %v5834 = vsub.f32 %v5581, %v5739
        %v5835 = vsub.f32 %v5583, %v5742
        %v5836 = vsub.f32 %v5585, %v5742
        %v5837 = vsub.f32 %v5589, %v5745
        %v5838 = vsub.f32 %v5591, %v5745
        %v5839 = vsub.f32 %v5593, %v5748
        %v5840 = vsub.f32 %v5595, %v5748
        %v5841 = vsub.f32 %v5599, %v5751
        %v5842 = vsub.f32 %v5601, %v5751
        %v5843 = vsub.f32 %v5603, %v5754
        %v5844 = vsub.f32 %v5605, %v5754
        %v5845 = vsub.f32 %v5609, %v5757
        %v5846 = vsub.f32 %v5611, %v5757
        %v5847 = vsub.f32 %v5613, %v5760
        %v5848 = vsub.f32 %v5615, %v5760
        %v5849 = vsub.f32 %v5619, %v5763
        %v5850 = vsub.f32 %v5621, %v5763
        %v5851 = vsub.f32 %v5623, %v5766
        %v5852 = vsub.f32 %v5625, %v5766
        %v5853 = vsub.f32 %v5629, %v5769
        %v5854 = vsub.f32 %v5631, %v5769
        %v5855 = vsub.f32 %v5633, %v5772
        %v5856 = vsub.f32 %v5635, %v5772
        %v5857 = vsub.f32 %v5639, %v5775
        %v5858 = vsub.f32 %v5641, %v5775
        %v5859 = vsub.f32 %v5643, %v5778
        %v5860 = vsub.f32 %v5645, %v5778
        %v5861 = vsub.f32 %v5649, %v5781
        %v5862 = vsub.f32 %v5651, %v5781
        %v5863 = vsub.f32 %v5653, %v5784
        %v5864 = vsub.f32 %v5655, %v5784
        %v5865 = vsub.f32 %v5659, %v5787
        %v5866 = vsub.f32 %v5661, %v5787
        %v5867 = vsub.f32 %v5663, %v5790
        %v5868 = vsub.f32 %v5665, %v5790
        %v5869 = vsub.f32 %v5669, %v5793
        %v5870 = vsub.f32 %v5671, %v5793
        %v5871 = vsub.f32 %v5673, %v5796
        %v5872 = vsub.f32 %v5675, %v5796
        %v5873 = vsub.f32 %v5679, %v5799
        %v5874 = vsub.f32 %v5681, %v5799
        %v5875 = vsub.f32 %v5683, %v5802
        %v5876 = vsub.f32 %v5685, %v5802
        %v5877 = vsub.f32 %v5689, %v5805
        %v5878 = vsub.f32 %v5691, %v5805
        %v5879 = vsub.f32 %v5693, %v5808
        %v5880 = vsub.f32 %v5695, %v5808
        %v5881 = vsub.f32 %v5699, %v5811
        %v5882 = vsub.f32 %v5701, %v5811
        %v5883 = vsub.f32 %v5703, %v5814
        %v5884 = vsub.f32 %v5705, %v5814
        %v5885 = vsub.f32 %v5709, %v5817
        %v5886 = vsub.f32 %v5711, %v5817
        %v5887 = vsub.f32 %v5713, %v5820
        %v5888 = vsub.f32 %v5715, %v5820
        %v5889 = vsub.f32 %v5719, %v5823
        %v5890 = vsub.f32 %v5721, %v5823
        %v5891 = vsub.f32 %v5723, %v5826
        %v5892 = vsub.f32 %v5725, %v5826
        %v5893 = vsub.f32 %v5729, %v5829
        %v5894 = vsub.f32 %v5731, %v5829
        %v5895 = vsub.f32 %v5733, %v5832
        %v5896 = vsub.f32 %v5735, %v5832
        %v5897 = vmul.f32 %v5833, 1.442695
        %v5898 = vpow.pop %v5897
        %v5899 = vmul.f32 %v5834, 1.442695
        %v5900 = vpow.pop %v5899
        %v5901 = vmul.f32 %v5835, 1.442695
        %v5902 = vpow.pop %v5901
        %v5903 = vmul.f32 %v5836, 1.442695
        %v5904 = vpow.pop %v5903
        %v5905 = vmul.f32 %v5837, 1.442695
        %v5906 = vpow.pop %v5905
        %v5907 = vmul.f32 %v5838, 1.442695
        %v5908 = vpow.pop %v5907
        %v5909 = vmul.f32 %v5839, 1.442695
        %v5910 = vpow.pop %v5909
        %v5911 = vmul.f32 %v5840, 1.442695
        %v5912 = vpow.pop %v5911
        %v5913 = vmul.f32 %v5841, 1.442695
        %v5914 = vpow.pop %v5913
        %v5915 = vmul.f32 %v5842, 1.442695
        %v5916 = vpow.pop %v5915
        %v5917 = vmul.f32 %v5843, 1.442695
        %v5918 = vpow.pop %v5917
        %v5919 = vmul.f32 %v5844, 1.442695
        %v5920 = vpow.pop %v5919
        %v5921 = vmul.f32 %v5845, 1.442695
        %v5922 = vpow.pop %v5921
        %v5923 = vmul.f32 %v5846, 1.442695
        %v5924 = vpow.pop %v5923
        %v5925 = vmul.f32 %v5847, 1.442695
        %v5926 = vpow.pop %v5925
        %v5927 = vmul.f32 %v5848, 1.442695
        %v5928 = vpow.pop %v5927
        %v5929 = vmul.f32 %v5849, 1.442695
        %v5930 = vpow.pop %v5929
        %v5931 = vmul.f32 %v5850, 1.442695
        %v5932 = vpow.pop %v5931
        %v5933 = vmul.f32 %v5851, 1.442695
        %v5934 = vpow.pop %v5933
        %v5935 = vmul.f32 %v5852, 1.442695
        %v5936 = vpow.pop %v5935
        %v5937 = vmul.f32 %v5853, 1.442695
        %v5938 = vpow.pop %v5937
        %v5939 = vmul.f32 %v5854, 1.442695
        %v5940 = vpow.pop %v5939
        %v5941 = vmul.f32 %v5855, 1.442695
        %v5942 = vpow.pop %v5941
        %v5943 = vmul.f32 %v5856, 1.442695
        %v5944 = vpow.pop %v5943
        %v5945 = vmul.f32 %v5857, 1.442695
        %v5946 = vpow.pop %v5945
        %v5947 = vmul.f32 %v5858, 1.442695
        %v5948 = vpow.pop %v5947
        %v5949 = vmul.f32 %v5859, 1.442695
        %v5950 = vpow.pop %v5949
        %v5951 = vmul.f32 %v5860, 1.442695
        %v5952 = vpow.pop %v5951
        %v5953 = vmul.f32 %v5861, 1.442695
        %v5954 = vpow.pop %v5953
        %v5955 = vmul.f32 %v5862, 1.442695
        %v5956 = vpow.pop %v5955
        %v5957 = vmul.f32 %v5863, 1.442695
        %v5958 = vpow.pop %v5957
        %v5959 = vmul.f32 %v5864, 1.442695
        %v5960 = vpow.pop %v5959
        %v5961 = vmul.f32 %v5865, 1.442695
        %v5962 = vpow.pop %v5961
        %v5963 = vmul.f32 %v5866, 1.442695
        %v5964 = vpow.pop %v5963
        %v5965 = vmul.f32 %v5867, 1.442695
        %v5966 = vpow.pop %v5965
        %v5967 = vmul.f32 %v5868, 1.442695
        %v5968 = vpow.pop %v5967
        %v5969 = vmul.f32 %v5869, 1.442695
        %v5970 = vpow.pop %v5969
        %v5971 = vmul.f32 %v5870, 1.442695
        %v5972 = vpow.pop %v5971
        %v5973 = vmul.f32 %v5871, 1.442695
        %v5974 = vpow.pop %v5973
        %v5975 = vmul.f32 %v5872, 1.442695
        %v5976 = vpow.pop %v5975
        %v5977 = vmul.f32 %v5873, 1.442695
        %v5978 = vpow.pop %v5977
        %v5979 = vmul.f32 %v5874, 1.442695
        %v5980 = vpow.pop %v5979
        %v5981 = vmul.f32 %v5875, 1.442695
        %v5982 = vpow.pop %v5981
        %v5983 = vmul.f32 %v5876, 1.442695
        %v5984 = vpow.pop %v5983
        %v5985 = vmul.f32 %v5877, 1.442695
        %v5986 = vpow.pop %v5985
        %v5987 = vmul.f32 %v5878, 1.442695
        %v5988 = vpow.pop %v5987
        %v5989 = vmul.f32 %v5879, 1.442695
        %v5990 = vpow.pop %v5989
        %v5991 = vmul.f32 %v5880, 1.442695
        %v5992 = vpow.pop %v5991
        %v5993 = vmul.f32 %v5881, 1.442695
        %v5994 = vpow.pop %v5993
        %v5995 = vmul.f32 %v5882, 1.442695
        %v5996 = vpow.pop %v5995
        %v5997 = vmul.f32 %v5883, 1.442695
        %v5998 = vpow.pop %v5997
        %v5999 = vmul.f32 %v5884, 1.442695
        %v6000 = vpow.pop %v5999
        %v6001 = vmul.f32 %v5885, 1.442695
        %v6002 = vpow.pop %v6001
        %v6003 = vmul.f32 %v5886, 1.442695
        %v6004 = vpow.pop %v6003
        %v6005 = vmul.f32 %v5887, 1.442695
        %v6006 = vpow.pop %v6005
        %v6007 = vmul.f32 %v5888, 1.442695
        %v6008 = vpow.pop %v6007
        %v6009 = vmul.f32 %v5889, 1.442695
        %v6010 = vpow.pop %v6009
        %v6011 = vmul.f32 %v5890, 1.442695
        %v6012 = vpow.pop %v6011
        %v6013 = vmul.f32 %v5891, 1.442695
        %v6014 = vpow.pop %v6013
        %v6015 = vmul.f32 %v5892, 1.442695
        %v6016 = vpow.pop %v6015
        %v6017 = vmul.f32 %v5893, 1.442695
        %v6018 = vpow.pop %v6017
        %v6019 = vmul.f32 %v5894, 1.442695
        %v6020 = vpow.pop %v6019
        %v6021 = vmul.f32 %v5895, 1.442695
        %v6022 = vpow.pop %v6021
        %v6023 = vmul.f32 %v5896, 1.442695
        %v6024 = vpow.pop %v6023
        %v6025 = vadd.f32 %v5898, %v5900
        %6026 = vadd.xlane.f32.xlu0 %v6025
        %v6027 = vpop.xlane.xlu0 %6026
        %v6028 = vadd.f32 %v5902, %v5904
        %6029 = vadd.xlane.f32.xlu0 %v6028
        %v6030 = vpop.xlane.xlu0 %6029
        %v6031 = vadd.f32 %v5906, %v5908
        %6032 = vadd.xlane.f32.xlu0 %v6031
        %v6033 = vpop.xlane.xlu0 %6032
        %v6034 = vadd.f32 %v5910, %v5912
        %6035 = vadd.xlane.f32.xlu0 %v6034
        %v6036 = vpop.xlane.xlu0 %6035
        %v6037 = vadd.f32 %v5914, %v5916
        %6038 = vadd.xlane.f32.xlu0 %v6037
        %v6039 = vpop.xlane.xlu0 %6038
        %v6040 = vadd.f32 %v5918, %v5920
        %6041 = vadd.xlane.f32.xlu0 %v6040
        %v6042 = vpop.xlane.xlu0 %6041
        %v6043 = vadd.f32 %v5922, %v5924
        %6044 = vadd.xlane.f32.xlu0 %v6043
        %v6045 = vpop.xlane.xlu0 %6044
        %v6046 = vadd.f32 %v5926, %v5928
        %6047 = vadd.xlane.f32.xlu0 %v6046
        %v6048 = vpop.xlane.xlu0 %6047
        %v6049 = vadd.f32 %v5930, %v5932
        %6050 = vadd.xlane.f32.xlu0 %v6049
        %v6051 = vpop.xlane.xlu0 %6050
        %v6052 = vadd.f32 %v5934, %v5936
        %6053 = vadd.xlane.f32.xlu0 %v6052
        %v6054 = vpop.xlane.xlu0 %6053
        %v6055 = vadd.f32 %v5938, %v5940
        %6056 = vadd.xlane.f32.xlu0 %v6055
        %v6057 = vpop.xlane.xlu0 %6056
        %v6058 = vadd.f32 %v5942, %v5944
        %6059 = vadd.xlane.f32.xlu0 %v6058
        %v6060 = vpop.xlane.xlu0 %6059
        %v6061 = vadd.f32 %v5946, %v5948
        %6062 = vadd.xlane.f32.xlu0 %v6061
        %v6063 = vpop.xlane.xlu0 %6062
        %v6064 = vadd.f32 %v5950, %v5952
        %6065 = vadd.xlane.f32.xlu0 %v6064
        %v6066 = vpop.xlane.xlu0 %6065
        %v6067 = vadd.f32 %v5954, %v5956
        %6068 = vadd.xlane.f32.xlu0 %v6067
        %v6069 = vpop.xlane.xlu0 %6068
        %v6070 = vadd.f32 %v5958, %v5960
        %6071 = vadd.xlane.f32.xlu0 %v6070
        %v6072 = vpop.xlane.xlu0 %6071
        %v6073 = vadd.f32 %v5962, %v5964
        %6074 = vadd.xlane.f32.xlu0 %v6073
        %v6075 = vpop.xlane.xlu0 %6074
        %v6076 = vadd.f32 %v5966, %v5968
        %6077 = vadd.xlane.f32.xlu0 %v6076
        %v6078 = vpop.xlane.xlu0 %6077
        %v6079 = vadd.f32 %v5970, %v5972
        %6080 = vadd.xlane.f32.xlu0 %v6079
        %v6081 = vpop.xlane.xlu0 %6080
        %v6082 = vadd.f32 %v5974, %v5976
        %6083 = vadd.xlane.f32.xlu0 %v6082
        %v6084 = vpop.xlane.xlu0 %6083
        %v6085 = vadd.f32 %v5978, %v5980
        %6086 = vadd.xlane.f32.xlu0 %v6085
        %v6087 = vpop.xlane.xlu0 %6086
        %v6088 = vadd.f32 %v5982, %v5984
        %6089 = vadd.xlane.f32.xlu0 %v6088
        %v6090 = vpop.xlane.xlu0 %6089
        %v6091 = vadd.f32 %v5986, %v5988
        %6092 = vadd.xlane.f32.xlu0 %v6091
        %v6093 = vpop.xlane.xlu0 %6092
        %v6094 = vadd.f32 %v5990, %v5992
        %6095 = vadd.xlane.f32.xlu0 %v6094
        %v6096 = vpop.xlane.xlu0 %6095
        %v6097 = vadd.f32 %v5994, %v5996
        %6098 = vadd.xlane.f32.xlu0 %v6097
        %v6099 = vpop.xlane.xlu0 %6098
        %v6100 = vadd.f32 %v5998, %v6000
        %6101 = vadd.xlane.f32.xlu0 %v6100
        %v6102 = vpop.xlane.xlu0 %6101
        %v6103 = vadd.f32 %v6002, %v6004
        %6104 = vadd.xlane.f32.xlu0 %v6103
        %v6105 = vpop.xlane.xlu0 %6104
        %v6106 = vadd.f32 %v6006, %v6008
        %6107 = vadd.xlane.f32.xlu0 %v6106
        %v6108 = vpop.xlane.xlu0 %6107
        %v6109 = vadd.f32 %v6010, %v6012
        %6110 = vadd.xlane.f32.xlu0 %v6109
        %v6111 = vpop.xlane.xlu0 %6110
        %v6112 = vadd.f32 %v6014, %v6016
        %6113 = vadd.xlane.f32.xlu0 %v6112
        %v6114 = vpop.xlane.xlu0 %6113
        %v6115 = vadd.f32 %v6018, %v6020
        %6116 = vadd.xlane.f32.xlu0 %v6115
        %v6117 = vpop.xlane.xlu0 %6116
        %v6118 = vadd.f32 %v6022, %v6024
        %6119 = vadd.xlane.f32.xlu0 %v6118
        %v6120 = vpop.xlane.xlu0 %6119
        %v6121 = vrcp.pop %v6027
        %v6122 = vrcp.pop %v6030
        %v6123 = vrcp.pop %v6033
        %v6124 = vrcp.pop %v6036
        %v6125 = vrcp.pop %v6039
        %v6126 = vrcp.pop %v6042
        %v6127 = vrcp.pop %v6045
        %v6128 = vrcp.pop %v6048
        %v6129 = vrcp.pop %v6051
        %v6130 = vrcp.pop %v6054
        %v6131 = vrcp.pop %v6057
        %v6132 = vrcp.pop %v6060
        %v6133 = vrcp.pop %v6063
        %v6134 = vrcp.pop %v6066
        %v6135 = vrcp.pop %v6069
        %v6136 = vrcp.pop %v6072
        %v6137 = vrcp.pop %v6075
        %v6138 = vrcp.pop %v6078
        %v6139 = vrcp.pop %v6081
        %v6140 = vrcp.pop %v6084
        %v6141 = vrcp.pop %v6087
        %v6142 = vrcp.pop %v6090
        %v6143 = vrcp.pop %v6093
        %v6144 = vrcp.pop %v6096
        %v6145 = vrcp.pop %v6099
        %v6146 = vrcp.pop %v6102
        %v6147 = vrcp.pop %v6105
        %v6148 = vrcp.pop %v6108
        %v6149 = vrcp.pop %v6111
        %v6150 = vrcp.pop %v6114
        %v6151 = vrcp.pop %v6117
        %v6152 = vrcp.pop %v6120
        %v6153 = vpack.c.bf16 %v5902, %v5898
        %v6154 = vpack.c.bf16 %v5904, %v5900
        %v6155 = vpack.c.bf16 %v5910, %v5906
        %v6156 = vpack.c.bf16 %v5912, %v5908
        %v6157 = vpack.c.bf16 %v5918, %v5914
        %v6158 = vpack.c.bf16 %v5920, %v5916
        %v6159 = vpack.c.bf16 %v5926, %v5922
        %v6160 = vpack.c.bf16 %v5928, %v5924
        %v6161 = vpack.c.bf16 %v5934, %v5930
        %v6162 = vpack.c.bf16 %v5936, %v5932
        %v6163 = vpack.c.bf16 %v5942, %v5938
        %v6164 = vpack.c.bf16 %v5944, %v5940
        %v6165 = vpack.c.bf16 %v5950, %v5946
        %v6166 = vpack.c.bf16 %v5952, %v5948
        %v6167 = vpack.c.bf16 %v5958, %v5954
        %v6168 = vpack.c.bf16 %v5960, %v5956
        %v6169 = vpack.c.bf16 %v5966, %v5962
        %v6170 = vpack.c.bf16 %v5968, %v5964
        %v6171 = vpack.c.bf16 %v5974, %v5970
        %v6172 = vpack.c.bf16 %v5976, %v5972
        %v6173 = vpack.c.bf16 %v5982, %v5978
        %v6174 = vpack.c.bf16 %v5984, %v5980
        %v6175 = vpack.c.bf16 %v5990, %v5986
        %v6176 = vpack.c.bf16 %v5992, %v5988
        %v6177 = vpack.c.bf16 %v5998, %v5994
        %v6178 = vpack.c.bf16 %v6000, %v5996
        %v6179 = vpack.c.bf16 %v6006, %v6002
        %v6180 = vpack.c.bf16 %v6008, %v6004
        %v6181 = vpack.c.bf16 %v6014, %v6010
        %v6182 = vpack.c.bf16 %v6016, %v6012
        %v6183 = vpack.c.bf16 %v6022, %v6018
        %v6184 = vpack.c.bf16 %v6024, %v6020
        %6185 = vrot.lane.b32.xlu0 %v2049, 32
        %v6186 = vpop.permute.xlu0 %6185
        %6187 = vrot.lane.b32.xlu0 %v2052, 32
        %v6188 = vpop.permute.xlu0 %6187
        %6189 = vrot.lane.b32.xlu0 %v2055, 32
        %v6190 = vpop.permute.xlu0 %6189
        %6191 = vrot.lane.b32.xlu0 %v2058, 32
        %v6192 = vpop.permute.xlu0 %6191
        %6193 = vrot.lane.b32.xlu0 %v2061, 32
        %v6194 = vpop.permute.xlu0 %6193
        %6195 = vrot.lane.b32.xlu0 %v2064, 32
        %v6196 = vpop.permute.xlu0 %6195
        %6197 = vrot.lane.b32.xlu0 %v2067, 32
        %v6198 = vpop.permute.xlu0 %6197
        %6199 = vrot.lane.b32.xlu0 %v2070, 32
        %v6200 = vpop.permute.xlu0 %6199
        %6201 = vrot.lane.b32.xlu0 %v2073, 32
        %v6202 = vpop.permute.xlu0 %6201
        %6203 = vrot.lane.b32.xlu0 %v2076, 32
        %v6204 = vpop.permute.xlu0 %6203
        %6205 = vrot.lane.b32.xlu0 %v2079, 32
        %v6206 = vpop.permute.xlu0 %6205
        %6207 = vrot.lane.b32.xlu0 %v2082, 32
        %v6208 = vpop.permute.xlu0 %6207
        %6209 = vrot.lane.b32.xlu0 %v2085, 32
        %v6210 = vpop.permute.xlu0 %6209
        %6211 = vrot.lane.b32.xlu0 %v2088, 32
        %v6212 = vpop.permute.xlu0 %6211
        %6213 = vrot.lane.b32.xlu0 %v2091, 32
        %v6214 = vpop.permute.xlu0 %6213
        %6215 = vrot.lane.b32.xlu0 %v2094, 32
        %v6216 = vpop.permute.xlu0 %6215
        %6233 = vmatprep.subr.bf16.mxu0 0
        %6234 = vmatpush1.bf16.msra.mxu0 %v6186
        %6235 = vmatprep.subr.bf16.mxu0 0
        %6236 = vmatpush1.bf16.msra.mxu0 %v6188
        %6237 = vmatprep.subr.bf16.mxu0 0
        %6238 = vmatpush1.bf16.msra.mxu0 %v6190
        %6239 = vmatprep.subr.bf16.mxu0 0
        %6240 = vmatpush1.bf16.msra.mxu0 %v6192
        %6241 = vmatprep.subr.bf16.mxu0 0
        %6242 = vmatpush1.bf16.msra.mxu0 %v6194
        %6243 = vmatprep.subr.bf16.mxu0 0
        %6244 = vmatpush1.bf16.msra.mxu0 %v6196
        %6245 = vmatprep.subr.bf16.mxu0 0
        %6246 = vmatpush1.bf16.msra.mxu0 %v6198
        %6247 = vmatprep.subr.bf16.mxu0 0
        %6248 = vmatpush1.bf16.msra.mxu0 %v6200
        %6249 = vmatprep.subr.bf16.mxu0 0
        %6250 = vmatpush1.bf16.msra.mxu0 %v6202
        %6251 = vmatprep.subr.bf16.mxu0 0
        %6252 = vmatpush1.bf16.msra.mxu0 %v6204
        %6253 = vmatprep.subr.bf16.mxu0 0
        %6254 = vmatpush1.bf16.msra.mxu0 %v6206
        %6255 = vmatprep.subr.bf16.mxu0 0
        %6256 = vmatpush1.bf16.msra.mxu0 %v6208
        %6257 = vmatprep.subr.bf16.mxu0 0
        %6258 = vmatpush1.bf16.msra.mxu0 %v6210
        %6259 = vmatprep.subr.bf16.mxu0 0
        %6260 = vmatpush1.bf16.msra.mxu0 %v6212
        %6261 = vmatprep.subr.bf16.mxu0 0
        %6262 = vmatpush1.bf16.msra.mxu0 %v6214
        %6263 = vmatprep.subr.bf16.mxu0 0
        %6264 = vmatpush1.bf16.msra.mxu0 %v6216
        %6265 = vmatprep.mubr.bf16.mxu0 %v6154
        %6266 = vmatmul.mubr.bf16.gmra.mrb[0].mxu0 %v6153
        %v6267 = vpop.f32.mrb[0].mxu0
        %v6268 = vadd.f32 0.0, %v6267
        %v6269 = vpop.f32.mrb[0].mxu0
        %v6270 = vpop.f32.mrb[0].mxu0
        %v6271 = vadd.f32 0.0, %v6270
        %v6272 = vpop.f32.mrb[0].mxu0
        %6273 = vmatprep.mubr.bf16.mxu0 %v6156
        %6274 = vmatmul.mubr.bf16.gmra.mrb[0].mxu0 %v6155
        %v6275 = vpop.f32.mrb[0].mxu0
        %v6276 = vadd.f32 0.0, %v6275
        %v6277 = vpop.f32.mrb[0].mxu0
        %v6278 = vpop.f32.mrb[0].mxu0
        %v6279 = vadd.f32 0.0, %v6278
        %v6280 = vpop.f32.mrb[0].mxu0
        %6281 = vmatprep.mubr.bf16.mxu0 %v6158
        %6282 = vmatmul.mubr.bf16.gmra.mrb[0].mxu0 %v6157
        %v6283 = vpop.f32.mrb[0].mxu0
        %v6284 = vadd.f32 0.0, %v6283
        %v6285 = vpop.f32.mrb[0].mxu0
        %v6286 = vpop.f32.mrb[0].mxu0
        %v6287 = vadd.f32 0.0, %v6286
        %v6288 = vpop.f32.mrb[0].mxu0
        %6289 = vmatprep.mubr.bf16.mxu0 %v6160
        %6290 = vmatmul.mubr.bf16.gmra.mrb[0].mxu0 %v6159
        %v6291 = vpop.f32.mrb[0].mxu0
        %v6292 = vadd.f32 0.0, %v6291
        %v6293 = vpop.f32.mrb[0].mxu0
        %v6294 = vpop.f32.mrb[0].mxu0
        %v6295 = vadd.f32 0.0, %v6294
        %v6296 = vpop.f32.mrb[0].mxu0
        %6297 = vmatprep.mubr.bf16.mxu0 %v6162
        %6298 = vmatmul.mubr.bf16.gmra.mrb[0].mxu0 %v6161
        %v6299 = vpop.f32.mrb[0].mxu0
        %v6300 = vadd.f32 0.0, %v6299
        %v6301 = vpop.f32.mrb[0].mxu0
        %v6302 = vpop.f32.mrb[0].mxu0
        %v6303 = vadd.f32 0.0, %v6302
        %v6304 = vpop.f32.mrb[0].mxu0
        %6305 = vmatprep.mubr.bf16.mxu0 %v6164
        %6306 = vmatmul.mubr.bf16.gmra.mrb[0].mxu0 %v6163
        %v6307 = vpop.f32.mrb[0].mxu0
        %v6308 = vadd.f32 0.0, %v6307
        %v6309 = vpop.f32.mrb[0].mxu0
        %v6310 = vpop.f32.mrb[0].mxu0
        %v6311 = vadd.f32 0.0, %v6310
        %v6312 = vpop.f32.mrb[0].mxu0
        %6313 = vmatprep.mubr.bf16.mxu0 %v6166
        %6314 = vmatmul.mubr.bf16.gmra.mrb[0].mxu0 %v6165
        %v6315 = vpop.f32.mrb[0].mxu0
        %v6316 = vadd.f32 0.0, %v6315
        %v6317 = vpop.f32.mrb[0].mxu0
        %v6318 = vpop.f32.mrb[0].mxu0
        %v6319 = vadd.f32 0.0, %v6318
        %v6320 = vpop.f32.mrb[0].mxu0
        %6321 = vmatprep.mubr.bf16.mxu0 %v6168
        %6322 = vmatmul.mubr.bf16.gmra.mrb[0].mxu0 %v6167
        %v6323 = vpop.f32.mrb[0].mxu0
        %v6324 = vadd.f32 0.0, %v6323
        %v6325 = vpop.f32.mrb[0].mxu0
        %v6326 = vpop.f32.mrb[0].mxu0
        %v6327 = vadd.f32 0.0, %v6326
        %v6328 = vpop.f32.mrb[0].mxu0
        %6329 = vmatprep.mubr.bf16.mxu0 %v6170
        %6330 = vmatmul.mubr.bf16.gmra.mrb[0].mxu0 %v6169
        %v6331 = vpop.f32.mrb[0].mxu0
        %v6332 = vadd.f32 0.0, %v6331
        %v6333 = vpop.f32.mrb[0].mxu0
        %v6334 = vpop.f32.mrb[0].mxu0
        %v6335 = vadd.f32 0.0, %v6334
        %v6336 = vpop.f32.mrb[0].mxu0
        %6337 = vmatprep.mubr.bf16.mxu0 %v6172
        %6338 = vmatmul.mubr.bf16.gmra.mrb[0].mxu0 %v6171
        %v6339 = vpop.f32.mrb[0].mxu0
        %v6340 = vadd.f32 0.0, %v6339
        %v6341 = vpop.f32.mrb[0].mxu0
        %v6342 = vpop.f32.mrb[0].mxu0
        %v6343 = vadd.f32 0.0, %v6342
        %v6344 = vpop.f32.mrb[0].mxu0
        %6345 = vmatprep.mubr.bf16.mxu0 %v6174
        %6346 = vmatmul.mubr.bf16.gmra.mrb[0].mxu0 %v6173
        %v6347 = vpop.f32.mrb[0].mxu0
        %v6348 = vadd.f32 0.0, %v6347
        %v6349 = vpop.f32.mrb[0].mxu0
        %v6350 = vpop.f32.mrb[0].mxu0
        %v6351 = vadd.f32 0.0, %v6350
        %v6352 = vpop.f32.mrb[0].mxu0
        %6353 = vmatprep.mubr.bf16.mxu0 %v6176
        %6354 = vmatmul.mubr.bf16.gmra.mrb[0].mxu0 %v6175
        %v6355 = vpop.f32.mrb[0].mxu0
        %v6356 = vadd.f32 0.0, %v6355
        %v6357 = vpop.f32.mrb[0].mxu0
        %v6358 = vpop.f32.mrb[0].mxu0
        %v6359 = vadd.f32 0.0, %v6358
        %v6360 = vpop.f32.mrb[0].mxu0
        %6361 = vmatprep.mubr.bf16.mxu0 %v6178
        %6362 = vmatmul.mubr.bf16.gmra.mrb[0].mxu0 %v6177
        %v6363 = vpop.f32.mrb[0].mxu0
        %v6364 = vadd.f32 0.0, %v6363
        %v6365 = vpop.f32.mrb[0].mxu0
        %v6366 = vpop.f32.mrb[0].mxu0
        %v6367 = vadd.f32 0.0, %v6366
        %v6368 = vpop.f32.mrb[0].mxu0
        %6369 = vmatprep.mubr.bf16.mxu0 %v6180
        %6370 = vmatmul.mubr.bf16.gmra.mrb[0].mxu0 %v6179
        %v6371 = vpop.f32.mrb[0].mxu0
        %v6372 = vadd.f32 0.0, %v6371
        %v6373 = vpop.f32.mrb[0].mxu0
        %v6374 = vpop.f32.mrb[0].mxu0
        %v6375 = vadd.f32 0.0, %v6374
        %v6376 = vpop.f32.mrb[0].mxu0
        %6377 = vmatprep.mubr.bf16.mxu0 %v6182
        %6378 = vmatmul.mubr.bf16.gmra.mrb[0].mxu0 %v6181
        %v6379 = vpop.f32.mrb[0].mxu0
        %v6380 = vadd.f32 0.0, %v6379
        %v6381 = vpop.f32.mrb[0].mxu0
        %v6382 = vpop.f32.mrb[0].mxu0
        %v6383 = vadd.f32 0.0, %v6382
        %v6384 = vpop.f32.mrb[0].mxu0
        %6385 = vmatprep.mubr.bf16.mxu0 %v6184
        %6386 = vmatmul.mubr.bf16.gmra.mrb[0].mxu0 %v6183
        %v6387 = vpop.f32.mrb[0].mxu0
        %v6388 = vadd.f32 0.0, %v6387
        %v6389 = vpop.f32.mrb[0].mxu0
        %v6390 = vpop.f32.mrb[0].mxu0
        %v6391 = vadd.f32 0.0, %v6390
        %v6392 = vpop.f32.mrb[0].mxu0
        %6393 = vdwg.mxu0
        %v6394 = vmul.f32 %v6268, %v6121
        %v6395 = vmul.f32 %v6271, %v6122
        %v6396 = vmul.f32 %v6276, %v6123
        %v6397 = vmul.f32 %v6279, %v6124
        %v6398 = vmul.f32 %v6284, %v6125
        %v6399 = vmul.f32 %v6287, %v6126
        %v6400 = vmul.f32 %v6292, %v6127
        %v6401 = vmul.f32 %v6295, %v6128
        %v6402 = vmul.f32 %v6300, %v6129
        %v6403 = vmul.f32 %v6303, %v6130
        %v6404 = vmul.f32 %v6308, %v6131
        %v6405 = vmul.f32 %v6311, %v6132
        %v6406 = vmul.f32 %v6316, %v6133
        %v6407 = vmul.f32 %v6319, %v6134
        %v6408 = vmul.f32 %v6324, %v6135
        %v6409 = vmul.f32 %v6327, %v6136
        %v6410 = vmul.f32 %v6332, %v6137
        %v6411 = vmul.f32 %v6335, %v6138
        %v6412 = vmul.f32 %v6340, %v6139
        %v6413 = vmul.f32 %v6343, %v6140
        %v6414 = vmul.f32 %v6348, %v6141
        %v6415 = vmul.f32 %v6351, %v6142
        %v6416 = vmul.f32 %v6356, %v6143
        %v6417 = vmul.f32 %v6359, %v6144
        %v6418 = vmul.f32 %v6364, %v6145
        %v6419 = vmul.f32 %v6367, %v6146
        %v6420 = vmul.f32 %v6372, %v6147
        %v6421 = vmul.f32 %v6375, %v6148
        %v6422 = vmul.f32 %v6380, %v6149
        %v6423 = vmul.f32 %v6383, %v6150
        %v6424 = vmul.f32 %v6388, %v6151
        %v6425 = vmul.f32 %v6391, %v6152
        %v6426 = vpack.c.bf16 %v6395, %v6394
        %v6427 = vpack.c.bf16 %v6397, %v6396
        %v6428 = vpack.c.bf16 %v6399, %v6398
        %v6429 = vpack.c.bf16 %v6401, %v6400
        %v6430 = vpack.c.bf16 %v6403, %v6402
        %v6431 = vpack.c.bf16 %v6405, %v6404
        %v6432 = vpack.c.bf16 %v6407, %v6406
        %v6433 = vpack.c.bf16 %v6409, %v6408
        %v6434 = vpack.c.bf16 %v6411, %v6410
        %v6435 = vpack.c.bf16 %v6413, %v6412
        %v6436 = vpack.c.bf16 %v6415, %v6414
        %v6437 = vpack.c.bf16 %v6417, %v6416
        %v6438 = vpack.c.bf16 %v6419, %v6418
        %v6439 = vpack.c.bf16 %v6421, %v6420
        %v6440 = vpack.c.bf16 %v6423, %v6422
        %v6441 = vpack.c.bf16 %v6425, %v6424
        %6458 = vrot.lane.b32.xlu0 %v6426, 96
        %v6459 = vpop.permute.xlu0 %6458
        %6460 = vrot.lane.b32.xlu0 %v6427, 96
        %v6461 = vpop.permute.xlu0 %6460
        %6462 = vrot.lane.b32.xlu0 %v6428, 96
        %v6463 = vpop.permute.xlu0 %6462
        %6464 = vrot.lane.b32.xlu0 %v6429, 96
        %v6465 = vpop.permute.xlu0 %6464
        %6466 = vrot.lane.b32.xlu0 %v6430, 96
        %v6467 = vpop.permute.xlu0 %6466
        %6468 = vrot.lane.b32.xlu0 %v6431, 96
        %v6469 = vpop.permute.xlu0 %6468
        %6470 = vrot.lane.b32.xlu0 %v6432, 96
        %v6471 = vpop.permute.xlu0 %6470
        %6472 = vrot.lane.b32.xlu0 %v6433, 96
        %v6473 = vpop.permute.xlu0 %6472
        %6474 = vrot.lane.b32.xlu0 %v6434, 96
        %v6475 = vpop.permute.xlu0 %6474
        %6476 = vrot.lane.b32.xlu0 %v6435, 96
        %v6477 = vpop.permute.xlu0 %6476
        %6478 = vrot.lane.b32.xlu0 %v6436, 96
        %v6479 = vpop.permute.xlu0 %6478
        %6480 = vrot.lane.b32.xlu0 %v6437, 96
        %v6481 = vpop.permute.xlu0 %6480
        %6482 = vrot.lane.b32.xlu0 %v6438, 96
        %v6483 = vpop.permute.xlu0 %6482
        %6484 = vrot.lane.b32.xlu0 %v6439, 96
        %v6485 = vpop.permute.xlu0 %6484
        %6486 = vrot.lane.b32.xlu0 %v6440, 96
        %v6487 = vpop.permute.xlu0 %6486
        %6488 = vrot.lane.b32.xlu0 %v6441, 96
        %v6489 = vpop.permute.xlu0 %6488
        %vm6506 = vcmask 1048320
        %6507 = vst.msk [vmem:[#allocation3] sm:$0xff] %vm6506, %v6459
        %6508 = vst.msk [vmem:[#allocation3 + $0x8] sm:$0xff] %vm6506, %v6461
        %6509 = vst.msk [vmem:[#allocation3 + $0x10] sm:$0xff] %vm6506, %v6463
        %6510 = vst.msk [vmem:[#allocation3 + $0x18] sm:$0xff] %vm6506, %v6465
        %6511 = vst.msk [vmem:[#allocation3 + $0x20] sm:$0xff] %vm6506, %v6467
        %6512 = vst.msk [vmem:[#allocation3 + $0x28] sm:$0xff] %vm6506, %v6469
        %6513 = vst.msk [vmem:[#allocation3 + $0x30] sm:$0xff] %vm6506, %v6471
        %6514 = vst.msk [vmem:[#allocation3 + $0x38] sm:$0xff] %vm6506, %v6473
        %6515 = vst.msk [vmem:[#allocation3 + $0x40] sm:$0xff] %vm6506, %v6475
        %6516 = vst.msk [vmem:[#allocation3 + $0x48] sm:$0xff] %vm6506, %v6477
        %6517 = vst.msk [vmem:[#allocation3 + $0x50] sm:$0xff] %vm6506, %v6479
        %6518 = vst.msk [vmem:[#allocation3 + $0x58] sm:$0xff] %vm6506, %v6481
        %6519 = vst.msk [vmem:[#allocation3 + $0x60] sm:$0xff] %vm6506, %v6483
        %6520 = vst.msk [vmem:[#allocation3 + $0x68] sm:$0xff] %vm6506, %v6485
        %6521 = vst.msk [vmem:[#allocation3 + $0x70] sm:$0xff] %vm6506, %v6487
        %6522 = vst.msk [vmem:[#allocation3 + $0x78] sm:$0xff] %vm6506, %v6489
        %v6523 = vld [vmem:[#allocation3] sm:$0xff]
        %v6524 = vld [vmem:[#allocation3 + $0x8] sm:$0xff]
        %v6525 = vld [vmem:[#allocation3 + $0x10] sm:$0xff]
        %v6526 = vld [vmem:[#allocation3 + $0x18] sm:$0xff]
        %v6527 = vld [vmem:[#allocation3 + $0x20] sm:$0xff]
        %v6528 = vld [vmem:[#allocation3 + $0x28] sm:$0xff]
        %v6529 = vld [vmem:[#allocation3 + $0x30] sm:$0xff]
        %v6530 = vld [vmem:[#allocation3 + $0x38] sm:$0xff]
        %v6531 = vld [vmem:[#allocation3 + $0x40] sm:$0xff]
        %v6532 = vld [vmem:[#allocation3 + $0x48] sm:$0xff]
        %v6533 = vld [vmem:[#allocation3 + $0x50] sm:$0xff]
        %v6534 = vld [vmem:[#allocation3 + $0x58] sm:$0xff]
        %v6535 = vld [vmem:[#allocation3 + $0x60] sm:$0xff]
        %v6536 = vld [vmem:[#allocation3 + $0x68] sm:$0xff]
        %v6537 = vld [vmem:[#allocation3 + $0x70] sm:$0xff]
        %v6538 = vld [vmem:[#allocation3 + $0x78] sm:$0xff]
        %v6539 = vld [vmem:[%s492] sm:$0xf]
        %v6540 = vld [vmem:[%s492 + $0x4] sm:$0xf]
        %v6541 = vld [vmem:[%s492 + $0x8] sm:$0xf]
        %v6542 = vld [vmem:[%s492 + $0xc] sm:$0xf]
        %v6543 = vld [vmem:[%s492 + $0x10] sm:$0xf]
        %v6544 = vld [vmem:[%s492 + $0x14] sm:$0xf]
        %v6545 = vld [vmem:[%s492 + $0x18] sm:$0xf]
        %v6546 = vld [vmem:[%s492 + $0x1c] sm:$0xf]
        %v6547 = vld [vmem:[%s492 + $0x20] sm:$0xf]
        %v6548 = vld [vmem:[%s492 + $0x24] sm:$0xf]
        %v6549 = vld [vmem:[%s492 + $0x28] sm:$0xf]
        %v6550 = vld [vmem:[%s492 + $0x2c] sm:$0xf]
        %v6551 = vld [vmem:[%s492 + $0x30] sm:$0xf]
        %v6552 = vld [vmem:[%s492 + $0x34] sm:$0xf]
        %v6553 = vld [vmem:[%s492 + $0x38] sm:$0xf]
        %v6554 = vld [vmem:[%s492 + $0x3c] sm:$0xf]
        %v6571 = vunpack.c.l.b16 %v6539
        %v6572 = vunpack.c.l.b16 %v6540
        %v6573 = vunpack.c.l.b16 %v6541
        %v6574 = vunpack.c.l.b16 %v6542
        %v6575 = vunpack.c.l.b16 %v6543
        %v6576 = vunpack.c.l.b16 %v6544
        %v6577 = vunpack.c.l.b16 %v6545
        %v6578 = vunpack.c.l.b16 %v6546
        %v6579 = vunpack.c.l.b16 %v6547
        %v6580 = vunpack.c.l.b16 %v6548
        %v6581 = vunpack.c.l.b16 %v6549
        %v6582 = vunpack.c.l.b16 %v6550
        %v6583 = vunpack.c.l.b16 %v6551
        %v6584 = vunpack.c.l.b16 %v6552
        %v6585 = vunpack.c.l.b16 %v6553
        %v6586 = vunpack.c.l.b16 %v6554
        %v6587 = vpack.c.b16 %v6572, %v6571
        %v6588 = vpack.c.b16 %v6574, %v6573
        %v6589 = vpack.c.b16 %v6576, %v6575
        %v6590 = vpack.c.b16 %v6578, %v6577
        %v6591 = vpack.c.b16 %v6580, %v6579
        %v6592 = vpack.c.b16 %v6582, %v6581
        %v6593 = vpack.c.b16 %v6584, %v6583
        %v6594 = vpack.c.b16 %v6586, %v6585
        %6603 = vmatprep.subr.bf16.mxu0 0
        %6604 = vmatpush1.bf16.msra.mxu0 %v6587
        %6605 = vmatprep.subr.bf16.mxu0 0
        %6606 = vmatpush1.bf16.msra.mxu0 %v6588
        %6607 = vmatprep.subr.bf16.mxu0 0
        %6608 = vmatpush1.bf16.msra.mxu0 %v6589
        %6609 = vmatprep.subr.bf16.mxu0 0
        %6610 = vmatpush1.bf16.msra.mxu0 %v6590
        %6611 = vmatprep.subr.bf16.mxu0 0
        %6612 = vmatpush1.bf16.msra.mxu0 %v6591
        %6613 = vmatprep.subr.bf16.mxu0 0
        %6614 = vmatpush1.bf16.msra.mxu0 %v6592
        %6615 = vmatprep.subr.bf16.mxu0 0
        %6616 = vmatpush1.bf16.msra.mxu0 %v6593
        %6617 = vmatprep.subr.bf16.mxu0 0
        %6618 = vmatpush1.bf16.msra.mxu0 %v6594
        %6619 = vmatprep.subr.bf16.mxu0 0
        %6620 = vmatpush1.bf16.msra.mxu0 0
        %6621 = vmatprep.subr.bf16.mxu0 0
        %6622 = vmatpush1.bf16.msra.mxu0 0
        %6623 = vmatprep.subr.bf16.mxu0 0
        %6624 = vmatpush1.bf16.msra.mxu0 0
        %6625 = vmatprep.subr.bf16.mxu0 0
        %6626 = vmatpush1.bf16.msra.mxu0 0
        %6627 = vmatprep.subr.bf16.mxu0 0
        %6628 = vmatpush1.bf16.msra.mxu0 0
        %6629 = vmatprep.subr.bf16.mxu0 0
        %6630 = vmatpush1.bf16.msra.mxu0 0
        %6631 = vmatprep.subr.bf16.mxu0 0
        %6632 = vmatpush1.bf16.msra.mxu0 0
        %6633 = vmatprep.subr.bf16.mxu0 0
        %6634 = vmatpush1.bf16.msra.mxu0 0
        %6635 = vmatprep.mubr.bf16.mxu0 0
        %6636 = vmatmul.mubr.bf16.gmra.mrb[0].mxu0 %v6523
        %v6637 = vpop.f32.mrb[0].mxu0
        %v6638 = vadd.f32 0.0, %v6637
        %v6639 = vpop.f32.mrb[0].mxu0
        %v6640 = vpop.f32.mrb[0].mxu0
        %v6641 = vadd.f32 0.0, %v6640
        %v6642 = vpop.f32.mrb[0].mxu0
        %6643 = vmatprep.mubr.bf16.mxu0 0
        %6644 = vmatmul.mubr.bf16.gmra.mrb[0].mxu0 %v6524
        %v6645 = vpop.f32.mrb[0].mxu0
        %v6646 = vadd.f32 0.0, %v6645
        %v6647 = vpop.f32.mrb[0].mxu0
        %v6648 = vpop.f32.mrb[0].mxu0
        %v6649 = vadd.f32 0.0, %v6648
        %v6650 = vpop.f32.mrb[0].mxu0
        %6651 = vmatprep.mubr.bf16.mxu0 0
        %6652 = vmatmul.mubr.bf16.gmra.mrb[0].mxu0 %v6525
        %v6653 = vpop.f32.mrb[0].mxu0
        %v6654 = vadd.f32 0.0, %v6653
        %v6655 = vpop.f32.mrb[0].mxu0
        %v6656 = vpop.f32.mrb[0].mxu0
        %v6657 = vadd.f32 0.0, %v6656
        %v6658 = vpop.f32.mrb[0].mxu0
        %6659 = vmatprep.mubr.bf16.mxu0 0
        %6660 = vmatmul.mubr.bf16.gmra.mrb[0].mxu0 %v6526
        %v6661 = vpop.f32.mrb[0].mxu0
        %v6662 = vadd.f32 0.0, %v6661
        %v6663 = vpop.f32.mrb[0].mxu0
        %v6664 = vpop.f32.mrb[0].mxu0
        %v6665 = vadd.f32 0.0, %v6664
        %v6666 = vpop.f32.mrb[0].mxu0
        %6667 = vmatprep.mubr.bf16.mxu0 0
        %6668 = vmatmul.mubr.bf16.gmra.mrb[0].mxu0 %v6527
        %v6669 = vpop.f32.mrb[0].mxu0
        %v6670 = vadd.f32 0.0, %v6669
        %v6671 = vpop.f32.mrb[0].mxu0
        %v6672 = vpop.f32.mrb[0].mxu0
        %v6673 = vadd.f32 0.0, %v6672
        %v6674 = vpop.f32.mrb[0].mxu0
        %6675 = vmatprep.mubr.bf16.mxu0 0
        %6676 = vmatmul.mubr.bf16.gmra.mrb[0].mxu0 %v6528
        %v6677 = vpop.f32.mrb[0].mxu0
        %v6678 = vadd.f32 0.0, %v6677
        %v6679 = vpop.f32.mrb[0].mxu0
        %v6680 = vpop.f32.mrb[0].mxu0
        %v6681 = vadd.f32 0.0, %v6680
        %v6682 = vpop.f32.mrb[0].mxu0
        %6683 = vmatprep.mubr.bf16.mxu0 0
        %6684 = vmatmul.mubr.bf16.gmra.mrb[0].mxu0 %v6529
        %v6685 = vpop.f32.mrb[0].mxu0
        %v6686 = vadd.f32 0.0, %v6685
        %v6687 = vpop.f32.mrb[0].mxu0
        %v6688 = vpop.f32.mrb[0].mxu0
        %v6689 = vadd.f32 0.0, %v6688
        %v6690 = vpop.f32.mrb[0].mxu0
        %6691 = vmatprep.mubr.bf16.mxu0 0
        %6692 = vmatmul.mubr.bf16.gmra.mrb[0].mxu0 %v6530
        %v6693 = vpop.f32.mrb[0].mxu0
        %v6694 = vadd.f32 0.0, %v6693
        %v6695 = vpop.f32.mrb[0].mxu0
        %v6696 = vpop.f32.mrb[0].mxu0
        %v6697 = vadd.f32 0.0, %v6696
        %v6698 = vpop.f32.mrb[0].mxu0
        %6699 = vmatprep.mubr.bf16.mxu0 0
        %6700 = vmatmul.mubr.bf16.gmra.mrb[0].mxu0 %v6531
        %v6701 = vpop.f32.mrb[0].mxu0
        %v6702 = vadd.f32 0.0, %v6701
        %v6703 = vpop.f32.mrb[0].mxu0
        %v6704 = vpop.f32.mrb[0].mxu0
        %v6705 = vadd.f32 0.0, %v6704
        %v6706 = vpop.f32.mrb[0].mxu0
        %6707 = vmatprep.mubr.bf16.mxu0 0
        %6708 = vmatmul.mubr.bf16.gmra.mrb[0].mxu0 %v6532
        %v6709 = vpop.f32.mrb[0].mxu0
        %v6710 = vadd.f32 0.0, %v6709
        %v6711 = vpop.f32.mrb[0].mxu0
        %v6712 = vpop.f32.mrb[0].mxu0
        %v6713 = vadd.f32 0.0, %v6712
        %v6714 = vpop.f32.mrb[0].mxu0
        %6715 = vmatprep.mubr.bf16.mxu0 0
        %6716 = vmatmul.mubr.bf16.gmra.mrb[0].mxu0 %v6533
        %v6717 = vpop.f32.mrb[0].mxu0
        %v6718 = vadd.f32 0.0, %v6717
        %v6719 = vpop.f32.mrb[0].mxu0
        %v6720 = vpop.f32.mrb[0].mxu0
        %v6721 = vadd.f32 0.0, %v6720
        %v6722 = vpop.f32.mrb[0].mxu0
        %6723 = vmatprep.mubr.bf16.mxu0 0
        %6724 = vmatmul.mubr.bf16.gmra.mrb[0].mxu0 %v6534
        %v6725 = vpop.f32.mrb[0].mxu0
        %v6726 = vadd.f32 0.0, %v6725
        %v6727 = vpop.f32.mrb[0].mxu0
        %v6728 = vpop.f32.mrb[0].mxu0
        %v6729 = vadd.f32 0.0, %v6728
        %v6730 = vpop.f32.mrb[0].mxu0
        %6731 = vmatprep.mubr.bf16.mxu0 0
        %6732 = vmatmul.mubr.bf16.gmra.mrb[0].mxu0 %v6535
        %v6733 = vpop.f32.mrb[0].mxu0
        %v6734 = vadd.f32 0.0, %v6733
        %v6735 = vpop.f32.mrb[0].mxu0
        %v6736 = vpop.f32.mrb[0].mxu0
        %v6737 = vadd.f32 0.0, %v6736
        %v6738 = vpop.f32.mrb[0].mxu0
        %6739 = vmatprep.mubr.bf16.mxu0 0
        %6740 = vmatmul.mubr.bf16.gmra.mrb[0].mxu0 %v6536
        %v6741 = vpop.f32.mrb[0].mxu0
        %v6742 = vadd.f32 0.0, %v6741
        %v6743 = vpop.f32.mrb[0].mxu0
        %v6744 = vpop.f32.mrb[0].mxu0
        %v6745 = vadd.f32 0.0, %v6744
        %v6746 = vpop.f32.mrb[0].mxu0
        %6747 = vmatprep.mubr.bf16.mxu0 0
        %6748 = vmatmul.mubr.bf16.gmra.mrb[0].mxu0 %v6537
        %v6749 = vpop.f32.mrb[0].mxu0
        %v6750 = vadd.f32 0.0, %v6749
        %v6751 = vpop.f32.mrb[0].mxu0
        %v6752 = vpop.f32.mrb[0].mxu0
        %v6753 = vadd.f32 0.0, %v6752
        %v6754 = vpop.f32.mrb[0].mxu0
        %6755 = vmatprep.mubr.bf16.mxu0 0
        %6756 = vmatmul.mubr.bf16.gmra.mrb[0].mxu0 %v6538
        %v6757 = vpop.f32.mrb[0].mxu0
        %v6758 = vadd.f32 0.0, %v6757
        %v6759 = vpop.f32.mrb[0].mxu0
        %v6760 = vpop.f32.mrb[0].mxu0
        %v6761 = vadd.f32 0.0, %v6760
        %v6762 = vpop.f32.mrb[0].mxu0
        %6763 = vdwg.mxu0
        %v6764 = vadd.f32 %v1468, %v6638
        %v6765 = vadd.f32 %v1469, %v6641
        %v6766 = vadd.f32 %v1470, %v6646
        %v6767 = vadd.f32 %v1471, %v6649
        %v6768 = vadd.f32 %v1472, %v6654
        %v6769 = vadd.f32 %v1473, %v6657
        %v6770 = vadd.f32 %v1474, %v6662
        %v6771 = vadd.f32 %v1475, %v6665
        %v6772 = vadd.f32 %v1476, %v6670
        %v6773 = vadd.f32 %v1477, %v6673
        %v6774 = vadd.f32 %v1478, %v6678
        %v6775 = vadd.f32 %v1479, %v6681
        %v6776 = vadd.f32 %v1480, %v6686
        %v6777 = vadd.f32 %v1481, %v6689
        %v6778 = vadd.f32 %v1482, %v6694
        %v6779 = vadd.f32 %v1483, %v6697
        %v6780 = vadd.f32 %v1484, %v6702
        %v6781 = vadd.f32 %v1485, %v6705
        %v6782 = vadd.f32 %v1486, %v6710
        %v6783 = vadd.f32 %v1487, %v6713
        %v6784 = vadd.f32 %v1488, %v6718
        %v6785 = vadd.f32 %v1489, %v6721
        %v6786 = vadd.f32 %v1490, %v6726
        %v6787 = vadd.f32 %v1491, %v6729
        %v6788 = vadd.f32 %v1492, %v6734
        %v6789 = vadd.f32 %v1493, %v6737
        %v6790 = vadd.f32 %v1494, %v6742
        %v6791 = vadd.f32 %v1495, %v6745
        %v6792 = vadd.f32 %v1496, %v6750
        %v6793 = vadd.f32 %v1497, %v6753
        %v6794 = vadd.f32 %v1498, %v6758
        %v6795 = vadd.f32 %v1499, %v6761
        %v6796 = vld [vmem:[%s566] sm:$0x1]
        %v6798 = vlaneseq
        %v6799 = vshrl.u32 %v6798, 7
        %v6800 = vsub.s32 0, %v6799
        %v6801 = vrot.slane %v6796, %v6800
        %v6803 = vadd.f32 %v6764, %v6801
        %v6804 = vadd.f32 %v6765, %v6801
        %v6805 = vadd.f32 %v6766, %v6801
        %v6806 = vadd.f32 %v6767, %v6801
        %v6807 = vadd.f32 %v6768, %v6801
        %v6808 = vadd.f32 %v6769, %v6801
        %v6809 = vadd.f32 %v6770, %v6801
        %v6810 = vadd.f32 %v6771, %v6801
        %v6811 = vadd.f32 %v6772, %v6801
        %v6812 = vadd.f32 %v6773, %v6801
        %v6813 = vadd.f32 %v6774, %v6801
        %v6814 = vadd.f32 %v6775, %v6801
        %v6815 = vadd.f32 %v6776, %v6801
        %v6816 = vadd.f32 %v6777, %v6801
        %v6817 = vadd.f32 %v6778, %v6801
        %v6818 = vadd.f32 %v6779, %v6801
        %v6819 = vadd.f32 %v6780, %v6801
        %v6820 = vadd.f32 %v6781, %v6801
        %v6821 = vadd.f32 %v6782, %v6801
        %v6822 = vadd.f32 %v6783, %v6801
        %v6823 = vadd.f32 %v6784, %v6801
        %v6824 = vadd.f32 %v6785, %v6801
        %v6825 = vadd.f32 %v6786, %v6801
        %v6826 = vadd.f32 %v6787, %v6801
        %v6827 = vadd.f32 %v6788, %v6801
        %v6828 = vadd.f32 %v6789, %v6801
        %v6829 = vadd.f32 %v6790, %v6801
        %v6830 = vadd.f32 %v6791, %v6801
        %v6831 = vadd.f32 %v6792, %v6801
        %v6832 = vadd.f32 %v6793, %v6801
        %v6833 = vadd.f32 %v6794, %v6801
        %v6834 = vadd.f32 %v6795, %v6801
        %v6835 = vpack.c.bf16 %v6804, %v6803
        %v6836 = vpack.c.bf16 %v6806, %v6805
        %v6837 = vpack.c.bf16 %v6808, %v6807
        %v6838 = vpack.c.bf16 %v6810, %v6809
        %v6839 = vpack.c.bf16 %v6812, %v6811
        %v6840 = vpack.c.bf16 %v6814, %v6813
        %v6841 = vpack.c.bf16 %v6816, %v6815
        %v6842 = vpack.c.bf16 %v6818, %v6817
        %v6843 = vpack.c.bf16 %v6820, %v6819
        %v6844 = vpack.c.bf16 %v6822, %v6821
        %v6845 = vpack.c.bf16 %v6824, %v6823
        %v6846 = vpack.c.bf16 %v6826, %v6825
        %v6847 = vpack.c.bf16 %v6828, %v6827
        %v6848 = vpack.c.bf16 %v6830, %v6829
        %v6849 = vpack.c.bf16 %v6832, %v6831
        %v6850 = vpack.c.bf16 %v6834, %v6833
        %v6851 = vld [vmem:[%s501] sm:$0xf]
        %v6852 = vld [vmem:[%s501 + $0x4] sm:$0xf]
        %v6853 = vld [vmem:[%s501 + $0x8] sm:$0xf]
        %v6854 = vld [vmem:[%s501 + $0xc] sm:$0xf]
        %v6855 = vld [vmem:[%s501 + $0x10] sm:$0xf]
        %v6856 = vld [vmem:[%s501 + $0x14] sm:$0xf]
        %v6857 = vld [vmem:[%s501 + $0x18] sm:$0xf]
        %v6858 = vld [vmem:[%s501 + $0x1c] sm:$0xf]
        %v6859 = vld [vmem:[%s501 + $0x20] sm:$0xf]
        %v6860 = vld [vmem:[%s501 + $0x24] sm:$0xf]
        %v6861 = vld [vmem:[%s501 + $0x28] sm:$0xf]
        %v6862 = vld [vmem:[%s501 + $0x2c] sm:$0xf]
        %v6863 = vld [vmem:[%s501 + $0x30] sm:$0xf]
        %v6864 = vld [vmem:[%s501 + $0x34] sm:$0xf]
        %v6865 = vld [vmem:[%s501 + $0x38] sm:$0xf]
        %v6866 = vld [vmem:[%s501 + $0x3c] sm:$0xf]
        %v6883 = vunpack.c.l.b16 %v6851
        %v6884 = vunpack.c.l.b16 %v6852
        %v6885 = vunpack.c.l.b16 %v6853
        %v6886 = vunpack.c.l.b16 %v6854
        %v6887 = vunpack.c.l.b16 %v6855
        %v6888 = vunpack.c.l.b16 %v6856
        %v6889 = vunpack.c.l.b16 %v6857
        %v6890 = vunpack.c.l.b16 %v6858
        %v6891 = vunpack.c.l.b16 %v6859
        %v6892 = vunpack.c.l.b16 %v6860
        %v6893 = vunpack.c.l.b16 %v6861
        %v6894 = vunpack.c.l.b16 %v6862
        %v6895 = vunpack.c.l.b16 %v6863
        %v6896 = vunpack.c.l.b16 %v6864
        %v6897 = vunpack.c.l.b16 %v6865
        %v6898 = vunpack.c.l.b16 %v6866
        %v6899 = vpack.c.b16 %v6884, %v6883
        %v6900 = vpack.c.b16 %v6886, %v6885
        %v6901 = vpack.c.b16 %v6888, %v6887
        %v6902 = vpack.c.b16 %v6890, %v6889
        %v6903 = vpack.c.b16 %v6892, %v6891
        %v6904 = vpack.c.b16 %v6894, %v6893
        %v6905 = vpack.c.b16 %v6896, %v6895
        %v6906 = vpack.c.b16 %v6898, %v6897
        %6915 = vmatprep.subr.bf16.mxu0 0
        %6916 = vmatpush1.bf16.msra.mxu0 %v6899
        %6917 = vmatprep.subr.bf16.mxu0 0
        %6918 = vmatpush1.bf16.msra.mxu0 %v6900
        %6919 = vmatprep.subr.bf16.mxu0 0
        %6920 = vmatpush1.bf16.msra.mxu0 %v6901
        %6921 = vmatprep.subr.bf16.mxu0 0
        %6922 = vmatpush1.bf16.msra.mxu0 %v6902
        %6923 = vmatprep.subr.bf16.mxu0 0
        %6924 = vmatpush1.bf16.msra.mxu0 %v6903
        %6925 = vmatprep.subr.bf16.mxu0 0
        %6926 = vmatpush1.bf16.msra.mxu0 %v6904
        %6927 = vmatprep.subr.bf16.mxu0 0
        %6928 = vmatpush1.bf16.msra.mxu0 %v6905
        %6929 = vmatprep.subr.bf16.mxu0 0
        %6930 = vmatpush1.bf16.msra.mxu0 %v6906
        %6931 = vmatprep.subr.bf16.mxu0 0
        %6932 = vmatpush1.bf16.msra.mxu0 0
        %6933 = vmatprep.subr.bf16.mxu0 0
        %6934 = vmatpush1.bf16.msra.mxu0 0
        %6935 = vmatprep.subr.bf16.mxu0 0
        %6936 = vmatpush1.bf16.msra.mxu0 0
        %6937 = vmatprep.subr.bf16.mxu0 0
        %6938 = vmatpush1.bf16.msra.mxu0 0
        %6939 = vmatprep.subr.bf16.mxu0 0
        %6940 = vmatpush1.bf16.msra.mxu0 0
        %6941 = vmatprep.subr.bf16.mxu0 0
        %6942 = vmatpush1.bf16.msra.mxu0 0
        %6943 = vmatprep.subr.bf16.mxu0 0
        %6944 = vmatpush1.bf16.msra.mxu0 0
        %6945 = vmatprep.subr.bf16.mxu0 0
        %6946 = vmatpush1.bf16.msra.mxu0 0
        %6947 = vmatprep.mubr.bf16.mxu0 0
        %6948 = vmatmul.mubr.bf16.gmra.mrb[0].mxu0 %v6835
        %v6949 = vpop.f32.mrb[0].mxu0
        %v6950 = vadd.f32 0.0, %v6949
        %v6951 = vpop.f32.mrb[0].mxu0
        %v6952 = vpop.f32.mrb[0].mxu0
        %v6953 = vadd.f32 0.0, %v6952
        %v6954 = vpop.f32.mrb[0].mxu0
        %6955 = vmatprep.mubr.bf16.mxu0 0
        %6956 = vmatmul.mubr.bf16.gmra.mrb[0].mxu0 %v6836
        %v6957 = vpop.f32.mrb[0].mxu0
        %v6958 = vadd.f32 0.0, %v6957
        %v6959 = vpop.f32.mrb[0].mxu0
        %v6960 = vpop.f32.mrb[0].mxu0
        %v6961 = vadd.f32 0.0, %v6960
        %v6962 = vpop.f32.mrb[0].mxu0
        %6963 = vmatprep.mubr.bf16.mxu0 0
        %6964 = vmatmul.mubr.bf16.gmra.mrb[0].mxu0 %v6837
        %v6965 = vpop.f32.mrb[0].mxu0
        %v6966 = vadd.f32 0.0, %v6965
        %v6967 = vpop.f32.mrb[0].mxu0
        %v6968 = vpop.f32.mrb[0].mxu0
        %v6969 = vadd.f32 0.0, %v6968
        %v6970 = vpop.f32.mrb[0].mxu0
        %6971 = vmatprep.mubr.bf16.mxu0 0
        %6972 = vmatmul.mubr.bf16.gmra.mrb[0].mxu0 %v6838
        %v6973 = vpop.f32.mrb[0].mxu0
        %v6974 = vadd.f32 0.0, %v6973
        %v6975 = vpop.f32.mrb[0].mxu0
        %v6976 = vpop.f32.mrb[0].mxu0
        %v6977 = vadd.f32 0.0, %v6976
        %v6978 = vpop.f32.mrb[0].mxu0
        %6979 = vmatprep.mubr.bf16.mxu0 0
        %6980 = vmatmul.mubr.bf16.gmra.mrb[0].mxu0 %v6839
        %v6981 = vpop.f32.mrb[0].mxu0
        %v6982 = vadd.f32 0.0, %v6981
        %v6983 = vpop.f32.mrb[0].mxu0
        %v6984 = vpop.f32.mrb[0].mxu0
        %v6985 = vadd.f32 0.0, %v6984
        %v6986 = vpop.f32.mrb[0].mxu0
        %6987 = vmatprep.mubr.bf16.mxu0 0
        %6988 = vmatmul.mubr.bf16.gmra.mrb[0].mxu0 %v6840
        %v6989 = vpop.f32.mrb[0].mxu0
        %v6990 = vadd.f32 0.0, %v6989
        %v6991 = vpop.f32.mrb[0].mxu0
        %v6992 = vpop.f32.mrb[0].mxu0
        %v6993 = vadd.f32 0.0, %v6992
        %v6994 = vpop.f32.mrb[0].mxu0
        %6995 = vmatprep.mubr.bf16.mxu0 0
        %6996 = vmatmul.mubr.bf16.gmra.mrb[0].mxu0 %v6841
        %v6997 = vpop.f32.mrb[0].mxu0
        %v6998 = vadd.f32 0.0, %v6997
        %v6999 = vpop.f32.mrb[0].mxu0
        %v7000 = vpop.f32.mrb[0].mxu0
        %v7001 = vadd.f32 0.0, %v7000
        %v7002 = vpop.f32.mrb[0].mxu0
        %7003 = vmatprep.mubr.bf16.mxu0 0
        %7004 = vmatmul.mubr.bf16.gmra.mrb[0].mxu0 %v6842
        %v7005 = vpop.f32.mrb[0].mxu0
        %v7006 = vadd.f32 0.0, %v7005
        %v7007 = vpop.f32.mrb[0].mxu0
        %v7008 = vpop.f32.mrb[0].mxu0
        %v7009 = vadd.f32 0.0, %v7008
        %v7010 = vpop.f32.mrb[0].mxu0
        %7011 = vmatprep.mubr.bf16.mxu0 0
        %7012 = vmatmul.mubr.bf16.gmra.mrb[0].mxu0 %v6843
        %v7013 = vpop.f32.mrb[0].mxu0
        %v7014 = vadd.f32 0.0, %v7013
        %v7015 = vpop.f32.mrb[0].mxu0
        %v7016 = vpop.f32.mrb[0].mxu0
        %v7017 = vadd.f32 0.0, %v7016
        %v7018 = vpop.f32.mrb[0].mxu0
        %7019 = vmatprep.mubr.bf16.mxu0 0
        %7020 = vmatmul.mubr.bf16.gmra.mrb[0].mxu0 %v6844
        %v7021 = vpop.f32.mrb[0].mxu0
        %v7022 = vadd.f32 0.0, %v7021
        %v7023 = vpop.f32.mrb[0].mxu0
        %v7024 = vpop.f32.mrb[0].mxu0
        %v7025 = vadd.f32 0.0, %v7024
        %v7026 = vpop.f32.mrb[0].mxu0
        %7027 = vmatprep.mubr.bf16.mxu0 0
        %7028 = vmatmul.mubr.bf16.gmra.mrb[0].mxu0 %v6845
        %v7029 = vpop.f32.mrb[0].mxu0
        %v7030 = vadd.f32 0.0, %v7029
        %v7031 = vpop.f32.mrb[0].mxu0
        %v7032 = vpop.f32.mrb[0].mxu0
        %v7033 = vadd.f32 0.0, %v7032
        %v7034 = vpop.f32.mrb[0].mxu0
        %7035 = vmatprep.mubr.bf16.mxu0 0
        %7036 = vmatmul.mubr.bf16.gmra.mrb[0].mxu0 %v6846
        %v7037 = vpop.f32.mrb[0].mxu0
        %v7038 = vadd.f32 0.0, %v7037
        %v7039 = vpop.f32.mrb[0].mxu0
        %v7040 = vpop.f32.mrb[0].mxu0
        %v7041 = vadd.f32 0.0, %v7040
        %v7042 = vpop.f32.mrb[0].mxu0
        %7043 = vmatprep.mubr.bf16.mxu0 0
        %7044 = vmatmul.mubr.bf16.gmra.mrb[0].mxu0 %v6847
        %v7045 = vpop.f32.mrb[0].mxu0
        %v7046 = vadd.f32 0.0, %v7045
        %v7047 = vpop.f32.mrb[0].mxu0
        %v7048 = vpop.f32.mrb[0].mxu0
        %v7049 = vadd.f32 0.0, %v7048
        %v7050 = vpop.f32.mrb[0].mxu0
        %7051 = vmatprep.mubr.bf16.mxu0 0
        %7052 = vmatmul.mubr.bf16.gmra.mrb[0].mxu0 %v6848
        %v7053 = vpop.f32.mrb[0].mxu0
        %v7054 = vadd.f32 0.0, %v7053
        %v7055 = vpop.f32.mrb[0].mxu0
        %v7056 = vpop.f32.mrb[0].mxu0
        %v7057 = vadd.f32 0.0, %v7056
        %v7058 = vpop.f32.mrb[0].mxu0
        %7059 = vmatprep.mubr.bf16.mxu0 0
        %7060 = vmatmul.mubr.bf16.gmra.mrb[0].mxu0 %v6849
        %v7061 = vpop.f32.mrb[0].mxu0
        %v7062 = vadd.f32 0.0, %v7061
        %v7063 = vpop.f32.mrb[0].mxu0
        %v7064 = vpop.f32.mrb[0].mxu0
        %v7065 = vadd.f32 0.0, %v7064
        %v7066 = vpop.f32.mrb[0].mxu0
        %7067 = vmatprep.mubr.bf16.mxu0 0
        %7068 = vmatmul.mubr.bf16.gmra.mrb[0].mxu0 %v6850
        %v7069 = vpop.f32.mrb[0].mxu0
        %v7070 = vadd.f32 0.0, %v7069
        %v7071 = vpop.f32.mrb[0].mxu0
        %v7072 = vpop.f32.mrb[0].mxu0
        %v7073 = vadd.f32 0.0, %v7072
        %v7074 = vpop.f32.mrb[0].mxu0
        %7075 = vdwg.mxu0
        %v7076 = vadd.f32 %v6803, %v6950
        %v7077 = vadd.f32 %v6804, %v6953
        %v7078 = vadd.f32 %v6805, %v6958
        %v7079 = vadd.f32 %v6806, %v6961
        %v7080 = vadd.f32 %v6807, %v6966
        %v7081 = vadd.f32 %v6808, %v6969
        %v7082 = vadd.f32 %v6809, %v6974
        %v7083 = vadd.f32 %v6810, %v6977
        %v7084 = vadd.f32 %v6811, %v6982
        %v7085 = vadd.f32 %v6812, %v6985
        %v7086 = vadd.f32 %v6813, %v6990
        %v7087 = vadd.f32 %v6814, %v6993
        %v7088 = vadd.f32 %v6815, %v6998
        %v7089 = vadd.f32 %v6816, %v7001
        %v7090 = vadd.f32 %v6817, %v7006
        %v7091 = vadd.f32 %v6818, %v7009
        %v7092 = vadd.f32 %v6819, %v7014
        %v7093 = vadd.f32 %v6820, %v7017
        %v7094 = vadd.f32 %v6821, %v7022
        %v7095 = vadd.f32 %v6822, %v7025
        %v7096 = vadd.f32 %v6823, %v7030
        %v7097 = vadd.f32 %v6824, %v7033
        %v7098 = vadd.f32 %v6825, %v7038
        %v7099 = vadd.f32 %v6826, %v7041
        %v7100 = vadd.f32 %v6827, %v7046
        %v7101 = vadd.f32 %v6828, %v7049
        %v7102 = vadd.f32 %v6829, %v7054
        %v7103 = vadd.f32 %v6830, %v7057
        %v7104 = vadd.f32 %v6831, %v7062
        %v7105 = vadd.f32 %v6832, %v7065
        %v7106 = vadd.f32 %v6833, %v7070
        %v7107 = vadd.f32 %v6834, %v7073
        %7108 = vst [vmem:[#allocation2] sm:$0xff] %v7076
        %7109 = vst [vmem:[#allocation2 + $0x8] sm:$0xff] %v7077
        %7110 = vst [vmem:[#allocation2 + $0x10] sm:$0xff] %v7078
        %7111 = vst [vmem:[#allocation2 + $0x18] sm:$0xff] %v7079
        %7112 = vst [vmem:[#allocation2 + $0x20] sm:$0xff] %v7080
        %7113 = vst [vmem:[#allocation2 + $0x28] sm:$0xff] %v7081
        %7114 = vst [vmem:[#allocation2 + $0x30] sm:$0xff] %v7082
        %7115 = vst [vmem:[#allocation2 + $0x38] sm:$0xff] %v7083
        %7116 = vst [vmem:[#allocation2 + $0x40] sm:$0xff] %v7084
        %7117 = vst [vmem:[#allocation2 + $0x48] sm:$0xff] %v7085
        %7118 = vst [vmem:[#allocation2 + $0x50] sm:$0xff] %v7086
        %7119 = vst [vmem:[#allocation2 + $0x58] sm:$0xff] %v7087
        %7120 = vst [vmem:[#allocation2 + $0x60] sm:$0xff] %v7088
        %7121 = vst [vmem:[#allocation2 + $0x68] sm:$0xff] %v7089
        %7122 = vst [vmem:[#allocation2 + $0x70] sm:$0xff] %v7090
        %7123 = vst [vmem:[#allocation2 + $0x78] sm:$0xff] %v7091
        %7124 = vst [vmem:[#allocation2 + $0x80] sm:$0xff] %v7092
        %7125 = vst [vmem:[#allocation2 + $0x88] sm:$0xff] %v7093
        %7126 = vst [vmem:[#allocation2 + $0x90] sm:$0xff] %v7094
        %7127 = vst [vmem:[#allocation2 + $0x98] sm:$0xff] %v7095
        %7128 = vst [vmem:[#allocation2 + $0xa0] sm:$0xff] %v7096
        %7129 = vst [vmem:[#allocation2 + $0xa8] sm:$0xff] %v7097
        %7130 = vst [vmem:[#allocation2 + $0xb0] sm:$0xff] %v7098
        %7131 = vst [vmem:[#allocation2 + $0xb8] sm:$0xff] %v7099
        %7132 = vst [vmem:[#allocation2 + $0xc0] sm:$0xff] %v7100
        %7133 = vst [vmem:[#allocation2 + $0xc8] sm:$0xff] %v7101
        %7134 = vst [vmem:[#allocation2 + $0xd0] sm:$0xff] %v7102
        %7135 = vst [vmem:[#allocation2 + $0xd8] sm:$0xff] %v7103
        %7136 = vst [vmem:[#allocation2 + $0xe0] sm:$0xff] %v7104
        %7137 = vst [vmem:[#allocation2 + $0xe8] sm:$0xff] %v7105
        %7138 = vst [vmem:[#allocation2 + $0xf0] sm:$0xff] %v7106
        %7139 = vst [vmem:[#allocation2 + $0xf8] sm:$0xff] %v7107
        %p7140 = scmp.eq.s32.totalorder %s39, 1
        // Predicated region
        $region89: #{tpu_custom_call.1} parent=59 // pred_check
          %p7141 = pneg %p7140
        $region90: #{tpu_custom_call.1} parent=59 // pred_check_branch
          %7143 = sbr.rel (%p7141) target = $region92
        $region91: #{tpu_custom_call.1} parent=59 // pred_region
          %7144 = vst [vmem:[%s559] sm:$0xff] %v7076
          %7145 = vst [vmem:[%s559 + $0x8] sm:$0xff] %v7077
          %7146 = vst [vmem:[%s559 + $0x10] sm:$0xff] %v7078
          %7147 = vst [vmem:[%s559 + $0x18] sm:$0xff] %v7079
          %7148 = vst [vmem:[%s559 + $0x20] sm:$0xff] %v7080
          %7149 = vst [vmem:[%s559 + $0x28] sm:$0xff] %v7081
          %7150 = vst [vmem:[%s559 + $0x30] sm:$0xff] %v7082
          %7151 = vst [vmem:[%s559 + $0x38] sm:$0xff] %v7083
          %7152 = vst [vmem:[%s559 + $0x40] sm:$0xff] %v7084
          %7153 = vst [vmem:[%s559 + $0x48] sm:$0xff] %v7085
          %7154 = vst [vmem:[%s559 + $0x50] sm:$0xff] %v7086
          %7155 = vst [vmem:[%s559 + $0x58] sm:$0xff] %v7087
          %7156 = vst [vmem:[%s559 + $0x60] sm:$0xff] %v7088
          %7157 = vst [vmem:[%s559 + $0x68] sm:$0xff] %v7089
          %7158 = vst [vmem:[%s559 + $0x70] sm:$0xff] %v7090
          %7159 = vst [vmem:[%s559 + $0x78] sm:$0xff] %v7091
          %7160 = vst [vmem:[%s559 + $0x80] sm:$0xff] %v7092
          %7161 = vst [vmem:[%s559 + $0x88] sm:$0xff] %v7093
          %7162 = vst [vmem:[%s559 + $0x90] sm:$0xff] %v7094
          %7163 = vst [vmem:[%s559 + $0x98] sm:$0xff] %v7095
          %7164 = vst [vmem:[%s559 + $0xa0] sm:$0xff] %v7096
          %7165 = vst [vmem:[%s559 + $0xa8] sm:$0xff] %v7097
          %7166 = vst [vmem:[%s559 + $0xb0] sm:$0xff] %v7098
          %7167 = vst [vmem:[%s559 + $0xb8] sm:$0xff] %v7099
          %7168 = vst [vmem:[%s559 + $0xc0] sm:$0xff] %v7100
          %7169 = vst [vmem:[%s559 + $0xc8] sm:$0xff] %v7101
          %7170 = vst [vmem:[%s559 + $0xd0] sm:$0xff] %v7102
          %7171 = vst [vmem:[%s559 + $0xd8] sm:$0xff] %v7103
          %7172 = vst [vmem:[%s559 + $0xe0] sm:$0xff] %v7104
          %7173 = vst [vmem:[%s559 + $0xe8] sm:$0xff] %v7105
          %7174 = vst [vmem:[%s559 + $0xf0] sm:$0xff] %v7106
          %7175 = vst [vmem:[%s559 + $0xf8] sm:$0xff] %v7107
        $region92: #{tpu_custom_call.1} parent=59 // pred_fallthru
          _
        %s7176 = sand.u32 %s294, 1
        %s7177 = scalar_lea.sflag [#allocation6], %s7176
        %s7178 = sand.u32 %s294, 1
        %s7179 = smul.addr %s7178, 256
        %s7180 = scalar_lea.vmem [#allocation15], %s7179
        // Predicated region
        $region93: #{tpu_custom_call.1} parent=59 // pred_check
          %p7181 = pneg %p304
        $region94: #{tpu_custom_call.1} parent=59 // pred_check_branch
          %7183 = sbr.rel (%p7181) target = $region96
        $region95: #{tpu_custom_call.1} parent=59 // pred_region
          %s7185 = ssub.s32 4096, 4096
          %7186 = vsyncadd %s7177, %s7185
          %s7187 = smul.addr %s38, 32
          %s7188 = smul.addr %s7187, 128
          %s7189 = scalar_lea.hbm %s10, %s7188
          %s7190 = sshll.u32 %s7180, 4
          %s7191 = int_to_ptr.vmem [resolvable:$true] %s7190
          %7196 = dma.vmem_to_hbm [thread:$0]  %s7191, 4096, %s7189, %s7177, 128, 128, 8
        $region96: #{tpu_custom_call.1} parent=59 // pred_fallthru
          _
      $region60: #{tpu_custom_call.1} parent=5 // pred_fallthru
        _
      %p7197 = scmp.le.s32.totalorder 2, %s29
      // Predicated region
      $region97: #{tpu_custom_call.1} parent=5 // pred_check
        %p7198 = pneg %p7197
      $region98: #{tpu_custom_call.1} parent=5 // pred_check_branch
        %7200 = sbr.rel (%p7198) target = $region100
      $region99: #{tpu_custom_call.1} parent=5 // pred_region
        %s7201 = ssub.s32 %s29, 2
        // Predicated region
        $region101: #{tpu_custom_call.1} parent=99 // pred_check
          %p7202 = pneg %p310
        $region102: #{tpu_custom_call.1} parent=99 // pred_check_branch
          %7204 = sbr.rel (%p7202) target = $region104
        $region103: #{tpu_custom_call.1} parent=99 // pred_region
          %s7205 = sand.u32 %s295, 1
          %s7206 = scalar_lea.sflag [#allocation6], %s7205
          %s7207 = sand.u32 %s295, 1
          %s7208 = smul.addr %s7207, 256
          %s7209 = scalar_lea.vmem [#allocation15], %s7208
          %7210 = dma.done %s7206, 4096
        $region104: #{tpu_custom_call.1} parent=99 // pred_fallthru
          _
      $region100: #{tpu_custom_call.1} parent=5 // pred_fallthru
        _
    $region6: #{tpu_custom_call.1} parent=1 // loop_footer
      %s33 = sadd.s32 1, %s29
    $region7: #{tpu_custom_call.1} parent=1 // loop_footer_branch
      %28 = sbr.rel target = $region3
    $region8: #{tpu_custom_call.1} parent=1 // loop_exit
      _
    %7211 = vsyncpa [#allocation5], 1
    %s7212 = scalar_lea.sflag [#allocation5], 1
    %7213 = vsyncpa %s7212, 1
    %7214 = vsyncpa [#allocation8], 1
    %7215 = vsyncpa [#allocation11], 1
    %s7216 = scalar_lea.sflag [#allocation11], 1
    %7217 = vsyncpa %s7216, 1
    %7218 = vsyncpa [#allocation14], 1
    %s7219 = scalar_lea.sflag [#allocation14], 1
    %7220 = vsyncpa %s7219, 1
    %7221 = vsyncpa [#allocation6], 1
    %s7222 = scalar_lea.sflag [#allocation6], 1
    %7223 = vsyncpa %s7222, 1

</llo_original>
